<compile_context>
chip_gen: v7x
topology: tpu7x:2x2x1
jax: 0.10.0
libtpu: 0.0.40
codegen_flags: <defaults>
</compile_context>

<pallas_src>
import jax
import jax.numpy as jnp
from jax import lax
from jax.experimental import pallas as pl
from jax.experimental.pallas import tpu as pltpu

# ---- model dims (MuModel.__init__ / mamba_ssm.Mamba(512, 16, 4, 2)) ----
D_IN = 3
D_MODEL = 512
D_STATE = 16
D_CONV = 4
EXPAND = 2
D_INNER = EXPAND * D_MODEL            # 1024
DT_RANK = (D_MODEL + 15) // 16        # 32 = ceil(d_model / 16)
N_OUT = 144
N_PAD = 256                           # lane-dense output width (2 x 128)


def _silu(x):
    return x * (1.0 / (1.0 + jnp.exp(-x)))


def _softplus(x):
    return jnp.where(x > 20.0, x, jnp.log1p(jnp.exp(jnp.minimum(x, 20.0))))


def mu_forward_kernel(x_ref, w0_ref, b0_ref, win_ref, convw_ref, convb_ref,
                      wxdt_ref, wxb_ref, wxc_ref, wdt_ref, bdt_ref,
                      alog_ref, dvec_ref, wout_ref, w1_ref, b1_ref,
                      o_ref, dA_sc, dBu_sc, hist_sc):
    """One batch element per grid step: x block (1, L, 3) -> logits (1, L, 256)."""
    L = x_ref.shape[1]
    f32 = jnp.float32
    bf16 = jnp.bfloat16

    # ---- proj0 on the VPU (K=3 matmul is degenerate on the MXU) + tanh ----
    # TODO(synk): Dropout(p=0.01) is treated as eval-mode identity (no RNG mask).
    xb = x_ref[0]                                            # (L, 3) f32
    w0 = w0_ref[...]                                         # (3, 512) f32
    pre = (xb[:, 0:1] * w0[0:1, :] + xb[:, 1:2] * w0[1:2, :]
           + xb[:, 2:3] * w0[2:3, :] + b0_ref[...])
    h = jnp.tanh(pre)                                        # (L, 512) f32

    # ---- Mamba in_proj (bias=False): bf16 MXU, f32 accumulate ----
    xz = jnp.dot(h.astype(bf16), win_ref[...],
                 preferred_element_type=f32)                 # (L, 2048)
    xm = xz[:, :D_INNER]                                     # (L, 1024)
    z = xz[:, D_INNER:]                                      # (L, 1024)

    # ---- causal depthwise conv1d (k=4): sublane roll + mask, no pad buffer ----
    convw = convw_ref[...]                                   # (4, 1024) f32
    row = lax.broadcasted_iota(jnp.int32, (L, D_INNER), 0)
    acc = xm * convw[D_CONV - 1:D_CONV, :]                   # tap with zero shift
    for k in range(D_CONV - 1):                              # taps k=0..2, shift=3-k
        shift = D_CONV - 1 - k
        shifted = pltpu.roll(xm, shift=shift, axis=0)        # row l <- xm[l - shift]
        shifted = jnp.where(row >= shift, shifted, 0.0)      # causal zero-fill
        acc = acc + shifted * convw[k:k + 1, :]
    x_act = _silu(acc + convb_ref[...])                      # (L, 1024) f32

    # ---- x_proj split into dt / B / C matmuls (each in its own lane group) ----
    xab = x_act.astype(bf16)
    dt_lo = jnp.dot(xab, wxdt_ref[...], preferred_element_type=f32)   # (L, 32)
    Bm = jnp.dot(xab, wxb_ref[...], preferred_element_type=f32)       # (L, 16)
    Cm = jnp.dot(xab, wxc_ref[...], preferred_element_type=f32)       # (L, 16)

    # ---- dt_proj (+bias) + softplus ----
    dt = _softplus(jnp.dot(dt_lo.astype(bf16), wdt_ref[...],
                           preferred_element_type=f32) + bdt_ref[...])  # (L, 1024)

    # ---- selective scan: hoist exp() and the B relayout out of the recurrence ----
    A = -jnp.exp(alog_ref[...])                              # (16, 1024) f32
    dA_sc[...] = jnp.exp(dt[:, None, :] * A[None, :, :])     # (L, 16, 1024)
    dBu_sc[...] = (dt * x_act)[:, None, :] * Bm[:, :, None]  # (L, 16, 1024)

    def scan_body(t, hstate):
        hstate = dA_sc[t] * hstate + dBu_sc[t]               # pure VALU FMA
        hist_sc[t] = hstate
        return hstate

    lax.fori_loop(0, L, scan_body, jnp.zeros((D_STATE, D_INNER), f32))

    # ---- C contraction (off the serial path), skip connection, gate ----
    y = jnp.sum(hist_sc[...] * Cm[:, :, None], axis=1)       # (L, 1024)
    y = y + dvec_ref[...] * x_act                            # + D * u
    y = y * _silu(z)                                         # gate

    # ---- out_proj (bias=False) and proj1 (padded to 256 lanes, dense stores) ----
    y_out = jnp.dot(y.astype(bf16), wout_ref[...],
                    preferred_element_type=f32)              # (L, 512)
    logits = jnp.dot(y_out.astype(bf16), w1_ref[...],
                     preferred_element_type=f32) + b1_ref[...]  # (L, 256)
    o_ref[0] = logits


def softmax_dim0_kernel(x_ref, o_ref):
    # nn.Softmax() with no dim on a 3-D tensor resolves to dim=0 (PyTorch
    # implicit-dim rule); reproduced exactly. Padded lanes are sliced off
    # in the wrapper.
    x = x_ref[...]
    m = jnp.max(x, axis=0, keepdims=True)
    e = jnp.exp(x - m)
    o_ref[...] = e / jnp.sum(e, axis=0, keepdims=True)


def _const_spec(shape):
    nd = len(shape)
    return pl.BlockSpec(shape, lambda b, _nd=nd: (0,) * _nd)


@jax.jit
def mu_model(x, params):
    (w0t, b0, wint, convw, convb, wxt, wdtt, bdt, alogt, dvec,
     woutt, w1t, b1) = params
    B, L, _ = x.shape
    bf16 = jnp.bfloat16

    # Layout plumbing only (no compute hoisting): bf16 weights for the MXU,
    # x_proj split into dt/B/C, proj1 padded from 144 to 256 lanes.
    win_bf = wint.astype(bf16)
    wxdt = wxt[:, :DT_RANK].astype(bf16)
    wxb = wxt[:, DT_RANK:DT_RANK + D_STATE].astype(bf16)
    wxc = wxt[:, DT_RANK + D_STATE:].astype(bf16)
    wdt_bf = wdtt.astype(bf16)
    wout_bf = woutt.astype(bf16)
    w1_pad = jnp.zeros((D_MODEL, N_PAD), bf16).at[:, :N_OUT].set(w1t.astype(bf16))
    b1_pad = jnp.zeros((1, N_PAD), jnp.float32).at[:, :N_OUT].set(b1)

    weights = (w0t, b0, win_bf, convw, convb, wxdt, wxb, wxc, wdt_bf, bdt,
               alogt, dvec, wout_bf, w1_pad, b1_pad)

    in_specs = [pl.BlockSpec((1, L, D_IN), lambda b: (b, 0, 0))]
    in_specs += [_const_spec(w.shape) for w in weights]

    logits = pl.pallas_call(
        mu_forward_kernel,
        out_shape=jax.ShapeDtypeStruct((B, L, N_PAD), jnp.float32),
        grid=(B,),
        in_specs=in_specs,
        out_specs=pl.BlockSpec((1, L, N_PAD), lambda b: (b, 0, 0)),
        scratch_shapes=[
            pltpu.VMEM((L, D_STATE, D_INNER), jnp.float32),   # dA_all
            pltpu.VMEM((L, D_STATE, D_INNER), jnp.float32),   # dBu_all
            pltpu.VMEM((L, D_STATE, D_INNER), jnp.float32),   # state history
        ],
        compiler_params=pltpu.CompilerParams(
            dimension_semantics=("parallel",),
            vmem_limit_bytes=48 * 1024 * 1024),   # <= v7x's 64 MiB physical VMEM
    )(x, *weights)

    # Softmax over dim=0 (batch) needs all batch elements -> separate tiny kernel.
    probs = pl.pallas_call(
        softmax_dim0_kernel,
        out_shape=jax.ShapeDtypeStruct((B, L, N_PAD), jnp.float32),
        grid=(1,),
        in_specs=[_const_spec((B, L, N_PAD))],
        out_specs=_const_spec((B, L, N_PAD)),
        compiler_params=pltpu.CompilerParams(
            dimension_semantics=("arbitrary",),
            vmem_limit_bytes=16 * 1024 * 1024),
    )(logits)

    return probs[:, :, :N_OUT]


def init_params(key):
    ks = jax.random.split(key, 11)

    def rnd(k, shape, fan_in):
        return (jax.random.normal(k, shape, jnp.float32) /
                jnp.sqrt(jnp.float32(fan_in))).astype(jnp.float32)

    w0t = rnd(ks[0], (D_IN, D_MODEL), D_IN)                  # proj0.weight^T
    b0 = rnd(ks[1], (1, D_MODEL), D_IN)                      # proj0.bias
    wint = rnd(ks[2], (D_MODEL, 2 * D_INNER), D_MODEL)       # mamba.in_proj.weight^T
    convw = rnd(ks[3], (D_CONV, D_INNER), D_CONV)            # mamba.conv1d.weight (tap, chan)
    convb = rnd(ks[4], (1, D_INNER), D_CONV)                 # mamba.conv1d.bias
    wxt = rnd(ks[5], (D_INNER, DT_RANK + 2 * D_STATE), D_INNER)   # mamba.x_proj.weight^T
    wdtt = rnd(ks[6], (DT_RANK, D_INNER), DT_RANK)           # mamba.dt_proj.weight^T
    bdt = rnd(ks[7], (1, D_INNER), DT_RANK)                  # mamba.dt_proj.bias
    alogt = (jnp.log(jnp.arange(1, D_STATE + 1, dtype=jnp.float32))[:, None]
             * jnp.ones((1, D_INNER), jnp.float32))          # A_log^T (16, 1024)
    dvec = jnp.ones((1, D_INNER), jnp.float32)               # mamba.D
    woutt = rnd(ks[8], (D_INNER, D_MODEL), D_INNER)          # mamba.out_proj.weight^T
    w1t = rnd(ks[9], (D_MODEL, N_OUT), D_MODEL)              # proj1.weight^T
    b1 = rnd(ks[10], (1, N_OUT), D_MODEL)                    # proj1.bias
    return (w0t, b0, wint, convw, convb, wxt, wdtt, bdt, alogt, dvec,
            woutt, w1t, b1)


if __name__ == "__main__":
    key = jax.random.PRNGKey(0)
    kx, kp = jax.random.split(key)
    B, L = 2, 8
    x = jax.random.normal(kx, (B, L, D_IN), jnp.float32)
    params = init_params(kp)

    out = jax.block_until_ready(mu_model(x, params))

    assert out.shape == (B, L, N_OUT), out.shape
    assert bool(jnp.all(jnp.isfinite(out)))
    # softmax is over dim=0 (PyTorch implicit-dim rule for 3-D): columns sum to 1
    assert bool(jnp.allclose(jnp.sum(out, axis=0), 1.0, atol=1e-4))
    print("KERNEL_OK")
</pallas_src>

<mosaic_0001>
module attributes {stable_mosaic.version = 11 : i64} {
  func.func @mu_forward_kernel(%arg0: i32, %arg1: memref<1x8x3xf32, #tpu.memory_space<vmem>>, %arg2: memref<3x512xf32, #tpu.memory_space<vmem>>, %arg3: memref<1x512xf32, #tpu.memory_space<vmem>>, %arg4: memref<512x2048xbf16, #tpu.memory_space<vmem>>, %arg5: memref<4x1024xf32, #tpu.memory_space<vmem>>, %arg6: memref<1x1024xf32, #tpu.memory_space<vmem>>, %arg7: memref<1024x32xbf16, #tpu.memory_space<vmem>>, %arg8: memref<1024x16xbf16, #tpu.memory_space<vmem>>, %arg9: memref<1024x16xbf16, #tpu.memory_space<vmem>>, %arg10: memref<32x1024xbf16, #tpu.memory_space<vmem>>, %arg11: memref<1x1024xf32, #tpu.memory_space<vmem>>, %arg12: memref<16x1024xf32, #tpu.memory_space<vmem>>, %arg13: memref<1x1024xf32, #tpu.memory_space<vmem>>, %arg14: memref<1024x512xbf16, #tpu.memory_space<vmem>>, %arg15: memref<512x256xbf16, #tpu.memory_space<vmem>>, %arg16: memref<1x256xf32, #tpu.memory_space<vmem>>, %arg17: memref<1x8x256xf32, #tpu.memory_space<vmem>>, %arg18: memref<8x16x1024xf32, #tpu.memory_space<vmem>>, %arg19: memref<8x16x1024xf32, #tpu.memory_space<vmem>>, %arg20: memref<8x16x1024xf32, #tpu.memory_space<vmem>>) attributes {dimension_semantics = [#tpu.dimension_semantics<parallel>], iteration_bounds = array<i64: 2>, scalar_prefetch = 0 : i64, scratch_operands = 3 : i64, tpu.core_type = #tpu.core_type<tc>, window_params = [{transform_indices = @transform_0, window_bounds = array<i64: 1, 8, 3>}, {pipeline_mode = #tpu.pipeline_mode<synchronous>, transform_indices = @transform_1, window_bounds = array<i64: 3, 512>}, {pipeline_mode = #tpu.pipeline_mode<synchronous>, transform_indices = @transform_2, window_bounds = array<i64: 1, 512>}, {pipeline_mode = #tpu.pipeline_mode<synchronous>, transform_indices = @transform_3, window_bounds = array<i64: 512, 2048>}, {pipeline_mode = #tpu.pipeline_mode<synchronous>, transform_indices = @transform_4, window_bounds = array<i64: 4, 1024>}, {pipeline_mode = #tpu.pipeline_mode<synchronous>, transform_indices = @transform_5, window_bounds = array<i64: 1, 1024>}, {pipeline_mode = #tpu.pipeline_mode<synchronous>, transform_indices = @transform_6, window_bounds = array<i64: 1024, 32>}, {pipeline_mode = #tpu.pipeline_mode<synchronous>, transform_indices = @transform_7, window_bounds = array<i64: 1024, 16>}, {pipeline_mode = #tpu.pipeline_mode<synchronous>, transform_indices = @transform_8, window_bounds = array<i64: 1024, 16>}, {pipeline_mode = #tpu.pipeline_mode<synchronous>, transform_indices = @transform_9, window_bounds = array<i64: 32, 1024>}, {pipeline_mode = #tpu.pipeline_mode<synchronous>, transform_indices = @transform_10, window_bounds = array<i64: 1, 1024>}, {pipeline_mode = #tpu.pipeline_mode<synchronous>, transform_indices = @transform_11, window_bounds = array<i64: 16, 1024>}, {pipeline_mode = #tpu.pipeline_mode<synchronous>, transform_indices = @transform_12, window_bounds = array<i64: 1, 1024>}, {pipeline_mode = #tpu.pipeline_mode<synchronous>, transform_indices = @transform_13, window_bounds = array<i64: 1024, 512>}, {pipeline_mode = #tpu.pipeline_mode<synchronous>, transform_indices = @transform_14, window_bounds = array<i64: 512, 256>}, {pipeline_mode = #tpu.pipeline_mode<synchronous>, transform_indices = @transform_15, window_bounds = array<i64: 1, 256>}, {transform_indices = @transform_16, window_bounds = array<i64: 1, 8, 256>}]} {
    %c0 = arith.constant 0 : index
    %c0_0 = arith.constant 0 : index
    %c0_1 = arith.constant 0 : index
    %0 = vector.load %arg1[%c0, %c0_0, %c0_1] : memref<1x8x3xf32, #tpu.memory_space<vmem>>, vector<1x8x3xf32>
    %1 = vector.shape_cast %0 : vector<1x8x3xf32> to vector<8x3xf32>
    %c0_2 = arith.constant 0 : index
    %c0_3 = arith.constant 0 : index
    %2 = vector.load %arg2[%c0_2, %c0_3] : memref<3x512xf32, #tpu.memory_space<vmem>>, vector<3x512xf32>
    %3 = vector.extract_strided_slice %1 {offsets = [0, 0], sizes = [8, 1], strides = [1, 1]} : vector<8x3xf32> to vector<8x1xf32>
    %4 = vector.extract_strided_slice %2 {offsets = [0, 0], sizes = [1, 512], strides = [1, 1]} : vector<3x512xf32> to vector<1x512xf32>
    %5 = vector.broadcast %3 : vector<8x1xf32> to vector<8x512xf32>
    %6 = vector.broadcast %4 : vector<1x512xf32> to vector<8x512xf32>
    %7 = arith.mulf %5, %6 : vector<8x512xf32>
    %8 = vector.extract_strided_slice %1 {offsets = [0, 1], sizes = [8, 1], strides = [1, 1]} : vector<8x3xf32> to vector<8x1xf32>
    %9 = vector.extract_strided_slice %2 {offsets = [1, 0], sizes = [1, 512], strides = [1, 1]} : vector<3x512xf32> to vector<1x512xf32>
    %10 = vector.broadcast %8 : vector<8x1xf32> to vector<8x512xf32>
    %11 = vector.broadcast %9 : vector<1x512xf32> to vector<8x512xf32>
    %12 = arith.mulf %10, %11 : vector<8x512xf32>
    %13 = arith.addf %7, %12 : vector<8x512xf32>
    %14 = vector.extract_strided_slice %1 {offsets = [0, 2], sizes = [8, 1], strides = [1, 1]} : vector<8x3xf32> to vector<8x1xf32>
    %15 = vector.extract_strided_slice %2 {offsets = [2, 0], sizes = [1, 512], strides = [1, 1]} : vector<3x512xf32> to vector<1x512xf32>
    %16 = vector.broadcast %14 : vector<8x1xf32> to vector<8x512xf32>
    %17 = vector.broadcast %15 : vector<1x512xf32> to vector<8x512xf32>
    %18 = arith.mulf %16, %17 : vector<8x512xf32>
    %19 = arith.addf %13, %18 : vector<8x512xf32>
    %c0_4 = arith.constant 0 : index
    %c0_5 = arith.constant 0 : index
    %20 = vector.load %arg3[%c0_4, %c0_5] : memref<1x512xf32, #tpu.memory_space<vmem>>, vector<1x512xf32>
    %21 = vector.broadcast %20 : vector<1x512xf32> to vector<8x512xf32>
    %22 = arith.addf %19, %21 : vector<8x512xf32>
    %23 = math.tanh %22 : vector<8x512xf32>
    %24 = arith.truncf %23 : vector<8x512xf32> to vector<8x512xbf16>
    %c0_6 = arith.constant 0 : index
    %c0_7 = arith.constant 0 : index
    %25 = vector.load %arg4[%c0_6, %c0_7] : memref<512x2048xbf16, #tpu.memory_space<vmem>>, vector<512x2048xbf16>
    %cst = arith.constant dense<0.000000e+00> : vector<8x2048xf32>
    %26 = tpu.matmul %24, %25, %cst {dimension_numbers = #tpu.dot_dimension_numbers<[1], [0], [0], [1], [0, 0, 1, 1], [], []>} : vector<8x512xbf16>, vector<512x2048xbf16>, vector<8x2048xf32> -> vector<8x2048xf32>
    %27 = vector.extract_strided_slice %26 {offsets = [0, 0], sizes = [8, 1024], strides = [1, 1]} : vector<8x2048xf32> to vector<8x1024xf32>
    %28 = vector.extract_strided_slice %26 {offsets = [0, 1024], sizes = [8, 1024], strides = [1, 1]} : vector<8x2048xf32> to vector<8x1024xf32>
    %c0_8 = arith.constant 0 : index
    %c0_9 = arith.constant 0 : index
    %29 = vector.load %arg5[%c0_8, %c0_9] : memref<4x1024xf32, #tpu.memory_space<vmem>>, vector<4x1024xf32>
    %30 = tpu.iota {dimensions = array<i32: 0>} : vector<8x1024xi32>
    %31 = vector.extract_strided_slice %29 {offsets = [3, 0], sizes = [1, 1024], strides = [1, 1]} : vector<4x1024xf32> to vector<1x1024xf32>
    %32 = vector.broadcast %31 : vector<1x1024xf32> to vector<8x1024xf32>
    %33 = arith.mulf %27, %32 : vector<8x1024xf32>
    %c3_i32 = arith.constant 3 : i32
    %34 = tpu.dynamic_rotate %27 by %c3_i32 dim 0 : vector<8x1024xf32>, i32 -> vector<8x1024xf32>
    %c3_i32_10 = arith.constant 3 : i32
    %35 = vector.broadcast %c3_i32_10 : i32 to vector<8x1024xi32>
    %36 = arith.cmpi sge, %30, %35 : vector<8x1024xi32>
    %cst_11 = arith.constant 0.000000e+00 : f32
    %37 = vector.broadcast %cst_11 : f32 to vector<8x1024xf32>
    %38 = arith.select %36, %34, %37 : vector<8x1024xi1>, vector<8x1024xf32>
    %39 = vector.extract_strided_slice %29 {offsets = [0, 0], sizes = [1, 1024], strides = [1, 1]} : vector<4x1024xf32> to vector<1x1024xf32>
    %40 = vector.broadcast %39 : vector<1x1024xf32> to vector<8x1024xf32>
    %41 = arith.mulf %38, %40 : vector<8x1024xf32>
    %42 = arith.addf %33, %41 : vector<8x1024xf32>
    %c2_i32 = arith.constant 2 : i32
    %43 = tpu.dynamic_rotate %27 by %c2_i32 dim 0 : vector<8x1024xf32>, i32 -> vector<8x1024xf32>
    %c2_i32_12 = arith.constant 2 : i32
    %44 = vector.broadcast %c2_i32_12 : i32 to vector<8x1024xi32>
    %45 = arith.cmpi sge, %30, %44 : vector<8x1024xi32>
    %cst_13 = arith.constant 0.000000e+00 : f32
    %46 = vector.broadcast %cst_13 : f32 to vector<8x1024xf32>
    %47 = arith.select %45, %43, %46 : vector<8x1024xi1>, vector<8x1024xf32>
    %48 = vector.extract_strided_slice %29 {offsets = [1, 0], sizes = [1, 1024], strides = [1, 1]} : vector<4x1024xf32> to vector<1x1024xf32>
    %49 = vector.broadcast %48 : vector<1x1024xf32> to vector<8x1024xf32>
    %50 = arith.mulf %47, %49 : vector<8x1024xf32>
    %51 = arith.addf %42, %50 : vector<8x1024xf32>
    %c1_i32 = arith.constant 1 : i32
    %52 = tpu.dynamic_rotate %27 by %c1_i32 dim 0 : vector<8x1024xf32>, i32 -> vector<8x1024xf32>
    %c1_i32_14 = arith.constant 1 : i32
    %53 = vector.broadcast %c1_i32_14 : i32 to vector<8x1024xi32>
    %54 = arith.cmpi sge, %30, %53 : vector<8x1024xi32>
    %cst_15 = arith.constant 0.000000e+00 : f32
    %55 = vector.broadcast %cst_15 : f32 to vector<8x1024xf32>
    %56 = arith.select %54, %52, %55 : vector<8x1024xi1>, vector<8x1024xf32>
    %57 = vector.extract_strided_slice %29 {offsets = [2, 0], sizes = [1, 1024], strides = [1, 1]} : vector<4x1024xf32> to vector<1x1024xf32>
    %58 = vector.broadcast %57 : vector<1x1024xf32> to vector<8x1024xf32>
    %59 = arith.mulf %56, %58 : vector<8x1024xf32>
    %60 = arith.addf %51, %59 : vector<8x1024xf32>
    %c0_16 = arith.constant 0 : index
    %c0_17 = arith.constant 0 : index
    %61 = vector.load %arg6[%c0_16, %c0_17] : memref<1x1024xf32, #tpu.memory_space<vmem>>, vector<1x1024xf32>
    %62 = vector.broadcast %61 : vector<1x1024xf32> to vector<8x1024xf32>
    %63 = arith.addf %60, %62 : vector<8x1024xf32>
    %cst_18 = arith.constant 0.000000e+00 : f32
    %64 = vector.broadcast %cst_18 : f32 to vector<8x1024xf32>
    %65 = arith.subf %64, %63 : vector<8x1024xf32>
    %66 = math.exp %65 : vector<8x1024xf32>
    %cst_19 = arith.constant 1.000000e+00 : f32
    %67 = vector.broadcast %cst_19 : f32 to vector<8x1024xf32>
    %68 = arith.addf %67, %66 : vector<8x1024xf32>
    %cst_20 = arith.constant 1.000000e+00 : f32
    %69 = vector.broadcast %cst_20 : f32 to vector<8x1024xf32>
    %70 = arith.divf %69, %68 : vector<8x1024xf32>
    %71 = arith.mulf %63, %70 : vector<8x1024xf32>
    %72 = arith.truncf %71 : vector<8x1024xf32> to vector<8x1024xbf16>
    %c0_21 = arith.constant 0 : index
    %c0_22 = arith.constant 0 : index
    %73 = vector.load %arg7[%c0_21, %c0_22] : memref<1024x32xbf16, #tpu.memory_space<vmem>>, vector<1024x32xbf16>
    %cst_23 = arith.constant dense<0.000000e+00> : vector<8x32xf32>
    %74 = tpu.matmul %72, %73, %cst_23 {dimension_numbers = #tpu.dot_dimension_numbers<[1], [0], [0], [1], [0, 0, 1, 1], [], []>} : vector<8x1024xbf16>, vector<1024x32xbf16>, vector<8x32xf32> -> vector<8x32xf32>
    %c0_24 = arith.constant 0 : index
    %c0_25 = arith.constant 0 : index
    %75 = vector.load %arg8[%c0_24, %c0_25] : memref<1024x16xbf16, #tpu.memory_space<vmem>>, vector<1024x16xbf16>
    %cst_26 = arith.constant dense<0.000000e+00> : vector<8x16xf32>
    %76 = tpu.matmul %72, %75, %cst_26 {dimension_numbers = #tpu.dot_dimension_numbers<[1], [0], [0], [1], [0, 0, 1, 1], [], []>} : vector<8x1024xbf16>, vector<1024x16xbf16>, vector<8x16xf32> -> vector<8x16xf32>
    %c0_27 = arith.constant 0 : index
    %c0_28 = arith.constant 0 : index
    %77 = vector.load %arg9[%c0_27, %c0_28] : memref<1024x16xbf16, #tpu.memory_space<vmem>>, vector<1024x16xbf16>
    %cst_29 = arith.constant dense<0.000000e+00> : vector<8x16xf32>
    %78 = tpu.matmul %72, %77, %cst_29 {dimension_numbers = #tpu.dot_dimension_numbers<[1], [0], [0], [1], [0, 0, 1, 1], [], []>} : vector<8x1024xbf16>, vector<1024x16xbf16>, vector<8x16xf32> -> vector<8x16xf32>
    %79 = arith.truncf %74 : vector<8x32xf32> to vector<8x32xbf16>
    %c0_30 = arith.constant 0 : index
    %c0_31 = arith.constant 0 : index
    %80 = vector.load %arg10[%c0_30, %c0_31] : memref<32x1024xbf16, #tpu.memory_space<vmem>>, vector<32x1024xbf16>
    %cst_32 = arith.constant dense<0.000000e+00> : vector<8x1024xf32>
    %81 = tpu.matmul %79, %80, %cst_32 {dimension_numbers = #tpu.dot_dimension_numbers<[1], [0], [0], [1], [0, 0, 1, 1], [], []>} : vector<8x32xbf16>, vector<32x1024xbf16>, vector<8x1024xf32> -> vector<8x1024xf32>
    %c0_33 = arith.constant 0 : index
    %c0_34 = arith.constant 0 : index
    %82 = vector.load %arg11[%c0_33, %c0_34] : memref<1x1024xf32, #tpu.memory_space<vmem>>, vector<1x1024xf32>
    %83 = vector.broadcast %82 : vector<1x1024xf32> to vector<8x1024xf32>
    %84 = arith.addf %81, %83 : vector<8x1024xf32>
    %cst_35 = arith.constant 2.000000e+01 : f32
    %85 = vector.broadcast %cst_35 : f32 to vector<8x1024xf32>
    %86 = arith.cmpf ogt, %84, %85 : vector<8x1024xf32>
    %cst_36 = arith.constant 2.000000e+01 : f32
    %87 = vector.broadcast %cst_36 : f32 to vector<8x1024xf32>
    %88 = arith.minimumf %84, %87 : vector<8x1024xf32>
    %89 = math.exp %88 : vector<8x1024xf32>
    %90 = math.log1p %89 : vector<8x1024xf32>
    %91 = arith.select %86, %84, %90 : vector<8x1024xi1>, vector<8x1024xf32>
    %c0_37 = arith.constant 0 : index
    %c0_38 = arith.constant 0 : index
    %92 = vector.load %arg12[%c0_37, %c0_38] : memref<16x1024xf32, #tpu.memory_space<vmem>>, vector<16x1024xf32>
    %93 = math.exp %92 : vector<16x1024xf32>
    %cst_39 = arith.constant 0.000000e+00 : f32
    %94 = vector.broadcast %cst_39 : f32 to vector<16x1024xf32>
    %95 = arith.subf %94, %93 : vector<16x1024xf32>
    %96 = vector.shape_cast %91 : vector<8x1024xf32> to vector<8x1x1024xf32>
    %97 = vector.shape_cast %95 : vector<16x1024xf32> to vector<1x16x1024xf32>
    %98 = vector.broadcast %96 : vector<8x1x1024xf32> to vector<8x16x1024xf32>
    %99 = vector.broadcast %97 : vector<1x16x1024xf32> to vector<8x16x1024xf32>
    %100 = arith.mulf %98, %99 : vector<8x16x1024xf32>
    %101 = math.exp %100 : vector<8x16x1024xf32>
    %c0_40 = arith.constant 0 : index
    %c0_41 = arith.constant 0 : index
    %c0_42 = arith.constant 0 : index
    %102 = vector.load %arg18[%c0_40, %c0_41, %c0_42] : memref<8x16x1024xf32, #tpu.memory_space<vmem>>, vector<8x16x1024xf32>
    tpu.vector_store %arg18[%c0_40, %c0_41, %c0_42], %101 {strides = array<i32>} : memref<8x16x1024xf32, #tpu.memory_space<vmem>>, vector<8x16x1024xf32>,
    %103 = arith.mulf %91, %71 : vector<8x1024xf32>
    %104 = vector.shape_cast %103 : vector<8x1024xf32> to vector<8x1x1024xf32>
    %105 = vector.shape_cast %76 : vector<8x16xf32> to vector<8x16x1xf32>
    %106 = vector.broadcast %104 : vector<8x1x1024xf32> to vector<8x16x1024xf32>
    %107 = vector.broadcast %105 : vector<8x16x1xf32> to vector<8x16x1024xf32>
    %108 = arith.mulf %106, %107 : vector<8x16x1024xf32>
    %c0_43 = arith.constant 0 : index
    %c0_44 = arith.constant 0 : index
    %c0_45 = arith.constant 0 : index
    %109 = vector.load %arg19[%c0_43, %c0_44, %c0_45] : memref<8x16x1024xf32, #tpu.memory_space<vmem>>, vector<8x16x1024xf32>
    tpu.vector_store %arg19[%c0_43, %c0_44, %c0_45], %108 {strides = array<i32>} : memref<8x16x1024xf32, #tpu.memory_space<vmem>>, vector<8x16x1024xf32>,
    %cst_46 = arith.constant 0.000000e+00 : f32
    %110 = vector.broadcast %cst_46 : f32 to vector<16x1024xf32>
    %c0_i32 = arith.constant 0 : i32
    %c8_i32 = arith.constant 8 : i32
    %111 = arith.addi %c0_i32, %c8_i32 : i32
    %c1_i32_47 = arith.constant 1 : i32
    %112 = scf.for %arg21 = %c0_i32 to %111 step %c1_i32_47 iter_args(%arg22 = %110) -> (vector<16x1024xf32>)  : i32 {
      %143 = arith.index_cast %arg21 : i32 to index
      %c0_69 = arith.constant 0 : index
      %c0_70 = arith.constant 0 : index
      %144 = vector.load %arg18[%143, %c0_69, %c0_70] : memref<8x16x1024xf32, #tpu.memory_space<vmem>>, vector<1x16x1024xf32>
      %145 = vector.shape_cast %144 : vector<1x16x1024xf32> to vector<16x1024xf32>
      %146 = arith.mulf %145, %arg22 : vector<16x1024xf32>
      %147 = arith.index_cast %arg21 : i32 to index
      %c0_71 = arith.constant 0 : index
      %c0_72 = arith.constant 0 : index
      %148 = vector.load %arg19[%147, %c0_71, %c0_72] : memref<8x16x1024xf32, #tpu.memory_space<vmem>>, vector<1x16x1024xf32>
      %149 = vector.shape_cast %148 : vector<1x16x1024xf32> to vector<16x1024xf32>
      %150 = arith.addf %146, %149 : vector<16x1024xf32>
      %151 = arith.index_cast %arg21 : i32 to index
      %c0_73 = arith.constant 0 : index
      %c0_74 = arith.constant 0 : index
      %152 = vector.load %arg20[%151, %c0_73, %c0_74] : memref<8x16x1024xf32, #tpu.memory_space<vmem>>, vector<1x16x1024xf32>
      %153 = vector.shape_cast %152 : vector<1x16x1024xf32> to vector<16x1024xf32>
      %154 = vector.shape_cast %150 : vector<16x1024xf32> to vector<1x16x1024xf32>
      tpu.vector_store %arg20[%151, %c0_73, %c0_74], %154 {strides = array<i32>} : memref<8x16x1024xf32, #tpu.memory_space<vmem>>, vector<1x16x1024xf32>,
      scf.yield %150 : vector<16x1024xf32>
    }
    %c8_i32_48 = arith.constant 8 : i32
    %c0_49 = arith.constant 0 : index
    %c0_50 = arith.constant 0 : index
    %c0_51 = arith.constant 0 : index
    %113 = vector.load %arg20[%c0_49, %c0_50, %c0_51] : memref<8x16x1024xf32, #tpu.memory_space<vmem>>, vector<8x16x1024xf32>
    %114 = vector.shape_cast %78 : vector<8x16xf32> to vector<8x16x1xf32>
    %115 = vector.broadcast %114 : vector<8x16x1xf32> to vector<8x16x1024xf32>
    %116 = arith.mulf %113, %115 : vector<8x16x1024xf32>
    %cst_52 = arith.constant dense<0.000000e+00> : vector<8x1024xf32>
    %117 = vector.multi_reduction <add>, %116, %cst_52 [1] : vector<8x16x1024xf32> to vector<8x1024xf32>
    %c0_53 = arith.constant 0 : index
    %c0_54 = arith.constant 0 : index
    %118 = vector.load %arg13[%c0_53, %c0_54] : memref<1x1024xf32, #tpu.memory_space<vmem>>, vector<1x1024xf32>
    %119 = vector.broadcast %118 : vector<1x1024xf32> to vector<8x1024xf32>
    %120 = arith.mulf %119, %71 : vector<8x1024xf32>
    %121 = arith.addf %117, %120 : vector<8x1024xf32>
    %cst_55 = arith.constant 0.000000e+00 : f32
    %122 = vector.broadcast %cst_55 : f32 to vector<8x1024xf32>
    %123 = arith.subf %122, %28 : vector<8x1024xf32>
    %124 = math.exp %123 : vector<8x1024xf32>
    %cst_56 = arith.constant 1.000000e+00 : f32
    %125 = vector.broadcast %cst_56 : f32 to vector<8x1024xf32>
    %126 = arith.addf %125, %124 : vector<8x1024xf32>
    %cst_57 = arith.constant 1.000000e+00 : f32
    %127 = vector.broadcast %cst_57 : f32 to vector<8x1024xf32>
    %128 = arith.divf %127, %126 : vector<8x1024xf32>
    %129 = arith.mulf %28, %128 : vector<8x1024xf32>
    %130 = arith.mulf %121, %129 : vector<8x1024xf32>
    %131 = arith.truncf %130 : vector<8x1024xf32> to vector<8x1024xbf16>
    %c0_58 = arith.constant 0 : index
    %c0_59 = arith.constant 0 : index
    %132 = vector.load %arg14[%c0_58, %c0_59] : memref<1024x512xbf16, #tpu.memory_space<vmem>>, vector<1024x512xbf16>
    %cst_60 = arith.constant dense<0.000000e+00> : vector<8x512xf32>
    %133 = tpu.matmul %131, %132, %cst_60 {dimension_numbers = #tpu.dot_dimension_numbers<[1], [0], [0], [1], [0, 0, 1, 1], [], []>} : vector<8x1024xbf16>, vector<1024x512xbf16>, vector<8x512xf32> -> vector<8x512xf32>
    %134 = arith.truncf %133 : vector<8x512xf32> to vector<8x512xbf16>
    %c0_61 = arith.constant 0 : index
    %c0_62 = arith.constant 0 : index
    %135 = vector.load %arg15[%c0_61, %c0_62] : memref<512x256xbf16, #tpu.memory_space<vmem>>, vector<512x256xbf16>
    %cst_63 = arith.constant dense<0.000000e+00> : vector<8x256xf32>
    %136 = tpu.matmul %134, %135, %cst_63 {dimension_numbers = #tpu.dot_dimension_numbers<[1], [0], [0], [1], [0, 0, 1, 1], [], []>} : vector<8x512xbf16>, vector<512x256xbf16>, vector<8x256xf32> -> vector<8x256xf32>
    %c0_64 = arith.constant 0 : index
    %c0_65 = arith.constant 0 : index
    %137 = vector.load %arg16[%c0_64, %c0_65] : memref<1x256xf32, #tpu.memory_space<vmem>>, vector<1x256xf32>
    %138 = vector.broadcast %137 : vector<1x256xf32> to vector<8x256xf32>
    %139 = arith.addf %136, %138 : vector<8x256xf32>
    %c0_66 = arith.constant 0 : index
    %c0_67 = arith.constant 0 : index
    %c0_68 = arith.constant 0 : index
    %140 = vector.load %arg17[%c0_66, %c0_67, %c0_68] : memref<1x8x256xf32, #tpu.memory_space<vmem>>, vector<1x8x256xf32>
    %141 = vector.shape_cast %140 : vector<1x8x256xf32> to vector<8x256xf32>
    %142 = vector.shape_cast %139 : vector<8x256xf32> to vector<1x8x256xf32>
    tpu.vector_store %arg17[%c0_66, %c0_67, %c0_68], %142 {strides = array<i32>} : memref<1x8x256xf32, #tpu.memory_space<vmem>>, vector<1x8x256xf32>,
    return
  }
  func.func @transform_0(%arg0: i32) -> (i32, i32, i32) {
    %c0_i32 = arith.constant 0 : i32
    %c0_i32_0 = arith.constant 0 : i32
    %c0_i32_1 = arith.constant 0 : i32
    return %arg0, %c0_i32, %c0_i32_0 : i32, i32, i32
  }
  func.func @transform_1(%arg0: i32) -> (i32, i32) {
    %c0_i32 = arith.constant 0 : i32
    %c0_i32_0 = arith.constant 0 : i32
    %c0_i32_1 = arith.constant 0 : i32
    return %c0_i32, %c0_i32_0 : i32, i32
  }
  func.func @transform_2(%arg0: i32) -> (i32, i32) {
    %c0_i32 = arith.constant 0 : i32
    %c0_i32_0 = arith.constant 0 : i32
    %c0_i32_1 = arith.constant 0 : i32
    return %c0_i32, %c0_i32_0 : i32, i32
  }
  func.func @transform_3(%arg0: i32) -> (i32, i32) {
    %c0_i32 = arith.constant 0 : i32
    %c0_i32_0 = arith.constant 0 : i32
    %c0_i32_1 = arith.constant 0 : i32
    return %c0_i32, %c0_i32_0 : i32, i32
  }
  func.func @transform_4(%arg0: i32) -> (i32, i32) {
    %c0_i32 = arith.constant 0 : i32
    %c0_i32_0 = arith.constant 0 : i32
    %c0_i32_1 = arith.constant 0 : i32
    return %c0_i32, %c0_i32_0 : i32, i32
  }
  func.func @transform_5(%arg0: i32) -> (i32, i32) {
    %c0_i32 = arith.constant 0 : i32
    %c0_i32_0 = arith.constant 0 : i32
    %c0_i32_1 = arith.constant 0 : i32
    return %c0_i32, %c0_i32_0 : i32, i32
  }
  func.func @transform_6(%arg0: i32) -> (i32, i32) {
    %c0_i32 = arith.constant 0 : i32
    %c0_i32_0 = arith.constant 0 : i32
    %c0_i32_1 = arith.constant 0 : i32
    return %c0_i32, %c0_i32_0 : i32, i32
  }
  func.func @transform_7(%arg0: i32) -> (i32, i32) {
    %c0_i32 = arith.constant 0 : i32
    %c0_i32_0 = arith.constant 0 : i32
    %c0_i32_1 = arith.constant 0 : i32
    return %c0_i32, %c0_i32_0 : i32, i32
  }
  func.func @transform_8(%arg0: i32) -> (i32, i32) {
    %c0_i32 = arith.constant 0 : i32
    %c0_i32_0 = arith.constant 0 : i32
    %c0_i32_1 = arith.constant 0 : i32
    return %c0_i32, %c0_i32_0 : i32, i32
  }
  func.func @transform_9(%arg0: i32) -> (i32, i32) {
    %c0_i32 = arith.constant 0 : i32
    %c0_i32_0 = arith.constant 0 : i32
    %c0_i32_1 = arith.constant 0 : i32
    return %c0_i32, %c0_i32_0 : i32, i32
  }
  func.func @transform_10(%arg0: i32) -> (i32, i32) {
    %c0_i32 = arith.constant 0 : i32
    %c0_i32_0 = arith.constant 0 : i32
    %c0_i32_1 = arith.constant 0 : i32
    return %c0_i32, %c0_i32_0 : i32, i32
  }
  func.func @transform_11(%arg0: i32) -> (i32, i32) {
    %c0_i32 = arith.constant 0 : i32
    %c0_i32_0 = arith.constant 0 : i32
    %c0_i32_1 = arith.constant 0 : i32
    return %c0_i32, %c0_i32_0 : i32, i32
  }
  func.func @transform_12(%arg0: i32) -> (i32, i32) {
    %c0_i32 = arith.constant 0 : i32
    %c0_i32_0 = arith.constant 0 : i32
    %c0_i32_1 = arith.constant 0 : i32
    return %c0_i32, %c0_i32_0 : i32, i32
  }
  func.func @transform_13(%arg0: i32) -> (i32, i32) {
    %c0_i32 = arith.constant 0 : i32
    %c0_i32_0 = arith.constant 0 : i32
    %c0_i32_1 = arith.constant 0 : i32
    return %c0_i32, %c0_i32_0 : i32, i32
  }
  func.func @transform_14(%arg0: i32) -> (i32, i32) {
    %c0_i32 = arith.constant 0 : i32
    %c0_i32_0 = arith.constant 0 : i32
    %c0_i32_1 = arith.constant 0 : i32
    return %c0_i32, %c0_i32_0 : i32, i32
  }
  func.func @transform_15(%arg0: i32) -> (i32, i32) {
    %c0_i32 = arith.constant 0 : i32
    %c0_i32_0 = arith.constant 0 : i32
    %c0_i32_1 = arith.constant 0 : i32
    return %c0_i32, %c0_i32_0 : i32, i32
  }
  func.func @transform_16(%arg0: i32) -> (i32, i32, i32) {
    %c0_i32 = arith.constant 0 : i32
    %c0_i32_0 = arith.constant 0 : i32
    %c0_i32_1 = arith.constant 0 : i32
    return %arg0, %c0_i32, %c0_i32_0 : i32, i32, i32
  }
}

module attributes {stable_mosaic.version = 11 : i64} {
  func.func @softmax_dim0_kernel(%arg0: i32, %arg1: memref<2x8x256xf32, #tpu.memory_space<vmem>>, %arg2: memref<2x8x256xf32, #tpu.memory_space<vmem>>) attributes {dimension_semantics = [#tpu.dimension_semantics<arbitrary>], iteration_bounds = array<i64: 1>, scalar_prefetch = 0 : i64, scratch_operands = 0 : i64, tpu.core_type = #tpu.core_type<tc>, window_params = [{pipeline_mode = #tpu.pipeline_mode<synchronous>, transform_indices = @transform_0, window_bounds = array<i64: 2, 8, 256>}, {pipeline_mode = #tpu.pipeline_mode<synchronous>, transform_indices = @transform_1, window_bounds = array<i64: 2, 8, 256>}]} {
    %c0 = arith.constant 0 : index
    %c0_0 = arith.constant 0 : index
    %c0_1 = arith.constant 0 : index
    %0 = vector.load %arg1[%c0, %c0_0, %c0_1] : memref<2x8x256xf32, #tpu.memory_space<vmem>>, vector<2x8x256xf32>
    %cst = arith.constant dense<0xFF800000> : vector<8x256xf32>
    %1 = vector.multi_reduction <maximumf>, %0, %cst [0] : vector<2x8x256xf32> to vector<8x256xf32>
    %2 = vector.shape_cast %1 : vector<8x256xf32> to vector<1x8x256xf32>
    %3 = vector.broadcast %2 : vector<1x8x256xf32> to vector<2x8x256xf32>
    %4 = arith.subf %0, %3 : vector<2x8x256xf32>
    %5 = math.exp %4 : vector<2x8x256xf32>
    %cst_2 = arith.constant dense<0.000000e+00> : vector<8x256xf32>
    %6 = vector.multi_reduction <add>, %5, %cst_2 [0] : vector<2x8x256xf32> to vector<8x256xf32>
    %7 = vector.shape_cast %6 : vector<8x256xf32> to vector<1x8x256xf32>
    %8 = vector.broadcast %7 : vector<1x8x256xf32> to vector<2x8x256xf32>
    %9 = arith.divf %5, %8 : vector<2x8x256xf32>
    %c0_3 = arith.constant 0 : index
    %c0_4 = arith.constant 0 : index
    %c0_5 = arith.constant 0 : index
    %10 = vector.load %arg2[%c0_3, %c0_4, %c0_5] : memref<2x8x256xf32, #tpu.memory_space<vmem>>, vector<2x8x256xf32>
    tpu.vector_store %arg2[%c0_3, %c0_4, %c0_5], %9 {strides = array<i32>} : memref<2x8x256xf32, #tpu.memory_space<vmem>>, vector<2x8x256xf32>,
    return
  }
  func.func @transform_0(%arg0: i32) -> (i32, i32, i32) {
    %c0_i32 = arith.constant 0 : i32
    %c0_i32_0 = arith.constant 0 : i32
    %c0_i32_1 = arith.constant 0 : i32
    %c0_i32_2 = arith.constant 0 : i32
    return %c0_i32, %c0_i32_0, %c0_i32_1 : i32, i32, i32
  }
  func.func @transform_1(%arg0: i32) -> (i32, i32, i32) {
    %c0_i32 = arith.constant 0 : i32
    %c0_i32_0 = arith.constant 0 : i32
    %c0_i32_1 = arith.constant 0 : i32
    %c0_i32_2 = arith.constant 0 : i32
    return %c0_i32, %c0_i32_0, %c0_i32_1 : i32, i32, i32
  }
}

</mosaic_0001>

<llo_original>
// kernel: mu_model.3
$region0: #{mu_model.3}
  #allocation0 [shape = 'u32[]', space=smem, size = 0x4, offset = 0x4, fixed_abs, tag = 'smem constant byte address 0x4 - core index']
  #allocation1 [shape = 'u32[144,128]{1,0:T(1,128)}', space=vmem, size = 0x12000, scoped, tag = 'internal scratch']
  %s0 = inlined_call_operand.vmem [shape: f32[2,8,256], index: 0, kind: input, shape index: {}]
  %s1 = inlined_call_operand.hbm [shape: f32[2,8,256], index: 1, kind: output, shape index: {}]
  %s2 = sld [smem:[#allocation0]]
  $region14: #{mu_model.3} parent=0
    _
  %s4 = ssub.s32 1, %s2
  %s5 = scalar_select 0, %s4, %s2
  $region1: #{mu_model.3} parent=0
    #allocation2 [shape = 'u8[16384]{0}', space=vmem, size = 0x4000, scoped, tag = 'output window, operand 0, single buffered']
    #allocation3 [shape = 's32[1]{0}', space=sflag, size = 0x4, scoped, tag = 'scoped memory for mu_model.3']
    %6 = vsyncpa [#allocation3], 0
    // Predicated region
    $region2: #{mu_model.3} parent=1 // pred_check
      _
    $region3: #{mu_model.3} parent=1 // pred_check_branch
      %8 = sbr.rel (0) target = $region5
    $region4: #{mu_model.3} parent=1 // pred_region
      _
    $region5: #{mu_model.3} parent=1 // pred_fallthru
      _
    %v9 = vld [vmem:[%s0] sm:$0xff]
    %v10 = vld [vmem:[%s0 + $0x8] sm:$0xff]
    %v11 = vld [vmem:[%s0 + $0x10] sm:$0xff]
    %v12 = vld [vmem:[%s0 + $0x18] sm:$0xff]
    %v13 = vmax.f32 %v9, %v11
    %v14 = vmax.f32 %v10, %v12
    %v15 = vsub.f32 %v9, %v13
    %v16 = vsub.f32 %v10, %v14
    %v17 = vsub.f32 %v11, %v13
    %v18 = vsub.f32 %v12, %v14
    %v19 = vmul.f32 %v15, 1.442695
    %v20 = vpow.pop %v19
    %v21 = vmul.f32 %v16, 1.442695
    %v22 = vpow.pop %v21
    %v23 = vmul.f32 %v17, 1.442695
    %v24 = vpow.pop %v23
    %v25 = vmul.f32 %v18, 1.442695
    %v26 = vpow.pop %v25
    %v27 = vadd.f32 %v20, %v24
    %v28 = vadd.f32 %v22, %v26
    %v29 = vrcp.pop %v27
    %v30 = vmul.f32 %v20, %v29
    %v31 = vrcp.pop %v28
    %v32 = vmul.f32 %v22, %v31
    %v33 = vmul.f32 %v24, %v29
    %v34 = vmul.f32 %v26, %v31
    %35 = vst [vmem:[#allocation2] sm:$0xff] %v30
    %36 = vst [vmem:[#allocation2 + $0x8] sm:$0xff] %v32
    %37 = vst [vmem:[#allocation2 + $0x10] sm:$0xff] %v33
    %38 = vst [vmem:[#allocation2 + $0x18] sm:$0xff] %v34
    // Predicated region
    $region6: #{mu_model.3} parent=1 // pred_check
      _
    $region7: #{mu_model.3} parent=1 // pred_check_branch
      %40 = sbr.rel (0) target = $region9
    $region8: #{mu_model.3} parent=1 // pred_region
      %s42 = ssub.s32 512, 512
      %43 = vsyncadd [#allocation3], %s42
      %s44 = sshll.u32 [#allocation2], 4
      %s45 = int_to_ptr.vmem [resolvable:$true] %s44
      %50 = dma.vmem_to_hbm [thread:$0]  %s45, 512, %s1, [#allocation3], 256, 256, 16
    $region9: #{mu_model.3} parent=1 // pred_fallthru
      _
    // Predicated region
    $region10: #{mu_model.3} parent=1 // pred_check
      _
    $region11: #{mu_model.3} parent=1 // pred_check_branch
      %52 = sbr.rel (0) target = $region13
    $region12: #{mu_model.3} parent=1 // pred_region
      %53 = dma.done [#allocation3], 512
    $region13: #{mu_model.3} parent=1 // pred_fallthru
      _
    %54 = vsyncpa [#allocation3], 1

// kernel: mu_model.2
$region0: #{mu_model.2}
  #allocation0 [shape = 'u32[]', space=smem, size = 0x4, offset = 0x4, fixed_abs, tag = 'smem constant byte address 0x4 - core index']
  #allocation1 [shape = 'u32[144,128]{1,0:T(1,128)}', space=vmem, size = 0x12000, scoped, tag = 'internal scratch']
  #allocation2 [shape = 'f32[8,16,1024]{2,1,0:T(8,128)}', space=vmem, size = 0x80000, scoped, tag = 'scratch operand']
  #allocation3 [shape = 'f32[8,16,1024]{2,1,0:T(8,128)}', space=vmem, size = 0x80000, scoped, tag = 'scratch operand']
  #allocation4 [shape = 'f32[8,16,1024]{2,1,0:T(8,128)}', space=vmem, size = 0x80000, scoped, tag = 'scratch operand']
  %s0 = inlined_call_operand.vmem [shape: f32[2,8,3], index: 0, kind: input, shape index: {}]
  %s1 = inlined_call_operand.vmem [shape: f32[3,512], index: 1, kind: input, shape index: {}]
  %s2 = inlined_call_operand.vmem [shape: f32[1,512], index: 2, kind: input, shape index: {}]
  %s3 = inlined_call_operand.vmem [shape: bf16[512,2048], index: 3, kind: input, shape index: {}]
  %s4 = inlined_call_operand.vmem [shape: f32[4,1024], index: 4, kind: input, shape index: {}]
  %s5 = inlined_call_operand.vmem [shape: f32[1,1024], index: 5, kind: input, shape index: {}]
  %s6 = inlined_call_operand.vmem [shape: bf16[1024,32], index: 6, kind: input, shape index: {}]
  %s7 = inlined_call_operand.vmem [shape: bf16[1024,16], index: 7, kind: input, shape index: {}]
  %s8 = inlined_call_operand.vmem [shape: bf16[1024,16], index: 8, kind: input, shape index: {}]
  %s9 = inlined_call_operand.vmem [shape: bf16[32,1024], index: 9, kind: input, shape index: {}]
  %s10 = inlined_call_operand.vmem [shape: f32[1,1024], index: 10, kind: input, shape index: {}]
  %s11 = inlined_call_operand.vmem [shape: f32[16,1024], index: 11, kind: input, shape index: {}]
  %s12 = inlined_call_operand.vmem [shape: f32[1,1024], index: 12, kind: input, shape index: {}]
  %s13 = inlined_call_operand.vmem [shape: bf16[1024,512], index: 13, kind: input, shape index: {}]
  %s14 = inlined_call_operand.vmem [shape: bf16[512,256], index: 14, kind: input, shape index: {}]
  %s15 = inlined_call_operand.vmem [shape: f32[1,256], index: 15, kind: input, shape index: {}]
  %s16 = inlined_call_operand.vmem [shape: f32[2,8,256], index: 16, kind: output, shape index: {}]
  %s17 = sld [smem:[#allocation0]]
  $region104: #{mu_model.2} parent=0
    _
  %s19 = ssub.s32 1, %s17
  %s20 = scalar_select 0, %s19, %s17
  loop: start=0, step=1, limit=4
  $region2: #{mu_model.2} parent=0 // loop_pre_header
    _
  $region3: #{mu_model.2} parent=0 // loop_header
    %s22 = sphi 0, %s26
    %p23 = scmp.ge.s32.totalorder %s22, 4
    %s32 = sphi 0, %s34
    %s35 = sphi 0, %s32
    %s36 = sphi 0, %s35
    %s52 = sphi 0, %s36
    %s56 = sphi 0, %s56
    %s58 = sphi 0, %s56
    %s59 = sphi 0, %s58
    %s73 = sphi 0, %s59
    %s77 = sphi 0, %s77
    %s79 = sphi 0, %s77
    %s80 = sphi 0, %s79
    %s94 = sphi 0, %s80
    %s98 = sphi 0, %s98
    %s100 = sphi 0, %s98
    %s101 = sphi 0, %s100
    %s115 = sphi 0, %s101
    %s119 = sphi 0, %s119
    %s121 = sphi 0, %s119
    %s122 = sphi 0, %s121
    %s136 = sphi 0, %s122
    %s140 = sphi 0, %s140
    %s142 = sphi 0, %s140
    %s143 = sphi 0, %s142
    %s157 = sphi 0, %s143
    %s161 = sphi 0, %s161
    %s163 = sphi 0, %s161
    %s164 = sphi 0, %s163
    %s178 = sphi 0, %s164
    %s182 = sphi 0, %s182
    %s184 = sphi 0, %s182
    %s185 = sphi 0, %s184
    %s199 = sphi 0, %s185
    %s203 = sphi 0, %s203
    %s205 = sphi 0, %s203
    %s206 = sphi 0, %s205
    %s220 = sphi 0, %s206
    %s224 = sphi 0, %s224
    %s226 = sphi 0, %s224
    %s227 = sphi 0, %s226
    %s241 = sphi 0, %s227
    %s245 = sphi 0, %s245
    %s247 = sphi 0, %s245
    %s248 = sphi 0, %s247
    %s262 = sphi 0, %s248
    %s266 = sphi 0, %s266
    %s268 = sphi 0, %s266
    %s269 = sphi 0, %s268
    %s283 = sphi 0, %s269
    %s287 = sphi 0, %s287
    %s289 = sphi 0, %s287
    %s290 = sphi 0, %s289
    %s304 = sphi 0, %s290
    %s308 = sphi 0, %s308
    %s310 = sphi 0, %s308
    %s311 = sphi 0, %s310
    %s325 = sphi 0, %s311
    %s329 = sphi 0, %s329
    %s331 = sphi 0, %s329
    %s332 = sphi 0, %s331
    %s346 = sphi 0, %s332
    %s350 = sphi 0, %s350
    %s352 = sphi 0, %s350
    %s353 = sphi 0, %s352
    %s367 = sphi 0, %s353
    %s373 = sphi 0, %s375
    %s376 = sphi 0, %s373
    %s377 = sphi 0, %s376
    %s393 = sphi 0, %s377
  $region4: #{mu_model.2} parent=0 // loop_header_branch
    %25 = sbr.rel (%p23) target = $region8
  $region5: #{mu_model.2} parent=0 // loop_body
    %s27 = ssub.s32 %s22, 1
    %s28 = ssub.s32 %s22, 2
    %s29 = sadd.s32 %s22, 1
    %s30 = ssub.s32 %s22, %s29
    %p31 = scmp.eq.s32.totalorder %s30, 0
    %s33 = sadd.s32 %s32, 1
    %s34 = scalar_select %p31, %s32, %s33
    %p37 = pneg %p31
    %p38 = scmp.eq.s32.totalorder %s22, 1
    %p39 = por %p37, %p38
    %p40 = scmp.ne.s32.totalorder %s32, %s35
    %p41 = scmp.eq.s32.totalorder %s22, 0
    %p42 = por %p40, %p41
    %p43 = scmp.ne.s32.totalorder %s32, %s35
    %p44 = scmp.eq.s32.totalorder %s27, 1
    %p45 = por %p43, %p44
    %p46 = scmp.ne.s32.totalorder %s35, %s36
    %p47 = scmp.eq.s32.totalorder %s27, 0
    %p48 = por %p46, %p47
    %p49 = scmp.ne.s32.totalorder %s35, %s36
    %p50 = scmp.eq.s32.totalorder %s28, 1
    %p51 = por %p49, %p50
    %p53 = scmp.ne.s32.totalorder %s36, %s52
    %p54 = scmp.eq.s32.totalorder %s28, 0
    %p55 = por %p53, %p54
    %s57 = sadd.s32 %s56, 1
    %p60 = scmp.eq.s32.totalorder %s22, 1
    %p61 = scmp.ne.s32.totalorder %s56, %s58
    %p62 = scmp.eq.s32.totalorder %s22, 0
    %p63 = por %p61, %p62
    %p64 = scmp.ne.s32.totalorder %s56, %s58
    %p65 = scmp.eq.s32.totalorder %s27, 1
    %p66 = por %p64, %p65
    %p67 = scmp.ne.s32.totalorder %s58, %s59
    %p68 = scmp.eq.s32.totalorder %s27, 0
    %p69 = por %p67, %p68
    %p70 = scmp.ne.s32.totalorder %s58, %s59
    %p71 = scmp.eq.s32.totalorder %s28, 1
    %p72 = por %p70, %p71
    %p74 = scmp.ne.s32.totalorder %s59, %s73
    %p75 = scmp.eq.s32.totalorder %s28, 0
    %p76 = por %p74, %p75
    %s78 = sadd.s32 %s77, 1
    %p81 = scmp.eq.s32.totalorder %s22, 1
    %p82 = scmp.ne.s32.totalorder %s77, %s79
    %p83 = scmp.eq.s32.totalorder %s22, 0
    %p84 = por %p82, %p83
    %p85 = scmp.ne.s32.totalorder %s77, %s79
    %p86 = scmp.eq.s32.totalorder %s27, 1
    %p87 = por %p85, %p86
    %p88 = scmp.ne.s32.totalorder %s79, %s80
    %p89 = scmp.eq.s32.totalorder %s27, 0
    %p90 = por %p88, %p89
    %p91 = scmp.ne.s32.totalorder %s79, %s80
    %p92 = scmp.eq.s32.totalorder %s28, 1
    %p93 = por %p91, %p92
    %p95 = scmp.ne.s32.totalorder %s80, %s94
    %p96 = scmp.eq.s32.totalorder %s28, 0
    %p97 = por %p95, %p96
    %s99 = sadd.s32 %s98, 1
    %p102 = scmp.eq.s32.totalorder %s22, 1
    %p103 = scmp.ne.s32.totalorder %s98, %s100
    %p104 = scmp.eq.s32.totalorder %s22, 0
    %p105 = por %p103, %p104
    %p106 = scmp.ne.s32.totalorder %s98, %s100
    %p107 = scmp.eq.s32.totalorder %s27, 1
    %p108 = por %p106, %p107
    %p109 = scmp.ne.s32.totalorder %s100, %s101
    %p110 = scmp.eq.s32.totalorder %s27, 0
    %p111 = por %p109, %p110
    %p112 = scmp.ne.s32.totalorder %s100, %s101
    %p113 = scmp.eq.s32.totalorder %s28, 1
    %p114 = por %p112, %p113
    %p116 = scmp.ne.s32.totalorder %s101, %s115
    %p117 = scmp.eq.s32.totalorder %s28, 0
    %p118 = por %p116, %p117
    %s120 = sadd.s32 %s119, 1
    %p123 = scmp.eq.s32.totalorder %s22, 1
    %p124 = scmp.ne.s32.totalorder %s119, %s121
    %p125 = scmp.eq.s32.totalorder %s22, 0
    %p126 = por %p124, %p125
    %p127 = scmp.ne.s32.totalorder %s119, %s121
    %p128 = scmp.eq.s32.totalorder %s27, 1
    %p129 = por %p127, %p128
    %p130 = scmp.ne.s32.totalorder %s121, %s122
    %p131 = scmp.eq.s32.totalorder %s27, 0
    %p132 = por %p130, %p131
    %p133 = scmp.ne.s32.totalorder %s121, %s122
    %p134 = scmp.eq.s32.totalorder %s28, 1
    %p135 = por %p133, %p134
    %p137 = scmp.ne.s32.totalorder %s122, %s136
    %p138 = scmp.eq.s32.totalorder %s28, 0
    %p139 = por %p137, %p138
    %s141 = sadd.s32 %s140, 1
    %p144 = scmp.eq.s32.totalorder %s22, 1
    %p145 = scmp.ne.s32.totalorder %s140, %s142
    %p146 = scmp.eq.s32.totalorder %s22, 0
    %p147 = por %p145, %p146
    %p148 = scmp.ne.s32.totalorder %s140, %s142
    %p149 = scmp.eq.s32.totalorder %s27, 1
    %p150 = por %p148, %p149
    %p151 = scmp.ne.s32.totalorder %s142, %s143
    %p152 = scmp.eq.s32.totalorder %s27, 0
    %p153 = por %p151, %p152
    %p154 = scmp.ne.s32.totalorder %s142, %s143
    %p155 = scmp.eq.s32.totalorder %s28, 1
    %p156 = por %p154, %p155
    %p158 = scmp.ne.s32.totalorder %s143, %s157
    %p159 = scmp.eq.s32.totalorder %s28, 0
    %p160 = por %p158, %p159
    %s162 = sadd.s32 %s161, 1
    %p165 = scmp.eq.s32.totalorder %s22, 1
    %p166 = scmp.ne.s32.totalorder %s161, %s163
    %p167 = scmp.eq.s32.totalorder %s22, 0
    %p168 = por %p166, %p167
    %p169 = scmp.ne.s32.totalorder %s161, %s163
    %p170 = scmp.eq.s32.totalorder %s27, 1
    %p171 = por %p169, %p170
    %p172 = scmp.ne.s32.totalorder %s163, %s164
    %p173 = scmp.eq.s32.totalorder %s27, 0
    %p174 = por %p172, %p173
    %p175 = scmp.ne.s32.totalorder %s163, %s164
    %p176 = scmp.eq.s32.totalorder %s28, 1
    %p177 = por %p175, %p176
    %p179 = scmp.ne.s32.totalorder %s164, %s178
    %p180 = scmp.eq.s32.totalorder %s28, 0
    %p181 = por %p179, %p180
    %s183 = sadd.s32 %s182, 1
    %p186 = scmp.eq.s32.totalorder %s22, 1
    %p187 = scmp.ne.s32.totalorder %s182, %s184
    %p188 = scmp.eq.s32.totalorder %s22, 0
    %p189 = por %p187, %p188
    %p190 = scmp.ne.s32.totalorder %s182, %s184
    %p191 = scmp.eq.s32.totalorder %s27, 1
    %p192 = por %p190, %p191
    %p193 = scmp.ne.s32.totalorder %s184, %s185
    %p194 = scmp.eq.s32.totalorder %s27, 0
    %p195 = por %p193, %p194
    %p196 = scmp.ne.s32.totalorder %s184, %s185
    %p197 = scmp.eq.s32.totalorder %s28, 1
    %p198 = por %p196, %p197
    %p200 = scmp.ne.s32.totalorder %s185, %s199
    %p201 = scmp.eq.s32.totalorder %s28, 0
    %p202 = por %p200, %p201
    %s204 = sadd.s32 %s203, 1
    %p207 = scmp.eq.s32.totalorder %s22, 1
    %p208 = scmp.ne.s32.totalorder %s203, %s205
    %p209 = scmp.eq.s32.totalorder %s22, 0
    %p210 = por %p208, %p209
    %p211 = scmp.ne.s32.totalorder %s203, %s205
    %p212 = scmp.eq.s32.totalorder %s27, 1
    %p213 = por %p211, %p212
    %p214 = scmp.ne.s32.totalorder %s205, %s206
    %p215 = scmp.eq.s32.totalorder %s27, 0
    %p216 = por %p214, %p215
    %p217 = scmp.ne.s32.totalorder %s205, %s206
    %p218 = scmp.eq.s32.totalorder %s28, 1
    %p219 = por %p217, %p218
    %p221 = scmp.ne.s32.totalorder %s206, %s220
    %p222 = scmp.eq.s32.totalorder %s28, 0
    %p223 = por %p221, %p222
    %s225 = sadd.s32 %s224, 1
    %p228 = scmp.eq.s32.totalorder %s22, 1
    %p229 = scmp.ne.s32.totalorder %s224, %s226
    %p230 = scmp.eq.s32.totalorder %s22, 0
    %p231 = por %p229, %p230
    %p232 = scmp.ne.s32.totalorder %s224, %s226
    %p233 = scmp.eq.s32.totalorder %s27, 1
    %p234 = por %p232, %p233
    %p235 = scmp.ne.s32.totalorder %s226, %s227
    %p236 = scmp.eq.s32.totalorder %s27, 0
    %p237 = por %p235, %p236
    %p238 = scmp.ne.s32.totalorder %s226, %s227
    %p239 = scmp.eq.s32.totalorder %s28, 1
    %p240 = por %p238, %p239
    %p242 = scmp.ne.s32.totalorder %s227, %s241
    %p243 = scmp.eq.s32.totalorder %s28, 0
    %p244 = por %p242, %p243
    %s246 = sadd.s32 %s245, 1
    %p249 = scmp.eq.s32.totalorder %s22, 1
    %p250 = scmp.ne.s32.totalorder %s245, %s247
    %p251 = scmp.eq.s32.totalorder %s22, 0
    %p252 = por %p250, %p251
    %p253 = scmp.ne.s32.totalorder %s245, %s247
    %p254 = scmp.eq.s32.totalorder %s27, 1
    %p255 = por %p253, %p254
    %p256 = scmp.ne.s32.totalorder %s247, %s248
    %p257 = scmp.eq.s32.totalorder %s27, 0
    %p258 = por %p256, %p257
    %p259 = scmp.ne.s32.totalorder %s247, %s248
    %p260 = scmp.eq.s32.totalorder %s28, 1
    %p261 = por %p259, %p260
    %p263 = scmp.ne.s32.totalorder %s248, %s262
    %p264 = scmp.eq.s32.totalorder %s28, 0
    %p265 = por %p263, %p264
    %s267 = sadd.s32 %s266, 1
    %p270 = scmp.eq.s32.totalorder %s22, 1
    %p271 = scmp.ne.s32.totalorder %s266, %s268
    %p272 = scmp.eq.s32.totalorder %s22, 0
    %p273 = por %p271, %p272
    %p274 = scmp.ne.s32.totalorder %s266, %s268
    %p275 = scmp.eq.s32.totalorder %s27, 1
    %p276 = por %p274, %p275
    %p277 = scmp.ne.s32.totalorder %s268, %s269
    %p278 = scmp.eq.s32.totalorder %s27, 0
    %p279 = por %p277, %p278
    %p280 = scmp.ne.s32.totalorder %s268, %s269
    %p281 = scmp.eq.s32.totalorder %s28, 1
    %p282 = por %p280, %p281
    %p284 = scmp.ne.s32.totalorder %s269, %s283
    %p285 = scmp.eq.s32.totalorder %s28, 0
    %p286 = por %p284, %p285
    %s288 = sadd.s32 %s287, 1
    %p291 = scmp.eq.s32.totalorder %s22, 1
    %p292 = scmp.ne.s32.totalorder %s287, %s289
    %p293 = scmp.eq.s32.totalorder %s22, 0
    %p294 = por %p292, %p293
    %p295 = scmp.ne.s32.totalorder %s287, %s289
    %p296 = scmp.eq.s32.totalorder %s27, 1
    %p297 = por %p295, %p296
    %p298 = scmp.ne.s32.totalorder %s289, %s290
    %p299 = scmp.eq.s32.totalorder %s27, 0
    %p300 = por %p298, %p299
    %p301 = scmp.ne.s32.totalorder %s289, %s290
    %p302 = scmp.eq.s32.totalorder %s28, 1
    %p303 = por %p301, %p302
    %p305 = scmp.ne.s32.totalorder %s290, %s304
    %p306 = scmp.eq.s32.totalorder %s28, 0
    %p307 = por %p305, %p306
    %s309 = sadd.s32 %s308, 1
    %p312 = scmp.eq.s32.totalorder %s22, 1
    %p313 = scmp.ne.s32.totalorder %s308, %s310
    %p314 = scmp.eq.s32.totalorder %s22, 0
    %p315 = por %p313, %p314
    %p316 = scmp.ne.s32.totalorder %s308, %s310
    %p317 = scmp.eq.s32.totalorder %s27, 1
    %p318 = por %p316, %p317
    %p319 = scmp.ne.s32.totalorder %s310, %s311
    %p320 = scmp.eq.s32.totalorder %s27, 0
    %p321 = por %p319, %p320
    %p322 = scmp.ne.s32.totalorder %s310, %s311
    %p323 = scmp.eq.s32.totalorder %s28, 1
    %p324 = por %p322, %p323
    %p326 = scmp.ne.s32.totalorder %s311, %s325
    %p327 = scmp.eq.s32.totalorder %s28, 0
    %p328 = por %p326, %p327
    %s330 = sadd.s32 %s329, 1
    %p333 = scmp.eq.s32.totalorder %s22, 1
    %p334 = scmp.ne.s32.totalorder %s329, %s331
    %p335 = scmp.eq.s32.totalorder %s22, 0
    %p336 = por %p334, %p335
    %p337 = scmp.ne.s32.totalorder %s329, %s331
    %p338 = scmp.eq.s32.totalorder %s27, 1
    %p339 = por %p337, %p338
    %p340 = scmp.ne.s32.totalorder %s331, %s332
    %p341 = scmp.eq.s32.totalorder %s27, 0
    %p342 = por %p340, %p341
    %p343 = scmp.ne.s32.totalorder %s331, %s332
    %p344 = scmp.eq.s32.totalorder %s28, 1
    %p345 = por %p343, %p344
    %p347 = scmp.ne.s32.totalorder %s332, %s346
    %p348 = scmp.eq.s32.totalorder %s28, 0
    %p349 = por %p347, %p348
    %s351 = sadd.s32 %s350, 1
    %p354 = scmp.eq.s32.totalorder %s22, 1
    %p355 = scmp.ne.s32.totalorder %s350, %s352
    %p356 = scmp.eq.s32.totalorder %s22, 0
    %p357 = por %p355, %p356
    %p358 = scmp.ne.s32.totalorder %s350, %s352
    %p359 = scmp.eq.s32.totalorder %s27, 1
    %p360 = por %p358, %p359
    %p361 = scmp.ne.s32.totalorder %s352, %s353
    %p362 = scmp.eq.s32.totalorder %s27, 0
    %p363 = por %p361, %p362
    %p364 = scmp.ne.s32.totalorder %s352, %s353
    %p365 = scmp.eq.s32.totalorder %s28, 1
    %p366 = por %p364, %p365
    %p368 = scmp.ne.s32.totalorder %s353, %s367
    %p369 = scmp.eq.s32.totalorder %s28, 0
    %p370 = por %p368, %p369
    %s371 = ssub.s32 %s22, %s29
    %p372 = scmp.eq.s32.totalorder %s371, 0
    %s374 = sadd.s32 %s373, 1
    %s375 = scalar_select %p372, %s373, %s374
    %p378 = pneg %p372
    %p379 = scmp.eq.s32.totalorder %s22, 1
    %p380 = por %p378, %p379
    %p381 = scmp.ne.s32.totalorder %s373, %s376
    %p382 = scmp.eq.s32.totalorder %s22, 0
    %p383 = por %p381, %p382
    %p384 = scmp.ne.s32.totalorder %s373, %s376
    %p385 = scmp.eq.s32.totalorder %s27, 1
    %p386 = por %p384, %p385
    %p387 = scmp.ne.s32.totalorder %s376, %s377
    %p388 = scmp.eq.s32.totalorder %s27, 0
    %p389 = por %p387, %p388
    %p390 = scmp.ne.s32.totalorder %s376, %s377
    %p391 = scmp.eq.s32.totalorder %s28, 1
    %p392 = por %p390, %p391
    %p394 = scmp.ne.s32.totalorder %s377, %s393
    %p395 = scmp.eq.s32.totalorder %s28, 0
    %p396 = por %p394, %p395
    %p397 = scmp.le.s32.totalorder 1, %s22
    %p398 = scmp.lt.s32.totalorder %s22, 3
    %p399 = pnand %p397, %p398
    %p400 = pneg %p399
    // Predicated region
    $region9: #{mu_model.2} parent=5 // pred_check
      _
    $region10: #{mu_model.2} parent=5 // pred_check_branch
      %402 = sbr.rel (%p399) target = $region12
    $region11: #{mu_model.2} parent=5 // pred_region
      %s403 = ssub.s32 %s22, 1
      // Predicated region
      $region13: #{mu_model.2} parent=11 // pred_check
        %p404 = pneg %p69
      $region14: #{mu_model.2} parent=11 // pred_check_branch
        %406 = sbr.rel (%p404) target = $region16
      $region15: #{mu_model.2} parent=11 // pred_region
        _
      $region16: #{mu_model.2} parent=11 // pred_fallthru
        _
      // Predicated region
      $region17: #{mu_model.2} parent=11 // pred_check
        %p407 = pneg %p90
      $region18: #{mu_model.2} parent=11 // pred_check_branch
        %409 = sbr.rel (%p407) target = $region20
      $region19: #{mu_model.2} parent=11 // pred_region
        _
      $region20: #{mu_model.2} parent=11 // pred_fallthru
        _
      // Predicated region
      $region21: #{mu_model.2} parent=11 // pred_check
        %p410 = pneg %p111
      $region22: #{mu_model.2} parent=11 // pred_check_branch
        %412 = sbr.rel (%p410) target = $region24
      $region23: #{mu_model.2} parent=11 // pred_region
        _
      $region24: #{mu_model.2} parent=11 // pred_fallthru
        _
      // Predicated region
      $region25: #{mu_model.2} parent=11 // pred_check
        %p413 = pneg %p132
      $region26: #{mu_model.2} parent=11 // pred_check_branch
        %415 = sbr.rel (%p413) target = $region28
      $region27: #{mu_model.2} parent=11 // pred_region
        _
      $region28: #{mu_model.2} parent=11 // pred_fallthru
        _
      // Predicated region
      $region29: #{mu_model.2} parent=11 // pred_check
        %p416 = pneg %p153
      $region30: #{mu_model.2} parent=11 // pred_check_branch
        %418 = sbr.rel (%p416) target = $region32
      $region31: #{mu_model.2} parent=11 // pred_region
        _
      $region32: #{mu_model.2} parent=11 // pred_fallthru
        _
      // Predicated region
      $region33: #{mu_model.2} parent=11 // pred_check
        %p419 = pneg %p174
      $region34: #{mu_model.2} parent=11 // pred_check_branch
        %421 = sbr.rel (%p419) target = $region36
      $region35: #{mu_model.2} parent=11 // pred_region
        _
      $region36: #{mu_model.2} parent=11 // pred_fallthru
        _
      // Predicated region
      $region37: #{mu_model.2} parent=11 // pred_check
        %p422 = pneg %p195
      $region38: #{mu_model.2} parent=11 // pred_check_branch
        %424 = sbr.rel (%p422) target = $region40
      $region39: #{mu_model.2} parent=11 // pred_region
        _
      $region40: #{mu_model.2} parent=11 // pred_fallthru
        _
      // Predicated region
      $region41: #{mu_model.2} parent=11 // pred_check
        %p425 = pneg %p216
      $region42: #{mu_model.2} parent=11 // pred_check_branch
        %427 = sbr.rel (%p425) target = $region44
      $region43: #{mu_model.2} parent=11 // pred_region
        _
      $region44: #{mu_model.2} parent=11 // pred_fallthru
        _
      // Predicated region
      $region45: #{mu_model.2} parent=11 // pred_check
        %p428 = pneg %p237
      $region46: #{mu_model.2} parent=11 // pred_check_branch
        %430 = sbr.rel (%p428) target = $region48
      $region47: #{mu_model.2} parent=11 // pred_region
        _
      $region48: #{mu_model.2} parent=11 // pred_fallthru
        _
      // Predicated region
      $region49: #{mu_model.2} parent=11 // pred_check
        %p431 = pneg %p258
      $region50: #{mu_model.2} parent=11 // pred_check_branch
        %433 = sbr.rel (%p431) target = $region52
      $region51: #{mu_model.2} parent=11 // pred_region
        _
      $region52: #{mu_model.2} parent=11 // pred_fallthru
        _
      // Predicated region
      $region53: #{mu_model.2} parent=11 // pred_check
        %p434 = pneg %p279
      $region54: #{mu_model.2} parent=11 // pred_check_branch
        %436 = sbr.rel (%p434) target = $region56
      $region55: #{mu_model.2} parent=11 // pred_region
        _
      $region56: #{mu_model.2} parent=11 // pred_fallthru
        _
      // Predicated region
      $region57: #{mu_model.2} parent=11 // pred_check
        %p437 = pneg %p300
      $region58: #{mu_model.2} parent=11 // pred_check_branch
        %439 = sbr.rel (%p437) target = $region60
      $region59: #{mu_model.2} parent=11 // pred_region
        _
      $region60: #{mu_model.2} parent=11 // pred_fallthru
        _
      // Predicated region
      $region61: #{mu_model.2} parent=11 // pred_check
        %p440 = pneg %p321
      $region62: #{mu_model.2} parent=11 // pred_check_branch
        %442 = sbr.rel (%p440) target = $region64
      $region63: #{mu_model.2} parent=11 // pred_region
        _
      $region64: #{mu_model.2} parent=11 // pred_fallthru
        _
      // Predicated region
      $region65: #{mu_model.2} parent=11 // pred_check
        %p443 = pneg %p342
      $region66: #{mu_model.2} parent=11 // pred_check_branch
        %445 = sbr.rel (%p443) target = $region68
      $region67: #{mu_model.2} parent=11 // pred_region
        _
      $region68: #{mu_model.2} parent=11 // pred_fallthru
        _
      // Predicated region
      $region69: #{mu_model.2} parent=11 // pred_check
        %p446 = pneg %p363
      $region70: #{mu_model.2} parent=11 // pred_check_branch
        %448 = sbr.rel (%p446) target = $region72
      $region71: #{mu_model.2} parent=11 // pred_region
        _
      $region72: #{mu_model.2} parent=11 // pred_fallthru
        _
    $region12: #{mu_model.2} parent=5 // pred_fallthru
      _
    %p449 = scmp.lt.s32.totalorder %s22, 2
    // Predicated region
    $region73: #{mu_model.2} parent=5 // pred_check
      %p450 = pneg %p449
    $region74: #{mu_model.2} parent=5 // pred_check_branch
      %452 = sbr.rel (%p450) target = $region76
    $region75: #{mu_model.2} parent=5 // pred_region
      // Predicated region
      $region77: #{mu_model.2} parent=75 // pred_check
        %p453 = pneg %p42
      $region78: #{mu_model.2} parent=75 // pred_check_branch
        %455 = sbr.rel (%p453) target = $region80
      $region79: #{mu_model.2} parent=75 // pred_region
        %p456 = scmp.lt.s32.totalorder %s22, 1
        %s457 = scalar_select %p456, %s22, 1
        %s458 = smul.addr %s457, 8
        %s459 = scalar_lea.vmem %s0, %s458
      $region80: #{mu_model.2} parent=75 // pred_fallthru
        _
    $region76: #{mu_model.2} parent=5 // pred_fallthru
      _
    %p460 = scmp.le.s32.totalorder 1, %s22
    %p461 = scmp.lt.s32.totalorder %s22, 3
    %p462 = pnand %p460, %p461
    %p463 = pneg %p462
    // Predicated region
    $region81: #{mu_model.2} parent=5 // pred_check
      _
    $region82: #{mu_model.2} parent=5 // pred_check_branch
      %465 = sbr.rel (%p462) target = $region84
    $region83: #{mu_model.2} parent=5 // pred_region
      %s466 = ssub.s32 %s22, 1
      %p467 = scmp.lt.s32.totalorder %s27, 1
      %s468 = scalar_select %p467, %s27, 1
      %s469 = smul.addr %s468, 8
      %s470 = scalar_lea.vmem %s0, %s469
      %p471 = pneg %p48
      %p472 = pneg %p45
      %p473 = pneg %p69
      %p474 = pneg %p66
      %p475 = pneg %p90
      %p476 = pneg %p87
      %p477 = pneg %p111
      %p478 = pneg %p108
      %p479 = pneg %p132
      %p480 = pneg %p129
      %p481 = pneg %p153
      %p482 = pneg %p150
      %p483 = pneg %p174
      %p484 = pneg %p171
      %p485 = pneg %p195
      %p486 = pneg %p192
      %p487 = pneg %p216
      %p488 = pneg %p213
      %p489 = pneg %p237
      %p490 = pneg %p234
      %p491 = pneg %p258
      %p492 = pneg %p255
      %p493 = pneg %p279
      %p494 = pneg %p276
      %p495 = pneg %p300
      %p496 = pneg %p297
      %p497 = pneg %p321
      %p498 = pneg %p318
      %p499 = pneg %p342
      %p500 = pneg %p339
      %p501 = pneg %p363
      %p502 = pneg %p360
      %p503 = pneg %p389
      %p504 = pneg %p386
      %p505 = scmp.lt.s32.totalorder %s27, 1
      %s506 = scalar_select %p505, %s27, 1
      %s507 = smul.addr %s506, 2
      %s508 = smul.addr %s507, 8
      %s509 = scalar_lea.vmem %s16, %s508
      %p510 = scmp.lt.s32.totalorder %s27, 1
      %s511 = scalar_select %p510, %s27, 1
      %s512 = smul.addr %s511, 8
      %s513 = scalar_lea.vmem %s0, %s512
      %p514 = scmp.lt.s32.totalorder %s27, 1
      %s515 = scalar_select %p514, %s27, 1
      %s516 = smul.addr %s515, 2
      %s517 = smul.addr %s516, 8
      %s518 = scalar_lea.vmem %s16, %s517
      %v520 = vld [vmem:[%s513] sm:$0xff]
      %v521 = vld [vmem:[%s1] sm:$0x77]
      %v522 = vld [vmem:[%s1 + $0x8] sm:$0x77]
      %524 = vset.pattern.permute.xlu0 0
      %525 = vperm.xlu0 %524, %v520
      %v526 = vpop.permute.xlu0 %525
      %v530 = vlaneseq
      %v531 = vshrl.u32 %v530, 7
      %v532 = vsub.s32 0, %v531
      %v533 = vrot.slane %v521, %v532
      %v534 = vlaneseq
      %v535 = vshrl.u32 %v534, 7
      %v536 = vsub.s32 4, %v535
      %v537 = vrot.slane %v521, %v536
      %v538 = vlaneseq
      %v539 = vshrl.u32 %v538, 7
      %v540 = vsub.s32 0, %v539
      %v541 = vrot.slane %v522, %v540
      %v542 = vlaneseq
      %v543 = vshrl.u32 %v542, 7
      %v544 = vsub.s32 4, %v543
      %v545 = vrot.slane %v522, %v544
      %v550 = vlaneseq
      %v551 = vshrl.u32 %v550, 7
      %v552 = vsub.s32 0, %v551
      %v553 = vrot.slane %v533, %v552
      %v554 = vlaneseq
      %v555 = vshrl.u32 %v554, 7
      %v556 = vsub.s32 0, %v555
      %v557 = vrot.slane %v537, %v556
      %v558 = vlaneseq
      %v559 = vshrl.u32 %v558, 7
      %v560 = vsub.s32 0, %v559
      %v561 = vrot.slane %v541, %v560
      %v562 = vlaneseq
      %v563 = vshrl.u32 %v562, 7
      %v564 = vsub.s32 0, %v563
      %v565 = vrot.slane %v545, %v564
      %v566 = vmul.f32 %v526, %v553
      %v567 = vmul.f32 %v526, %v557
      %v568 = vmul.f32 %v526, %v561
      %v569 = vmul.f32 %v526, %v565
      %570 = vset.pattern.permute.xlu0 1
      %571 = vperm.xlu0 %570, %v520
      %v572 = vpop.permute.xlu0 %571
      %v574 = vlaneseq
      %v575 = vshrl.u32 %v574, 7
      %v576 = vsub.s32 1, %v575
      %v577 = vrot.slane %v521, %v576
      %v578 = vlaneseq
      %v579 = vshrl.u32 %v578, 7
      %v580 = vsub.s32 5, %v579
      %v581 = vrot.slane %v521, %v580
      %v582 = vlaneseq
      %v583 = vshrl.u32 %v582, 7
      %v584 = vsub.s32 1, %v583
      %v585 = vrot.slane %v522, %v584
      %v586 = vlaneseq
      %v587 = vshrl.u32 %v586, 7
      %v588 = vsub.s32 5, %v587
      %v589 = vrot.slane %v522, %v588
      %v594 = vlaneseq
      %v595 = vshrl.u32 %v594, 7
      %v596 = vsub.s32 1, %v595
      %v597 = vrot.slane %v577, %v596
      %v598 = vlaneseq
      %v599 = vshrl.u32 %v598, 7
      %v600 = vsub.s32 1, %v599
      %v601 = vrot.slane %v581, %v600
      %v602 = vlaneseq
      %v603 = vshrl.u32 %v602, 7
      %v604 = vsub.s32 1, %v603
      %v605 = vrot.slane %v585, %v604
      %v606 = vlaneseq
      %v607 = vshrl.u32 %v606, 7
      %v608 = vsub.s32 1, %v607
      %v609 = vrot.slane %v589, %v608
      %v610 = vmul.f32 %v572, %v597
      %v611 = vmul.f32 %v572, %v601
      %v612 = vmul.f32 %v572, %v605
      %v613 = vmul.f32 %v572, %v609
      %v614 = vadd.f32 %v566, %v610
      %v615 = vadd.f32 %v567, %v611
      %v616 = vadd.f32 %v568, %v612
      %v617 = vadd.f32 %v569, %v613
      %618 = vset.pattern.permute.xlu0 2
      %619 = vperm.xlu0 %618, %v520
      %v620 = vpop.permute.xlu0 %619
      %v622 = vlaneseq
      %v623 = vshrl.u32 %v622, 7
      %v624 = vsub.s32 2, %v623
      %v625 = vrot.slane %v521, %v624
      %v626 = vlaneseq
      %v627 = vshrl.u32 %v626, 7
      %v628 = vsub.s32 6, %v627
      %v629 = vrot.slane %v521, %v628
      %v630 = vlaneseq
      %v631 = vshrl.u32 %v630, 7
      %v632 = vsub.s32 2, %v631
      %v633 = vrot.slane %v522, %v632
      %v634 = vlaneseq
      %v635 = vshrl.u32 %v634, 7
      %v636 = vsub.s32 6, %v635
      %v637 = vrot.slane %v522, %v636
      %v642 = vlaneseq
      %v643 = vshrl.u32 %v642, 7
      %v644 = vsub.s32 2, %v643
      %v645 = vrot.slane %v625, %v644
      %v646 = vlaneseq
      %v647 = vshrl.u32 %v646, 7
      %v648 = vsub.s32 2, %v647
      %v649 = vrot.slane %v629, %v648
      %v650 = vlaneseq
      %v651 = vshrl.u32 %v650, 7
      %v652 = vsub.s32 2, %v651
      %v653 = vrot.slane %v633, %v652
      %v654 = vlaneseq
      %v655 = vshrl.u32 %v654, 7
      %v656 = vsub.s32 2, %v655
      %v657 = vrot.slane %v637, %v656
      %v658 = vmul.f32 %v620, %v645
      %v659 = vmul.f32 %v620, %v649
      %v660 = vmul.f32 %v620, %v653
      %v661 = vmul.f32 %v620, %v657
      %v662 = vadd.f32 %v614, %v658
      %v663 = vadd.f32 %v615, %v659
      %v664 = vadd.f32 %v616, %v660
      %v665 = vadd.f32 %v617, %v661
      %v666 = vld [vmem:[%s2] sm:$0xf]
      %v668 = vlaneseq
      %v669 = vshrl.u32 %v668, 7
      %v670 = vsub.s32 0, %v669
      %v671 = vrot.slane %v666, %v670
      %v672 = vlaneseq
      %v673 = vshrl.u32 %v672, 7
      %v674 = vsub.s32 1, %v673
      %v675 = vrot.slane %v666, %v674
      %v676 = vlaneseq
      %v677 = vshrl.u32 %v676, 7
      %v678 = vsub.s32 2, %v677
      %v679 = vrot.slane %v666, %v678
      %v680 = vlaneseq
      %v681 = vshrl.u32 %v680, 7
      %v682 = vsub.s32 3, %v681
      %v683 = vrot.slane %v666, %v682
      %v688 = vadd.f32 %v662, %v671
      %v689 = vadd.f32 %v663, %v675
      %v690 = vadd.f32 %v664, %v679
      %v691 = vadd.f32 %v665, %v683
      %v692 = vtanh.pop %v688
      %v693 = vtanh.pop %v689
      %v694 = vtanh.pop %v690
      %v695 = vtanh.pop %v691
      %v696 = vpack.c.bf16 %v692, %v692
      %v697 = vpack.c.bf16 %v693, %v693
      %v698 = vpack.c.bf16 %v694, %v694
      %v699 = vpack.c.bf16 %v695, %v695
      %v700 = vld [vmem:[%s3] sm:$0xff]
      %v701 = vld [vmem:[%s3 + $0x8] sm:$0xff]
      %v702 = vld [vmem:[%s3 + $0x10] sm:$0xff]
      %v703 = vld [vmem:[%s3 + $0x18] sm:$0xff]
      %v704 = vld [vmem:[%s3 + $0x20] sm:$0xff]
      %v705 = vld [vmem:[%s3 + $0x28] sm:$0xff]
      %v706 = vld [vmem:[%s3 + $0x30] sm:$0xff]
      %v707 = vld [vmem:[%s3 + $0x38] sm:$0xff]
      %v708 = vld [vmem:[%s3 + $0x40] sm:$0xff]
      %v709 = vld [vmem:[%s3 + $0x48] sm:$0xff]
      %v710 = vld [vmem:[%s3 + $0x50] sm:$0xff]
      %v711 = vld [vmem:[%s3 + $0x58] sm:$0xff]
      %v712 = vld [vmem:[%s3 + $0x60] sm:$0xff]
      %v713 = vld [vmem:[%s3 + $0x68] sm:$0xff]
      %v714 = vld [vmem:[%s3 + $0x70] sm:$0xff]
      %v715 = vld [vmem:[%s3 + $0x78] sm:$0xff]
      %v716 = vld [vmem:[%s3 + $0x80] sm:$0xff]
      %v717 = vld [vmem:[%s3 + $0x88] sm:$0xff]
      %v718 = vld [vmem:[%s3 + $0x90] sm:$0xff]
      %v719 = vld [vmem:[%s3 + $0x98] sm:$0xff]
      %v720 = vld [vmem:[%s3 + $0xa0] sm:$0xff]
      %v721 = vld [vmem:[%s3 + $0xa8] sm:$0xff]
      %v722 = vld [vmem:[%s3 + $0xb0] sm:$0xff]
      %v723 = vld [vmem:[%s3 + $0xb8] sm:$0xff]
      %v724 = vld [vmem:[%s3 + $0xc0] sm:$0xff]
      %v725 = vld [vmem:[%s3 + $0xc8] sm:$0xff]
      %v726 = vld [vmem:[%s3 + $0xd0] sm:$0xff]
      %v727 = vld [vmem:[%s3 + $0xd8] sm:$0xff]
      %v728 = vld [vmem:[%s3 + $0xe0] sm:$0xff]
      %v729 = vld [vmem:[%s3 + $0xe8] sm:$0xff]
      %v730 = vld [vmem:[%s3 + $0xf0] sm:$0xff]
      %v731 = vld [vmem:[%s3 + $0xf8] sm:$0xff]
      %v732 = vld [vmem:[%s3 + $0x100] sm:$0xff]
      %v733 = vld [vmem:[%s3 + $0x108] sm:$0xff]
      %v734 = vld [vmem:[%s3 + $0x110] sm:$0xff]
      %v735 = vld [vmem:[%s3 + $0x118] sm:$0xff]
      %v736 = vld [vmem:[%s3 + $0x120] sm:$0xff]
      %v737 = vld [vmem:[%s3 + $0x128] sm:$0xff]
      %v738 = vld [vmem:[%s3 + $0x130] sm:$0xff]
      %v739 = vld [vmem:[%s3 + $0x138] sm:$0xff]
      %v740 = vld [vmem:[%s3 + $0x140] sm:$0xff]
      %v741 = vld [vmem:[%s3 + $0x148] sm:$0xff]
      %v742 = vld [vmem:[%s3 + $0x150] sm:$0xff]
      %v743 = vld [vmem:[%s3 + $0x158] sm:$0xff]
      %v744 = vld [vmem:[%s3 + $0x160] sm:$0xff]
      %v745 = vld [vmem:[%s3 + $0x168] sm:$0xff]
      %v746 = vld [vmem:[%s3 + $0x170] sm:$0xff]
      %v747 = vld [vmem:[%s3 + $0x178] sm:$0xff]
      %v748 = vld [vmem:[%s3 + $0x180] sm:$0xff]
      %v749 = vld [vmem:[%s3 + $0x188] sm:$0xff]
      %v750 = vld [vmem:[%s3 + $0x190] sm:$0xff]
      %v751 = vld [vmem:[%s3 + $0x198] sm:$0xff]
      %v752 = vld [vmem:[%s3 + $0x1a0] sm:$0xff]
      %v753 = vld [vmem:[%s3 + $0x1a8] sm:$0xff]
      %v754 = vld [vmem:[%s3 + $0x1b0] sm:$0xff]
      %v755 = vld [vmem:[%s3 + $0x1b8] sm:$0xff]
      %v756 = vld [vmem:[%s3 + $0x1c0] sm:$0xff]
      %v757 = vld [vmem:[%s3 + $0x1c8] sm:$0xff]
      %v758 = vld [vmem:[%s3 + $0x1d0] sm:$0xff]
      %v759 = vld [vmem:[%s3 + $0x1d8] sm:$0xff]
      %v760 = vld [vmem:[%s3 + $0x1e0] sm:$0xff]
      %v761 = vld [vmem:[%s3 + $0x1e8] sm:$0xff]
      %v762 = vld [vmem:[%s3 + $0x1f0] sm:$0xff]
      %v763 = vld [vmem:[%s3 + $0x1f8] sm:$0xff]
      %v764 = vld [vmem:[%s3 + $0x200] sm:$0xff]
      %v765 = vld [vmem:[%s3 + $0x208] sm:$0xff]
      %v766 = vld [vmem:[%s3 + $0x210] sm:$0xff]
      %v767 = vld [vmem:[%s3 + $0x218] sm:$0xff]
      %v768 = vld [vmem:[%s3 + $0x220] sm:$0xff]
      %v769 = vld [vmem:[%s3 + $0x228] sm:$0xff]
      %v770 = vld [vmem:[%s3 + $0x230] sm:$0xff]
      %v771 = vld [vmem:[%s3 + $0x238] sm:$0xff]
      %v772 = vld [vmem:[%s3 + $0x240] sm:$0xff]
      %v773 = vld [vmem:[%s3 + $0x248] sm:$0xff]
      %v774 = vld [vmem:[%s3 + $0x250] sm:$0xff]
      %v775 = vld [vmem:[%s3 + $0x258] sm:$0xff]
      %v776 = vld [vmem:[%s3 + $0x260] sm:$0xff]
      %v777 = vld [vmem:[%s3 + $0x268] sm:$0xff]
      %v778 = vld [vmem:[%s3 + $0x270] sm:$0xff]
      %v779 = vld [vmem:[%s3 + $0x278] sm:$0xff]
      %v780 = vld [vmem:[%s3 + $0x280] sm:$0xff]
      %v781 = vld [vmem:[%s3 + $0x288] sm:$0xff]
      %v782 = vld [vmem:[%s3 + $0x290] sm:$0xff]
      %v783 = vld [vmem:[%s3 + $0x298] sm:$0xff]
      %v784 = vld [vmem:[%s3 + $0x2a0] sm:$0xff]
      %v785 = vld [vmem:[%s3 + $0x2a8] sm:$0xff]
      %v786 = vld [vmem:[%s3 + $0x2b0] sm:$0xff]
      %v787 = vld [vmem:[%s3 + $0x2b8] sm:$0xff]
      %v788 = vld [vmem:[%s3 + $0x2c0] sm:$0xff]
      %v789 = vld [vmem:[%s3 + $0x2c8] sm:$0xff]
      %v790 = vld [vmem:[%s3 + $0x2d0] sm:$0xff]
      %v791 = vld [vmem:[%s3 + $0x2d8] sm:$0xff]
      %v792 = vld [vmem:[%s3 + $0x2e0] sm:$0xff]
      %v793 = vld [vmem:[%s3 + $0x2e8] sm:$0xff]
      %v794 = vld [vmem:[%s3 + $0x2f0] sm:$0xff]
      %v795 = vld [vmem:[%s3 + $0x2f8] sm:$0xff]
      %v796 = vld [vmem:[%s3 + $0x300] sm:$0xff]
      %v797 = vld [vmem:[%s3 + $0x308] sm:$0xff]
      %v798 = vld [vmem:[%s3 + $0x310] sm:$0xff]
      %v799 = vld [vmem:[%s3 + $0x318] sm:$0xff]
      %v800 = vld [vmem:[%s3 + $0x320] sm:$0xff]
      %v801 = vld [vmem:[%s3 + $0x328] sm:$0xff]
      %v802 = vld [vmem:[%s3 + $0x330] sm:$0xff]
      %v803 = vld [vmem:[%s3 + $0x338] sm:$0xff]
      %v804 = vld [vmem:[%s3 + $0x340] sm:$0xff]
      %v805 = vld [vmem:[%s3 + $0x348] sm:$0xff]
      %v806 = vld [vmem:[%s3 + $0x350] sm:$0xff]
      %v807 = vld [vmem:[%s3 + $0x358] sm:$0xff]
      %v808 = vld [vmem:[%s3 + $0x360] sm:$0xff]
      %v809 = vld [vmem:[%s3 + $0x368] sm:$0xff]
      %v810 = vld [vmem:[%s3 + $0x370] sm:$0xff]
      %v811 = vld [vmem:[%s3 + $0x378] sm:$0xff]
      %v812 = vld [vmem:[%s3 + $0x380] sm:$0xff]
      %v813 = vld [vmem:[%s3 + $0x388] sm:$0xff]
      %v814 = vld [vmem:[%s3 + $0x390] sm:$0xff]
      %v815 = vld [vmem:[%s3 + $0x398] sm:$0xff]
      %v816 = vld [vmem:[%s3 + $0x3a0] sm:$0xff]
      %v817 = vld [vmem:[%s3 + $0x3a8] sm:$0xff]
      %v818 = vld [vmem:[%s3 + $0x3b0] sm:$0xff]
      %v819 = vld [vmem:[%s3 + $0x3b8] sm:$0xff]
      %v820 = vld [vmem:[%s3 + $0x3c0] sm:$0xff]
      %v821 = vld [vmem:[%s3 + $0x3c8] sm:$0xff]
      %v822 = vld [vmem:[%s3 + $0x3d0] sm:$0xff]
      %v823 = vld [vmem:[%s3 + $0x3d8] sm:$0xff]
      %v824 = vld [vmem:[%s3 + $0x3e0] sm:$0xff]
      %v825 = vld [vmem:[%s3 + $0x3e8] sm:$0xff]
      %v826 = vld [vmem:[%s3 + $0x3f0] sm:$0xff]
      %v827 = vld [vmem:[%s3 + $0x3f8] sm:$0xff]
      %v828 = vld [vmem:[%s3 + $0x400] sm:$0xff]
      %v829 = vld [vmem:[%s3 + $0x408] sm:$0xff]
      %v830 = vld [vmem:[%s3 + $0x410] sm:$0xff]
      %v831 = vld [vmem:[%s3 + $0x418] sm:$0xff]
      %v832 = vld [vmem:[%s3 + $0x420] sm:$0xff]
      %v833 = vld [vmem:[%s3 + $0x428] sm:$0xff]
      %v834 = vld [vmem:[%s3 + $0x430] sm:$0xff]
      %v835 = vld [vmem:[%s3 + $0x438] sm:$0xff]
      %v836 = vld [vmem:[%s3 + $0x440] sm:$0xff]
      %v837 = vld [vmem:[%s3 + $0x448] sm:$0xff]
      %v838 = vld [vmem:[%s3 + $0x450] sm:$0xff]
      %v839 = vld [vmem:[%s3 + $0x458] sm:$0xff]
      %v840 = vld [vmem:[%s3 + $0x460] sm:$0xff]
      %v841 = vld [vmem:[%s3 + $0x468] sm:$0xff]
      %v842 = vld [vmem:[%s3 + $0x470] sm:$0xff]
      %v843 = vld [vmem:[%s3 + $0x478] sm:$0xff]
      %v844 = vld [vmem:[%s3 + $0x480] sm:$0xff]
      %v845 = vld [vmem:[%s3 + $0x488] sm:$0xff]
      %v846 = vld [vmem:[%s3 + $0x490] sm:$0xff]
      %v847 = vld [vmem:[%s3 + $0x498] sm:$0xff]
      %v848 = vld [vmem:[%s3 + $0x4a0] sm:$0xff]
      %v849 = vld [vmem:[%s3 + $0x4a8] sm:$0xff]
      %v850 = vld [vmem:[%s3 + $0x4b0] sm:$0xff]
      %v851 = vld [vmem:[%s3 + $0x4b8] sm:$0xff]
      %v852 = vld [vmem:[%s3 + $0x4c0] sm:$0xff]
      %v853 = vld [vmem:[%s3 + $0x4c8] sm:$0xff]
      %v854 = vld [vmem:[%s3 + $0x4d0] sm:$0xff]
      %v855 = vld [vmem:[%s3 + $0x4d8] sm:$0xff]
      %v856 = vld [vmem:[%s3 + $0x4e0] sm:$0xff]
      %v857 = vld [vmem:[%s3 + $0x4e8] sm:$0xff]
      %v858 = vld [vmem:[%s3 + $0x4f0] sm:$0xff]
      %v859 = vld [vmem:[%s3 + $0x4f8] sm:$0xff]
      %v860 = vld [vmem:[%s3 + $0x500] sm:$0xff]
      %v861 = vld [vmem:[%s3 + $0x508] sm:$0xff]
      %v862 = vld [vmem:[%s3 + $0x510] sm:$0xff]
      %v863 = vld [vmem:[%s3 + $0x518] sm:$0xff]
      %v864 = vld [vmem:[%s3 + $0x520] sm:$0xff]
      %v865 = vld [vmem:[%s3 + $0x528] sm:$0xff]
      %v866 = vld [vmem:[%s3 + $0x530] sm:$0xff]
      %v867 = vld [vmem:[%s3 + $0x538] sm:$0xff]
      %v868 = vld [vmem:[%s3 + $0x540] sm:$0xff]
      %v869 = vld [vmem:[%s3 + $0x548] sm:$0xff]
      %v870 = vld [vmem:[%s3 + $0x550] sm:$0xff]
      %v871 = vld [vmem:[%s3 + $0x558] sm:$0xff]
      %v872 = vld [vmem:[%s3 + $0x560] sm:$0xff]
      %v873 = vld [vmem:[%s3 + $0x568] sm:$0xff]
      %v874 = vld [vmem:[%s3 + $0x570] sm:$0xff]
      %v875 = vld [vmem:[%s3 + $0x578] sm:$0xff]
      %v876 = vld [vmem:[%s3 + $0x580] sm:$0xff]
      %v877 = vld [vmem:[%s3 + $0x588] sm:$0xff]
      %v878 = vld [vmem:[%s3 + $0x590] sm:$0xff]
      %v879 = vld [vmem:[%s3 + $0x598] sm:$0xff]
      %v880 = vld [vmem:[%s3 + $0x5a0] sm:$0xff]
      %v881 = vld [vmem:[%s3 + $0x5a8] sm:$0xff]
      %v882 = vld [vmem:[%s3 + $0x5b0] sm:$0xff]
      %v883 = vld [vmem:[%s3 + $0x5b8] sm:$0xff]
      %v884 = vld [vmem:[%s3 + $0x5c0] sm:$0xff]
      %v885 = vld [vmem:[%s3 + $0x5c8] sm:$0xff]
      %v886 = vld [vmem:[%s3 + $0x5d0] sm:$0xff]
      %v887 = vld [vmem:[%s3 + $0x5d8] sm:$0xff]
      %v888 = vld [vmem:[%s3 + $0x5e0] sm:$0xff]
      %v889 = vld [vmem:[%s3 + $0x5e8] sm:$0xff]
      %v890 = vld [vmem:[%s3 + $0x5f0] sm:$0xff]
      %v891 = vld [vmem:[%s3 + $0x5f8] sm:$0xff]
      %v892 = vld [vmem:[%s3 + $0x600] sm:$0xff]
      %v893 = vld [vmem:[%s3 + $0x608] sm:$0xff]
      %v894 = vld [vmem:[%s3 + $0x610] sm:$0xff]
      %v895 = vld [vmem:[%s3 + $0x618] sm:$0xff]
      %v896 = vld [vmem:[%s3 + $0x620] sm:$0xff]
      %v897 = vld [vmem:[%s3 + $0x628] sm:$0xff]
      %v898 = vld [vmem:[%s3 + $0x630] sm:$0xff]
      %v899 = vld [vmem:[%s3 + $0x638] sm:$0xff]
      %v900 = vld [vmem:[%s3 + $0x640] sm:$0xff]
      %v901 = vld [vmem:[%s3 + $0x648] sm:$0xff]
      %v902 = vld [vmem:[%s3 + $0x650] sm:$0xff]
      %v903 = vld [vmem:[%s3 + $0x658] sm:$0xff]
      %v904 = vld [vmem:[%s3 + $0x660] sm:$0xff]
      %v905 = vld [vmem:[%s3 + $0x668] sm:$0xff]
      %v906 = vld [vmem:[%s3 + $0x670] sm:$0xff]
      %v907 = vld [vmem:[%s3 + $0x678] sm:$0xff]
      %v908 = vld [vmem:[%s3 + $0x680] sm:$0xff]
      %v909 = vld [vmem:[%s3 + $0x688] sm:$0xff]
      %v910 = vld [vmem:[%s3 + $0x690] sm:$0xff]
      %v911 = vld [vmem:[%s3 + $0x698] sm:$0xff]
      %v912 = vld [vmem:[%s3 + $0x6a0] sm:$0xff]
      %v913 = vld [vmem:[%s3 + $0x6a8] sm:$0xff]
      %v914 = vld [vmem:[%s3 + $0x6b0] sm:$0xff]
      %v915 = vld [vmem:[%s3 + $0x6b8] sm:$0xff]
      %v916 = vld [vmem:[%s3 + $0x6c0] sm:$0xff]
      %v917 = vld [vmem:[%s3 + $0x6c8] sm:$0xff]
      %v918 = vld [vmem:[%s3 + $0x6d0] sm:$0xff]
      %v919 = vld [vmem:[%s3 + $0x6d8] sm:$0xff]
      %v920 = vld [vmem:[%s3 + $0x6e0] sm:$0xff]
      %v921 = vld [vmem:[%s3 + $0x6e8] sm:$0xff]
      %v922 = vld [vmem:[%s3 + $0x6f0] sm:$0xff]
      %v923 = vld [vmem:[%s3 + $0x6f8] sm:$0xff]
      %v924 = vld [vmem:[%s3 + $0x700] sm:$0xff]
      %v925 = vld [vmem:[%s3 + $0x708] sm:$0xff]
      %v926 = vld [vmem:[%s3 + $0x710] sm:$0xff]
      %v927 = vld [vmem:[%s3 + $0x718] sm:$0xff]
      %v928 = vld [vmem:[%s3 + $0x720] sm:$0xff]
      %v929 = vld [vmem:[%s3 + $0x728] sm:$0xff]
      %v930 = vld [vmem:[%s3 + $0x730] sm:$0xff]
      %v931 = vld [vmem:[%s3 + $0x738] sm:$0xff]
      %v932 = vld [vmem:[%s3 + $0x740] sm:$0xff]
      %v933 = vld [vmem:[%s3 + $0x748] sm:$0xff]
      %v934 = vld [vmem:[%s3 + $0x750] sm:$0xff]
      %v935 = vld [vmem:[%s3 + $0x758] sm:$0xff]
      %v936 = vld [vmem:[%s3 + $0x760] sm:$0xff]
      %v937 = vld [vmem:[%s3 + $0x768] sm:$0xff]
      %v938 = vld [vmem:[%s3 + $0x770] sm:$0xff]
      %v939 = vld [vmem:[%s3 + $0x778] sm:$0xff]
      %v940 = vld [vmem:[%s3 + $0x780] sm:$0xff]
      %v941 = vld [vmem:[%s3 + $0x788] sm:$0xff]
      %v942 = vld [vmem:[%s3 + $0x790] sm:$0xff]
      %v943 = vld [vmem:[%s3 + $0x798] sm:$0xff]
      %v944 = vld [vmem:[%s3 + $0x7a0] sm:$0xff]
      %v945 = vld [vmem:[%s3 + $0x7a8] sm:$0xff]
      %v946 = vld [vmem:[%s3 + $0x7b0] sm:$0xff]
      %v947 = vld [vmem:[%s3 + $0x7b8] sm:$0xff]
      %v948 = vld [vmem:[%s3 + $0x7c0] sm:$0xff]
      %v949 = vld [vmem:[%s3 + $0x7c8] sm:$0xff]
      %v950 = vld [vmem:[%s3 + $0x7d0] sm:$0xff]
      %v951 = vld [vmem:[%s3 + $0x7d8] sm:$0xff]
      %v952 = vld [vmem:[%s3 + $0x7e0] sm:$0xff]
      %v953 = vld [vmem:[%s3 + $0x7e8] sm:$0xff]
      %v954 = vld [vmem:[%s3 + $0x7f0] sm:$0xff]
      %v955 = vld [vmem:[%s3 + $0x7f8] sm:$0xff]
      %v956 = vld [vmem:[%s3 + $0x800] sm:$0xff]
      %v957 = vld [vmem:[%s3 + $0x808] sm:$0xff]
      %v958 = vld [vmem:[%s3 + $0x810] sm:$0xff]
      %v959 = vld [vmem:[%s3 + $0x818] sm:$0xff]
      %v960 = vld [vmem:[%s3 + $0x820] sm:$0xff]
      %v961 = vld [vmem:[%s3 + $0x828] sm:$0xff]
      %v962 = vld [vmem:[%s3 + $0x830] sm:$0xff]
      %v963 = vld [vmem:[%s3 + $0x838] sm:$0xff]
      %v964 = vld [vmem:[%s3 + $0x840] sm:$0xff]
      %v965 = vld [vmem:[%s3 + $0x848] sm:$0xff]
      %v966 = vld [vmem:[%s3 + $0x850] sm:$0xff]
      %v967 = vld [vmem:[%s3 + $0x858] sm:$0xff]
      %v968 = vld [vmem:[%s3 + $0x860] sm:$0xff]
      %v969 = vld [vmem:[%s3 + $0x868] sm:$0xff]
      %v970 = vld [vmem:[%s3 + $0x870] sm:$0xff]
      %v971 = vld [vmem:[%s3 + $0x878] sm:$0xff]
      %v972 = vld [vmem:[%s3 + $0x880] sm:$0xff]
      %v973 = vld [vmem:[%s3 + $0x888] sm:$0xff]
      %v974 = vld [vmem:[%s3 + $0x890] sm:$0xff]
      %v975 = vld [vmem:[%s3 + $0x898] sm:$0xff]
      %v976 = vld [vmem:[%s3 + $0x8a0] sm:$0xff]
      %v977 = vld [vmem:[%s3 + $0x8a8] sm:$0xff]
      %v978 = vld [vmem:[%s3 + $0x8b0] sm:$0xff]
      %v979 = vld [vmem:[%s3 + $0x8b8] sm:$0xff]
      %v980 = vld [vmem:[%s3 + $0x8c0] sm:$0xff]
      %v981 = vld [vmem:[%s3 + $0x8c8] sm:$0xff]
      %v982 = vld [vmem:[%s3 + $0x8d0] sm:$0xff]
      %v983 = vld [vmem:[%s3 + $0x8d8] sm:$0xff]
      %v984 = vld [vmem:[%s3 + $0x8e0] sm:$0xff]
      %v985 = vld [vmem:[%s3 + $0x8e8] sm:$0xff]
      %v986 = vld [vmem:[%s3 + $0x8f0] sm:$0xff]
      %v987 = vld [vmem:[%s3 + $0x8f8] sm:$0xff]
      %v988 = vld [vmem:[%s3 + $0x900] sm:$0xff]
      %v989 = vld [vmem:[%s3 + $0x908] sm:$0xff]
      %v990 = vld [vmem:[%s3 + $0x910] sm:$0xff]
      %v991 = vld [vmem:[%s3 + $0x918] sm:$0xff]
      %v992 = vld [vmem:[%s3 + $0x920] sm:$0xff]
      %v993 = vld [vmem:[%s3 + $0x928] sm:$0xff]
      %v994 = vld [vmem:[%s3 + $0x930] sm:$0xff]
      %v995 = vld [vmem:[%s3 + $0x938] sm:$0xff]
      %v996 = vld [vmem:[%s3 + $0x940] sm:$0xff]
      %v997 = vld [vmem:[%s3 + $0x948] sm:$0xff]
      %v998 = vld [vmem:[%s3 + $0x950] sm:$0xff]
      %v999 = vld [vmem:[%s3 + $0x958] sm:$0xff]
      %v1000 = vld [vmem:[%s3 + $0x960] sm:$0xff]
      %v1001 = vld [vmem:[%s3 + $0x968] sm:$0xff]
      %v1002 = vld [vmem:[%s3 + $0x970] sm:$0xff]
      %v1003 = vld [vmem:[%s3 + $0x978] sm:$0xff]
      %v1004 = vld [vmem:[%s3 + $0x980] sm:$0xff]
      %v1005 = vld [vmem:[%s3 + $0x988] sm:$0xff]
      %v1006 = vld [vmem:[%s3 + $0x990] sm:$0xff]
      %v1007 = vld [vmem:[%s3 + $0x998] sm:$0xff]
      %v1008 = vld [vmem:[%s3 + $0x9a0] sm:$0xff]
      %v1009 = vld [vmem:[%s3 + $0x9a8] sm:$0xff]
      %v1010 = vld [vmem:[%s3 + $0x9b0] sm:$0xff]
      %v1011 = vld [vmem:[%s3 + $0x9b8] sm:$0xff]
      %v1012 = vld [vmem:[%s3 + $0x9c0] sm:$0xff]
      %v1013 = vld [vmem:[%s3 + $0x9c8] sm:$0xff]
      %v1014 = vld [vmem:[%s3 + $0x9d0] sm:$0xff]
      %v1015 = vld [vmem:[%s3 + $0x9d8] sm:$0xff]
      %v1016 = vld [vmem:[%s3 + $0x9e0] sm:$0xff]
      %v1017 = vld [vmem:[%s3 + $0x9e8] sm:$0xff]
      %v1018 = vld [vmem:[%s3 + $0x9f0] sm:$0xff]
      %v1019 = vld [vmem:[%s3 + $0x9f8] sm:$0xff]
      %v1020 = vld [vmem:[%s3 + $0xa00] sm:$0xff]
      %v1021 = vld [vmem:[%s3 + $0xa08] sm:$0xff]
      %v1022 = vld [vmem:[%s3 + $0xa10] sm:$0xff]
      %v1023 = vld [vmem:[%s3 + $0xa18] sm:$0xff]
      %v1024 = vld [vmem:[%s3 + $0xa20] sm:$0xff]
      %v1025 = vld [vmem:[%s3 + $0xa28] sm:$0xff]
      %v1026 = vld [vmem:[%s3 + $0xa30] sm:$0xff]
      %v1027 = vld [vmem:[%s3 + $0xa38] sm:$0xff]
      %v1028 = vld [vmem:[%s3 + $0xa40] sm:$0xff]
      %v1029 = vld [vmem:[%s3 + $0xa48] sm:$0xff]
      %v1030 = vld [vmem:[%s3 + $0xa50] sm:$0xff]
      %v1031 = vld [vmem:[%s3 + $0xa58] sm:$0xff]
      %v1032 = vld [vmem:[%s3 + $0xa60] sm:$0xff]
      %v1033 = vld [vmem:[%s3 + $0xa68] sm:$0xff]
      %v1034 = vld [vmem:[%s3 + $0xa70] sm:$0xff]
      %v1035 = vld [vmem:[%s3 + $0xa78] sm:$0xff]
      %v1036 = vld [vmem:[%s3 + $0xa80] sm:$0xff]
      %v1037 = vld [vmem:[%s3 + $0xa88] sm:$0xff]
      %v1038 = vld [vmem:[%s3 + $0xa90] sm:$0xff]
      %v1039 = vld [vmem:[%s3 + $0xa98] sm:$0xff]
      %v1040 = vld [vmem:[%s3 + $0xaa0] sm:$0xff]
      %v1041 = vld [vmem:[%s3 + $0xaa8] sm:$0xff]
      %v1042 = vld [vmem:[%s3 + $0xab0] sm:$0xff]
      %v1043 = vld [vmem:[%s3 + $0xab8] sm:$0xff]
      %v1044 = vld [vmem:[%s3 + $0xac0] sm:$0xff]
      %v1045 = vld [vmem:[%s3 + $0xac8] sm:$0xff]
      %v1046 = vld [vmem:[%s3 + $0xad0] sm:$0xff]
      %v1047 = vld [vmem:[%s3 + $0xad8] sm:$0xff]
      %v1048 = vld [vmem:[%s3 + $0xae0] sm:$0xff]
      %v1049 = vld [vmem:[%s3 + $0xae8] sm:$0xff]
      %v1050 = vld [vmem:[%s3 + $0xaf0] sm:$0xff]
      %v1051 = vld [vmem:[%s3 + $0xaf8] sm:$0xff]
      %v1052 = vld [vmem:[%s3 + $0xb00] sm:$0xff]
      %v1053 = vld [vmem:[%s3 + $0xb08] sm:$0xff]
      %v1054 = vld [vmem:[%s3 + $0xb10] sm:$0xff]
      %v1055 = vld [vmem:[%s3 + $0xb18] sm:$0xff]
      %v1056 = vld [vmem:[%s3 + $0xb20] sm:$0xff]
      %v1057 = vld [vmem:[%s3 + $0xb28] sm:$0xff]
      %v1058 = vld [vmem:[%s3 + $0xb30] sm:$0xff]
      %v1059 = vld [vmem:[%s3 + $0xb38] sm:$0xff]
      %v1060 = vld [vmem:[%s3 + $0xb40] sm:$0xff]
      %v1061 = vld [vmem:[%s3 + $0xb48] sm:$0xff]
      %v1062 = vld [vmem:[%s3 + $0xb50] sm:$0xff]
      %v1063 = vld [vmem:[%s3 + $0xb58] sm:$0xff]
      %v1064 = vld [vmem:[%s3 + $0xb60] sm:$0xff]
      %v1065 = vld [vmem:[%s3 + $0xb68] sm:$0xff]
      %v1066 = vld [vmem:[%s3 + $0xb70] sm:$0xff]
      %v1067 = vld [vmem:[%s3 + $0xb78] sm:$0xff]
      %v1068 = vld [vmem:[%s3 + $0xb80] sm:$0xff]
      %v1069 = vld [vmem:[%s3 + $0xb88] sm:$0xff]
      %v1070 = vld [vmem:[%s3 + $0xb90] sm:$0xff]
      %v1071 = vld [vmem:[%s3 + $0xb98] sm:$0xff]
      %v1072 = vld [vmem:[%s3 + $0xba0] sm:$0xff]
      %v1073 = vld [vmem:[%s3 + $0xba8] sm:$0xff]
      %v1074 = vld [vmem:[%s3 + $0xbb0] sm:$0xff]
      %v1075 = vld [vmem:[%s3 + $0xbb8] sm:$0xff]
      %v1076 = vld [vmem:[%s3 + $0xbc0] sm:$0xff]
      %v1077 = vld [vmem:[%s3 + $0xbc8] sm:$0xff]
      %v1078 = vld [vmem:[%s3 + $0xbd0] sm:$0xff]
      %v1079 = vld [vmem:[%s3 + $0xbd8] sm:$0xff]
      %v1080 = vld [vmem:[%s3 + $0xbe0] sm:$0xff]
      %v1081 = vld [vmem:[%s3 + $0xbe8] sm:$0xff]
      %v1082 = vld [vmem:[%s3 + $0xbf0] sm:$0xff]
      %v1083 = vld [vmem:[%s3 + $0xbf8] sm:$0xff]
      %v1084 = vld [vmem:[%s3 + $0xc00] sm:$0xff]
      %v1085 = vld [vmem:[%s3 + $0xc08] sm:$0xff]
      %v1086 = vld [vmem:[%s3 + $0xc10] sm:$0xff]
      %v1087 = vld [vmem:[%s3 + $0xc18] sm:$0xff]
      %v1088 = vld [vmem:[%s3 + $0xc20] sm:$0xff]
      %v1089 = vld [vmem:[%s3 + $0xc28] sm:$0xff]
      %v1090 = vld [vmem:[%s3 + $0xc30] sm:$0xff]
      %v1091 = vld [vmem:[%s3 + $0xc38] sm:$0xff]
      %v1092 = vld [vmem:[%s3 + $0xc40] sm:$0xff]
      %v1093 = vld [vmem:[%s3 + $0xc48] sm:$0xff]
      %v1094 = vld [vmem:[%s3 + $0xc50] sm:$0xff]
      %v1095 = vld [vmem:[%s3 + $0xc58] sm:$0xff]
      %v1096 = vld [vmem:[%s3 + $0xc60] sm:$0xff]
      %v1097 = vld [vmem:[%s3 + $0xc68] sm:$0xff]
      %v1098 = vld [vmem:[%s3 + $0xc70] sm:$0xff]
      %v1099 = vld [vmem:[%s3 + $0xc78] sm:$0xff]
      %v1100 = vld [vmem:[%s3 + $0xc80] sm:$0xff]
      %v1101 = vld [vmem:[%s3 + $0xc88] sm:$0xff]
      %v1102 = vld [vmem:[%s3 + $0xc90] sm:$0xff]
      %v1103 = vld [vmem:[%s3 + $0xc98] sm:$0xff]
      %v1104 = vld [vmem:[%s3 + $0xca0] sm:$0xff]
      %v1105 = vld [vmem:[%s3 + $0xca8] sm:$0xff]
      %v1106 = vld [vmem:[%s3 + $0xcb0] sm:$0xff]
      %v1107 = vld [vmem:[%s3 + $0xcb8] sm:$0xff]
      %v1108 = vld [vmem:[%s3 + $0xcc0] sm:$0xff]
      %v1109 = vld [vmem:[%s3 + $0xcc8] sm:$0xff]
      %v1110 = vld [vmem:[%s3 + $0xcd0] sm:$0xff]
      %v1111 = vld [vmem:[%s3 + $0xcd8] sm:$0xff]
      %v1112 = vld [vmem:[%s3 + $0xce0] sm:$0xff]
      %v1113 = vld [vmem:[%s3 + $0xce8] sm:$0xff]
      %v1114 = vld [vmem:[%s3 + $0xcf0] sm:$0xff]
      %v1115 = vld [vmem:[%s3 + $0xcf8] sm:$0xff]
      %v1116 = vld [vmem:[%s3 + $0xd00] sm:$0xff]
      %v1117 = vld [vmem:[%s3 + $0xd08] sm:$0xff]
      %v1118 = vld [vmem:[%s3 + $0xd10] sm:$0xff]
      %v1119 = vld [vmem:[%s3 + $0xd18] sm:$0xff]
      %v1120 = vld [vmem:[%s3 + $0xd20] sm:$0xff]
      %v1121 = vld [vmem:[%s3 + $0xd28] sm:$0xff]
      %v1122 = vld [vmem:[%s3 + $0xd30] sm:$0xff]
      %v1123 = vld [vmem:[%s3 + $0xd38] sm:$0xff]
      %v1124 = vld [vmem:[%s3 + $0xd40] sm:$0xff]
      %v1125 = vld [vmem:[%s3 + $0xd48] sm:$0xff]
      %v1126 = vld [vmem:[%s3 + $0xd50] sm:$0xff]
      %v1127 = vld [vmem:[%s3 + $0xd58] sm:$0xff]
      %v1128 = vld [vmem:[%s3 + $0xd60] sm:$0xff]
      %v1129 = vld [vmem:[%s3 + $0xd68] sm:$0xff]
      %v1130 = vld [vmem:[%s3 + $0xd70] sm:$0xff]
      %v1131 = vld [vmem:[%s3 + $0xd78] sm:$0xff]
      %v1132 = vld [vmem:[%s3 + $0xd80] sm:$0xff]
      %v1133 = vld [vmem:[%s3 + $0xd88] sm:$0xff]
      %v1134 = vld [vmem:[%s3 + $0xd90] sm:$0xff]
      %v1135 = vld [vmem:[%s3 + $0xd98] sm:$0xff]
      %v1136 = vld [vmem:[%s3 + $0xda0] sm:$0xff]
      %v1137 = vld [vmem:[%s3 + $0xda8] sm:$0xff]
      %v1138 = vld [vmem:[%s3 + $0xdb0] sm:$0xff]
      %v1139 = vld [vmem:[%s3 + $0xdb8] sm:$0xff]
      %v1140 = vld [vmem:[%s3 + $0xdc0] sm:$0xff]
      %v1141 = vld [vmem:[%s3 + $0xdc8] sm:$0xff]
      %v1142 = vld [vmem:[%s3 + $0xdd0] sm:$0xff]
      %v1143 = vld [vmem:[%s3 + $0xdd8] sm:$0xff]
      %v1144 = vld [vmem:[%s3 + $0xde0] sm:$0xff]
      %v1145 = vld [vmem:[%s3 + $0xde8] sm:$0xff]
      %v1146 = vld [vmem:[%s3 + $0xdf0] sm:$0xff]
      %v1147 = vld [vmem:[%s3 + $0xdf8] sm:$0xff]
      %v1148 = vld [vmem:[%s3 + $0xe00] sm:$0xff]
      %v1149 = vld [vmem:[%s3 + $0xe08] sm:$0xff]
      %v1150 = vld [vmem:[%s3 + $0xe10] sm:$0xff]
      %v1151 = vld [vmem:[%s3 + $0xe18] sm:$0xff]
      %v1152 = vld [vmem:[%s3 + $0xe20] sm:$0xff]
      %v1153 = vld [vmem:[%s3 + $0xe28] sm:$0xff]
      %v1154 = vld [vmem:[%s3 + $0xe30] sm:$0xff]
      %v1155 = vld [vmem:[%s3 + $0xe38] sm:$0xff]
      %v1156 = vld [vmem:[%s3 + $0xe40] sm:$0xff]
      %v1157 = vld [vmem:[%s3 + $0xe48] sm:$0xff]
      %v1158 = vld [vmem:[%s3 + $0xe50] sm:$0xff]
      %v1159 = vld [vmem:[%s3 + $0xe58] sm:$0xff]
      %v1160 = vld [vmem:[%s3 + $0xe60] sm:$0xff]
      %v1161 = vld [vmem:[%s3 + $0xe68] sm:$0xff]
      %v1162 = vld [vmem:[%s3 + $0xe70] sm:$0xff]
      %v1163 = vld [vmem:[%s3 + $0xe78] sm:$0xff]
      %v1164 = vld [vmem:[%s3 + $0xe80] sm:$0xff]
      %v1165 = vld [vmem:[%s3 + $0xe88] sm:$0xff]
      %v1166 = vld [vmem:[%s3 + $0xe90] sm:$0xff]
      %v1167 = vld [vmem:[%s3 + $0xe98] sm:$0xff]
      %v1168 = vld [vmem:[%s3 + $0xea0] sm:$0xff]
      %v1169 = vld [vmem:[%s3 + $0xea8] sm:$0xff]
      %v1170 = vld [vmem:[%s3 + $0xeb0] sm:$0xff]
      %v1171 = vld [vmem:[%s3 + $0xeb8] sm:$0xff]
      %v1172 = vld [vmem:[%s3 + $0xec0] sm:$0xff]
      %v1173 = vld [vmem:[%s3 + $0xec8] sm:$0xff]
      %v1174 = vld [vmem:[%s3 + $0xed0] sm:$0xff]
      %v1175 = vld [vmem:[%s3 + $0xed8] sm:$0xff]
      %v1176 = vld [vmem:[%s3 + $0xee0] sm:$0xff]
      %v1177 = vld [vmem:[%s3 + $0xee8] sm:$0xff]
      %v1178 = vld [vmem:[%s3 + $0xef0] sm:$0xff]
      %v1179 = vld [vmem:[%s3 + $0xef8] sm:$0xff]
      %v1180 = vld [vmem:[%s3 + $0xf00] sm:$0xff]
      %v1181 = vld [vmem:[%s3 + $0xf08] sm:$0xff]
      %v1182 = vld [vmem:[%s3 + $0xf10] sm:$0xff]
      %v1183 = vld [vmem:[%s3 + $0xf18] sm:$0xff]
      %v1184 = vld [vmem:[%s3 + $0xf20] sm:$0xff]
      %v1185 = vld [vmem:[%s3 + $0xf28] sm:$0xff]
      %v1186 = vld [vmem:[%s3 + $0xf30] sm:$0xff]
      %v1187 = vld [vmem:[%s3 + $0xf38] sm:$0xff]
      %v1188 = vld [vmem:[%s3 + $0xf40] sm:$0xff]
      %v1189 = vld [vmem:[%s3 + $0xf48] sm:$0xff]
      %v1190 = vld [vmem:[%s3 + $0xf50] sm:$0xff]
      %v1191 = vld [vmem:[%s3 + $0xf58] sm:$0xff]
      %v1192 = vld [vmem:[%s3 + $0xf60] sm:$0xff]
      %v1193 = vld [vmem:[%s3 + $0xf68] sm:$0xff]
      %v1194 = vld [vmem:[%s3 + $0xf70] sm:$0xff]
      %v1195 = vld [vmem:[%s3 + $0xf78] sm:$0xff]
      %v1196 = vld [vmem:[%s3 + $0xf80] sm:$0xff]
      %v1197 = vld [vmem:[%s3 + $0xf88] sm:$0xff]
      %v1198 = vld [vmem:[%s3 + $0xf90] sm:$0xff]
      %v1199 = vld [vmem:[%s3 + $0xf98] sm:$0xff]
      %v1200 = vld [vmem:[%s3 + $0xfa0] sm:$0xff]
      %v1201 = vld [vmem:[%s3 + $0xfa8] sm:$0xff]
      %v1202 = vld [vmem:[%s3 + $0xfb0] sm:$0xff]
      %v1203 = vld [vmem:[%s3 + $0xfb8] sm:$0xff]
      %v1204 = vld [vmem:[%s3 + $0xfc0] sm:$0xff]
      %v1205 = vld [vmem:[%s3 + $0xfc8] sm:$0xff]
      %v1206 = vld [vmem:[%s3 + $0xfd0] sm:$0xff]
      %v1207 = vld [vmem:[%s3 + $0xfd8] sm:$0xff]
      %v1208 = vld [vmem:[%s3 + $0xfe0] sm:$0xff]
      %v1209 = vld [vmem:[%s3 + $0xfe8] sm:$0xff]
      %v1210 = vld [vmem:[%s3 + $0xff0] sm:$0xff]
      %v1211 = vld [vmem:[%s3 + $0xff8] sm:$0xff]
      %v1724 = vunpack.c.l.b16 %v700
      %v1725 = vunpack.c.h.b16 %v700
      %v1726 = vunpack.c.l.b16 %v701
      %v1727 = vunpack.c.h.b16 %v701
      %v1728 = vunpack.c.l.b16 %v702
      %v1729 = vunpack.c.h.b16 %v702
      %v1730 = vunpack.c.l.b16 %v703
      %v1731 = vunpack.c.h.b16 %v703
      %v1732 = vunpack.c.l.b16 %v704
      %v1733 = vunpack.c.h.b16 %v704
      %v1734 = vunpack.c.l.b16 %v705
      %v1735 = vunpack.c.h.b16 %v705
      %v1736 = vunpack.c.l.b16 %v706
      %v1737 = vunpack.c.h.b16 %v706
      %v1738 = vunpack.c.l.b16 %v707
      %v1739 = vunpack.c.h.b16 %v707
      %v1740 = vunpack.c.l.b16 %v708
      %v1741 = vunpack.c.h.b16 %v708
      %v1742 = vunpack.c.l.b16 %v709
      %v1743 = vunpack.c.h.b16 %v709
      %v1744 = vunpack.c.l.b16 %v710
      %v1745 = vunpack.c.h.b16 %v710
      %v1746 = vunpack.c.l.b16 %v711
      %v1747 = vunpack.c.h.b16 %v711
      %v1748 = vunpack.c.l.b16 %v712
      %v1749 = vunpack.c.h.b16 %v712
      %v1750 = vunpack.c.l.b16 %v713
      %v1751 = vunpack.c.h.b16 %v713
      %v1752 = vunpack.c.l.b16 %v714
      %v1753 = vunpack.c.h.b16 %v714
      %v1754 = vunpack.c.l.b16 %v715
      %v1755 = vunpack.c.h.b16 %v715
      %v1756 = vunpack.c.l.b16 %v716
      %v1757 = vunpack.c.h.b16 %v716
      %v1758 = vunpack.c.l.b16 %v717
      %v1759 = vunpack.c.h.b16 %v717
      %v1760 = vunpack.c.l.b16 %v718
      %v1761 = vunpack.c.h.b16 %v718
      %v1762 = vunpack.c.l.b16 %v719
      %v1763 = vunpack.c.h.b16 %v719
      %v1764 = vunpack.c.l.b16 %v720
      %v1765 = vunpack.c.h.b16 %v720
      %v1766 = vunpack.c.l.b16 %v721
      %v1767 = vunpack.c.h.b16 %v721
      %v1768 = vunpack.c.l.b16 %v722
      %v1769 = vunpack.c.h.b16 %v722
      %v1770 = vunpack.c.l.b16 %v723
      %v1771 = vunpack.c.h.b16 %v723
      %v1772 = vunpack.c.l.b16 %v724
      %v1773 = vunpack.c.h.b16 %v724
      %v1774 = vunpack.c.l.b16 %v725
      %v1775 = vunpack.c.h.b16 %v725
      %v1776 = vunpack.c.l.b16 %v726
      %v1777 = vunpack.c.h.b16 %v726
      %v1778 = vunpack.c.l.b16 %v727
      %v1779 = vunpack.c.h.b16 %v727
      %v1780 = vunpack.c.l.b16 %v728
      %v1781 = vunpack.c.h.b16 %v728
      %v1782 = vunpack.c.l.b16 %v729
      %v1783 = vunpack.c.h.b16 %v729
      %v1784 = vunpack.c.l.b16 %v730
      %v1785 = vunpack.c.h.b16 %v730
      %v1786 = vunpack.c.l.b16 %v731
      %v1787 = vunpack.c.h.b16 %v731
      %v1788 = vunpack.c.l.b16 %v732
      %v1789 = vunpack.c.h.b16 %v732
      %v1790 = vunpack.c.l.b16 %v733
      %v1791 = vunpack.c.h.b16 %v733
      %v1792 = vunpack.c.l.b16 %v734
      %v1793 = vunpack.c.h.b16 %v734
      %v1794 = vunpack.c.l.b16 %v735
      %v1795 = vunpack.c.h.b16 %v735
      %v1796 = vunpack.c.l.b16 %v736
      %v1797 = vunpack.c.h.b16 %v736
      %v1798 = vunpack.c.l.b16 %v737
      %v1799 = vunpack.c.h.b16 %v737
      %v1800 = vunpack.c.l.b16 %v738
      %v1801 = vunpack.c.h.b16 %v738
      %v1802 = vunpack.c.l.b16 %v739
      %v1803 = vunpack.c.h.b16 %v739
      %v1804 = vunpack.c.l.b16 %v740
      %v1805 = vunpack.c.h.b16 %v740
      %v1806 = vunpack.c.l.b16 %v741
      %v1807 = vunpack.c.h.b16 %v741
      %v1808 = vunpack.c.l.b16 %v742
      %v1809 = vunpack.c.h.b16 %v742
      %v1810 = vunpack.c.l.b16 %v743
      %v1811 = vunpack.c.h.b16 %v743
      %v1812 = vunpack.c.l.b16 %v744
      %v1813 = vunpack.c.h.b16 %v744
      %v1814 = vunpack.c.l.b16 %v745
      %v1815 = vunpack.c.h.b16 %v745
      %v1816 = vunpack.c.l.b16 %v746
      %v1817 = vunpack.c.h.b16 %v746
      %v1818 = vunpack.c.l.b16 %v747
      %v1819 = vunpack.c.h.b16 %v747
      %v1820 = vunpack.c.l.b16 %v748
      %v1821 = vunpack.c.h.b16 %v748
      %v1822 = vunpack.c.l.b16 %v749
      %v1823 = vunpack.c.h.b16 %v749
      %v1824 = vunpack.c.l.b16 %v750
      %v1825 = vunpack.c.h.b16 %v750
      %v1826 = vunpack.c.l.b16 %v751
      %v1827 = vunpack.c.h.b16 %v751
      %v1828 = vunpack.c.l.b16 %v752
      %v1829 = vunpack.c.h.b16 %v752
      %v1830 = vunpack.c.l.b16 %v753
      %v1831 = vunpack.c.h.b16 %v753
      %v1832 = vunpack.c.l.b16 %v754
      %v1833 = vunpack.c.h.b16 %v754
      %v1834 = vunpack.c.l.b16 %v755
      %v1835 = vunpack.c.h.b16 %v755
      %v1836 = vunpack.c.l.b16 %v756
      %v1837 = vunpack.c.h.b16 %v756
      %v1838 = vunpack.c.l.b16 %v757
      %v1839 = vunpack.c.h.b16 %v757
      %v1840 = vunpack.c.l.b16 %v758
      %v1841 = vunpack.c.h.b16 %v758
      %v1842 = vunpack.c.l.b16 %v759
      %v1843 = vunpack.c.h.b16 %v759
      %v1844 = vunpack.c.l.b16 %v760
      %v1845 = vunpack.c.h.b16 %v760
      %v1846 = vunpack.c.l.b16 %v761
      %v1847 = vunpack.c.h.b16 %v761
      %v1848 = vunpack.c.l.b16 %v762
      %v1849 = vunpack.c.h.b16 %v762
      %v1850 = vunpack.c.l.b16 %v763
      %v1851 = vunpack.c.h.b16 %v763
      %v1852 = vunpack.c.l.b16 %v764
      %v1853 = vunpack.c.h.b16 %v764
      %v1854 = vunpack.c.l.b16 %v765
      %v1855 = vunpack.c.h.b16 %v765
      %v1856 = vunpack.c.l.b16 %v766
      %v1857 = vunpack.c.h.b16 %v766
      %v1858 = vunpack.c.l.b16 %v767
      %v1859 = vunpack.c.h.b16 %v767
      %v1860 = vunpack.c.l.b16 %v768
      %v1861 = vunpack.c.h.b16 %v768
      %v1862 = vunpack.c.l.b16 %v769
      %v1863 = vunpack.c.h.b16 %v769
      %v1864 = vunpack.c.l.b16 %v770
      %v1865 = vunpack.c.h.b16 %v770
      %v1866 = vunpack.c.l.b16 %v771
      %v1867 = vunpack.c.h.b16 %v771
      %v1868 = vunpack.c.l.b16 %v772
      %v1869 = vunpack.c.h.b16 %v772
      %v1870 = vunpack.c.l.b16 %v773
      %v1871 = vunpack.c.h.b16 %v773
      %v1872 = vunpack.c.l.b16 %v774
      %v1873 = vunpack.c.h.b16 %v774
      %v1874 = vunpack.c.l.b16 %v775
      %v1875 = vunpack.c.h.b16 %v775
      %v1876 = vunpack.c.l.b16 %v776
      %v1877 = vunpack.c.h.b16 %v776
      %v1878 = vunpack.c.l.b16 %v777
      %v1879 = vunpack.c.h.b16 %v777
      %v1880 = vunpack.c.l.b16 %v778
      %v1881 = vunpack.c.h.b16 %v778
      %v1882 = vunpack.c.l.b16 %v779
      %v1883 = vunpack.c.h.b16 %v779
      %v1884 = vunpack.c.l.b16 %v780
      %v1885 = vunpack.c.h.b16 %v780
      %v1886 = vunpack.c.l.b16 %v781
      %v1887 = vunpack.c.h.b16 %v781
      %v1888 = vunpack.c.l.b16 %v782
      %v1889 = vunpack.c.h.b16 %v782
      %v1890 = vunpack.c.l.b16 %v783
      %v1891 = vunpack.c.h.b16 %v783
      %v1892 = vunpack.c.l.b16 %v784
      %v1893 = vunpack.c.h.b16 %v784
      %v1894 = vunpack.c.l.b16 %v785
      %v1895 = vunpack.c.h.b16 %v785
      %v1896 = vunpack.c.l.b16 %v786
      %v1897 = vunpack.c.h.b16 %v786
      %v1898 = vunpack.c.l.b16 %v787
      %v1899 = vunpack.c.h.b16 %v787
      %v1900 = vunpack.c.l.b16 %v788
      %v1901 = vunpack.c.h.b16 %v788
      %v1902 = vunpack.c.l.b16 %v789
      %v1903 = vunpack.c.h.b16 %v789
      %v1904 = vunpack.c.l.b16 %v790
      %v1905 = vunpack.c.h.b16 %v790
      %v1906 = vunpack.c.l.b16 %v791
      %v1907 = vunpack.c.h.b16 %v791
      %v1908 = vunpack.c.l.b16 %v792
      %v1909 = vunpack.c.h.b16 %v792
      %v1910 = vunpack.c.l.b16 %v793
      %v1911 = vunpack.c.h.b16 %v793
      %v1912 = vunpack.c.l.b16 %v794
      %v1913 = vunpack.c.h.b16 %v794
      %v1914 = vunpack.c.l.b16 %v795
      %v1915 = vunpack.c.h.b16 %v795
      %v1916 = vunpack.c.l.b16 %v796
      %v1917 = vunpack.c.h.b16 %v796
      %v1918 = vunpack.c.l.b16 %v797
      %v1919 = vunpack.c.h.b16 %v797
      %v1920 = vunpack.c.l.b16 %v798
      %v1921 = vunpack.c.h.b16 %v798
      %v1922 = vunpack.c.l.b16 %v799
      %v1923 = vunpack.c.h.b16 %v799
      %v1924 = vunpack.c.l.b16 %v800
      %v1925 = vunpack.c.h.b16 %v800
      %v1926 = vunpack.c.l.b16 %v801
      %v1927 = vunpack.c.h.b16 %v801
      %v1928 = vunpack.c.l.b16 %v802
      %v1929 = vunpack.c.h.b16 %v802
      %v1930 = vunpack.c.l.b16 %v803
      %v1931 = vunpack.c.h.b16 %v803
      %v1932 = vunpack.c.l.b16 %v804
      %v1933 = vunpack.c.h.b16 %v804
      %v1934 = vunpack.c.l.b16 %v805
      %v1935 = vunpack.c.h.b16 %v805
      %v1936 = vunpack.c.l.b16 %v806
      %v1937 = vunpack.c.h.b16 %v806
      %v1938 = vunpack.c.l.b16 %v807
      %v1939 = vunpack.c.h.b16 %v807
      %v1940 = vunpack.c.l.b16 %v808
      %v1941 = vunpack.c.h.b16 %v808
      %v1942 = vunpack.c.l.b16 %v809
      %v1943 = vunpack.c.h.b16 %v809
      %v1944 = vunpack.c.l.b16 %v810
      %v1945 = vunpack.c.h.b16 %v810
      %v1946 = vunpack.c.l.b16 %v811
      %v1947 = vunpack.c.h.b16 %v811
      %v1948 = vunpack.c.l.b16 %v812
      %v1949 = vunpack.c.h.b16 %v812
      %v1950 = vunpack.c.l.b16 %v813
      %v1951 = vunpack.c.h.b16 %v813
      %v1952 = vunpack.c.l.b16 %v814
      %v1953 = vunpack.c.h.b16 %v814
      %v1954 = vunpack.c.l.b16 %v815
      %v1955 = vunpack.c.h.b16 %v815
      %v1956 = vunpack.c.l.b16 %v816
      %v1957 = vunpack.c.h.b16 %v816
      %v1958 = vunpack.c.l.b16 %v817
      %v1959 = vunpack.c.h.b16 %v817
      %v1960 = vunpack.c.l.b16 %v818
      %v1961 = vunpack.c.h.b16 %v818
      %v1962 = vunpack.c.l.b16 %v819
      %v1963 = vunpack.c.h.b16 %v819
      %v1964 = vunpack.c.l.b16 %v820
      %v1965 = vunpack.c.h.b16 %v820
      %v1966 = vunpack.c.l.b16 %v821
      %v1967 = vunpack.c.h.b16 %v821
      %v1968 = vunpack.c.l.b16 %v822
      %v1969 = vunpack.c.h.b16 %v822
      %v1970 = vunpack.c.l.b16 %v823
      %v1971 = vunpack.c.h.b16 %v823
      %v1972 = vunpack.c.l.b16 %v824
      %v1973 = vunpack.c.h.b16 %v824
      %v1974 = vunpack.c.l.b16 %v825
      %v1975 = vunpack.c.h.b16 %v825
      %v1976 = vunpack.c.l.b16 %v826
      %v1977 = vunpack.c.h.b16 %v826
      %v1978 = vunpack.c.l.b16 %v827
      %v1979 = vunpack.c.h.b16 %v827
      %v1980 = vunpack.c.l.b16 %v828
      %v1981 = vunpack.c.h.b16 %v828
      %v1982 = vunpack.c.l.b16 %v829
      %v1983 = vunpack.c.h.b16 %v829
      %v1984 = vunpack.c.l.b16 %v830
      %v1985 = vunpack.c.h.b16 %v830
      %v1986 = vunpack.c.l.b16 %v831
      %v1987 = vunpack.c.h.b16 %v831
      %v1988 = vunpack.c.l.b16 %v832
      %v1989 = vunpack.c.h.b16 %v832
      %v1990 = vunpack.c.l.b16 %v833
      %v1991 = vunpack.c.h.b16 %v833
      %v1992 = vunpack.c.l.b16 %v834
      %v1993 = vunpack.c.h.b16 %v834
      %v1994 = vunpack.c.l.b16 %v835
      %v1995 = vunpack.c.h.b16 %v835
      %v1996 = vunpack.c.l.b16 %v836
      %v1997 = vunpack.c.h.b16 %v836
      %v1998 = vunpack.c.l.b16 %v837
      %v1999 = vunpack.c.h.b16 %v837
      %v2000 = vunpack.c.l.b16 %v838
      %v2001 = vunpack.c.h.b16 %v838
      %v2002 = vunpack.c.l.b16 %v839
      %v2003 = vunpack.c.h.b16 %v839
      %v2004 = vunpack.c.l.b16 %v840
      %v2005 = vunpack.c.h.b16 %v840
      %v2006 = vunpack.c.l.b16 %v841
      %v2007 = vunpack.c.h.b16 %v841
      %v2008 = vunpack.c.l.b16 %v842
      %v2009 = vunpack.c.h.b16 %v842
      %v2010 = vunpack.c.l.b16 %v843
      %v2011 = vunpack.c.h.b16 %v843
      %v2012 = vunpack.c.l.b16 %v844
      %v2013 = vunpack.c.h.b16 %v844
      %v2014 = vunpack.c.l.b16 %v845
      %v2015 = vunpack.c.h.b16 %v845
      %v2016 = vunpack.c.l.b16 %v846
      %v2017 = vunpack.c.h.b16 %v846
      %v2018 = vunpack.c.l.b16 %v847
      %v2019 = vunpack.c.h.b16 %v847
      %v2020 = vunpack.c.l.b16 %v848
      %v2021 = vunpack.c.h.b16 %v848
      %v2022 = vunpack.c.l.b16 %v849
      %v2023 = vunpack.c.h.b16 %v849
      %v2024 = vunpack.c.l.b16 %v850
      %v2025 = vunpack.c.h.b16 %v850
      %v2026 = vunpack.c.l.b16 %v851
      %v2027 = vunpack.c.h.b16 %v851
      %v2028 = vunpack.c.l.b16 %v852
      %v2029 = vunpack.c.h.b16 %v852
      %v2030 = vunpack.c.l.b16 %v853
      %v2031 = vunpack.c.h.b16 %v853
      %v2032 = vunpack.c.l.b16 %v854
      %v2033 = vunpack.c.h.b16 %v854
      %v2034 = vunpack.c.l.b16 %v855
      %v2035 = vunpack.c.h.b16 %v855
      %v2036 = vunpack.c.l.b16 %v856
      %v2037 = vunpack.c.h.b16 %v856
      %v2038 = vunpack.c.l.b16 %v857
      %v2039 = vunpack.c.h.b16 %v857
      %v2040 = vunpack.c.l.b16 %v858
      %v2041 = vunpack.c.h.b16 %v858
      %v2042 = vunpack.c.l.b16 %v859
      %v2043 = vunpack.c.h.b16 %v859
      %v2044 = vunpack.c.l.b16 %v860
      %v2045 = vunpack.c.h.b16 %v860
      %v2046 = vunpack.c.l.b16 %v861
      %v2047 = vunpack.c.h.b16 %v861
      %v2048 = vunpack.c.l.b16 %v862
      %v2049 = vunpack.c.h.b16 %v862
      %v2050 = vunpack.c.l.b16 %v863
      %v2051 = vunpack.c.h.b16 %v863
      %v2052 = vunpack.c.l.b16 %v864
      %v2053 = vunpack.c.h.b16 %v864
      %v2054 = vunpack.c.l.b16 %v865
      %v2055 = vunpack.c.h.b16 %v865
      %v2056 = vunpack.c.l.b16 %v866
      %v2057 = vunpack.c.h.b16 %v866
      %v2058 = vunpack.c.l.b16 %v867
      %v2059 = vunpack.c.h.b16 %v867
      %v2060 = vunpack.c.l.b16 %v868
      %v2061 = vunpack.c.h.b16 %v868
      %v2062 = vunpack.c.l.b16 %v869
      %v2063 = vunpack.c.h.b16 %v869
      %v2064 = vunpack.c.l.b16 %v870
      %v2065 = vunpack.c.h.b16 %v870
      %v2066 = vunpack.c.l.b16 %v871
      %v2067 = vunpack.c.h.b16 %v871
      %v2068 = vunpack.c.l.b16 %v872
      %v2069 = vunpack.c.h.b16 %v872
      %v2070 = vunpack.c.l.b16 %v873
      %v2071 = vunpack.c.h.b16 %v873
      %v2072 = vunpack.c.l.b16 %v874
      %v2073 = vunpack.c.h.b16 %v874
      %v2074 = vunpack.c.l.b16 %v875
      %v2075 = vunpack.c.h.b16 %v875
      %v2076 = vunpack.c.l.b16 %v876
      %v2077 = vunpack.c.h.b16 %v876
      %v2078 = vunpack.c.l.b16 %v877
      %v2079 = vunpack.c.h.b16 %v877
      %v2080 = vunpack.c.l.b16 %v878
      %v2081 = vunpack.c.h.b16 %v878
      %v2082 = vunpack.c.l.b16 %v879
      %v2083 = vunpack.c.h.b16 %v879
      %v2084 = vunpack.c.l.b16 %v880
      %v2085 = vunpack.c.h.b16 %v880
      %v2086 = vunpack.c.l.b16 %v881
      %v2087 = vunpack.c.h.b16 %v881
      %v2088 = vunpack.c.l.b16 %v882
      %v2089 = vunpack.c.h.b16 %v882
      %v2090 = vunpack.c.l.b16 %v883
      %v2091 = vunpack.c.h.b16 %v883
      %v2092 = vunpack.c.l.b16 %v884
      %v2093 = vunpack.c.h.b16 %v884
      %v2094 = vunpack.c.l.b16 %v885
      %v2095 = vunpack.c.h.b16 %v885
      %v2096 = vunpack.c.l.b16 %v886
      %v2097 = vunpack.c.h.b16 %v886
      %v2098 = vunpack.c.l.b16 %v887
      %v2099 = vunpack.c.h.b16 %v887
      %v2100 = vunpack.c.l.b16 %v888
      %v2101 = vunpack.c.h.b16 %v888
      %v2102 = vunpack.c.l.b16 %v889
      %v2103 = vunpack.c.h.b16 %v889
      %v2104 = vunpack.c.l.b16 %v890
      %v2105 = vunpack.c.h.b16 %v890
      %v2106 = vunpack.c.l.b16 %v891
      %v2107 = vunpack.c.h.b16 %v891
      %v2108 = vunpack.c.l.b16 %v892
      %v2109 = vunpack.c.h.b16 %v892
      %v2110 = vunpack.c.l.b16 %v893
      %v2111 = vunpack.c.h.b16 %v893
      %v2112 = vunpack.c.l.b16 %v894
      %v2113 = vunpack.c.h.b16 %v894
      %v2114 = vunpack.c.l.b16 %v895
      %v2115 = vunpack.c.h.b16 %v895
      %v2116 = vunpack.c.l.b16 %v896
      %v2117 = vunpack.c.h.b16 %v896
      %v2118 = vunpack.c.l.b16 %v897
      %v2119 = vunpack.c.h.b16 %v897
      %v2120 = vunpack.c.l.b16 %v898
      %v2121 = vunpack.c.h.b16 %v898
      %v2122 = vunpack.c.l.b16 %v899
      %v2123 = vunpack.c.h.b16 %v899
      %v2124 = vunpack.c.l.b16 %v900
      %v2125 = vunpack.c.h.b16 %v900
      %v2126 = vunpack.c.l.b16 %v901
      %v2127 = vunpack.c.h.b16 %v901
      %v2128 = vunpack.c.l.b16 %v902
      %v2129 = vunpack.c.h.b16 %v902
      %v2130 = vunpack.c.l.b16 %v903
      %v2131 = vunpack.c.h.b16 %v903
      %v2132 = vunpack.c.l.b16 %v904
      %v2133 = vunpack.c.h.b16 %v904
      %v2134 = vunpack.c.l.b16 %v905
      %v2135 = vunpack.c.h.b16 %v905
      %v2136 = vunpack.c.l.b16 %v906
      %v2137 = vunpack.c.h.b16 %v906
      %v2138 = vunpack.c.l.b16 %v907
      %v2139 = vunpack.c.h.b16 %v907
      %v2140 = vunpack.c.l.b16 %v908
      %v2141 = vunpack.c.h.b16 %v908
      %v2142 = vunpack.c.l.b16 %v909
      %v2143 = vunpack.c.h.b16 %v909
      %v2144 = vunpack.c.l.b16 %v910
      %v2145 = vunpack.c.h.b16 %v910
      %v2146 = vunpack.c.l.b16 %v911
      %v2147 = vunpack.c.h.b16 %v911
      %v2148 = vunpack.c.l.b16 %v912
      %v2149 = vunpack.c.h.b16 %v912
      %v2150 = vunpack.c.l.b16 %v913
      %v2151 = vunpack.c.h.b16 %v913
      %v2152 = vunpack.c.l.b16 %v914
      %v2153 = vunpack.c.h.b16 %v914
      %v2154 = vunpack.c.l.b16 %v915
      %v2155 = vunpack.c.h.b16 %v915
      %v2156 = vunpack.c.l.b16 %v916
      %v2157 = vunpack.c.h.b16 %v916
      %v2158 = vunpack.c.l.b16 %v917
      %v2159 = vunpack.c.h.b16 %v917
      %v2160 = vunpack.c.l.b16 %v918
      %v2161 = vunpack.c.h.b16 %v918
      %v2162 = vunpack.c.l.b16 %v919
      %v2163 = vunpack.c.h.b16 %v919
      %v2164 = vunpack.c.l.b16 %v920
      %v2165 = vunpack.c.h.b16 %v920
      %v2166 = vunpack.c.l.b16 %v921
      %v2167 = vunpack.c.h.b16 %v921
      %v2168 = vunpack.c.l.b16 %v922
      %v2169 = vunpack.c.h.b16 %v922
      %v2170 = vunpack.c.l.b16 %v923
      %v2171 = vunpack.c.h.b16 %v923
      %v2172 = vunpack.c.l.b16 %v924
      %v2173 = vunpack.c.h.b16 %v924
      %v2174 = vunpack.c.l.b16 %v925
      %v2175 = vunpack.c.h.b16 %v925
      %v2176 = vunpack.c.l.b16 %v926
      %v2177 = vunpack.c.h.b16 %v926
      %v2178 = vunpack.c.l.b16 %v927
      %v2179 = vunpack.c.h.b16 %v927
      %v2180 = vunpack.c.l.b16 %v928
      %v2181 = vunpack.c.h.b16 %v928
      %v2182 = vunpack.c.l.b16 %v929
      %v2183 = vunpack.c.h.b16 %v929
      %v2184 = vunpack.c.l.b16 %v930
      %v2185 = vunpack.c.h.b16 %v930
      %v2186 = vunpack.c.l.b16 %v931
      %v2187 = vunpack.c.h.b16 %v931
      %v2188 = vunpack.c.l.b16 %v932
      %v2189 = vunpack.c.h.b16 %v932
      %v2190 = vunpack.c.l.b16 %v933
      %v2191 = vunpack.c.h.b16 %v933
      %v2192 = vunpack.c.l.b16 %v934
      %v2193 = vunpack.c.h.b16 %v934
      %v2194 = vunpack.c.l.b16 %v935
      %v2195 = vunpack.c.h.b16 %v935
      %v2196 = vunpack.c.l.b16 %v936
      %v2197 = vunpack.c.h.b16 %v936
      %v2198 = vunpack.c.l.b16 %v937
      %v2199 = vunpack.c.h.b16 %v937
      %v2200 = vunpack.c.l.b16 %v938
      %v2201 = vunpack.c.h.b16 %v938
      %v2202 = vunpack.c.l.b16 %v939
      %v2203 = vunpack.c.h.b16 %v939
      %v2204 = vunpack.c.l.b16 %v940
      %v2205 = vunpack.c.h.b16 %v940
      %v2206 = vunpack.c.l.b16 %v941
      %v2207 = vunpack.c.h.b16 %v941
      %v2208 = vunpack.c.l.b16 %v942
      %v2209 = vunpack.c.h.b16 %v942
      %v2210 = vunpack.c.l.b16 %v943
      %v2211 = vunpack.c.h.b16 %v943
      %v2212 = vunpack.c.l.b16 %v944
      %v2213 = vunpack.c.h.b16 %v944
      %v2214 = vunpack.c.l.b16 %v945
      %v2215 = vunpack.c.h.b16 %v945
      %v2216 = vunpack.c.l.b16 %v946
      %v2217 = vunpack.c.h.b16 %v946
      %v2218 = vunpack.c.l.b16 %v947
      %v2219 = vunpack.c.h.b16 %v947
      %v2220 = vunpack.c.l.b16 %v948
      %v2221 = vunpack.c.h.b16 %v948
      %v2222 = vunpack.c.l.b16 %v949
      %v2223 = vunpack.c.h.b16 %v949
      %v2224 = vunpack.c.l.b16 %v950
      %v2225 = vunpack.c.h.b16 %v950
      %v2226 = vunpack.c.l.b16 %v951
      %v2227 = vunpack.c.h.b16 %v951
      %v2228 = vunpack.c.l.b16 %v952
      %v2229 = vunpack.c.h.b16 %v952
      %v2230 = vunpack.c.l.b16 %v953
      %v2231 = vunpack.c.h.b16 %v953
      %v2232 = vunpack.c.l.b16 %v954
      %v2233 = vunpack.c.h.b16 %v954
      %v2234 = vunpack.c.l.b16 %v955
      %v2235 = vunpack.c.h.b16 %v955
      %v2236 = vunpack.c.l.b16 %v956
      %v2237 = vunpack.c.h.b16 %v956
      %v2238 = vunpack.c.l.b16 %v957
      %v2239 = vunpack.c.h.b16 %v957
      %v2240 = vunpack.c.l.b16 %v958
      %v2241 = vunpack.c.h.b16 %v958
      %v2242 = vunpack.c.l.b16 %v959
      %v2243 = vunpack.c.h.b16 %v959
      %v2244 = vunpack.c.l.b16 %v960
      %v2245 = vunpack.c.h.b16 %v960
      %v2246 = vunpack.c.l.b16 %v961
      %v2247 = vunpack.c.h.b16 %v961
      %v2248 = vunpack.c.l.b16 %v962
      %v2249 = vunpack.c.h.b16 %v962
      %v2250 = vunpack.c.l.b16 %v963
      %v2251 = vunpack.c.h.b16 %v963
      %v2252 = vunpack.c.l.b16 %v964
      %v2253 = vunpack.c.h.b16 %v964
      %v2254 = vunpack.c.l.b16 %v965
      %v2255 = vunpack.c.h.b16 %v965
      %v2256 = vunpack.c.l.b16 %v966
      %v2257 = vunpack.c.h.b16 %v966
      %v2258 = vunpack.c.l.b16 %v967
      %v2259 = vunpack.c.h.b16 %v967
      %v2260 = vunpack.c.l.b16 %v968
      %v2261 = vunpack.c.h.b16 %v968
      %v2262 = vunpack.c.l.b16 %v969
      %v2263 = vunpack.c.h.b16 %v969
      %v2264 = vunpack.c.l.b16 %v970
      %v2265 = vunpack.c.h.b16 %v970
      %v2266 = vunpack.c.l.b16 %v971
      %v2267 = vunpack.c.h.b16 %v971
      %v2268 = vunpack.c.l.b16 %v972
      %v2269 = vunpack.c.h.b16 %v972
      %v2270 = vunpack.c.l.b16 %v973
      %v2271 = vunpack.c.h.b16 %v973
      %v2272 = vunpack.c.l.b16 %v974
      %v2273 = vunpack.c.h.b16 %v974
      %v2274 = vunpack.c.l.b16 %v975
      %v2275 = vunpack.c.h.b16 %v975
      %v2276 = vunpack.c.l.b16 %v976
      %v2277 = vunpack.c.h.b16 %v976
      %v2278 = vunpack.c.l.b16 %v977
      %v2279 = vunpack.c.h.b16 %v977
      %v2280 = vunpack.c.l.b16 %v978
      %v2281 = vunpack.c.h.b16 %v978
      %v2282 = vunpack.c.l.b16 %v979
      %v2283 = vunpack.c.h.b16 %v979
      %v2284 = vunpack.c.l.b16 %v980
      %v2285 = vunpack.c.h.b16 %v980
      %v2286 = vunpack.c.l.b16 %v981
      %v2287 = vunpack.c.h.b16 %v981
      %v2288 = vunpack.c.l.b16 %v982
      %v2289 = vunpack.c.h.b16 %v982
      %v2290 = vunpack.c.l.b16 %v983
      %v2291 = vunpack.c.h.b16 %v983
      %v2292 = vunpack.c.l.b16 %v984
      %v2293 = vunpack.c.h.b16 %v984
      %v2294 = vunpack.c.l.b16 %v985
      %v2295 = vunpack.c.h.b16 %v985
      %v2296 = vunpack.c.l.b16 %v986
      %v2297 = vunpack.c.h.b16 %v986
      %v2298 = vunpack.c.l.b16 %v987
      %v2299 = vunpack.c.h.b16 %v987
      %v2300 = vunpack.c.l.b16 %v988
      %v2301 = vunpack.c.h.b16 %v988
      %v2302 = vunpack.c.l.b16 %v989
      %v2303 = vunpack.c.h.b16 %v989
      %v2304 = vunpack.c.l.b16 %v990
      %v2305 = vunpack.c.h.b16 %v990
      %v2306 = vunpack.c.l.b16 %v991
      %v2307 = vunpack.c.h.b16 %v991
      %v2308 = vunpack.c.l.b16 %v992
      %v2309 = vunpack.c.h.b16 %v992
      %v2310 = vunpack.c.l.b16 %v993
      %v2311 = vunpack.c.h.b16 %v993
      %v2312 = vunpack.c.l.b16 %v994
      %v2313 = vunpack.c.h.b16 %v994
      %v2314 = vunpack.c.l.b16 %v995
      %v2315 = vunpack.c.h.b16 %v995
      %v2316 = vunpack.c.l.b16 %v996
      %v2317 = vunpack.c.h.b16 %v996
      %v2318 = vunpack.c.l.b16 %v997
      %v2319 = vunpack.c.h.b16 %v997
      %v2320 = vunpack.c.l.b16 %v998
      %v2321 = vunpack.c.h.b16 %v998
      %v2322 = vunpack.c.l.b16 %v999
      %v2323 = vunpack.c.h.b16 %v999
      %v2324 = vunpack.c.l.b16 %v1000
      %v2325 = vunpack.c.h.b16 %v1000
      %v2326 = vunpack.c.l.b16 %v1001
      %v2327 = vunpack.c.h.b16 %v1001
      %v2328 = vunpack.c.l.b16 %v1002
      %v2329 = vunpack.c.h.b16 %v1002
      %v2330 = vunpack.c.l.b16 %v1003
      %v2331 = vunpack.c.h.b16 %v1003
      %v2332 = vunpack.c.l.b16 %v1004
      %v2333 = vunpack.c.h.b16 %v1004
      %v2334 = vunpack.c.l.b16 %v1005
      %v2335 = vunpack.c.h.b16 %v1005
      %v2336 = vunpack.c.l.b16 %v1006
      %v2337 = vunpack.c.h.b16 %v1006
      %v2338 = vunpack.c.l.b16 %v1007
      %v2339 = vunpack.c.h.b16 %v1007
      %v2340 = vunpack.c.l.b16 %v1008
      %v2341 = vunpack.c.h.b16 %v1008
      %v2342 = vunpack.c.l.b16 %v1009
      %v2343 = vunpack.c.h.b16 %v1009
      %v2344 = vunpack.c.l.b16 %v1010
      %v2345 = vunpack.c.h.b16 %v1010
      %v2346 = vunpack.c.l.b16 %v1011
      %v2347 = vunpack.c.h.b16 %v1011
      %v2348 = vunpack.c.l.b16 %v1012
      %v2349 = vunpack.c.h.b16 %v1012
      %v2350 = vunpack.c.l.b16 %v1013
      %v2351 = vunpack.c.h.b16 %v1013
      %v2352 = vunpack.c.l.b16 %v1014
      %v2353 = vunpack.c.h.b16 %v1014
      %v2354 = vunpack.c.l.b16 %v1015
      %v2355 = vunpack.c.h.b16 %v1015
      %v2356 = vunpack.c.l.b16 %v1016
      %v2357 = vunpack.c.h.b16 %v1016
      %v2358 = vunpack.c.l.b16 %v1017
      %v2359 = vunpack.c.h.b16 %v1017
      %v2360 = vunpack.c.l.b16 %v1018
      %v2361 = vunpack.c.h.b16 %v1018
      %v2362 = vunpack.c.l.b16 %v1019
      %v2363 = vunpack.c.h.b16 %v1019
      %v2364 = vunpack.c.l.b16 %v1020
      %v2365 = vunpack.c.h.b16 %v1020
      %v2366 = vunpack.c.l.b16 %v1021
      %v2367 = vunpack.c.h.b16 %v1021
      %v2368 = vunpack.c.l.b16 %v1022
      %v2369 = vunpack.c.h.b16 %v1022
      %v2370 = vunpack.c.l.b16 %v1023
      %v2371 = vunpack.c.h.b16 %v1023
      %v2372 = vunpack.c.l.b16 %v1024
      %v2373 = vunpack.c.h.b16 %v1024
      %v2374 = vunpack.c.l.b16 %v1025
      %v2375 = vunpack.c.h.b16 %v1025
      %v2376 = vunpack.c.l.b16 %v1026
      %v2377 = vunpack.c.h.b16 %v1026
      %v2378 = vunpack.c.l.b16 %v1027
      %v2379 = vunpack.c.h.b16 %v1027
      %v2380 = vunpack.c.l.b16 %v1028
      %v2381 = vunpack.c.h.b16 %v1028
      %v2382 = vunpack.c.l.b16 %v1029
      %v2383 = vunpack.c.h.b16 %v1029
      %v2384 = vunpack.c.l.b16 %v1030
      %v2385 = vunpack.c.h.b16 %v1030
      %v2386 = vunpack.c.l.b16 %v1031
      %v2387 = vunpack.c.h.b16 %v1031
      %v2388 = vunpack.c.l.b16 %v1032
      %v2389 = vunpack.c.h.b16 %v1032
      %v2390 = vunpack.c.l.b16 %v1033
      %v2391 = vunpack.c.h.b16 %v1033
      %v2392 = vunpack.c.l.b16 %v1034
      %v2393 = vunpack.c.h.b16 %v1034
      %v2394 = vunpack.c.l.b16 %v1035
      %v2395 = vunpack.c.h.b16 %v1035
      %v2396 = vunpack.c.l.b16 %v1036
      %v2397 = vunpack.c.h.b16 %v1036
      %v2398 = vunpack.c.l.b16 %v1037
      %v2399 = vunpack.c.h.b16 %v1037
      %v2400 = vunpack.c.l.b16 %v1038
      %v2401 = vunpack.c.h.b16 %v1038
      %v2402 = vunpack.c.l.b16 %v1039
      %v2403 = vunpack.c.h.b16 %v1039
      %v2404 = vunpack.c.l.b16 %v1040
      %v2405 = vunpack.c.h.b16 %v1040
      %v2406 = vunpack.c.l.b16 %v1041
      %v2407 = vunpack.c.h.b16 %v1041
      %v2408 = vunpack.c.l.b16 %v1042
      %v2409 = vunpack.c.h.b16 %v1042
      %v2410 = vunpack.c.l.b16 %v1043
      %v2411 = vunpack.c.h.b16 %v1043
      %v2412 = vunpack.c.l.b16 %v1044
      %v2413 = vunpack.c.h.b16 %v1044
      %v2414 = vunpack.c.l.b16 %v1045
      %v2415 = vunpack.c.h.b16 %v1045
      %v2416 = vunpack.c.l.b16 %v1046
      %v2417 = vunpack.c.h.b16 %v1046
      %v2418 = vunpack.c.l.b16 %v1047
      %v2419 = vunpack.c.h.b16 %v1047
      %v2420 = vunpack.c.l.b16 %v1048
      %v2421 = vunpack.c.h.b16 %v1048
      %v2422 = vunpack.c.l.b16 %v1049
      %v2423 = vunpack.c.h.b16 %v1049
      %v2424 = vunpack.c.l.b16 %v1050
      %v2425 = vunpack.c.h.b16 %v1050
      %v2426 = vunpack.c.l.b16 %v1051
      %v2427 = vunpack.c.h.b16 %v1051
      %v2428 = vunpack.c.l.b16 %v1052
      %v2429 = vunpack.c.h.b16 %v1052
      %v2430 = vunpack.c.l.b16 %v1053
      %v2431 = vunpack.c.h.b16 %v1053
      %v2432 = vunpack.c.l.b16 %v1054
      %v2433 = vunpack.c.h.b16 %v1054
      %v2434 = vunpack.c.l.b16 %v1055
      %v2435 = vunpack.c.h.b16 %v1055
      %v2436 = vunpack.c.l.b16 %v1056
      %v2437 = vunpack.c.h.b16 %v1056
      %v2438 = vunpack.c.l.b16 %v1057
      %v2439 = vunpack.c.h.b16 %v1057
      %v2440 = vunpack.c.l.b16 %v1058
      %v2441 = vunpack.c.h.b16 %v1058
      %v2442 = vunpack.c.l.b16 %v1059
      %v2443 = vunpack.c.h.b16 %v1059
      %v2444 = vunpack.c.l.b16 %v1060
      %v2445 = vunpack.c.h.b16 %v1060
      %v2446 = vunpack.c.l.b16 %v1061
      %v2447 = vunpack.c.h.b16 %v1061
      %v2448 = vunpack.c.l.b16 %v1062
      %v2449 = vunpack.c.h.b16 %v1062
      %v2450 = vunpack.c.l.b16 %v1063
      %v2451 = vunpack.c.h.b16 %v1063
      %v2452 = vunpack.c.l.b16 %v1064
      %v2453 = vunpack.c.h.b16 %v1064
      %v2454 = vunpack.c.l.b16 %v1065
      %v2455 = vunpack.c.h.b16 %v1065
      %v2456 = vunpack.c.l.b16 %v1066
      %v2457 = vunpack.c.h.b16 %v1066
      %v2458 = vunpack.c.l.b16 %v1067
      %v2459 = vunpack.c.h.b16 %v1067
      %v2460 = vunpack.c.l.b16 %v1068
      %v2461 = vunpack.c.h.b16 %v1068
      %v2462 = vunpack.c.l.b16 %v1069
      %v2463 = vunpack.c.h.b16 %v1069
      %v2464 = vunpack.c.l.b16 %v1070
      %v2465 = vunpack.c.h.b16 %v1070
      %v2466 = vunpack.c.l.b16 %v1071
      %v2467 = vunpack.c.h.b16 %v1071
      %v2468 = vunpack.c.l.b16 %v1072
      %v2469 = vunpack.c.h.b16 %v1072
      %v2470 = vunpack.c.l.b16 %v1073
      %v2471 = vunpack.c.h.b16 %v1073
      %v2472 = vunpack.c.l.b16 %v1074
      %v2473 = vunpack.c.h.b16 %v1074
      %v2474 = vunpack.c.l.b16 %v1075
      %v2475 = vunpack.c.h.b16 %v1075
      %v2476 = vunpack.c.l.b16 %v1076
      %v2477 = vunpack.c.h.b16 %v1076
      %v2478 = vunpack.c.l.b16 %v1077
      %v2479 = vunpack.c.h.b16 %v1077
      %v2480 = vunpack.c.l.b16 %v1078
      %v2481 = vunpack.c.h.b16 %v1078
      %v2482 = vunpack.c.l.b16 %v1079
      %v2483 = vunpack.c.h.b16 %v1079
      %v2484 = vunpack.c.l.b16 %v1080
      %v2485 = vunpack.c.h.b16 %v1080
      %v2486 = vunpack.c.l.b16 %v1081
      %v2487 = vunpack.c.h.b16 %v1081
      %v2488 = vunpack.c.l.b16 %v1082
      %v2489 = vunpack.c.h.b16 %v1082
      %v2490 = vunpack.c.l.b16 %v1083
      %v2491 = vunpack.c.h.b16 %v1083
      %v2492 = vunpack.c.l.b16 %v1084
      %v2493 = vunpack.c.h.b16 %v1084
      %v2494 = vunpack.c.l.b16 %v1085
      %v2495 = vunpack.c.h.b16 %v1085
      %v2496 = vunpack.c.l.b16 %v1086
      %v2497 = vunpack.c.h.b16 %v1086
      %v2498 = vunpack.c.l.b16 %v1087
      %v2499 = vunpack.c.h.b16 %v1087
      %v2500 = vunpack.c.l.b16 %v1088
      %v2501 = vunpack.c.h.b16 %v1088
      %v2502 = vunpack.c.l.b16 %v1089
      %v2503 = vunpack.c.h.b16 %v1089
      %v2504 = vunpack.c.l.b16 %v1090
      %v2505 = vunpack.c.h.b16 %v1090
      %v2506 = vunpack.c.l.b16 %v1091
      %v2507 = vunpack.c.h.b16 %v1091
      %v2508 = vunpack.c.l.b16 %v1092
      %v2509 = vunpack.c.h.b16 %v1092
      %v2510 = vunpack.c.l.b16 %v1093
      %v2511 = vunpack.c.h.b16 %v1093
      %v2512 = vunpack.c.l.b16 %v1094
      %v2513 = vunpack.c.h.b16 %v1094
      %v2514 = vunpack.c.l.b16 %v1095
      %v2515 = vunpack.c.h.b16 %v1095
      %v2516 = vunpack.c.l.b16 %v1096
      %v2517 = vunpack.c.h.b16 %v1096
      %v2518 = vunpack.c.l.b16 %v1097
      %v2519 = vunpack.c.h.b16 %v1097
      %v2520 = vunpack.c.l.b16 %v1098
      %v2521 = vunpack.c.h.b16 %v1098
      %v2522 = vunpack.c.l.b16 %v1099
      %v2523 = vunpack.c.h.b16 %v1099
      %v2524 = vunpack.c.l.b16 %v1100
      %v2525 = vunpack.c.h.b16 %v1100
      %v2526 = vunpack.c.l.b16 %v1101
      %v2527 = vunpack.c.h.b16 %v1101
      %v2528 = vunpack.c.l.b16 %v1102
      %v2529 = vunpack.c.h.b16 %v1102
      %v2530 = vunpack.c.l.b16 %v1103
      %v2531 = vunpack.c.h.b16 %v1103
      %v2532 = vunpack.c.l.b16 %v1104
      %v2533 = vunpack.c.h.b16 %v1104
      %v2534 = vunpack.c.l.b16 %v1105
      %v2535 = vunpack.c.h.b16 %v1105
      %v2536 = vunpack.c.l.b16 %v1106
      %v2537 = vunpack.c.h.b16 %v1106
      %v2538 = vunpack.c.l.b16 %v1107
      %v2539 = vunpack.c.h.b16 %v1107
      %v2540 = vunpack.c.l.b16 %v1108
      %v2541 = vunpack.c.h.b16 %v1108
      %v2542 = vunpack.c.l.b16 %v1109
      %v2543 = vunpack.c.h.b16 %v1109
      %v2544 = vunpack.c.l.b16 %v1110
      %v2545 = vunpack.c.h.b16 %v1110
      %v2546 = vunpack.c.l.b16 %v1111
      %v2547 = vunpack.c.h.b16 %v1111
      %v2548 = vunpack.c.l.b16 %v1112
      %v2549 = vunpack.c.h.b16 %v1112
      %v2550 = vunpack.c.l.b16 %v1113
      %v2551 = vunpack.c.h.b16 %v1113
      %v2552 = vunpack.c.l.b16 %v1114
      %v2553 = vunpack.c.h.b16 %v1114
      %v2554 = vunpack.c.l.b16 %v1115
      %v2555 = vunpack.c.h.b16 %v1115
      %v2556 = vunpack.c.l.b16 %v1116
      %v2557 = vunpack.c.h.b16 %v1116
      %v2558 = vunpack.c.l.b16 %v1117
      %v2559 = vunpack.c.h.b16 %v1117
      %v2560 = vunpack.c.l.b16 %v1118
      %v2561 = vunpack.c.h.b16 %v1118
      %v2562 = vunpack.c.l.b16 %v1119
      %v2563 = vunpack.c.h.b16 %v1119
      %v2564 = vunpack.c.l.b16 %v1120
      %v2565 = vunpack.c.h.b16 %v1120
      %v2566 = vunpack.c.l.b16 %v1121
      %v2567 = vunpack.c.h.b16 %v1121
      %v2568 = vunpack.c.l.b16 %v1122
      %v2569 = vunpack.c.h.b16 %v1122
      %v2570 = vunpack.c.l.b16 %v1123
      %v2571 = vunpack.c.h.b16 %v1123
      %v2572 = vunpack.c.l.b16 %v1124
      %v2573 = vunpack.c.h.b16 %v1124
      %v2574 = vunpack.c.l.b16 %v1125
      %v2575 = vunpack.c.h.b16 %v1125
      %v2576 = vunpack.c.l.b16 %v1126
      %v2577 = vunpack.c.h.b16 %v1126
      %v2578 = vunpack.c.l.b16 %v1127
      %v2579 = vunpack.c.h.b16 %v1127
      %v2580 = vunpack.c.l.b16 %v1128
      %v2581 = vunpack.c.h.b16 %v1128
      %v2582 = vunpack.c.l.b16 %v1129
      %v2583 = vunpack.c.h.b16 %v1129
      %v2584 = vunpack.c.l.b16 %v1130
      %v2585 = vunpack.c.h.b16 %v1130
      %v2586 = vunpack.c.l.b16 %v1131
      %v2587 = vunpack.c.h.b16 %v1131
      %v2588 = vunpack.c.l.b16 %v1132
      %v2589 = vunpack.c.h.b16 %v1132
      %v2590 = vunpack.c.l.b16 %v1133
      %v2591 = vunpack.c.h.b16 %v1133
      %v2592 = vunpack.c.l.b16 %v1134
      %v2593 = vunpack.c.h.b16 %v1134
      %v2594 = vunpack.c.l.b16 %v1135
      %v2595 = vunpack.c.h.b16 %v1135
      %v2596 = vunpack.c.l.b16 %v1136
      %v2597 = vunpack.c.h.b16 %v1136
      %v2598 = vunpack.c.l.b16 %v1137
      %v2599 = vunpack.c.h.b16 %v1137
      %v2600 = vunpack.c.l.b16 %v1138
      %v2601 = vunpack.c.h.b16 %v1138
      %v2602 = vunpack.c.l.b16 %v1139
      %v2603 = vunpack.c.h.b16 %v1139
      %v2604 = vunpack.c.l.b16 %v1140
      %v2605 = vunpack.c.h.b16 %v1140
      %v2606 = vunpack.c.l.b16 %v1141
      %v2607 = vunpack.c.h.b16 %v1141
      %v2608 = vunpack.c.l.b16 %v1142
      %v2609 = vunpack.c.h.b16 %v1142
      %v2610 = vunpack.c.l.b16 %v1143
      %v2611 = vunpack.c.h.b16 %v1143
      %v2612 = vunpack.c.l.b16 %v1144
      %v2613 = vunpack.c.h.b16 %v1144
      %v2614 = vunpack.c.l.b16 %v1145
      %v2615 = vunpack.c.h.b16 %v1145
      %v2616 = vunpack.c.l.b16 %v1146
      %v2617 = vunpack.c.h.b16 %v1146
      %v2618 = vunpack.c.l.b16 %v1147
      %v2619 = vunpack.c.h.b16 %v1147
      %v2620 = vunpack.c.l.b16 %v1148
      %v2621 = vunpack.c.h.b16 %v1148
      %v2622 = vunpack.c.l.b16 %v1149
      %v2623 = vunpack.c.h.b16 %v1149
      %v2624 = vunpack.c.l.b16 %v1150
      %v2625 = vunpack.c.h.b16 %v1150
      %v2626 = vunpack.c.l.b16 %v1151
      %v2627 = vunpack.c.h.b16 %v1151
      %v2628 = vunpack.c.l.b16 %v1152
      %v2629 = vunpack.c.h.b16 %v1152
      %v2630 = vunpack.c.l.b16 %v1153
      %v2631 = vunpack.c.h.b16 %v1153
      %v2632 = vunpack.c.l.b16 %v1154
      %v2633 = vunpack.c.h.b16 %v1154
      %v2634 = vunpack.c.l.b16 %v1155
      %v2635 = vunpack.c.h.b16 %v1155
      %v2636 = vunpack.c.l.b16 %v1156
      %v2637 = vunpack.c.h.b16 %v1156
      %v2638 = vunpack.c.l.b16 %v1157
      %v2639 = vunpack.c.h.b16 %v1157
      %v2640 = vunpack.c.l.b16 %v1158
      %v2641 = vunpack.c.h.b16 %v1158
      %v2642 = vunpack.c.l.b16 %v1159
      %v2643 = vunpack.c.h.b16 %v1159
      %v2644 = vunpack.c.l.b16 %v1160
      %v2645 = vunpack.c.h.b16 %v1160
      %v2646 = vunpack.c.l.b16 %v1161
      %v2647 = vunpack.c.h.b16 %v1161
      %v2648 = vunpack.c.l.b16 %v1162
      %v2649 = vunpack.c.h.b16 %v1162
      %v2650 = vunpack.c.l.b16 %v1163
      %v2651 = vunpack.c.h.b16 %v1163
      %v2652 = vunpack.c.l.b16 %v1164
      %v2653 = vunpack.c.h.b16 %v1164
      %v2654 = vunpack.c.l.b16 %v1165
      %v2655 = vunpack.c.h.b16 %v1165
      %v2656 = vunpack.c.l.b16 %v1166
      %v2657 = vunpack.c.h.b16 %v1166
      %v2658 = vunpack.c.l.b16 %v1167
      %v2659 = vunpack.c.h.b16 %v1167
      %v2660 = vunpack.c.l.b16 %v1168
      %v2661 = vunpack.c.h.b16 %v1168
      %v2662 = vunpack.c.l.b16 %v1169
      %v2663 = vunpack.c.h.b16 %v1169
      %v2664 = vunpack.c.l.b16 %v1170
      %v2665 = vunpack.c.h.b16 %v1170
      %v2666 = vunpack.c.l.b16 %v1171
      %v2667 = vunpack.c.h.b16 %v1171
      %v2668 = vunpack.c.l.b16 %v1172
      %v2669 = vunpack.c.h.b16 %v1172
      %v2670 = vunpack.c.l.b16 %v1173
      %v2671 = vunpack.c.h.b16 %v1173
      %v2672 = vunpack.c.l.b16 %v1174
      %v2673 = vunpack.c.h.b16 %v1174
      %v2674 = vunpack.c.l.b16 %v1175
      %v2675 = vunpack.c.h.b16 %v1175
      %v2676 = vunpack.c.l.b16 %v1176
      %v2677 = vunpack.c.h.b16 %v1176
      %v2678 = vunpack.c.l.b16 %v1177
      %v2679 = vunpack.c.h.b16 %v1177
      %v2680 = vunpack.c.l.b16 %v1178
      %v2681 = vunpack.c.h.b16 %v1178
      %v2682 = vunpack.c.l.b16 %v1179
      %v2683 = vunpack.c.h.b16 %v1179
      %v2684 = vunpack.c.l.b16 %v1180
      %v2685 = vunpack.c.h.b16 %v1180
      %v2686 = vunpack.c.l.b16 %v1181
      %v2687 = vunpack.c.h.b16 %v1181
      %v2688 = vunpack.c.l.b16 %v1182
      %v2689 = vunpack.c.h.b16 %v1182
      %v2690 = vunpack.c.l.b16 %v1183
      %v2691 = vunpack.c.h.b16 %v1183
      %v2692 = vunpack.c.l.b16 %v1184
      %v2693 = vunpack.c.h.b16 %v1184
      %v2694 = vunpack.c.l.b16 %v1185
      %v2695 = vunpack.c.h.b16 %v1185
      %v2696 = vunpack.c.l.b16 %v1186
      %v2697 = vunpack.c.h.b16 %v1186
      %v2698 = vunpack.c.l.b16 %v1187
      %v2699 = vunpack.c.h.b16 %v1187
      %v2700 = vunpack.c.l.b16 %v1188
      %v2701 = vunpack.c.h.b16 %v1188
      %v2702 = vunpack.c.l.b16 %v1189
      %v2703 = vunpack.c.h.b16 %v1189
      %v2704 = vunpack.c.l.b16 %v1190
      %v2705 = vunpack.c.h.b16 %v1190
      %v2706 = vunpack.c.l.b16 %v1191
      %v2707 = vunpack.c.h.b16 %v1191
      %v2708 = vunpack.c.l.b16 %v1192
      %v2709 = vunpack.c.h.b16 %v1192
      %v2710 = vunpack.c.l.b16 %v1193
      %v2711 = vunpack.c.h.b16 %v1193
      %v2712 = vunpack.c.l.b16 %v1194
      %v2713 = vunpack.c.h.b16 %v1194
      %v2714 = vunpack.c.l.b16 %v1195
      %v2715 = vunpack.c.h.b16 %v1195
      %v2716 = vunpack.c.l.b16 %v1196
      %v2717 = vunpack.c.h.b16 %v1196
      %v2718 = vunpack.c.l.b16 %v1197
      %v2719 = vunpack.c.h.b16 %v1197
      %v2720 = vunpack.c.l.b16 %v1198
      %v2721 = vunpack.c.h.b16 %v1198
      %v2722 = vunpack.c.l.b16 %v1199
      %v2723 = vunpack.c.h.b16 %v1199
      %v2724 = vunpack.c.l.b16 %v1200
      %v2725 = vunpack.c.h.b16 %v1200
      %v2726 = vunpack.c.l.b16 %v1201
      %v2727 = vunpack.c.h.b16 %v1201
      %v2728 = vunpack.c.l.b16 %v1202
      %v2729 = vunpack.c.h.b16 %v1202
      %v2730 = vunpack.c.l.b16 %v1203
      %v2731 = vunpack.c.h.b16 %v1203
      %v2732 = vunpack.c.l.b16 %v1204
      %v2733 = vunpack.c.h.b16 %v1204
      %v2734 = vunpack.c.l.b16 %v1205
      %v2735 = vunpack.c.h.b16 %v1205
      %v2736 = vunpack.c.l.b16 %v1206
      %v2737 = vunpack.c.h.b16 %v1206
      %v2738 = vunpack.c.l.b16 %v1207
      %v2739 = vunpack.c.h.b16 %v1207
      %v2740 = vunpack.c.l.b16 %v1208
      %v2741 = vunpack.c.h.b16 %v1208
      %v2742 = vunpack.c.l.b16 %v1209
      %v2743 = vunpack.c.h.b16 %v1209
      %v2744 = vunpack.c.l.b16 %v1210
      %v2745 = vunpack.c.h.b16 %v1210
      %v2746 = vunpack.c.l.b16 %v1211
      %v2747 = vunpack.c.h.b16 %v1211
      %v2748 = vpack.c.b16 %v1740, %v1724
      %v2749 = vpack.c.b16 %v1741, %v1725
      %v2750 = vpack.c.b16 %v1742, %v1726
      %v2751 = vpack.c.b16 %v1743, %v1727
      %v2752 = vpack.c.b16 %v1744, %v1728
      %v2753 = vpack.c.b16 %v1745, %v1729
      %v2754 = vpack.c.b16 %v1746, %v1730
      %v2755 = vpack.c.b16 %v1747, %v1731
      %v2756 = vpack.c.b16 %v1748, %v1732
      %v2757 = vpack.c.b16 %v1749, %v1733
      %v2758 = vpack.c.b16 %v1750, %v1734
      %v2759 = vpack.c.b16 %v1751, %v1735
      %v2760 = vpack.c.b16 %v1752, %v1736
      %v2761 = vpack.c.b16 %v1753, %v1737
      %v2762 = vpack.c.b16 %v1754, %v1738
      %v2763 = vpack.c.b16 %v1755, %v1739
      %v2764 = vpack.c.b16 %v1772, %v1756
      %v2765 = vpack.c.b16 %v1773, %v1757
      %v2766 = vpack.c.b16 %v1774, %v1758
      %v2767 = vpack.c.b16 %v1775, %v1759
      %v2768 = vpack.c.b16 %v1776, %v1760
      %v2769 = vpack.c.b16 %v1777, %v1761
      %v2770 = vpack.c.b16 %v1778, %v1762
      %v2771 = vpack.c.b16 %v1779, %v1763
      %v2772 = vpack.c.b16 %v1780, %v1764
      %v2773 = vpack.c.b16 %v1781, %v1765
      %v2774 = vpack.c.b16 %v1782, %v1766
      %v2775 = vpack.c.b16 %v1783, %v1767
      %v2776 = vpack.c.b16 %v1784, %v1768
      %v2777 = vpack.c.b16 %v1785, %v1769
      %v2778 = vpack.c.b16 %v1786, %v1770
      %v2779 = vpack.c.b16 %v1787, %v1771
      %v2780 = vpack.c.b16 %v1804, %v1788
      %v2781 = vpack.c.b16 %v1805, %v1789
      %v2782 = vpack.c.b16 %v1806, %v1790
      %v2783 = vpack.c.b16 %v1807, %v1791
      %v2784 = vpack.c.b16 %v1808, %v1792
      %v2785 = vpack.c.b16 %v1809, %v1793
      %v2786 = vpack.c.b16 %v1810, %v1794
      %v2787 = vpack.c.b16 %v1811, %v1795
      %v2788 = vpack.c.b16 %v1812, %v1796
      %v2789 = vpack.c.b16 %v1813, %v1797
      %v2790 = vpack.c.b16 %v1814, %v1798
      %v2791 = vpack.c.b16 %v1815, %v1799
      %v2792 = vpack.c.b16 %v1816, %v1800
      %v2793 = vpack.c.b16 %v1817, %v1801
      %v2794 = vpack.c.b16 %v1818, %v1802
      %v2795 = vpack.c.b16 %v1819, %v1803
      %v2796 = vpack.c.b16 %v1836, %v1820
      %v2797 = vpack.c.b16 %v1837, %v1821
      %v2798 = vpack.c.b16 %v1838, %v1822
      %v2799 = vpack.c.b16 %v1839, %v1823
      %v2800 = vpack.c.b16 %v1840, %v1824
      %v2801 = vpack.c.b16 %v1841, %v1825
      %v2802 = vpack.c.b16 %v1842, %v1826
      %v2803 = vpack.c.b16 %v1843, %v1827
      %v2804 = vpack.c.b16 %v1844, %v1828
      %v2805 = vpack.c.b16 %v1845, %v1829
      %v2806 = vpack.c.b16 %v1846, %v1830
      %v2807 = vpack.c.b16 %v1847, %v1831
      %v2808 = vpack.c.b16 %v1848, %v1832
      %v2809 = vpack.c.b16 %v1849, %v1833
      %v2810 = vpack.c.b16 %v1850, %v1834
      %v2811 = vpack.c.b16 %v1851, %v1835
      %v2812 = vpack.c.b16 %v1868, %v1852
      %v2813 = vpack.c.b16 %v1869, %v1853
      %v2814 = vpack.c.b16 %v1870, %v1854
      %v2815 = vpack.c.b16 %v1871, %v1855
      %v2816 = vpack.c.b16 %v1872, %v1856
      %v2817 = vpack.c.b16 %v1873, %v1857
      %v2818 = vpack.c.b16 %v1874, %v1858
      %v2819 = vpack.c.b16 %v1875, %v1859
      %v2820 = vpack.c.b16 %v1876, %v1860
      %v2821 = vpack.c.b16 %v1877, %v1861
      %v2822 = vpack.c.b16 %v1878, %v1862
      %v2823 = vpack.c.b16 %v1879, %v1863
      %v2824 = vpack.c.b16 %v1880, %v1864
      %v2825 = vpack.c.b16 %v1881, %v1865
      %v2826 = vpack.c.b16 %v1882, %v1866
      %v2827 = vpack.c.b16 %v1883, %v1867
      %v2828 = vpack.c.b16 %v1900, %v1884
      %v2829 = vpack.c.b16 %v1901, %v1885
      %v2830 = vpack.c.b16 %v1902, %v1886
      %v2831 = vpack.c.b16 %v1903, %v1887
      %v2832 = vpack.c.b16 %v1904, %v1888
      %v2833 = vpack.c.b16 %v1905, %v1889
      %v2834 = vpack.c.b16 %v1906, %v1890
      %v2835 = vpack.c.b16 %v1907, %v1891
      %v2836 = vpack.c.b16 %v1908, %v1892
      %v2837 = vpack.c.b16 %v1909, %v1893
      %v2838 = vpack.c.b16 %v1910, %v1894
      %v2839 = vpack.c.b16 %v1911, %v1895
      %v2840 = vpack.c.b16 %v1912, %v1896
      %v2841 = vpack.c.b16 %v1913, %v1897
      %v2842 = vpack.c.b16 %v1914, %v1898
      %v2843 = vpack.c.b16 %v1915, %v1899
      %v2844 = vpack.c.b16 %v1932, %v1916
      %v2845 = vpack.c.b16 %v1933, %v1917
      %v2846 = vpack.c.b16 %v1934, %v1918
      %v2847 = vpack.c.b16 %v1935, %v1919
      %v2848 = vpack.c.b16 %v1936, %v1920
      %v2849 = vpack.c.b16 %v1937, %v1921
      %v2850 = vpack.c.b16 %v1938, %v1922
      %v2851 = vpack.c.b16 %v1939, %v1923
      %v2852 = vpack.c.b16 %v1940, %v1924
      %v2853 = vpack.c.b16 %v1941, %v1925
      %v2854 = vpack.c.b16 %v1942, %v1926
      %v2855 = vpack.c.b16 %v1943, %v1927
      %v2856 = vpack.c.b16 %v1944, %v1928
      %v2857 = vpack.c.b16 %v1945, %v1929
      %v2858 = vpack.c.b16 %v1946, %v1930
      %v2859 = vpack.c.b16 %v1947, %v1931
      %v2860 = vpack.c.b16 %v1964, %v1948
      %v2861 = vpack.c.b16 %v1965, %v1949
      %v2862 = vpack.c.b16 %v1966, %v1950
      %v2863 = vpack.c.b16 %v1967, %v1951
      %v2864 = vpack.c.b16 %v1968, %v1952
      %v2865 = vpack.c.b16 %v1969, %v1953
      %v2866 = vpack.c.b16 %v1970, %v1954
      %v2867 = vpack.c.b16 %v1971, %v1955
      %v2868 = vpack.c.b16 %v1972, %v1956
      %v2869 = vpack.c.b16 %v1973, %v1957
      %v2870 = vpack.c.b16 %v1974, %v1958
      %v2871 = vpack.c.b16 %v1975, %v1959
      %v2872 = vpack.c.b16 %v1976, %v1960
      %v2873 = vpack.c.b16 %v1977, %v1961
      %v2874 = vpack.c.b16 %v1978, %v1962
      %v2875 = vpack.c.b16 %v1979, %v1963
      %v2876 = vpack.c.b16 %v1996, %v1980
      %v2877 = vpack.c.b16 %v1997, %v1981
      %v2878 = vpack.c.b16 %v1998, %v1982
      %v2879 = vpack.c.b16 %v1999, %v1983
      %v2880 = vpack.c.b16 %v2000, %v1984
      %v2881 = vpack.c.b16 %v2001, %v1985
      %v2882 = vpack.c.b16 %v2002, %v1986
      %v2883 = vpack.c.b16 %v2003, %v1987
      %v2884 = vpack.c.b16 %v2004, %v1988
      %v2885 = vpack.c.b16 %v2005, %v1989
      %v2886 = vpack.c.b16 %v2006, %v1990
      %v2887 = vpack.c.b16 %v2007, %v1991
      %v2888 = vpack.c.b16 %v2008, %v1992
      %v2889 = vpack.c.b16 %v2009, %v1993
      %v2890 = vpack.c.b16 %v2010, %v1994
      %v2891 = vpack.c.b16 %v2011, %v1995
      %v2892 = vpack.c.b16 %v2028, %v2012
      %v2893 = vpack.c.b16 %v2029, %v2013
      %v2894 = vpack.c.b16 %v2030, %v2014
      %v2895 = vpack.c.b16 %v2031, %v2015
      %v2896 = vpack.c.b16 %v2032, %v2016
      %v2897 = vpack.c.b16 %v2033, %v2017
      %v2898 = vpack.c.b16 %v2034, %v2018
      %v2899 = vpack.c.b16 %v2035, %v2019
      %v2900 = vpack.c.b16 %v2036, %v2020
      %v2901 = vpack.c.b16 %v2037, %v2021
      %v2902 = vpack.c.b16 %v2038, %v2022
      %v2903 = vpack.c.b16 %v2039, %v2023
      %v2904 = vpack.c.b16 %v2040, %v2024
      %v2905 = vpack.c.b16 %v2041, %v2025
      %v2906 = vpack.c.b16 %v2042, %v2026
      %v2907 = vpack.c.b16 %v2043, %v2027
      %v2908 = vpack.c.b16 %v2060, %v2044
      %v2909 = vpack.c.b16 %v2061, %v2045
      %v2910 = vpack.c.b16 %v2062, %v2046
      %v2911 = vpack.c.b16 %v2063, %v2047
      %v2912 = vpack.c.b16 %v2064, %v2048
      %v2913 = vpack.c.b16 %v2065, %v2049
      %v2914 = vpack.c.b16 %v2066, %v2050
      %v2915 = vpack.c.b16 %v2067, %v2051
      %v2916 = vpack.c.b16 %v2068, %v2052
      %v2917 = vpack.c.b16 %v2069, %v2053
      %v2918 = vpack.c.b16 %v2070, %v2054
      %v2919 = vpack.c.b16 %v2071, %v2055
      %v2920 = vpack.c.b16 %v2072, %v2056
      %v2921 = vpack.c.b16 %v2073, %v2057
      %v2922 = vpack.c.b16 %v2074, %v2058
      %v2923 = vpack.c.b16 %v2075, %v2059
      %v2924 = vpack.c.b16 %v2092, %v2076
      %v2925 = vpack.c.b16 %v2093, %v2077
      %v2926 = vpack.c.b16 %v2094, %v2078
      %v2927 = vpack.c.b16 %v2095, %v2079
      %v2928 = vpack.c.b16 %v2096, %v2080
      %v2929 = vpack.c.b16 %v2097, %v2081
      %v2930 = vpack.c.b16 %v2098, %v2082
      %v2931 = vpack.c.b16 %v2099, %v2083
      %v2932 = vpack.c.b16 %v2100, %v2084
      %v2933 = vpack.c.b16 %v2101, %v2085
      %v2934 = vpack.c.b16 %v2102, %v2086
      %v2935 = vpack.c.b16 %v2103, %v2087
      %v2936 = vpack.c.b16 %v2104, %v2088
      %v2937 = vpack.c.b16 %v2105, %v2089
      %v2938 = vpack.c.b16 %v2106, %v2090
      %v2939 = vpack.c.b16 %v2107, %v2091
      %v2940 = vpack.c.b16 %v2124, %v2108
      %v2941 = vpack.c.b16 %v2125, %v2109
      %v2942 = vpack.c.b16 %v2126, %v2110
      %v2943 = vpack.c.b16 %v2127, %v2111
      %v2944 = vpack.c.b16 %v2128, %v2112
      %v2945 = vpack.c.b16 %v2129, %v2113
      %v2946 = vpack.c.b16 %v2130, %v2114
      %v2947 = vpack.c.b16 %v2131, %v2115
      %v2948 = vpack.c.b16 %v2132, %v2116
      %v2949 = vpack.c.b16 %v2133, %v2117
      %v2950 = vpack.c.b16 %v2134, %v2118
      %v2951 = vpack.c.b16 %v2135, %v2119
      %v2952 = vpack.c.b16 %v2136, %v2120
      %v2953 = vpack.c.b16 %v2137, %v2121
      %v2954 = vpack.c.b16 %v2138, %v2122
      %v2955 = vpack.c.b16 %v2139, %v2123
      %v2956 = vpack.c.b16 %v2156, %v2140
      %v2957 = vpack.c.b16 %v2157, %v2141
      %v2958 = vpack.c.b16 %v2158, %v2142
      %v2959 = vpack.c.b16 %v2159, %v2143
      %v2960 = vpack.c.b16 %v2160, %v2144
      %v2961 = vpack.c.b16 %v2161, %v2145
      %v2962 = vpack.c.b16 %v2162, %v2146
      %v2963 = vpack.c.b16 %v2163, %v2147
      %v2964 = vpack.c.b16 %v2164, %v2148
      %v2965 = vpack.c.b16 %v2165, %v2149
      %v2966 = vpack.c.b16 %v2166, %v2150
      %v2967 = vpack.c.b16 %v2167, %v2151
      %v2968 = vpack.c.b16 %v2168, %v2152
      %v2969 = vpack.c.b16 %v2169, %v2153
      %v2970 = vpack.c.b16 %v2170, %v2154
      %v2971 = vpack.c.b16 %v2171, %v2155
      %v2972 = vpack.c.b16 %v2188, %v2172
      %v2973 = vpack.c.b16 %v2189, %v2173
      %v2974 = vpack.c.b16 %v2190, %v2174
      %v2975 = vpack.c.b16 %v2191, %v2175
      %v2976 = vpack.c.b16 %v2192, %v2176
      %v2977 = vpack.c.b16 %v2193, %v2177
      %v2978 = vpack.c.b16 %v2194, %v2178
      %v2979 = vpack.c.b16 %v2195, %v2179
      %v2980 = vpack.c.b16 %v2196, %v2180
      %v2981 = vpack.c.b16 %v2197, %v2181
      %v2982 = vpack.c.b16 %v2198, %v2182
      %v2983 = vpack.c.b16 %v2199, %v2183
      %v2984 = vpack.c.b16 %v2200, %v2184
      %v2985 = vpack.c.b16 %v2201, %v2185
      %v2986 = vpack.c.b16 %v2202, %v2186
      %v2987 = vpack.c.b16 %v2203, %v2187
      %v2988 = vpack.c.b16 %v2220, %v2204
      %v2989 = vpack.c.b16 %v2221, %v2205
      %v2990 = vpack.c.b16 %v2222, %v2206
      %v2991 = vpack.c.b16 %v2223, %v2207
      %v2992 = vpack.c.b16 %v2224, %v2208
      %v2993 = vpack.c.b16 %v2225, %v2209
      %v2994 = vpack.c.b16 %v2226, %v2210
      %v2995 = vpack.c.b16 %v2227, %v2211
      %v2996 = vpack.c.b16 %v2228, %v2212
      %v2997 = vpack.c.b16 %v2229, %v2213
      %v2998 = vpack.c.b16 %v2230, %v2214
      %v2999 = vpack.c.b16 %v2231, %v2215
      %v3000 = vpack.c.b16 %v2232, %v2216
      %v3001 = vpack.c.b16 %v2233, %v2217
      %v3002 = vpack.c.b16 %v2234, %v2218
      %v3003 = vpack.c.b16 %v2235, %v2219
      %v3004 = vpack.c.b16 %v2252, %v2236
      %v3005 = vpack.c.b16 %v2253, %v2237
      %v3006 = vpack.c.b16 %v2254, %v2238
      %v3007 = vpack.c.b16 %v2255, %v2239
      %v3008 = vpack.c.b16 %v2256, %v2240
      %v3009 = vpack.c.b16 %v2257, %v2241
      %v3010 = vpack.c.b16 %v2258, %v2242
      %v3011 = vpack.c.b16 %v2259, %v2243
      %v3012 = vpack.c.b16 %v2260, %v2244
      %v3013 = vpack.c.b16 %v2261, %v2245
      %v3014 = vpack.c.b16 %v2262, %v2246
      %v3015 = vpack.c.b16 %v2263, %v2247
      %v3016 = vpack.c.b16 %v2264, %v2248
      %v3017 = vpack.c.b16 %v2265, %v2249
      %v3018 = vpack.c.b16 %v2266, %v2250
      %v3019 = vpack.c.b16 %v2267, %v2251
      %v3020 = vpack.c.b16 %v2284, %v2268
      %v3021 = vpack.c.b16 %v2285, %v2269
      %v3022 = vpack.c.b16 %v2286, %v2270
      %v3023 = vpack.c.b16 %v2287, %v2271
      %v3024 = vpack.c.b16 %v2288, %v2272
      %v3025 = vpack.c.b16 %v2289, %v2273
      %v3026 = vpack.c.b16 %v2290, %v2274
      %v3027 = vpack.c.b16 %v2291, %v2275
      %v3028 = vpack.c.b16 %v2292, %v2276
      %v3029 = vpack.c.b16 %v2293, %v2277
      %v3030 = vpack.c.b16 %v2294, %v2278
      %v3031 = vpack.c.b16 %v2295, %v2279
      %v3032 = vpack.c.b16 %v2296, %v2280
      %v3033 = vpack.c.b16 %v2297, %v2281
      %v3034 = vpack.c.b16 %v2298, %v2282
      %v3035 = vpack.c.b16 %v2299, %v2283
      %v3036 = vpack.c.b16 %v2316, %v2300
      %v3037 = vpack.c.b16 %v2317, %v2301
      %v3038 = vpack.c.b16 %v2318, %v2302
      %v3039 = vpack.c.b16 %v2319, %v2303
      %v3040 = vpack.c.b16 %v2320, %v2304
      %v3041 = vpack.c.b16 %v2321, %v2305
      %v3042 = vpack.c.b16 %v2322, %v2306
      %v3043 = vpack.c.b16 %v2323, %v2307
      %v3044 = vpack.c.b16 %v2324, %v2308
      %v3045 = vpack.c.b16 %v2325, %v2309
      %v3046 = vpack.c.b16 %v2326, %v2310
      %v3047 = vpack.c.b16 %v2327, %v2311
      %v3048 = vpack.c.b16 %v2328, %v2312
      %v3049 = vpack.c.b16 %v2329, %v2313
      %v3050 = vpack.c.b16 %v2330, %v2314
      %v3051 = vpack.c.b16 %v2331, %v2315
      %v3052 = vpack.c.b16 %v2348, %v2332
      %v3053 = vpack.c.b16 %v2349, %v2333
      %v3054 = vpack.c.b16 %v2350, %v2334
      %v3055 = vpack.c.b16 %v2351, %v2335
      %v3056 = vpack.c.b16 %v2352, %v2336
      %v3057 = vpack.c.b16 %v2353, %v2337
      %v3058 = vpack.c.b16 %v2354, %v2338
      %v3059 = vpack.c.b16 %v2355, %v2339
      %v3060 = vpack.c.b16 %v2356, %v2340
      %v3061 = vpack.c.b16 %v2357, %v2341
      %v3062 = vpack.c.b16 %v2358, %v2342
      %v3063 = vpack.c.b16 %v2359, %v2343
      %v3064 = vpack.c.b16 %v2360, %v2344
      %v3065 = vpack.c.b16 %v2361, %v2345
      %v3066 = vpack.c.b16 %v2362, %v2346
      %v3067 = vpack.c.b16 %v2363, %v2347
      %v3068 = vpack.c.b16 %v2380, %v2364
      %v3069 = vpack.c.b16 %v2381, %v2365
      %v3070 = vpack.c.b16 %v2382, %v2366
      %v3071 = vpack.c.b16 %v2383, %v2367
      %v3072 = vpack.c.b16 %v2384, %v2368
      %v3073 = vpack.c.b16 %v2385, %v2369
      %v3074 = vpack.c.b16 %v2386, %v2370
      %v3075 = vpack.c.b16 %v2387, %v2371
      %v3076 = vpack.c.b16 %v2388, %v2372
      %v3077 = vpack.c.b16 %v2389, %v2373
      %v3078 = vpack.c.b16 %v2390, %v2374
      %v3079 = vpack.c.b16 %v2391, %v2375
      %v3080 = vpack.c.b16 %v2392, %v2376
      %v3081 = vpack.c.b16 %v2393, %v2377
      %v3082 = vpack.c.b16 %v2394, %v2378
      %v3083 = vpack.c.b16 %v2395, %v2379
      %v3084 = vpack.c.b16 %v2412, %v2396
      %v3085 = vpack.c.b16 %v2413, %v2397
      %v3086 = vpack.c.b16 %v2414, %v2398
      %v3087 = vpack.c.b16 %v2415, %v2399
      %v3088 = vpack.c.b16 %v2416, %v2400
      %v3089 = vpack.c.b16 %v2417, %v2401
      %v3090 = vpack.c.b16 %v2418, %v2402
      %v3091 = vpack.c.b16 %v2419, %v2403
      %v3092 = vpack.c.b16 %v2420, %v2404
      %v3093 = vpack.c.b16 %v2421, %v2405
      %v3094 = vpack.c.b16 %v2422, %v2406
      %v3095 = vpack.c.b16 %v2423, %v2407
      %v3096 = vpack.c.b16 %v2424, %v2408
      %v3097 = vpack.c.b16 %v2425, %v2409
      %v3098 = vpack.c.b16 %v2426, %v2410
      %v3099 = vpack.c.b16 %v2427, %v2411
      %v3100 = vpack.c.b16 %v2444, %v2428
      %v3101 = vpack.c.b16 %v2445, %v2429
      %v3102 = vpack.c.b16 %v2446, %v2430
      %v3103 = vpack.c.b16 %v2447, %v2431
      %v3104 = vpack.c.b16 %v2448, %v2432
      %v3105 = vpack.c.b16 %v2449, %v2433
      %v3106 = vpack.c.b16 %v2450, %v2434
      %v3107 = vpack.c.b16 %v2451, %v2435
      %v3108 = vpack.c.b16 %v2452, %v2436
      %v3109 = vpack.c.b16 %v2453, %v2437
      %v3110 = vpack.c.b16 %v2454, %v2438
      %v3111 = vpack.c.b16 %v2455, %v2439
      %v3112 = vpack.c.b16 %v2456, %v2440
      %v3113 = vpack.c.b16 %v2457, %v2441
      %v3114 = vpack.c.b16 %v2458, %v2442
      %v3115 = vpack.c.b16 %v2459, %v2443
      %v3116 = vpack.c.b16 %v2476, %v2460
      %v3117 = vpack.c.b16 %v2477, %v2461
      %v3118 = vpack.c.b16 %v2478, %v2462
      %v3119 = vpack.c.b16 %v2479, %v2463
      %v3120 = vpack.c.b16 %v2480, %v2464
      %v3121 = vpack.c.b16 %v2481, %v2465
      %v3122 = vpack.c.b16 %v2482, %v2466
      %v3123 = vpack.c.b16 %v2483, %v2467
      %v3124 = vpack.c.b16 %v2484, %v2468
      %v3125 = vpack.c.b16 %v2485, %v2469
      %v3126 = vpack.c.b16 %v2486, %v2470
      %v3127 = vpack.c.b16 %v2487, %v2471
      %v3128 = vpack.c.b16 %v2488, %v2472
      %v3129 = vpack.c.b16 %v2489, %v2473
      %v3130 = vpack.c.b16 %v2490, %v2474
      %v3131 = vpack.c.b16 %v2491, %v2475
      %v3132 = vpack.c.b16 %v2508, %v2492
      %v3133 = vpack.c.b16 %v2509, %v2493
      %v3134 = vpack.c.b16 %v2510, %v2494
      %v3135 = vpack.c.b16 %v2511, %v2495
      %v3136 = vpack.c.b16 %v2512, %v2496
      %v3137 = vpack.c.b16 %v2513, %v2497
      %v3138 = vpack.c.b16 %v2514, %v2498
      %v3139 = vpack.c.b16 %v2515, %v2499
      %v3140 = vpack.c.b16 %v2516, %v2500
      %v3141 = vpack.c.b16 %v2517, %v2501
      %v3142 = vpack.c.b16 %v2518, %v2502
      %v3143 = vpack.c.b16 %v2519, %v2503
      %v3144 = vpack.c.b16 %v2520, %v2504
      %v3145 = vpack.c.b16 %v2521, %v2505
      %v3146 = vpack.c.b16 %v2522, %v2506
      %v3147 = vpack.c.b16 %v2523, %v2507
      %v3148 = vpack.c.b16 %v2540, %v2524
      %v3149 = vpack.c.b16 %v2541, %v2525
      %v3150 = vpack.c.b16 %v2542, %v2526
      %v3151 = vpack.c.b16 %v2543, %v2527
      %v3152 = vpack.c.b16 %v2544, %v2528
      %v3153 = vpack.c.b16 %v2545, %v2529
      %v3154 = vpack.c.b16 %v2546, %v2530
      %v3155 = vpack.c.b16 %v2547, %v2531
      %v3156 = vpack.c.b16 %v2548, %v2532
      %v3157 = vpack.c.b16 %v2549, %v2533
      %v3158 = vpack.c.b16 %v2550, %v2534
      %v3159 = vpack.c.b16 %v2551, %v2535
      %v3160 = vpack.c.b16 %v2552, %v2536
      %v3161 = vpack.c.b16 %v2553, %v2537
      %v3162 = vpack.c.b16 %v2554, %v2538
      %v3163 = vpack.c.b16 %v2555, %v2539
      %v3164 = vpack.c.b16 %v2572, %v2556
      %v3165 = vpack.c.b16 %v2573, %v2557
      %v3166 = vpack.c.b16 %v2574, %v2558
      %v3167 = vpack.c.b16 %v2575, %v2559
      %v3168 = vpack.c.b16 %v2576, %v2560
      %v3169 = vpack.c.b16 %v2577, %v2561
      %v3170 = vpack.c.b16 %v2578, %v2562
      %v3171 = vpack.c.b16 %v2579, %v2563
      %v3172 = vpack.c.b16 %v2580, %v2564
      %v3173 = vpack.c.b16 %v2581, %v2565
      %v3174 = vpack.c.b16 %v2582, %v2566
      %v3175 = vpack.c.b16 %v2583, %v2567
      %v3176 = vpack.c.b16 %v2584, %v2568
      %v3177 = vpack.c.b16 %v2585, %v2569
      %v3178 = vpack.c.b16 %v2586, %v2570
      %v3179 = vpack.c.b16 %v2587, %v2571
      %v3180 = vpack.c.b16 %v2604, %v2588
      %v3181 = vpack.c.b16 %v2605, %v2589
      %v3182 = vpack.c.b16 %v2606, %v2590
      %v3183 = vpack.c.b16 %v2607, %v2591
      %v3184 = vpack.c.b16 %v2608, %v2592
      %v3185 = vpack.c.b16 %v2609, %v2593
      %v3186 = vpack.c.b16 %v2610, %v2594
      %v3187 = vpack.c.b16 %v2611, %v2595
      %v3188 = vpack.c.b16 %v2612, %v2596
      %v3189 = vpack.c.b16 %v2613, %v2597
      %v3190 = vpack.c.b16 %v2614, %v2598
      %v3191 = vpack.c.b16 %v2615, %v2599
      %v3192 = vpack.c.b16 %v2616, %v2600
      %v3193 = vpack.c.b16 %v2617, %v2601
      %v3194 = vpack.c.b16 %v2618, %v2602
      %v3195 = vpack.c.b16 %v2619, %v2603
      %v3196 = vpack.c.b16 %v2636, %v2620
      %v3197 = vpack.c.b16 %v2637, %v2621
      %v3198 = vpack.c.b16 %v2638, %v2622
      %v3199 = vpack.c.b16 %v2639, %v2623
      %v3200 = vpack.c.b16 %v2640, %v2624
      %v3201 = vpack.c.b16 %v2641, %v2625
      %v3202 = vpack.c.b16 %v2642, %v2626
      %v3203 = vpack.c.b16 %v2643, %v2627
      %v3204 = vpack.c.b16 %v2644, %v2628
      %v3205 = vpack.c.b16 %v2645, %v2629
      %v3206 = vpack.c.b16 %v2646, %v2630
      %v3207 = vpack.c.b16 %v2647, %v2631
      %v3208 = vpack.c.b16 %v2648, %v2632
      %v3209 = vpack.c.b16 %v2649, %v2633
      %v3210 = vpack.c.b16 %v2650, %v2634
      %v3211 = vpack.c.b16 %v2651, %v2635
      %v3212 = vpack.c.b16 %v2668, %v2652
      %v3213 = vpack.c.b16 %v2669, %v2653
      %v3214 = vpack.c.b16 %v2670, %v2654
      %v3215 = vpack.c.b16 %v2671, %v2655
      %v3216 = vpack.c.b16 %v2672, %v2656
      %v3217 = vpack.c.b16 %v2673, %v2657
      %v3218 = vpack.c.b16 %v2674, %v2658
      %v3219 = vpack.c.b16 %v2675, %v2659
      %v3220 = vpack.c.b16 %v2676, %v2660
      %v3221 = vpack.c.b16 %v2677, %v2661
      %v3222 = vpack.c.b16 %v2678, %v2662
      %v3223 = vpack.c.b16 %v2679, %v2663
      %v3224 = vpack.c.b16 %v2680, %v2664
      %v3225 = vpack.c.b16 %v2681, %v2665
      %v3226 = vpack.c.b16 %v2682, %v2666
      %v3227 = vpack.c.b16 %v2683, %v2667
      %v3228 = vpack.c.b16 %v2700, %v2684
      %v3229 = vpack.c.b16 %v2701, %v2685
      %v3230 = vpack.c.b16 %v2702, %v2686
      %v3231 = vpack.c.b16 %v2703, %v2687
      %v3232 = vpack.c.b16 %v2704, %v2688
      %v3233 = vpack.c.b16 %v2705, %v2689
      %v3234 = vpack.c.b16 %v2706, %v2690
      %v3235 = vpack.c.b16 %v2707, %v2691
      %v3236 = vpack.c.b16 %v2708, %v2692
      %v3237 = vpack.c.b16 %v2709, %v2693
      %v3238 = vpack.c.b16 %v2710, %v2694
      %v3239 = vpack.c.b16 %v2711, %v2695
      %v3240 = vpack.c.b16 %v2712, %v2696
      %v3241 = vpack.c.b16 %v2713, %v2697
      %v3242 = vpack.c.b16 %v2714, %v2698
      %v3243 = vpack.c.b16 %v2715, %v2699
      %v3244 = vpack.c.b16 %v2732, %v2716
      %v3245 = vpack.c.b16 %v2733, %v2717
      %v3246 = vpack.c.b16 %v2734, %v2718
      %v3247 = vpack.c.b16 %v2735, %v2719
      %v3248 = vpack.c.b16 %v2736, %v2720
      %v3249 = vpack.c.b16 %v2737, %v2721
      %v3250 = vpack.c.b16 %v2738, %v2722
      %v3251 = vpack.c.b16 %v2739, %v2723
      %v3252 = vpack.c.b16 %v2740, %v2724
      %v3253 = vpack.c.b16 %v2741, %v2725
      %v3254 = vpack.c.b16 %v2742, %v2726
      %v3255 = vpack.c.b16 %v2743, %v2727
      %v3256 = vpack.c.b16 %v2744, %v2728
      %v3257 = vpack.c.b16 %v2745, %v2729
      %v3258 = vpack.c.b16 %v2746, %v2730
      %v3259 = vpack.c.b16 %v2747, %v2731
      %3772 = vmatprep.subr.bf16.mxu0 %v2749
      %3773 = vmatpush1.bf16.msra.mxu0 %v2748
      %3774 = vmatprep.subr.bf16.mxu0 %v2765
      %3775 = vmatpush1.bf16.msra.mxu0 %v2764
      %3776 = vmatprep.subr.bf16.mxu0 %v2781
      %3777 = vmatpush1.bf16.msra.mxu0 %v2780
      %3778 = vmatprep.subr.bf16.mxu0 %v2797
      %3779 = vmatpush1.bf16.msra.mxu0 %v2796
      %3780 = vmatprep.subr.bf16.mxu0 %v2813
      %3781 = vmatpush1.bf16.msra.mxu0 %v2812
      %3782 = vmatprep.subr.bf16.mxu0 %v2829
      %3783 = vmatpush1.bf16.msra.mxu0 %v2828
      %3784 = vmatprep.subr.bf16.mxu0 %v2845
      %3785 = vmatpush1.bf16.msra.mxu0 %v2844
      %3786 = vmatprep.subr.bf16.mxu0 %v2861
      %3787 = vmatpush1.bf16.msra.mxu0 %v2860
      %3788 = vmatprep.subr.bf16.mxu0 %v2877
      %3789 = vmatpush1.bf16.msra.mxu0 %v2876
      %3790 = vmatprep.subr.bf16.mxu0 %v2893
      %3791 = vmatpush1.bf16.msra.mxu0 %v2892
      %3792 = vmatprep.subr.bf16.mxu0 %v2909
      %3793 = vmatpush1.bf16.msra.mxu0 %v2908
      %3794 = vmatprep.subr.bf16.mxu0 %v2925
      %3795 = vmatpush1.bf16.msra.mxu0 %v2924
      %3796 = vmatprep.subr.bf16.mxu0 %v2941
      %3797 = vmatpush1.bf16.msra.mxu0 %v2940
      %3798 = vmatprep.subr.bf16.mxu0 %v2957
      %3799 = vmatpush1.bf16.msra.mxu0 %v2956
      %3800 = vmatprep.subr.bf16.mxu0 %v2973
      %3801 = vmatpush1.bf16.msra.mxu0 %v2972
      %3802 = vmatprep.subr.bf16.mxu0 %v2989
      %3803 = vmatpush1.bf16.msra.mxu0 %v2988
      %3804 = vmatprep.mubr.bf16.mxu0 %v697
      %3805 = vmatmul.mubr.bf16.gmra.mrb[0].mxu0 %v696
      %v3806 = vpop.f32.mrb[0].mxu0
      %v3807 = vadd.f32 0.0, %v3806
      %v3808 = vpop.f32.mrb[0].mxu0
      %v3809 = vadd.f32 0.0, %v3808
      %v3810 = vpop.f32.mrb[0].mxu0
      %v3811 = vpop.f32.mrb[0].mxu0
      %3812 = vdwg.mxu0
      %3813 = vmatprep.subr.bf16.mxu0 %v3005
      %3814 = vmatpush1.bf16.msra.mxu0 %v3004
      %3815 = vmatprep.subr.bf16.mxu0 %v3021
      %3816 = vmatpush1.bf16.msra.mxu0 %v3020
      %3817 = vmatprep.subr.bf16.mxu0 %v3037
      %3818 = vmatpush1.bf16.msra.mxu0 %v3036
      %3819 = vmatprep.subr.bf16.mxu0 %v3053
      %3820 = vmatpush1.bf16.msra.mxu0 %v3052
      %3821 = vmatprep.subr.bf16.mxu0 %v3069
      %3822 = vmatpush1.bf16.msra.mxu0 %v3068
      %3823 = vmatprep.subr.bf16.mxu0 %v3085
      %3824 = vmatpush1.bf16.msra.mxu0 %v3084
      %3825 = vmatprep.subr.bf16.mxu0 %v3101
      %3826 = vmatpush1.bf16.msra.mxu0 %v3100
      %3827 = vmatprep.subr.bf16.mxu0 %v3117
      %3828 = vmatpush1.bf16.msra.mxu0 %v3116
      %3829 = vmatprep.subr.bf16.mxu0 %v3133
      %3830 = vmatpush1.bf16.msra.mxu0 %v3132
      %3831 = vmatprep.subr.bf16.mxu0 %v3149
      %3832 = vmatpush1.bf16.msra.mxu0 %v3148
      %3833 = vmatprep.subr.bf16.mxu0 %v3165
      %3834 = vmatpush1.bf16.msra.mxu0 %v3164
      %3835 = vmatprep.subr.bf16.mxu0 %v3181
      %3836 = vmatpush1.bf16.msra.mxu0 %v3180
      %3837 = vmatprep.subr.bf16.mxu0 %v3197
      %3838 = vmatpush1.bf16.msra.mxu0 %v3196
      %3839 = vmatprep.subr.bf16.mxu0 %v3213
      %3840 = vmatpush1.bf16.msra.mxu0 %v3212
      %3841 = vmatprep.subr.bf16.mxu0 %v3229
      %3842 = vmatpush1.bf16.msra.mxu0 %v3228
      %3843 = vmatprep.subr.bf16.mxu0 %v3245
      %3844 = vmatpush1.bf16.msra.mxu0 %v3244
      %3845 = vmatprep.mubr.bf16.mxu0 %v699
      %3846 = vmatmul.mubr.bf16.gmra.mrb[0].mxu0 %v698
      %v3847 = vpop.f32.mrb[0].mxu0
      %v3848 = vadd.f32 %v3807, %v3847
      %v3849 = vpop.f32.mrb[0].mxu0
      %v3850 = vadd.f32 %v3809, %v3849
      %v3851 = vpop.f32.mrb[0].mxu0
      %v3852 = vpop.f32.mrb[0].mxu0
      %3853 = vdwg.mxu0
      %3854 = vmatprep.subr.bf16.mxu0 %v2751
      %3855 = vmatpush1.bf16.msra.mxu0 %v2750
      %3856 = vmatprep.subr.bf16.mxu0 %v2767
      %3857 = vmatpush1.bf16.msra.mxu0 %v2766
      %3858 = vmatprep.subr.bf16.mxu0 %v2783
      %3859 = vmatpush1.bf16.msra.mxu0 %v2782
      %3860 = vmatprep.subr.bf16.mxu0 %v2799
      %3861 = vmatpush1.bf16.msra.mxu0 %v2798
      %3862 = vmatprep.subr.bf16.mxu0 %v2815
      %3863 = vmatpush1.bf16.msra.mxu0 %v2814
      %3864 = vmatprep.subr.bf16.mxu0 %v2831
      %3865 = vmatpush1.bf16.msra.mxu0 %v2830
      %3866 = vmatprep.subr.bf16.mxu0 %v2847
      %3867 = vmatpush1.bf16.msra.mxu0 %v2846
      %3868 = vmatprep.subr.bf16.mxu0 %v2863
      %3869 = vmatpush1.bf16.msra.mxu0 %v2862
      %3870 = vmatprep.subr.bf16.mxu0 %v2879
      %3871 = vmatpush1.bf16.msra.mxu0 %v2878
      %3872 = vmatprep.subr.bf16.mxu0 %v2895
      %3873 = vmatpush1.bf16.msra.mxu0 %v2894
      %3874 = vmatprep.subr.bf16.mxu0 %v2911
      %3875 = vmatpush1.bf16.msra.mxu0 %v2910
      %3876 = vmatprep.subr.bf16.mxu0 %v2927
      %3877 = vmatpush1.bf16.msra.mxu0 %v2926
      %3878 = vmatprep.subr.bf16.mxu0 %v2943
      %3879 = vmatpush1.bf16.msra.mxu0 %v2942
      %3880 = vmatprep.subr.bf16.mxu0 %v2959
      %3881 = vmatpush1.bf16.msra.mxu0 %v2958
      %3882 = vmatprep.subr.bf16.mxu0 %v2975
      %3883 = vmatpush1.bf16.msra.mxu0 %v2974
      %3884 = vmatprep.subr.bf16.mxu0 %v2991
      %3885 = vmatpush1.bf16.msra.mxu0 %v2990
      %3886 = vmatprep.mubr.bf16.mxu0 %v697
      %3887 = vmatmul.mubr.bf16.gmra.mrb[0].mxu0 %v696
      %v3888 = vpop.f32.mrb[0].mxu0
      %v3889 = vadd.f32 0.0, %v3888
      %v3890 = vpop.f32.mrb[0].mxu0
      %v3891 = vadd.f32 0.0, %v3890
      %v3892 = vpop.f32.mrb[0].mxu0
      %v3893 = vpop.f32.mrb[0].mxu0
      %3894 = vdwg.mxu0
      %3895 = vmatprep.subr.bf16.mxu0 %v3007
      %3896 = vmatpush1.bf16.msra.mxu0 %v3006
      %3897 = vmatprep.subr.bf16.mxu0 %v3023
      %3898 = vmatpush1.bf16.msra.mxu0 %v3022
      %3899 = vmatprep.subr.bf16.mxu0 %v3039
      %3900 = vmatpush1.bf16.msra.mxu0 %v3038
      %3901 = vmatprep.subr.bf16.mxu0 %v3055
      %3902 = vmatpush1.bf16.msra.mxu0 %v3054
      %3903 = vmatprep.subr.bf16.mxu0 %v3071
      %3904 = vmatpush1.bf16.msra.mxu0 %v3070
      %3905 = vmatprep.subr.bf16.mxu0 %v3087
      %3906 = vmatpush1.bf16.msra.mxu0 %v3086
      %3907 = vmatprep.subr.bf16.mxu0 %v3103
      %3908 = vmatpush1.bf16.msra.mxu0 %v3102
      %3909 = vmatprep.subr.bf16.mxu0 %v3119
      %3910 = vmatpush1.bf16.msra.mxu0 %v3118
      %3911 = vmatprep.subr.bf16.mxu0 %v3135
      %3912 = vmatpush1.bf16.msra.mxu0 %v3134
      %3913 = vmatprep.subr.bf16.mxu0 %v3151
      %3914 = vmatpush1.bf16.msra.mxu0 %v3150
      %3915 = vmatprep.subr.bf16.mxu0 %v3167
      %3916 = vmatpush1.bf16.msra.mxu0 %v3166
      %3917 = vmatprep.subr.bf16.mxu0 %v3183
      %3918 = vmatpush1.bf16.msra.mxu0 %v3182
      %3919 = vmatprep.subr.bf16.mxu0 %v3199
      %3920 = vmatpush1.bf16.msra.mxu0 %v3198
      %3921 = vmatprep.subr.bf16.mxu0 %v3215
      %3922 = vmatpush1.bf16.msra.mxu0 %v3214
      %3923 = vmatprep.subr.bf16.mxu0 %v3231
      %3924 = vmatpush1.bf16.msra.mxu0 %v3230
      %3925 = vmatprep.subr.bf16.mxu0 %v3247
      %3926 = vmatpush1.bf16.msra.mxu0 %v3246
      %3927 = vmatprep.mubr.bf16.mxu0 %v699
      %3928 = vmatmul.mubr.bf16.gmra.mrb[0].mxu0 %v698
      %v3929 = vpop.f32.mrb[0].mxu0
      %v3930 = vadd.f32 %v3889, %v3929
      %v3931 = vpop.f32.mrb[0].mxu0
      %v3932 = vadd.f32 %v3891, %v3931
      %v3933 = vpop.f32.mrb[0].mxu0
      %v3934 = vpop.f32.mrb[0].mxu0
      %3935 = vdwg.mxu0
      %3936 = vmatprep.subr.bf16.mxu0 %v2753
      %3937 = vmatpush1.bf16.msra.mxu0 %v2752
      %3938 = vmatprep.subr.bf16.mxu0 %v2769
      %3939 = vmatpush1.bf16.msra.mxu0 %v2768
      %3940 = vmatprep.subr.bf16.mxu0 %v2785
      %3941 = vmatpush1.bf16.msra.mxu0 %v2784
      %3942 = vmatprep.subr.bf16.mxu0 %v2801
      %3943 = vmatpush1.bf16.msra.mxu0 %v2800
      %3944 = vmatprep.subr.bf16.mxu0 %v2817
      %3945 = vmatpush1.bf16.msra.mxu0 %v2816
      %3946 = vmatprep.subr.bf16.mxu0 %v2833
      %3947 = vmatpush1.bf16.msra.mxu0 %v2832
      %3948 = vmatprep.subr.bf16.mxu0 %v2849
      %3949 = vmatpush1.bf16.msra.mxu0 %v2848
      %3950 = vmatprep.subr.bf16.mxu0 %v2865
      %3951 = vmatpush1.bf16.msra.mxu0 %v2864
      %3952 = vmatprep.subr.bf16.mxu0 %v2881
      %3953 = vmatpush1.bf16.msra.mxu0 %v2880
      %3954 = vmatprep.subr.bf16.mxu0 %v2897
      %3955 = vmatpush1.bf16.msra.mxu0 %v2896
      %3956 = vmatprep.subr.bf16.mxu0 %v2913
      %3957 = vmatpush1.bf16.msra.mxu0 %v2912
      %3958 = vmatprep.subr.bf16.mxu0 %v2929
      %3959 = vmatpush1.bf16.msra.mxu0 %v2928
      %3960 = vmatprep.subr.bf16.mxu0 %v2945
      %3961 = vmatpush1.bf16.msra.mxu0 %v2944
      %3962 = vmatprep.subr.bf16.mxu0 %v2961
      %3963 = vmatpush1.bf16.msra.mxu0 %v2960
      %3964 = vmatprep.subr.bf16.mxu0 %v2977
      %3965 = vmatpush1.bf16.msra.mxu0 %v2976
      %3966 = vmatprep.subr.bf16.mxu0 %v2993
      %3967 = vmatpush1.bf16.msra.mxu0 %v2992
      %3968 = vmatprep.mubr.bf16.mxu0 %v697
      %3969 = vmatmul.mubr.bf16.gmra.mrb[0].mxu0 %v696
      %v3970 = vpop.f32.mrb[0].mxu0
      %v3971 = vadd.f32 0.0, %v3970
      %v3972 = vpop.f32.mrb[0].mxu0
      %v3973 = vadd.f32 0.0, %v3972
      %v3974 = vpop.f32.mrb[0].mxu0
      %v3975 = vpop.f32.mrb[0].mxu0
      %3976 = vdwg.mxu0
      %3977 = vmatprep.subr.bf16.mxu0 %v3009
      %3978 = vmatpush1.bf16.msra.mxu0 %v3008
      %3979 = vmatprep.subr.bf16.mxu0 %v3025
      %3980 = vmatpush1.bf16.msra.mxu0 %v3024
      %3981 = vmatprep.subr.bf16.mxu0 %v3041
      %3982 = vmatpush1.bf16.msra.mxu0 %v3040
      %3983 = vmatprep.subr.bf16.mxu0 %v3057
      %3984 = vmatpush1.bf16.msra.mxu0 %v3056
      %3985 = vmatprep.subr.bf16.mxu0 %v3073
      %3986 = vmatpush1.bf16.msra.mxu0 %v3072
      %3987 = vmatprep.subr.bf16.mxu0 %v3089
      %3988 = vmatpush1.bf16.msra.mxu0 %v3088
      %3989 = vmatprep.subr.bf16.mxu0 %v3105
      %3990 = vmatpush1.bf16.msra.mxu0 %v3104
      %3991 = vmatprep.subr.bf16.mxu0 %v3121
      %3992 = vmatpush1.bf16.msra.mxu0 %v3120
      %3993 = vmatprep.subr.bf16.mxu0 %v3137
      %3994 = vmatpush1.bf16.msra.mxu0 %v3136
      %3995 = vmatprep.subr.bf16.mxu0 %v3153
      %3996 = vmatpush1.bf16.msra.mxu0 %v3152
      %3997 = vmatprep.subr.bf16.mxu0 %v3169
      %3998 = vmatpush1.bf16.msra.mxu0 %v3168
      %3999 = vmatprep.subr.bf16.mxu0 %v3185
      %4000 = vmatpush1.bf16.msra.mxu0 %v3184
      %4001 = vmatprep.subr.bf16.mxu0 %v3201
      %4002 = vmatpush1.bf16.msra.mxu0 %v3200
      %4003 = vmatprep.subr.bf16.mxu0 %v3217
      %4004 = vmatpush1.bf16.msra.mxu0 %v3216
      %4005 = vmatprep.subr.bf16.mxu0 %v3233
      %4006 = vmatpush1.bf16.msra.mxu0 %v3232
      %4007 = vmatprep.subr.bf16.mxu0 %v3249
      %4008 = vmatpush1.bf16.msra.mxu0 %v3248
      %4009 = vmatprep.mubr.bf16.mxu0 %v699
      %4010 = vmatmul.mubr.bf16.gmra.mrb[0].mxu0 %v698
      %v4011 = vpop.f32.mrb[0].mxu0
      %v4012 = vadd.f32 %v3971, %v4011
      %v4013 = vpop.f32.mrb[0].mxu0
      %v4014 = vadd.f32 %v3973, %v4013
      %v4015 = vpop.f32.mrb[0].mxu0
      %v4016 = vpop.f32.mrb[0].mxu0
      %4017 = vdwg.mxu0
      %4018 = vmatprep.subr.bf16.mxu0 %v2755
      %4019 = vmatpush1.bf16.msra.mxu0 %v2754
      %4020 = vmatprep.subr.bf16.mxu0 %v2771
      %4021 = vmatpush1.bf16.msra.mxu0 %v2770
      %4022 = vmatprep.subr.bf16.mxu0 %v2787
      %4023 = vmatpush1.bf16.msra.mxu0 %v2786
      %4024 = vmatprep.subr.bf16.mxu0 %v2803
      %4025 = vmatpush1.bf16.msra.mxu0 %v2802
      %4026 = vmatprep.subr.bf16.mxu0 %v2819
      %4027 = vmatpush1.bf16.msra.mxu0 %v2818
      %4028 = vmatprep.subr.bf16.mxu0 %v2835
      %4029 = vmatpush1.bf16.msra.mxu0 %v2834
      %4030 = vmatprep.subr.bf16.mxu0 %v2851
      %4031 = vmatpush1.bf16.msra.mxu0 %v2850
      %4032 = vmatprep.subr.bf16.mxu0 %v2867
      %4033 = vmatpush1.bf16.msra.mxu0 %v2866
      %4034 = vmatprep.subr.bf16.mxu0 %v2883
      %4035 = vmatpush1.bf16.msra.mxu0 %v2882
      %4036 = vmatprep.subr.bf16.mxu0 %v2899
      %4037 = vmatpush1.bf16.msra.mxu0 %v2898
      %4038 = vmatprep.subr.bf16.mxu0 %v2915
      %4039 = vmatpush1.bf16.msra.mxu0 %v2914
      %4040 = vmatprep.subr.bf16.mxu0 %v2931
      %4041 = vmatpush1.bf16.msra.mxu0 %v2930
      %4042 = vmatprep.subr.bf16.mxu0 %v2947
      %4043 = vmatpush1.bf16.msra.mxu0 %v2946
      %4044 = vmatprep.subr.bf16.mxu0 %v2963
      %4045 = vmatpush1.bf16.msra.mxu0 %v2962
      %4046 = vmatprep.subr.bf16.mxu0 %v2979
      %4047 = vmatpush1.bf16.msra.mxu0 %v2978
      %4048 = vmatprep.subr.bf16.mxu0 %v2995
      %4049 = vmatpush1.bf16.msra.mxu0 %v2994
      %4050 = vmatprep.mubr.bf16.mxu0 %v697
      %4051 = vmatmul.mubr.bf16.gmra.mrb[0].mxu0 %v696
      %v4052 = vpop.f32.mrb[0].mxu0
      %v4053 = vadd.f32 0.0, %v4052
      %v4054 = vpop.f32.mrb[0].mxu0
      %v4055 = vadd.f32 0.0, %v4054
      %v4056 = vpop.f32.mrb[0].mxu0
      %v4057 = vpop.f32.mrb[0].mxu0
      %4058 = vdwg.mxu0
      %4059 = vmatprep.subr.bf16.mxu0 %v3011
      %4060 = vmatpush1.bf16.msra.mxu0 %v3010
      %4061 = vmatprep.subr.bf16.mxu0 %v3027
      %4062 = vmatpush1.bf16.msra.mxu0 %v3026
      %4063 = vmatprep.subr.bf16.mxu0 %v3043
      %4064 = vmatpush1.bf16.msra.mxu0 %v3042
      %4065 = vmatprep.subr.bf16.mxu0 %v3059
      %4066 = vmatpush1.bf16.msra.mxu0 %v3058
      %4067 = vmatprep.subr.bf16.mxu0 %v3075
      %4068 = vmatpush1.bf16.msra.mxu0 %v3074
      %4069 = vmatprep.subr.bf16.mxu0 %v3091
      %4070 = vmatpush1.bf16.msra.mxu0 %v3090
      %4071 = vmatprep.subr.bf16.mxu0 %v3107
      %4072 = vmatpush1.bf16.msra.mxu0 %v3106
      %4073 = vmatprep.subr.bf16.mxu0 %v3123
      %4074 = vmatpush1.bf16.msra.mxu0 %v3122
      %4075 = vmatprep.subr.bf16.mxu0 %v3139
      %4076 = vmatpush1.bf16.msra.mxu0 %v3138
      %4077 = vmatprep.subr.bf16.mxu0 %v3155
      %4078 = vmatpush1.bf16.msra.mxu0 %v3154
      %4079 = vmatprep.subr.bf16.mxu0 %v3171
      %4080 = vmatpush1.bf16.msra.mxu0 %v3170
      %4081 = vmatprep.subr.bf16.mxu0 %v3187
      %4082 = vmatpush1.bf16.msra.mxu0 %v3186
      %4083 = vmatprep.subr.bf16.mxu0 %v3203
      %4084 = vmatpush1.bf16.msra.mxu0 %v3202
      %4085 = vmatprep.subr.bf16.mxu0 %v3219
      %4086 = vmatpush1.bf16.msra.mxu0 %v3218
      %4087 = vmatprep.subr.bf16.mxu0 %v3235
      %4088 = vmatpush1.bf16.msra.mxu0 %v3234
      %4089 = vmatprep.subr.bf16.mxu0 %v3251
      %4090 = vmatpush1.bf16.msra.mxu0 %v3250
      %4091 = vmatprep.mubr.bf16.mxu0 %v699
      %4092 = vmatmul.mubr.bf16.gmra.mrb[0].mxu0 %v698
      %v4093 = vpop.f32.mrb[0].mxu0
      %v4094 = vadd.f32 %v4053, %v4093
      %v4095 = vpop.f32.mrb[0].mxu0
      %v4096 = vadd.f32 %v4055, %v4095
      %v4097 = vpop.f32.mrb[0].mxu0
      %v4098 = vpop.f32.mrb[0].mxu0
      %4099 = vdwg.mxu0
      %4100 = vmatprep.subr.bf16.mxu0 %v2757
      %4101 = vmatpush1.bf16.msra.mxu0 %v2756
      %4102 = vmatprep.subr.bf16.mxu0 %v2773
      %4103 = vmatpush1.bf16.msra.mxu0 %v2772
      %4104 = vmatprep.subr.bf16.mxu0 %v2789
      %4105 = vmatpush1.bf16.msra.mxu0 %v2788
      %4106 = vmatprep.subr.bf16.mxu0 %v2805
      %4107 = vmatpush1.bf16.msra.mxu0 %v2804
      %4108 = vmatprep.subr.bf16.mxu0 %v2821
      %4109 = vmatpush1.bf16.msra.mxu0 %v2820
      %4110 = vmatprep.subr.bf16.mxu0 %v2837
      %4111 = vmatpush1.bf16.msra.mxu0 %v2836
      %4112 = vmatprep.subr.bf16.mxu0 %v2853
      %4113 = vmatpush1.bf16.msra.mxu0 %v2852
      %4114 = vmatprep.subr.bf16.mxu0 %v2869
      %4115 = vmatpush1.bf16.msra.mxu0 %v2868
      %4116 = vmatprep.subr.bf16.mxu0 %v2885
      %4117 = vmatpush1.bf16.msra.mxu0 %v2884
      %4118 = vmatprep.subr.bf16.mxu0 %v2901
      %4119 = vmatpush1.bf16.msra.mxu0 %v2900
      %4120 = vmatprep.subr.bf16.mxu0 %v2917
      %4121 = vmatpush1.bf16.msra.mxu0 %v2916
      %4122 = vmatprep.subr.bf16.mxu0 %v2933
      %4123 = vmatpush1.bf16.msra.mxu0 %v2932
      %4124 = vmatprep.subr.bf16.mxu0 %v2949
      %4125 = vmatpush1.bf16.msra.mxu0 %v2948
      %4126 = vmatprep.subr.bf16.mxu0 %v2965
      %4127 = vmatpush1.bf16.msra.mxu0 %v2964
      %4128 = vmatprep.subr.bf16.mxu0 %v2981
      %4129 = vmatpush1.bf16.msra.mxu0 %v2980
      %4130 = vmatprep.subr.bf16.mxu0 %v2997
      %4131 = vmatpush1.bf16.msra.mxu0 %v2996
      %4132 = vmatprep.mubr.bf16.mxu0 %v697
      %4133 = vmatmul.mubr.bf16.gmra.mrb[0].mxu0 %v696
      %v4134 = vpop.f32.mrb[0].mxu0
      %v4135 = vadd.f32 0.0, %v4134
      %v4136 = vpop.f32.mrb[0].mxu0
      %v4137 = vadd.f32 0.0, %v4136
      %v4138 = vpop.f32.mrb[0].mxu0
      %v4139 = vpop.f32.mrb[0].mxu0
      %4140 = vdwg.mxu0
      %4141 = vmatprep.subr.bf16.mxu0 %v3013
      %4142 = vmatpush1.bf16.msra.mxu0 %v3012
      %4143 = vmatprep.subr.bf16.mxu0 %v3029
      %4144 = vmatpush1.bf16.msra.mxu0 %v3028
      %4145 = vmatprep.subr.bf16.mxu0 %v3045
      %4146 = vmatpush1.bf16.msra.mxu0 %v3044
      %4147 = vmatprep.subr.bf16.mxu0 %v3061
      %4148 = vmatpush1.bf16.msra.mxu0 %v3060
      %4149 = vmatprep.subr.bf16.mxu0 %v3077
      %4150 = vmatpush1.bf16.msra.mxu0 %v3076
      %4151 = vmatprep.subr.bf16.mxu0 %v3093
      %4152 = vmatpush1.bf16.msra.mxu0 %v3092
      %4153 = vmatprep.subr.bf16.mxu0 %v3109
      %4154 = vmatpush1.bf16.msra.mxu0 %v3108
      %4155 = vmatprep.subr.bf16.mxu0 %v3125
      %4156 = vmatpush1.bf16.msra.mxu0 %v3124
      %4157 = vmatprep.subr.bf16.mxu0 %v3141
      %4158 = vmatpush1.bf16.msra.mxu0 %v3140
      %4159 = vmatprep.subr.bf16.mxu0 %v3157
      %4160 = vmatpush1.bf16.msra.mxu0 %v3156
      %4161 = vmatprep.subr.bf16.mxu0 %v3173
      %4162 = vmatpush1.bf16.msra.mxu0 %v3172
      %4163 = vmatprep.subr.bf16.mxu0 %v3189
      %4164 = vmatpush1.bf16.msra.mxu0 %v3188
      %4165 = vmatprep.subr.bf16.mxu0 %v3205
      %4166 = vmatpush1.bf16.msra.mxu0 %v3204
      %4167 = vmatprep.subr.bf16.mxu0 %v3221
      %4168 = vmatpush1.bf16.msra.mxu0 %v3220
      %4169 = vmatprep.subr.bf16.mxu0 %v3237
      %4170 = vmatpush1.bf16.msra.mxu0 %v3236
      %4171 = vmatprep.subr.bf16.mxu0 %v3253
      %4172 = vmatpush1.bf16.msra.mxu0 %v3252
      %4173 = vmatprep.mubr.bf16.mxu0 %v699
      %4174 = vmatmul.mubr.bf16.gmra.mrb[0].mxu0 %v698
      %v4175 = vpop.f32.mrb[0].mxu0
      %v4176 = vadd.f32 %v4135, %v4175
      %v4177 = vpop.f32.mrb[0].mxu0
      %v4178 = vadd.f32 %v4137, %v4177
      %v4179 = vpop.f32.mrb[0].mxu0
      %v4180 = vpop.f32.mrb[0].mxu0
      %4181 = vdwg.mxu0
      %4182 = vmatprep.subr.bf16.mxu0 %v2759
      %4183 = vmatpush1.bf16.msra.mxu0 %v2758
      %4184 = vmatprep.subr.bf16.mxu0 %v2775
      %4185 = vmatpush1.bf16.msra.mxu0 %v2774
      %4186 = vmatprep.subr.bf16.mxu0 %v2791
      %4187 = vmatpush1.bf16.msra.mxu0 %v2790
      %4188 = vmatprep.subr.bf16.mxu0 %v2807
      %4189 = vmatpush1.bf16.msra.mxu0 %v2806
      %4190 = vmatprep.subr.bf16.mxu0 %v2823
      %4191 = vmatpush1.bf16.msra.mxu0 %v2822
      %4192 = vmatprep.subr.bf16.mxu0 %v2839
      %4193 = vmatpush1.bf16.msra.mxu0 %v2838
      %4194 = vmatprep.subr.bf16.mxu0 %v2855
      %4195 = vmatpush1.bf16.msra.mxu0 %v2854
      %4196 = vmatprep.subr.bf16.mxu0 %v2871
      %4197 = vmatpush1.bf16.msra.mxu0 %v2870
      %4198 = vmatprep.subr.bf16.mxu0 %v2887
      %4199 = vmatpush1.bf16.msra.mxu0 %v2886
      %4200 = vmatprep.subr.bf16.mxu0 %v2903
      %4201 = vmatpush1.bf16.msra.mxu0 %v2902
      %4202 = vmatprep.subr.bf16.mxu0 %v2919
      %4203 = vmatpush1.bf16.msra.mxu0 %v2918
      %4204 = vmatprep.subr.bf16.mxu0 %v2935
      %4205 = vmatpush1.bf16.msra.mxu0 %v2934
      %4206 = vmatprep.subr.bf16.mxu0 %v2951
      %4207 = vmatpush1.bf16.msra.mxu0 %v2950
      %4208 = vmatprep.subr.bf16.mxu0 %v2967
      %4209 = vmatpush1.bf16.msra.mxu0 %v2966
      %4210 = vmatprep.subr.bf16.mxu0 %v2983
      %4211 = vmatpush1.bf16.msra.mxu0 %v2982
      %4212 = vmatprep.subr.bf16.mxu0 %v2999
      %4213 = vmatpush1.bf16.msra.mxu0 %v2998
      %4214 = vmatprep.mubr.bf16.mxu0 %v697
      %4215 = vmatmul.mubr.bf16.gmra.mrb[0].mxu0 %v696
      %v4216 = vpop.f32.mrb[0].mxu0
      %v4217 = vadd.f32 0.0, %v4216
      %v4218 = vpop.f32.mrb[0].mxu0
      %v4219 = vadd.f32 0.0, %v4218
      %v4220 = vpop.f32.mrb[0].mxu0
      %v4221 = vpop.f32.mrb[0].mxu0
      %4222 = vdwg.mxu0
      %4223 = vmatprep.subr.bf16.mxu0 %v3015
      %4224 = vmatpush1.bf16.msra.mxu0 %v3014
      %4225 = vmatprep.subr.bf16.mxu0 %v3031
      %4226 = vmatpush1.bf16.msra.mxu0 %v3030
      %4227 = vmatprep.subr.bf16.mxu0 %v3047
      %4228 = vmatpush1.bf16.msra.mxu0 %v3046
      %4229 = vmatprep.subr.bf16.mxu0 %v3063
      %4230 = vmatpush1.bf16.msra.mxu0 %v3062
      %4231 = vmatprep.subr.bf16.mxu0 %v3079
      %4232 = vmatpush1.bf16.msra.mxu0 %v3078
      %4233 = vmatprep.subr.bf16.mxu0 %v3095
      %4234 = vmatpush1.bf16.msra.mxu0 %v3094
      %4235 = vmatprep.subr.bf16.mxu0 %v3111
      %4236 = vmatpush1.bf16.msra.mxu0 %v3110
      %4237 = vmatprep.subr.bf16.mxu0 %v3127
      %4238 = vmatpush1.bf16.msra.mxu0 %v3126
      %4239 = vmatprep.subr.bf16.mxu0 %v3143
      %4240 = vmatpush1.bf16.msra.mxu0 %v3142
      %4241 = vmatprep.subr.bf16.mxu0 %v3159
      %4242 = vmatpush1.bf16.msra.mxu0 %v3158
      %4243 = vmatprep.subr.bf16.mxu0 %v3175
      %4244 = vmatpush1.bf16.msra.mxu0 %v3174
      %4245 = vmatprep.subr.bf16.mxu0 %v3191
      %4246 = vmatpush1.bf16.msra.mxu0 %v3190
      %4247 = vmatprep.subr.bf16.mxu0 %v3207
      %4248 = vmatpush1.bf16.msra.mxu0 %v3206
      %4249 = vmatprep.subr.bf16.mxu0 %v3223
      %4250 = vmatpush1.bf16.msra.mxu0 %v3222
      %4251 = vmatprep.subr.bf16.mxu0 %v3239
      %4252 = vmatpush1.bf16.msra.mxu0 %v3238
      %4253 = vmatprep.subr.bf16.mxu0 %v3255
      %4254 = vmatpush1.bf16.msra.mxu0 %v3254
      %4255 = vmatprep.mubr.bf16.mxu0 %v699
      %4256 = vmatmul.mubr.bf16.gmra.mrb[0].mxu0 %v698
      %v4257 = vpop.f32.mrb[0].mxu0
      %v4258 = vadd.f32 %v4217, %v4257
      %v4259 = vpop.f32.mrb[0].mxu0
      %v4260 = vadd.f32 %v4219, %v4259
      %v4261 = vpop.f32.mrb[0].mxu0
      %v4262 = vpop.f32.mrb[0].mxu0
      %4263 = vdwg.mxu0
      %4264 = vmatprep.subr.bf16.mxu0 %v2761
      %4265 = vmatpush1.bf16.msra.mxu0 %v2760
      %4266 = vmatprep.subr.bf16.mxu0 %v2777
      %4267 = vmatpush1.bf16.msra.mxu0 %v2776
      %4268 = vmatprep.subr.bf16.mxu0 %v2793
      %4269 = vmatpush1.bf16.msra.mxu0 %v2792
      %4270 = vmatprep.subr.bf16.mxu0 %v2809
      %4271 = vmatpush1.bf16.msra.mxu0 %v2808
      %4272 = vmatprep.subr.bf16.mxu0 %v2825
      %4273 = vmatpush1.bf16.msra.mxu0 %v2824
      %4274 = vmatprep.subr.bf16.mxu0 %v2841
      %4275 = vmatpush1.bf16.msra.mxu0 %v2840
      %4276 = vmatprep.subr.bf16.mxu0 %v2857
      %4277 = vmatpush1.bf16.msra.mxu0 %v2856
      %4278 = vmatprep.subr.bf16.mxu0 %v2873
      %4279 = vmatpush1.bf16.msra.mxu0 %v2872
      %4280 = vmatprep.subr.bf16.mxu0 %v2889
      %4281 = vmatpush1.bf16.msra.mxu0 %v2888
      %4282 = vmatprep.subr.bf16.mxu0 %v2905
      %4283 = vmatpush1.bf16.msra.mxu0 %v2904
      %4284 = vmatprep.subr.bf16.mxu0 %v2921
      %4285 = vmatpush1.bf16.msra.mxu0 %v2920
      %4286 = vmatprep.subr.bf16.mxu0 %v2937
      %4287 = vmatpush1.bf16.msra.mxu0 %v2936
      %4288 = vmatprep.subr.bf16.mxu0 %v2953
      %4289 = vmatpush1.bf16.msra.mxu0 %v2952
      %4290 = vmatprep.subr.bf16.mxu0 %v2969
      %4291 = vmatpush1.bf16.msra.mxu0 %v2968
      %4292 = vmatprep.subr.bf16.mxu0 %v2985
      %4293 = vmatpush1.bf16.msra.mxu0 %v2984
      %4294 = vmatprep.subr.bf16.mxu0 %v3001
      %4295 = vmatpush1.bf16.msra.mxu0 %v3000
      %4296 = vmatprep.mubr.bf16.mxu0 %v697
      %4297 = vmatmul.mubr.bf16.gmra.mrb[0].mxu0 %v696
      %v4298 = vpop.f32.mrb[0].mxu0
      %v4299 = vadd.f32 0.0, %v4298
      %v4300 = vpop.f32.mrb[0].mxu0
      %v4301 = vadd.f32 0.0, %v4300
      %v4302 = vpop.f32.mrb[0].mxu0
      %v4303 = vpop.f32.mrb[0].mxu0
      %4304 = vdwg.mxu0
      %4305 = vmatprep.subr.bf16.mxu0 %v3017
      %4306 = vmatpush1.bf16.msra.mxu0 %v3016
      %4307 = vmatprep.subr.bf16.mxu0 %v3033
      %4308 = vmatpush1.bf16.msra.mxu0 %v3032
      %4309 = vmatprep.subr.bf16.mxu0 %v3049
      %4310 = vmatpush1.bf16.msra.mxu0 %v3048
      %4311 = vmatprep.subr.bf16.mxu0 %v3065
      %4312 = vmatpush1.bf16.msra.mxu0 %v3064
      %4313 = vmatprep.subr.bf16.mxu0 %v3081
      %4314 = vmatpush1.bf16.msra.mxu0 %v3080
      %4315 = vmatprep.subr.bf16.mxu0 %v3097
      %4316 = vmatpush1.bf16.msra.mxu0 %v3096
      %4317 = vmatprep.subr.bf16.mxu0 %v3113
      %4318 = vmatpush1.bf16.msra.mxu0 %v3112
      %4319 = vmatprep.subr.bf16.mxu0 %v3129
      %4320 = vmatpush1.bf16.msra.mxu0 %v3128
      %4321 = vmatprep.subr.bf16.mxu0 %v3145
      %4322 = vmatpush1.bf16.msra.mxu0 %v3144
      %4323 = vmatprep.subr.bf16.mxu0 %v3161
      %4324 = vmatpush1.bf16.msra.mxu0 %v3160
      %4325 = vmatprep.subr.bf16.mxu0 %v3177
      %4326 = vmatpush1.bf16.msra.mxu0 %v3176
      %4327 = vmatprep.subr.bf16.mxu0 %v3193
      %4328 = vmatpush1.bf16.msra.mxu0 %v3192
      %4329 = vmatprep.subr.bf16.mxu0 %v3209
      %4330 = vmatpush1.bf16.msra.mxu0 %v3208
      %4331 = vmatprep.subr.bf16.mxu0 %v3225
      %4332 = vmatpush1.bf16.msra.mxu0 %v3224
      %4333 = vmatprep.subr.bf16.mxu0 %v3241
      %4334 = vmatpush1.bf16.msra.mxu0 %v3240
      %4335 = vmatprep.subr.bf16.mxu0 %v3257
      %4336 = vmatpush1.bf16.msra.mxu0 %v3256
      %4337 = vmatprep.mubr.bf16.mxu0 %v699
      %4338 = vmatmul.mubr.bf16.gmra.mrb[0].mxu0 %v698
      %v4339 = vpop.f32.mrb[0].mxu0
      %v4340 = vadd.f32 %v4299, %v4339
      %v4341 = vpop.f32.mrb[0].mxu0
      %v4342 = vadd.f32 %v4301, %v4341
      %v4343 = vpop.f32.mrb[0].mxu0
      %v4344 = vpop.f32.mrb[0].mxu0
      %4345 = vdwg.mxu0
      %4346 = vmatprep.subr.bf16.mxu0 %v2763
      %4347 = vmatpush1.bf16.msra.mxu0 %v2762
      %4348 = vmatprep.subr.bf16.mxu0 %v2779
      %4349 = vmatpush1.bf16.msra.mxu0 %v2778
      %4350 = vmatprep.subr.bf16.mxu0 %v2795
      %4351 = vmatpush1.bf16.msra.mxu0 %v2794
      %4352 = vmatprep.subr.bf16.mxu0 %v2811
      %4353 = vmatpush1.bf16.msra.mxu0 %v2810
      %4354 = vmatprep.subr.bf16.mxu0 %v2827
      %4355 = vmatpush1.bf16.msra.mxu0 %v2826
      %4356 = vmatprep.subr.bf16.mxu0 %v2843
      %4357 = vmatpush1.bf16.msra.mxu0 %v2842
      %4358 = vmatprep.subr.bf16.mxu0 %v2859
      %4359 = vmatpush1.bf16.msra.mxu0 %v2858
      %4360 = vmatprep.subr.bf16.mxu0 %v2875
      %4361 = vmatpush1.bf16.msra.mxu0 %v2874
      %4362 = vmatprep.subr.bf16.mxu0 %v2891
      %4363 = vmatpush1.bf16.msra.mxu0 %v2890
      %4364 = vmatprep.subr.bf16.mxu0 %v2907
      %4365 = vmatpush1.bf16.msra.mxu0 %v2906
      %4366 = vmatprep.subr.bf16.mxu0 %v2923
      %4367 = vmatpush1.bf16.msra.mxu0 %v2922
      %4368 = vmatprep.subr.bf16.mxu0 %v2939
      %4369 = vmatpush1.bf16.msra.mxu0 %v2938
      %4370 = vmatprep.subr.bf16.mxu0 %v2955
      %4371 = vmatpush1.bf16.msra.mxu0 %v2954
      %4372 = vmatprep.subr.bf16.mxu0 %v2971
      %4373 = vmatpush1.bf16.msra.mxu0 %v2970
      %4374 = vmatprep.subr.bf16.mxu0 %v2987
      %4375 = vmatpush1.bf16.msra.mxu0 %v2986
      %4376 = vmatprep.subr.bf16.mxu0 %v3003
      %4377 = vmatpush1.bf16.msra.mxu0 %v3002
      %4378 = vmatprep.mubr.bf16.mxu0 %v697
      %4379 = vmatmul.mubr.bf16.gmra.mrb[0].mxu0 %v696
      %v4380 = vpop.f32.mrb[0].mxu0
      %v4381 = vadd.f32 0.0, %v4380
      %v4382 = vpop.f32.mrb[0].mxu0
      %v4383 = vadd.f32 0.0, %v4382
      %v4384 = vpop.f32.mrb[0].mxu0
      %v4385 = vpop.f32.mrb[0].mxu0
      %4386 = vdwg.mxu0
      %4387 = vmatprep.subr.bf16.mxu0 %v3019
      %4388 = vmatpush1.bf16.msra.mxu0 %v3018
      %4389 = vmatprep.subr.bf16.mxu0 %v3035
      %4390 = vmatpush1.bf16.msra.mxu0 %v3034
      %4391 = vmatprep.subr.bf16.mxu0 %v3051
      %4392 = vmatpush1.bf16.msra.mxu0 %v3050
      %4393 = vmatprep.subr.bf16.mxu0 %v3067
      %4394 = vmatpush1.bf16.msra.mxu0 %v3066
      %4395 = vmatprep.subr.bf16.mxu0 %v3083
      %4396 = vmatpush1.bf16.msra.mxu0 %v3082
      %4397 = vmatprep.subr.bf16.mxu0 %v3099
      %4398 = vmatpush1.bf16.msra.mxu0 %v3098
      %4399 = vmatprep.subr.bf16.mxu0 %v3115
      %4400 = vmatpush1.bf16.msra.mxu0 %v3114
      %4401 = vmatprep.subr.bf16.mxu0 %v3131
      %4402 = vmatpush1.bf16.msra.mxu0 %v3130
      %4403 = vmatprep.subr.bf16.mxu0 %v3147
      %4404 = vmatpush1.bf16.msra.mxu0 %v3146
      %4405 = vmatprep.subr.bf16.mxu0 %v3163
      %4406 = vmatpush1.bf16.msra.mxu0 %v3162
      %4407 = vmatprep.subr.bf16.mxu0 %v3179
      %4408 = vmatpush1.bf16.msra.mxu0 %v3178
      %4409 = vmatprep.subr.bf16.mxu0 %v3195
      %4410 = vmatpush1.bf16.msra.mxu0 %v3194
      %4411 = vmatprep.subr.bf16.mxu0 %v3211
      %4412 = vmatpush1.bf16.msra.mxu0 %v3210
      %4413 = vmatprep.subr.bf16.mxu0 %v3227
      %4414 = vmatpush1.bf16.msra.mxu0 %v3226
      %4415 = vmatprep.subr.bf16.mxu0 %v3243
      %4416 = vmatpush1.bf16.msra.mxu0 %v3242
      %4417 = vmatprep.subr.bf16.mxu0 %v3259
      %4418 = vmatpush1.bf16.msra.mxu0 %v3258
      %4419 = vmatprep.mubr.bf16.mxu0 %v699
      %4420 = vmatmul.mubr.bf16.gmra.mrb[0].mxu0 %v698
      %v4421 = vpop.f32.mrb[0].mxu0
      %v4422 = vadd.f32 %v4381, %v4421
      %v4423 = vpop.f32.mrb[0].mxu0
      %v4424 = vadd.f32 %v4383, %v4423
      %v4425 = vpop.f32.mrb[0].mxu0
      %v4426 = vpop.f32.mrb[0].mxu0
      %4427 = vdwg.mxu0
      %v4428 = vld [vmem:[%s4] sm:$0xff]
      %v4429 = vld [vmem:[%s4 + $0x8] sm:$0xff]
      %v4430 = vld [vmem:[%s4 + $0x10] sm:$0xff]
      %v4431 = vld [vmem:[%s4 + $0x18] sm:$0xff]
      %v4432 = vlaneseq
      %v4433 = vshrl.u32 %v4432, 7
      %v4438 = vlaneseq
      %v4439 = vshrl.u32 %v4438, 7
      %v4440 = vsub.s32 3, %v4439
      %v4441 = vrot.slane %v4428, %v4440
      %v4442 = vlaneseq
      %v4443 = vshrl.u32 %v4442, 7
      %v4444 = vsub.s32 7, %v4443
      %v4445 = vrot.slane %v4428, %v4444
      %v4446 = vlaneseq
      %v4447 = vshrl.u32 %v4446, 7
      %v4448 = vsub.s32 3, %v4447
      %v4449 = vrot.slane %v4429, %v4448
      %v4450 = vlaneseq
      %v4451 = vshrl.u32 %v4450, 7
      %v4452 = vsub.s32 7, %v4451
      %v4453 = vrot.slane %v4429, %v4452
      %v4454 = vlaneseq
      %v4455 = vshrl.u32 %v4454, 7
      %v4456 = vsub.s32 3, %v4455
      %v4457 = vrot.slane %v4430, %v4456
      %v4458 = vlaneseq
      %v4459 = vshrl.u32 %v4458, 7
      %v4460 = vsub.s32 7, %v4459
      %v4461 = vrot.slane %v4430, %v4460
      %v4462 = vlaneseq
      %v4463 = vshrl.u32 %v4462, 7
      %v4464 = vsub.s32 3, %v4463
      %v4465 = vrot.slane %v4431, %v4464
      %v4466 = vlaneseq
      %v4467 = vshrl.u32 %v4466, 7
      %v4468 = vsub.s32 7, %v4467
      %v4469 = vrot.slane %v4431, %v4468
      %v4478 = vlaneseq
      %v4479 = vshrl.u32 %v4478, 7
      %v4480 = vsub.s32 3, %v4479
      %v4481 = vrot.slane %v4441, %v4480
      %v4482 = vlaneseq
      %v4483 = vshrl.u32 %v4482, 7
      %v4484 = vsub.s32 3, %v4483
      %v4485 = vrot.slane %v4445, %v4484
      %v4486 = vlaneseq
      %v4487 = vshrl.u32 %v4486, 7
      %v4488 = vsub.s32 3, %v4487
      %v4489 = vrot.slane %v4449, %v4488
      %v4490 = vlaneseq
      %v4491 = vshrl.u32 %v4490, 7
      %v4492 = vsub.s32 3, %v4491
      %v4493 = vrot.slane %v4453, %v4492
      %v4494 = vlaneseq
      %v4495 = vshrl.u32 %v4494, 7
      %v4496 = vsub.s32 3, %v4495
      %v4497 = vrot.slane %v4457, %v4496
      %v4498 = vlaneseq
      %v4499 = vshrl.u32 %v4498, 7
      %v4500 = vsub.s32 3, %v4499
      %v4501 = vrot.slane %v4461, %v4500
      %v4502 = vlaneseq
      %v4503 = vshrl.u32 %v4502, 7
      %v4504 = vsub.s32 3, %v4503
      %v4505 = vrot.slane %v4465, %v4504
      %v4506 = vlaneseq
      %v4507 = vshrl.u32 %v4506, 7
      %v4508 = vsub.s32 3, %v4507
      %v4509 = vrot.slane %v4469, %v4508
      %v4510 = vmul.f32 %v3848, %v4481
      %v4511 = vmul.f32 %v3850, %v4485
      %v4512 = vmul.f32 %v3930, %v4489
      %v4513 = vmul.f32 %v3932, %v4493
      %v4514 = vmul.f32 %v4012, %v4497
      %v4515 = vmul.f32 %v4014, %v4501
      %v4516 = vmul.f32 %v4094, %v4505
      %v4517 = vmul.f32 %v4096, %v4509
      %v4518 = vrot.slane %v3848, 5
      %v4519 = vrot.slane %v3850, 5
      %v4520 = vrot.slane %v3930, 5
      %v4521 = vrot.slane %v3932, 5
      %v4522 = vrot.slane %v4012, 5
      %v4523 = vrot.slane %v4014, 5
      %v4524 = vrot.slane %v4094, 5
      %v4525 = vrot.slane %v4096, 5
      %vm4526 = vcmp.ge.s32.totalorder %v4433, 3
      %v4527 = vsel %vm4526, %v4518, 0.0
      %v4528 = vsel %vm4526, %v4519, 0.0
      %v4529 = vsel %vm4526, %v4520, 0.0
      %v4530 = vsel %vm4526, %v4521, 0.0
      %v4531 = vsel %vm4526, %v4522, 0.0
      %v4532 = vsel %vm4526, %v4523, 0.0
      %v4533 = vsel %vm4526, %v4524, 0.0
      %v4534 = vsel %vm4526, %v4525, 0.0
      %v4535 = vlaneseq
      %v4536 = vshrl.u32 %v4535, 7
      %v4537 = vsub.s32 0, %v4536
      %v4538 = vrot.slane %v4428, %v4537
      %v4539 = vlaneseq
      %v4540 = vshrl.u32 %v4539, 7
      %v4541 = vsub.s32 4, %v4540
      %v4542 = vrot.slane %v4428, %v4541
      %v4543 = vlaneseq
      %v4544 = vshrl.u32 %v4543, 7
      %v4545 = vsub.s32 0, %v4544
      %v4546 = vrot.slane %v4429, %v4545
      %v4547 = vlaneseq
      %v4548 = vshrl.u32 %v4547, 7
      %v4549 = vsub.s32 4, %v4548
      %v4550 = vrot.slane %v4429, %v4549
      %v4551 = vlaneseq
      %v4552 = vshrl.u32 %v4551, 7
      %v4553 = vsub.s32 0, %v4552
      %v4554 = vrot.slane %v4430, %v4553
      %v4555 = vlaneseq
      %v4556 = vshrl.u32 %v4555, 7
      %v4557 = vsub.s32 4, %v4556
      %v4558 = vrot.slane %v4430, %v4557
      %v4559 = vlaneseq
      %v4560 = vshrl.u32 %v4559, 7
      %v4561 = vsub.s32 0, %v4560
      %v4562 = vrot.slane %v4431, %v4561
      %v4563 = vlaneseq
      %v4564 = vshrl.u32 %v4563, 7
      %v4565 = vsub.s32 4, %v4564
      %v4566 = vrot.slane %v4431, %v4565
      %v4575 = vlaneseq
      %v4576 = vshrl.u32 %v4575, 7
      %v4577 = vsub.s32 0, %v4576
      %v4578 = vrot.slane %v4538, %v4577
      %v4579 = vlaneseq
      %v4580 = vshrl.u32 %v4579, 7
      %v4581 = vsub.s32 0, %v4580
      %v4582 = vrot.slane %v4542, %v4581
      %v4583 = vlaneseq
      %v4584 = vshrl.u32 %v4583, 7
      %v4585 = vsub.s32 0, %v4584
      %v4586 = vrot.slane %v4546, %v4585
      %v4587 = vlaneseq
      %v4588 = vshrl.u32 %v4587, 7
      %v4589 = vsub.s32 0, %v4588
      %v4590 = vrot.slane %v4550, %v4589
      %v4591 = vlaneseq
      %v4592 = vshrl.u32 %v4591, 7
      %v4593 = vsub.s32 0, %v4592
      %v4594 = vrot.slane %v4554, %v4593
      %v4595 = vlaneseq
      %v4596 = vshrl.u32 %v4595, 7
      %v4597 = vsub.s32 0, %v4596
      %v4598 = vrot.slane %v4558, %v4597
      %v4599 = vlaneseq
      %v4600 = vshrl.u32 %v4599, 7
      %v4601 = vsub.s32 0, %v4600
      %v4602 = vrot.slane %v4562, %v4601
      %v4603 = vlaneseq
      %v4604 = vshrl.u32 %v4603, 7
      %v4605 = vsub.s32 0, %v4604
      %v4606 = vrot.slane %v4566, %v4605
      %v4607 = vmul.f32 %v4527, %v4578
      %v4608 = vmul.f32 %v4528, %v4582
      %v4609 = vmul.f32 %v4529, %v4586
      %v4610 = vmul.f32 %v4530, %v4590
      %v4611 = vmul.f32 %v4531, %v4594
      %v4612 = vmul.f32 %v4532, %v4598
      %v4613 = vmul.f32 %v4533, %v4602
      %v4614 = vmul.f32 %v4534, %v4606
      %v4615 = vadd.f32 %v4510, %v4607
      %v4616 = vadd.f32 %v4511, %v4608
      %v4617 = vadd.f32 %v4512, %v4609
      %v4618 = vadd.f32 %v4513, %v4610
      %v4619 = vadd.f32 %v4514, %v4611
      %v4620 = vadd.f32 %v4515, %v4612
      %v4621 = vadd.f32 %v4516, %v4613
      %v4622 = vadd.f32 %v4517, %v4614
      %v4623 = vrot.slane %v3848, 6
      %v4624 = vrot.slane %v3850, 6
      %v4625 = vrot.slane %v3930, 6
      %v4626 = vrot.slane %v3932, 6
      %v4627 = vrot.slane %v4012, 6
      %v4628 = vrot.slane %v4014, 6
      %v4629 = vrot.slane %v4094, 6
      %v4630 = vrot.slane %v4096, 6
      %vm4631 = vcmp.ge.s32.totalorder %v4433, 2
      %v4632 = vsel %vm4631, %v4623, 0.0
      %v4633 = vsel %vm4631, %v4624, 0.0
      %v4634 = vsel %vm4631, %v4625, 0.0
      %v4635 = vsel %vm4631, %v4626, 0.0
      %v4636 = vsel %vm4631, %v4627, 0.0
      %v4637 = vsel %vm4631, %v4628, 0.0
      %v4638 = vsel %vm4631, %v4629, 0.0
      %v4639 = vsel %vm4631, %v4630, 0.0
      %v4640 = vlaneseq
      %v4641 = vshrl.u32 %v4640, 7
      %v4642 = vsub.s32 1, %v4641
      %v4643 = vrot.slane %v4428, %v4642
      %v4644 = vlaneseq
      %v4645 = vshrl.u32 %v4644, 7
      %v4646 = vsub.s32 5, %v4645
      %v4647 = vrot.slane %v4428, %v4646
      %v4648 = vlaneseq
      %v4649 = vshrl.u32 %v4648, 7
      %v4650 = vsub.s32 1, %v4649
      %v4651 = vrot.slane %v4429, %v4650
      %v4652 = vlaneseq
      %v4653 = vshrl.u32 %v4652, 7
      %v4654 = vsub.s32 5, %v4653
      %v4655 = vrot.slane %v4429, %v4654
      %v4656 = vlaneseq
      %v4657 = vshrl.u32 %v4656, 7
      %v4658 = vsub.s32 1, %v4657
      %v4659 = vrot.slane %v4430, %v4658
      %v4660 = vlaneseq
      %v4661 = vshrl.u32 %v4660, 7
      %v4662 = vsub.s32 5, %v4661
      %v4663 = vrot.slane %v4430, %v4662
      %v4664 = vlaneseq
      %v4665 = vshrl.u32 %v4664, 7
      %v4666 = vsub.s32 1, %v4665
      %v4667 = vrot.slane %v4431, %v4666
      %v4668 = vlaneseq
      %v4669 = vshrl.u32 %v4668, 7
      %v4670 = vsub.s32 5, %v4669
      %v4671 = vrot.slane %v4431, %v4670
      %v4680 = vlaneseq
      %v4681 = vshrl.u32 %v4680, 7
      %v4682 = vsub.s32 1, %v4681
      %v4683 = vrot.slane %v4643, %v4682
      %v4684 = vlaneseq
      %v4685 = vshrl.u32 %v4684, 7
      %v4686 = vsub.s32 1, %v4685
      %v4687 = vrot.slane %v4647, %v4686
      %v4688 = vlaneseq
      %v4689 = vshrl.u32 %v4688, 7
      %v4690 = vsub.s32 1, %v4689
      %v4691 = vrot.slane %v4651, %v4690
      %v4692 = vlaneseq
      %v4693 = vshrl.u32 %v4692, 7
      %v4694 = vsub.s32 1, %v4693
      %v4695 = vrot.slane %v4655, %v4694
      %v4696 = vlaneseq
      %v4697 = vshrl.u32 %v4696, 7
      %v4698 = vsub.s32 1, %v4697
      %v4699 = vrot.slane %v4659, %v4698
      %v4700 = vlaneseq
      %v4701 = vshrl.u32 %v4700, 7
      %v4702 = vsub.s32 1, %v4701
      %v4703 = vrot.slane %v4663, %v4702
      %v4704 = vlaneseq
      %v4705 = vshrl.u32 %v4704, 7
      %v4706 = vsub.s32 1, %v4705
      %v4707 = vrot.slane %v4667, %v4706
      %v4708 = vlaneseq
      %v4709 = vshrl.u32 %v4708, 7
      %v4710 = vsub.s32 1, %v4709
      %v4711 = vrot.slane %v4671, %v4710
      %v4712 = vmul.f32 %v4632, %v4683
      %v4713 = vmul.f32 %v4633, %v4687
      %v4714 = vmul.f32 %v4634, %v4691
      %v4715 = vmul.f32 %v4635, %v4695
      %v4716 = vmul.f32 %v4636, %v4699
      %v4717 = vmul.f32 %v4637, %v4703
      %v4718 = vmul.f32 %v4638, %v4707
      %v4719 = vmul.f32 %v4639, %v4711
      %v4720 = vadd.f32 %v4615, %v4712
      %v4721 = vadd.f32 %v4616, %v4713
      %v4722 = vadd.f32 %v4617, %v4714
      %v4723 = vadd.f32 %v4618, %v4715
      %v4724 = vadd.f32 %v4619, %v4716
      %v4725 = vadd.f32 %v4620, %v4717
      %v4726 = vadd.f32 %v4621, %v4718
      %v4727 = vadd.f32 %v4622, %v4719
      %v4728 = vrot.slane %v3848, 7
      %v4729 = vrot.slane %v3850, 7
      %v4730 = vrot.slane %v3930, 7
      %v4731 = vrot.slane %v3932, 7
      %v4732 = vrot.slane %v4012, 7
      %v4733 = vrot.slane %v4014, 7
      %v4734 = vrot.slane %v4094, 7
      %v4735 = vrot.slane %v4096, 7
      %vm4736 = vcmp.ge.s32.totalorder %v4433, 1
      %v4737 = vsel %vm4736, %v4728, 0.0
      %v4738 = vsel %vm4736, %v4729, 0.0
      %v4739 = vsel %vm4736, %v4730, 0.0
      %v4740 = vsel %vm4736, %v4731, 0.0
      %v4741 = vsel %vm4736, %v4732, 0.0
      %v4742 = vsel %vm4736, %v4733, 0.0
      %v4743 = vsel %vm4736, %v4734, 0.0
      %v4744 = vsel %vm4736, %v4735, 0.0
      %v4745 = vlaneseq
      %v4746 = vshrl.u32 %v4745, 7
      %v4747 = vsub.s32 2, %v4746
      %v4748 = vrot.slane %v4428, %v4747
      %v4749 = vlaneseq
      %v4750 = vshrl.u32 %v4749, 7
      %v4751 = vsub.s32 6, %v4750
      %v4752 = vrot.slane %v4428, %v4751
      %v4753 = vlaneseq
      %v4754 = vshrl.u32 %v4753, 7
      %v4755 = vsub.s32 2, %v4754
      %v4756 = vrot.slane %v4429, %v4755
      %v4757 = vlaneseq
      %v4758 = vshrl.u32 %v4757, 7
      %v4759 = vsub.s32 6, %v4758
      %v4760 = vrot.slane %v4429, %v4759
      %v4761 = vlaneseq
      %v4762 = vshrl.u32 %v4761, 7
      %v4763 = vsub.s32 2, %v4762
      %v4764 = vrot.slane %v4430, %v4763
      %v4765 = vlaneseq
      %v4766 = vshrl.u32 %v4765, 7
      %v4767 = vsub.s32 6, %v4766
      %v4768 = vrot.slane %v4430, %v4767
      %v4769 = vlaneseq
      %v4770 = vshrl.u32 %v4769, 7
      %v4771 = vsub.s32 2, %v4770
      %v4772 = vrot.slane %v4431, %v4771
      %v4773 = vlaneseq
      %v4774 = vshrl.u32 %v4773, 7
      %v4775 = vsub.s32 6, %v4774
      %v4776 = vrot.slane %v4431, %v4775
      %v4785 = vlaneseq
      %v4786 = vshrl.u32 %v4785, 7
      %v4787 = vsub.s32 2, %v4786
      %v4788 = vrot.slane %v4748, %v4787
      %v4789 = vlaneseq
      %v4790 = vshrl.u32 %v4789, 7
      %v4791 = vsub.s32 2, %v4790
      %v4792 = vrot.slane %v4752, %v4791
      %v4793 = vlaneseq
      %v4794 = vshrl.u32 %v4793, 7
      %v4795 = vsub.s32 2, %v4794
      %v4796 = vrot.slane %v4756, %v4795
      %v4797 = vlaneseq
      %v4798 = vshrl.u32 %v4797, 7
      %v4799 = vsub.s32 2, %v4798
      %v4800 = vrot.slane %v4760, %v4799
      %v4801 = vlaneseq
      %v4802 = vshrl.u32 %v4801, 7
      %v4803 = vsub.s32 2, %v4802
      %v4804 = vrot.slane %v4764, %v4803
      %v4805 = vlaneseq
      %v4806 = vshrl.u32 %v4805, 7
      %v4807 = vsub.s32 2, %v4806
      %v4808 = vrot.slane %v4768, %v4807
      %v4809 = vlaneseq
      %v4810 = vshrl.u32 %v4809, 7
      %v4811 = vsub.s32 2, %v4810
      %v4812 = vrot.slane %v4772, %v4811
      %v4813 = vlaneseq
      %v4814 = vshrl.u32 %v4813, 7
      %v4815 = vsub.s32 2, %v4814
      %v4816 = vrot.slane %v4776, %v4815
      %v4817 = vmul.f32 %v4737, %v4788
      %v4818 = vmul.f32 %v4738, %v4792
      %v4819 = vmul.f32 %v4739, %v4796
      %v4820 = vmul.f32 %v4740, %v4800
      %v4821 = vmul.f32 %v4741, %v4804
      %v4822 = vmul.f32 %v4742, %v4808
      %v4823 = vmul.f32 %v4743, %v4812
      %v4824 = vmul.f32 %v4744, %v4816
      %v4825 = vadd.f32 %v4720, %v4817
      %v4826 = vadd.f32 %v4721, %v4818
      %v4827 = vadd.f32 %v4722, %v4819
      %v4828 = vadd.f32 %v4723, %v4820
      %v4829 = vadd.f32 %v4724, %v4821
      %v4830 = vadd.f32 %v4725, %v4822
      %v4831 = vadd.f32 %v4726, %v4823
      %v4832 = vadd.f32 %v4727, %v4824
      %v4833 = vld [vmem:[%s5] sm:$0xff]
      %v4835 = vlaneseq
      %v4836 = vshrl.u32 %v4835, 7
      %v4837 = vsub.s32 0, %v4836
      %v4838 = vrot.slane %v4833, %v4837
      %v4839 = vlaneseq
      %v4840 = vshrl.u32 %v4839, 7
      %v4841 = vsub.s32 1, %v4840
      %v4842 = vrot.slane %v4833, %v4841
      %v4843 = vlaneseq
      %v4844 = vshrl.u32 %v4843, 7
      %v4845 = vsub.s32 2, %v4844
      %v4846 = vrot.slane %v4833, %v4845
      %v4847 = vlaneseq
      %v4848 = vshrl.u32 %v4847, 7
      %v4849 = vsub.s32 3, %v4848
      %v4850 = vrot.slane %v4833, %v4849
      %v4851 = vlaneseq
      %v4852 = vshrl.u32 %v4851, 7
      %v4853 = vsub.s32 4, %v4852
      %v4854 = vrot.slane %v4833, %v4853
      %v4855 = vlaneseq
      %v4856 = vshrl.u32 %v4855, 7
      %v4857 = vsub.s32 5, %v4856
      %v4858 = vrot.slane %v4833, %v4857
      %v4859 = vlaneseq
      %v4860 = vshrl.u32 %v4859, 7
      %v4861 = vsub.s32 6, %v4860
      %v4862 = vrot.slane %v4833, %v4861
      %v4863 = vlaneseq
      %v4864 = vshrl.u32 %v4863, 7
      %v4865 = vsub.s32 7, %v4864
      %v4866 = vrot.slane %v4833, %v4865
      %v4875 = vadd.f32 %v4825, %v4838
      %v4876 = vadd.f32 %v4826, %v4842
      %v4877 = vadd.f32 %v4827, %v4846
      %v4878 = vadd.f32 %v4828, %v4850
      %v4879 = vadd.f32 %v4829, %v4854
      %v4880 = vadd.f32 %v4830, %v4858
      %v4881 = vadd.f32 %v4831, %v4862
      %v4882 = vadd.f32 %v4832, %v4866
      %v4883 = vsub.f32 0.0, %v4875
      %v4884 = vsub.f32 0.0, %v4876
      %v4885 = vsub.f32 0.0, %v4877
      %v4886 = vsub.f32 0.0, %v4878
      %v4887 = vsub.f32 0.0, %v4879
      %v4888 = vsub.f32 0.0, %v4880
      %v4889 = vsub.f32 0.0, %v4881
      %v4890 = vsub.f32 0.0, %v4882
      %v4891 = vmul.f32 %v4883, 1.442695
      %v4892 = vpow.pop %v4891
      %v4893 = vmul.f32 %v4884, 1.442695
      %v4894 = vpow.pop %v4893
      %v4895 = vmul.f32 %v4885, 1.442695
      %v4896 = vpow.pop %v4895
      %v4897 = vmul.f32 %v4886, 1.442695
      %v4898 = vpow.pop %v4897
      %v4899 = vmul.f32 %v4887, 1.442695
      %v4900 = vpow.pop %v4899
      %v4901 = vmul.f32 %v4888, 1.442695
      %v4902 = vpow.pop %v4901
      %v4903 = vmul.f32 %v4889, 1.442695
      %v4904 = vpow.pop %v4903
      %v4905 = vmul.f32 %v4890, 1.442695
      %v4906 = vpow.pop %v4905
      %v4907 = vadd.f32 %v4892, 1.0
      %v4908 = vadd.f32 %v4894, 1.0
      %v4909 = vadd.f32 %v4896, 1.0
      %v4910 = vadd.f32 %v4898, 1.0
      %v4911 = vadd.f32 %v4900, 1.0
      %v4912 = vadd.f32 %v4902, 1.0
      %v4913 = vadd.f32 %v4904, 1.0
      %v4914 = vadd.f32 %v4906, 1.0
      %v4915 = vrcp.pop %v4907
      %v4916 = vmul.f32 1.0, %v4915
      %v4917 = vrcp.pop %v4908
      %v4918 = vmul.f32 1.0, %v4917
      %v4919 = vrcp.pop %v4909
      %v4920 = vmul.f32 1.0, %v4919
      %v4921 = vrcp.pop %v4910
      %v4922 = vmul.f32 1.0, %v4921
      %v4923 = vrcp.pop %v4911
      %v4924 = vmul.f32 1.0, %v4923
      %v4925 = vrcp.pop %v4912
      %v4926 = vmul.f32 1.0, %v4925
      %v4927 = vrcp.pop %v4913
      %v4928 = vmul.f32 1.0, %v4927
      %v4929 = vrcp.pop %v4914
      %v4930 = vmul.f32 1.0, %v4929
      %v4931 = vmul.f32 %v4875, %v4916
      %v4932 = vmul.f32 %v4876, %v4918
      %v4933 = vmul.f32 %v4877, %v4920
      %v4934 = vmul.f32 %v4878, %v4922
      %v4935 = vmul.f32 %v4879, %v4924
      %v4936 = vmul.f32 %v4880, %v4926
      %v4937 = vmul.f32 %v4881, %v4928
      %v4938 = vmul.f32 %v4882, %v4930
      %v4939 = vpack.c.bf16 %v4931, %v4931
      %v4940 = vpack.c.bf16 %v4932, %v4932
      %v4941 = vpack.c.bf16 %v4933, %v4933
      %v4942 = vpack.c.bf16 %v4934, %v4934
      %v4943 = vpack.c.bf16 %v4935, %v4935
      %v4944 = vpack.c.bf16 %v4936, %v4936
      %v4945 = vpack.c.bf16 %v4937, %v4937
      %v4946 = vpack.c.bf16 %v4938, %v4938
      %v4947 = vld [vmem:[%s6] sm:$0xf]
      %v4948 = vld [vmem:[%s6 + $0x4] sm:$0xf]
      %v4949 = vld [vmem:[%s6 + $0x8] sm:$0xf]
      %v4950 = vld [vmem:[%s6 + $0xc] sm:$0xf]
      %v4951 = vld [vmem:[%s6 + $0x10] sm:$0xf]
      %v4952 = vld [vmem:[%s6 + $0x14] sm:$0xf]
      %v4953 = vld [vmem:[%s6 + $0x18] sm:$0xf]
      %v4954 = vld [vmem:[%s6 + $0x1c] sm:$0xf]
      %v4955 = vld [vmem:[%s6 + $0x20] sm:$0xf]
      %v4956 = vld [vmem:[%s6 + $0x24] sm:$0xf]
      %v4957 = vld [vmem:[%s6 + $0x28] sm:$0xf]
      %v4958 = vld [vmem:[%s6 + $0x2c] sm:$0xf]
      %v4959 = vld [vmem:[%s6 + $0x30] sm:$0xf]
      %v4960 = vld [vmem:[%s6 + $0x34] sm:$0xf]
      %v4961 = vld [vmem:[%s6 + $0x38] sm:$0xf]
      %v4962 = vld [vmem:[%s6 + $0x3c] sm:$0xf]
      %v4963 = vld [vmem:[%s6 + $0x40] sm:$0xf]
      %v4964 = vld [vmem:[%s6 + $0x44] sm:$0xf]
      %v4965 = vld [vmem:[%s6 + $0x48] sm:$0xf]
      %v4966 = vld [vmem:[%s6 + $0x4c] sm:$0xf]
      %v4967 = vld [vmem:[%s6 + $0x50] sm:$0xf]
      %v4968 = vld [vmem:[%s6 + $0x54] sm:$0xf]
      %v4969 = vld [vmem:[%s6 + $0x58] sm:$0xf]
      %v4970 = vld [vmem:[%s6 + $0x5c] sm:$0xf]
      %v4971 = vld [vmem:[%s6 + $0x60] sm:$0xf]
      %v4972 = vld [vmem:[%s6 + $0x64] sm:$0xf]
      %v4973 = vld [vmem:[%s6 + $0x68] sm:$0xf]
      %v4974 = vld [vmem:[%s6 + $0x6c] sm:$0xf]
      %v4975 = vld [vmem:[%s6 + $0x70] sm:$0xf]
      %v4976 = vld [vmem:[%s6 + $0x74] sm:$0xf]
      %v4977 = vld [vmem:[%s6 + $0x78] sm:$0xf]
      %v4978 = vld [vmem:[%s6 + $0x7c] sm:$0xf]
      %v4979 = vld [vmem:[%s6 + $0x80] sm:$0xf]
      %v4980 = vld [vmem:[%s6 + $0x84] sm:$0xf]
      %v4981 = vld [vmem:[%s6 + $0x88] sm:$0xf]
      %v4982 = vld [vmem:[%s6 + $0x8c] sm:$0xf]
      %v4983 = vld [vmem:[%s6 + $0x90] sm:$0xf]
      %v4984 = vld [vmem:[%s6 + $0x94] sm:$0xf]
      %v4985 = vld [vmem:[%s6 + $0x98] sm:$0xf]
      %v4986 = vld [vmem:[%s6 + $0x9c] sm:$0xf]
      %v4987 = vld [vmem:[%s6 + $0xa0] sm:$0xf]
      %v4988 = vld [vmem:[%s6 + $0xa4] sm:$0xf]
      %v4989 = vld [vmem:[%s6 + $0xa8] sm:$0xf]
      %v4990 = vld [vmem:[%s6 + $0xac] sm:$0xf]
      %v4991 = vld [vmem:[%s6 + $0xb0] sm:$0xf]
      %v4992 = vld [vmem:[%s6 + $0xb4] sm:$0xf]
      %v4993 = vld [vmem:[%s6 + $0xb8] sm:$0xf]
      %v4994 = vld [vmem:[%s6 + $0xbc] sm:$0xf]
      %v4995 = vld [vmem:[%s6 + $0xc0] sm:$0xf]
      %v4996 = vld [vmem:[%s6 + $0xc4] sm:$0xf]
      %v4997 = vld [vmem:[%s6 + $0xc8] sm:$0xf]
      %v4998 = vld [vmem:[%s6 + $0xcc] sm:$0xf]
      %v4999 = vld [vmem:[%s6 + $0xd0] sm:$0xf]
      %v5000 = vld [vmem:[%s6 + $0xd4] sm:$0xf]
      %v5001 = vld [vmem:[%s6 + $0xd8] sm:$0xf]
      %v5002 = vld [vmem:[%s6 + $0xdc] sm:$0xf]
      %v5003 = vld [vmem:[%s6 + $0xe0] sm:$0xf]
      %v5004 = vld [vmem:[%s6 + $0xe4] sm:$0xf]
      %v5005 = vld [vmem:[%s6 + $0xe8] sm:$0xf]
      %v5006 = vld [vmem:[%s6 + $0xec] sm:$0xf]
      %v5007 = vld [vmem:[%s6 + $0xf0] sm:$0xf]
      %v5008 = vld [vmem:[%s6 + $0xf4] sm:$0xf]
      %v5009 = vld [vmem:[%s6 + $0xf8] sm:$0xf]
      %v5010 = vld [vmem:[%s6 + $0xfc] sm:$0xf]
      %v5011 = vld [vmem:[%s6 + $0x100] sm:$0xf]
      %v5012 = vld [vmem:[%s6 + $0x104] sm:$0xf]
      %v5013 = vld [vmem:[%s6 + $0x108] sm:$0xf]
      %v5014 = vld [vmem:[%s6 + $0x10c] sm:$0xf]
      %v5015 = vld [vmem:[%s6 + $0x110] sm:$0xf]
      %v5016 = vld [vmem:[%s6 + $0x114] sm:$0xf]
      %v5017 = vld [vmem:[%s6 + $0x118] sm:$0xf]
      %v5018 = vld [vmem:[%s6 + $0x11c] sm:$0xf]
      %v5019 = vld [vmem:[%s6 + $0x120] sm:$0xf]
      %v5020 = vld [vmem:[%s6 + $0x124] sm:$0xf]
      %v5021 = vld [vmem:[%s6 + $0x128] sm:$0xf]
      %v5022 = vld [vmem:[%s6 + $0x12c] sm:$0xf]
      %v5023 = vld [vmem:[%s6 + $0x130] sm:$0xf]
      %v5024 = vld [vmem:[%s6 + $0x134] sm:$0xf]
      %v5025 = vld [vmem:[%s6 + $0x138] sm:$0xf]
      %v5026 = vld [vmem:[%s6 + $0x13c] sm:$0xf]
      %v5027 = vld [vmem:[%s6 + $0x140] sm:$0xf]
      %v5028 = vld [vmem:[%s6 + $0x144] sm:$0xf]
      %v5029 = vld [vmem:[%s6 + $0x148] sm:$0xf]
      %v5030 = vld [vmem:[%s6 + $0x14c] sm:$0xf]
      %v5031 = vld [vmem:[%s6 + $0x150] sm:$0xf]
      %v5032 = vld [vmem:[%s6 + $0x154] sm:$0xf]
      %v5033 = vld [vmem:[%s6 + $0x158] sm:$0xf]
      %v5034 = vld [vmem:[%s6 + $0x15c] sm:$0xf]
      %v5035 = vld [vmem:[%s6 + $0x160] sm:$0xf]
      %v5036 = vld [vmem:[%s6 + $0x164] sm:$0xf]
      %v5037 = vld [vmem:[%s6 + $0x168] sm:$0xf]
      %v5038 = vld [vmem:[%s6 + $0x16c] sm:$0xf]
      %v5039 = vld [vmem:[%s6 + $0x170] sm:$0xf]
      %v5040 = vld [vmem:[%s6 + $0x174] sm:$0xf]
      %v5041 = vld [vmem:[%s6 + $0x178] sm:$0xf]
      %v5042 = vld [vmem:[%s6 + $0x17c] sm:$0xf]
      %v5043 = vld [vmem:[%s6 + $0x180] sm:$0xf]
      %v5044 = vld [vmem:[%s6 + $0x184] sm:$0xf]
      %v5045 = vld [vmem:[%s6 + $0x188] sm:$0xf]
      %v5046 = vld [vmem:[%s6 + $0x18c] sm:$0xf]
      %v5047 = vld [vmem:[%s6 + $0x190] sm:$0xf]
      %v5048 = vld [vmem:[%s6 + $0x194] sm:$0xf]
      %v5049 = vld [vmem:[%s6 + $0x198] sm:$0xf]
      %v5050 = vld [vmem:[%s6 + $0x19c] sm:$0xf]
      %v5051 = vld [vmem:[%s6 + $0x1a0] sm:$0xf]
      %v5052 = vld [vmem:[%s6 + $0x1a4] sm:$0xf]
      %v5053 = vld [vmem:[%s6 + $0x1a8] sm:$0xf]
      %v5054 = vld [vmem:[%s6 + $0x1ac] sm:$0xf]
      %v5055 = vld [vmem:[%s6 + $0x1b0] sm:$0xf]
      %v5056 = vld [vmem:[%s6 + $0x1b4] sm:$0xf]
      %v5057 = vld [vmem:[%s6 + $0x1b8] sm:$0xf]
      %v5058 = vld [vmem:[%s6 + $0x1bc] sm:$0xf]
      %v5059 = vld [vmem:[%s6 + $0x1c0] sm:$0xf]
      %v5060 = vld [vmem:[%s6 + $0x1c4] sm:$0xf]
      %v5061 = vld [vmem:[%s6 + $0x1c8] sm:$0xf]
      %v5062 = vld [vmem:[%s6 + $0x1cc] sm:$0xf]
      %v5063 = vld [vmem:[%s6 + $0x1d0] sm:$0xf]
      %v5064 = vld [vmem:[%s6 + $0x1d4] sm:$0xf]
      %v5065 = vld [vmem:[%s6 + $0x1d8] sm:$0xf]
      %v5066 = vld [vmem:[%s6 + $0x1dc] sm:$0xf]
      %v5067 = vld [vmem:[%s6 + $0x1e0] sm:$0xf]
      %v5068 = vld [vmem:[%s6 + $0x1e4] sm:$0xf]
      %v5069 = vld [vmem:[%s6 + $0x1e8] sm:$0xf]
      %v5070 = vld [vmem:[%s6 + $0x1ec] sm:$0xf]
      %v5071 = vld [vmem:[%s6 + $0x1f0] sm:$0xf]
      %v5072 = vld [vmem:[%s6 + $0x1f4] sm:$0xf]
      %v5073 = vld [vmem:[%s6 + $0x1f8] sm:$0xf]
      %v5074 = vld [vmem:[%s6 + $0x1fc] sm:$0xf]
      %v5203 = vunpack.c.l.b16 %v4947
      %v5204 = vunpack.c.l.b16 %v4948
      %v5205 = vunpack.c.l.b16 %v4949
      %v5206 = vunpack.c.l.b16 %v4950
      %v5207 = vunpack.c.l.b16 %v4951
      %v5208 = vunpack.c.l.b16 %v4952
      %v5209 = vunpack.c.l.b16 %v4953
      %v5210 = vunpack.c.l.b16 %v4954
      %v5211 = vunpack.c.l.b16 %v4955
      %v5212 = vunpack.c.l.b16 %v4956
      %v5213 = vunpack.c.l.b16 %v4957
      %v5214 = vunpack.c.l.b16 %v4958
      %v5215 = vunpack.c.l.b16 %v4959
      %v5216 = vunpack.c.l.b16 %v4960
      %v5217 = vunpack.c.l.b16 %v4961
      %v5218 = vunpack.c.l.b16 %v4962
      %v5219 = vunpack.c.l.b16 %v4963
      %v5220 = vunpack.c.l.b16 %v4964
      %v5221 = vunpack.c.l.b16 %v4965
      %v5222 = vunpack.c.l.b16 %v4966
      %v5223 = vunpack.c.l.b16 %v4967
      %v5224 = vunpack.c.l.b16 %v4968
      %v5225 = vunpack.c.l.b16 %v4969
      %v5226 = vunpack.c.l.b16 %v4970
      %v5227 = vunpack.c.l.b16 %v4971
      %v5228 = vunpack.c.l.b16 %v4972
      %v5229 = vunpack.c.l.b16 %v4973
      %v5230 = vunpack.c.l.b16 %v4974
      %v5231 = vunpack.c.l.b16 %v4975
      %v5232 = vunpack.c.l.b16 %v4976
      %v5233 = vunpack.c.l.b16 %v4977
      %v5234 = vunpack.c.l.b16 %v4978
      %v5235 = vunpack.c.l.b16 %v4979
      %v5236 = vunpack.c.l.b16 %v4980
      %v5237 = vunpack.c.l.b16 %v4981
      %v5238 = vunpack.c.l.b16 %v4982
      %v5239 = vunpack.c.l.b16 %v4983
      %v5240 = vunpack.c.l.b16 %v4984
      %v5241 = vunpack.c.l.b16 %v4985
      %v5242 = vunpack.c.l.b16 %v4986
      %v5243 = vunpack.c.l.b16 %v4987
      %v5244 = vunpack.c.l.b16 %v4988
      %v5245 = vunpack.c.l.b16 %v4989
      %v5246 = vunpack.c.l.b16 %v4990
      %v5247 = vunpack.c.l.b16 %v4991
      %v5248 = vunpack.c.l.b16 %v4992
      %v5249 = vunpack.c.l.b16 %v4993
      %v5250 = vunpack.c.l.b16 %v4994
      %v5251 = vunpack.c.l.b16 %v4995
      %v5252 = vunpack.c.l.b16 %v4996
      %v5253 = vunpack.c.l.b16 %v4997
      %v5254 = vunpack.c.l.b16 %v4998
      %v5255 = vunpack.c.l.b16 %v4999
      %v5256 = vunpack.c.l.b16 %v5000
      %v5257 = vunpack.c.l.b16 %v5001
      %v5258 = vunpack.c.l.b16 %v5002
      %v5259 = vunpack.c.l.b16 %v5003
      %v5260 = vunpack.c.l.b16 %v5004
      %v5261 = vunpack.c.l.b16 %v5005
      %v5262 = vunpack.c.l.b16 %v5006
      %v5263 = vunpack.c.l.b16 %v5007
      %v5264 = vunpack.c.l.b16 %v5008
      %v5265 = vunpack.c.l.b16 %v5009
      %v5266 = vunpack.c.l.b16 %v5010
      %v5267 = vunpack.c.l.b16 %v5011
      %v5268 = vunpack.c.l.b16 %v5012
      %v5269 = vunpack.c.l.b16 %v5013
      %v5270 = vunpack.c.l.b16 %v5014
      %v5271 = vunpack.c.l.b16 %v5015
      %v5272 = vunpack.c.l.b16 %v5016
      %v5273 = vunpack.c.l.b16 %v5017
      %v5274 = vunpack.c.l.b16 %v5018
      %v5275 = vunpack.c.l.b16 %v5019
      %v5276 = vunpack.c.l.b16 %v5020
      %v5277 = vunpack.c.l.b16 %v5021
      %v5278 = vunpack.c.l.b16 %v5022
      %v5279 = vunpack.c.l.b16 %v5023
      %v5280 = vunpack.c.l.b16 %v5024
      %v5281 = vunpack.c.l.b16 %v5025
      %v5282 = vunpack.c.l.b16 %v5026
      %v5283 = vunpack.c.l.b16 %v5027
      %v5284 = vunpack.c.l.b16 %v5028
      %v5285 = vunpack.c.l.b16 %v5029
      %v5286 = vunpack.c.l.b16 %v5030
      %v5287 = vunpack.c.l.b16 %v5031
      %v5288 = vunpack.c.l.b16 %v5032
      %v5289 = vunpack.c.l.b16 %v5033
      %v5290 = vunpack.c.l.b16 %v5034
      %v5291 = vunpack.c.l.b16 %v5035
      %v5292 = vunpack.c.l.b16 %v5036
      %v5293 = vunpack.c.l.b16 %v5037
      %v5294 = vunpack.c.l.b16 %v5038
      %v5295 = vunpack.c.l.b16 %v5039
      %v5296 = vunpack.c.l.b16 %v5040
      %v5297 = vunpack.c.l.b16 %v5041
      %v5298 = vunpack.c.l.b16 %v5042
      %v5299 = vunpack.c.l.b16 %v5043
      %v5300 = vunpack.c.l.b16 %v5044
      %v5301 = vunpack.c.l.b16 %v5045
      %v5302 = vunpack.c.l.b16 %v5046
      %v5303 = vunpack.c.l.b16 %v5047
      %v5304 = vunpack.c.l.b16 %v5048
      %v5305 = vunpack.c.l.b16 %v5049
      %v5306 = vunpack.c.l.b16 %v5050
      %v5307 = vunpack.c.l.b16 %v5051
      %v5308 = vunpack.c.l.b16 %v5052
      %v5309 = vunpack.c.l.b16 %v5053
      %v5310 = vunpack.c.l.b16 %v5054
      %v5311 = vunpack.c.l.b16 %v5055
      %v5312 = vunpack.c.l.b16 %v5056
      %v5313 = vunpack.c.l.b16 %v5057
      %v5314 = vunpack.c.l.b16 %v5058
      %v5315 = vunpack.c.l.b16 %v5059
      %v5316 = vunpack.c.l.b16 %v5060
      %v5317 = vunpack.c.l.b16 %v5061
      %v5318 = vunpack.c.l.b16 %v5062
      %v5319 = vunpack.c.l.b16 %v5063
      %v5320 = vunpack.c.l.b16 %v5064
      %v5321 = vunpack.c.l.b16 %v5065
      %v5322 = vunpack.c.l.b16 %v5066
      %v5323 = vunpack.c.l.b16 %v5067
      %v5324 = vunpack.c.l.b16 %v5068
      %v5325 = vunpack.c.l.b16 %v5069
      %v5326 = vunpack.c.l.b16 %v5070
      %v5327 = vunpack.c.l.b16 %v5071
      %v5328 = vunpack.c.l.b16 %v5072
      %v5329 = vunpack.c.l.b16 %v5073
      %v5330 = vunpack.c.l.b16 %v5074
      %v5331 = vpack.c.b16 %v5204, %v5203
      %v5332 = vpack.c.b16 %v5206, %v5205
      %v5333 = vpack.c.b16 %v5208, %v5207
      %v5334 = vpack.c.b16 %v5210, %v5209
      %v5335 = vpack.c.b16 %v5212, %v5211
      %v5336 = vpack.c.b16 %v5214, %v5213
      %v5337 = vpack.c.b16 %v5216, %v5215
      %v5338 = vpack.c.b16 %v5218, %v5217
      %v5339 = vpack.c.b16 %v5220, %v5219
      %v5340 = vpack.c.b16 %v5222, %v5221
      %v5341 = vpack.c.b16 %v5224, %v5223
      %v5342 = vpack.c.b16 %v5226, %v5225
      %v5343 = vpack.c.b16 %v5228, %v5227
      %v5344 = vpack.c.b16 %v5230, %v5229
      %v5345 = vpack.c.b16 %v5232, %v5231
      %v5346 = vpack.c.b16 %v5234, %v5233
      %v5347 = vpack.c.b16 %v5236, %v5235
      %v5348 = vpack.c.b16 %v5238, %v5237
      %v5349 = vpack.c.b16 %v5240, %v5239
      %v5350 = vpack.c.b16 %v5242, %v5241
      %v5351 = vpack.c.b16 %v5244, %v5243
      %v5352 = vpack.c.b16 %v5246, %v5245
      %v5353 = vpack.c.b16 %v5248, %v5247
      %v5354 = vpack.c.b16 %v5250, %v5249
      %v5355 = vpack.c.b16 %v5252, %v5251
      %v5356 = vpack.c.b16 %v5254, %v5253
      %v5357 = vpack.c.b16 %v5256, %v5255
      %v5358 = vpack.c.b16 %v5258, %v5257
      %v5359 = vpack.c.b16 %v5260, %v5259
      %v5360 = vpack.c.b16 %v5262, %v5261
      %v5361 = vpack.c.b16 %v5264, %v5263
      %v5362 = vpack.c.b16 %v5266, %v5265
      %v5363 = vpack.c.b16 %v5268, %v5267
      %v5364 = vpack.c.b16 %v5270, %v5269
      %v5365 = vpack.c.b16 %v5272, %v5271
      %v5366 = vpack.c.b16 %v5274, %v5273
      %v5367 = vpack.c.b16 %v5276, %v5275
      %v5368 = vpack.c.b16 %v5278, %v5277
      %v5369 = vpack.c.b16 %v5280, %v5279
      %v5370 = vpack.c.b16 %v5282, %v5281
      %v5371 = vpack.c.b16 %v5284, %v5283
      %v5372 = vpack.c.b16 %v5286, %v5285
      %v5373 = vpack.c.b16 %v5288, %v5287
      %v5374 = vpack.c.b16 %v5290, %v5289
      %v5375 = vpack.c.b16 %v5292, %v5291
      %v5376 = vpack.c.b16 %v5294, %v5293
      %v5377 = vpack.c.b16 %v5296, %v5295
      %v5378 = vpack.c.b16 %v5298, %v5297
      %v5379 = vpack.c.b16 %v5300, %v5299
      %v5380 = vpack.c.b16 %v5302, %v5301
      %v5381 = vpack.c.b16 %v5304, %v5303
      %v5382 = vpack.c.b16 %v5306, %v5305
      %v5383 = vpack.c.b16 %v5308, %v5307
      %v5384 = vpack.c.b16 %v5310, %v5309
      %v5385 = vpack.c.b16 %v5312, %v5311
      %v5386 = vpack.c.b16 %v5314, %v5313
      %v5387 = vpack.c.b16 %v5316, %v5315
      %v5388 = vpack.c.b16 %v5318, %v5317
      %v5389 = vpack.c.b16 %v5320, %v5319
      %v5390 = vpack.c.b16 %v5322, %v5321
      %v5391 = vpack.c.b16 %v5324, %v5323
      %v5392 = vpack.c.b16 %v5326, %v5325
      %v5393 = vpack.c.b16 %v5328, %v5327
      %v5394 = vpack.c.b16 %v5330, %v5329
      %5459 = vmatprep.subr.bf16.mxu0 0
      %5460 = vmatpush1.bf16.msra.mxu0 %v5331
      %5461 = vmatprep.subr.bf16.mxu0 0
      %5462 = vmatpush1.bf16.msra.mxu0 %v5332
      %5463 = vmatprep.subr.bf16.mxu0 0
      %5464 = vmatpush1.bf16.msra.mxu0 %v5333
      %5465 = vmatprep.subr.bf16.mxu0 0
      %5466 = vmatpush1.bf16.msra.mxu0 %v5334
      %5467 = vmatprep.subr.bf16.mxu0 0
      %5468 = vmatpush1.bf16.msra.mxu0 %v5335
      %5469 = vmatprep.subr.bf16.mxu0 0
      %5470 = vmatpush1.bf16.msra.mxu0 %v5336
      %5471 = vmatprep.subr.bf16.mxu0 0
      %5472 = vmatpush1.bf16.msra.mxu0 %v5337
      %5473 = vmatprep.subr.bf16.mxu0 0
      %5474 = vmatpush1.bf16.msra.mxu0 %v5338
      %5475 = vmatprep.subr.bf16.mxu0 0
      %5476 = vmatpush1.bf16.msra.mxu0 %v5339
      %5477 = vmatprep.subr.bf16.mxu0 0
      %5478 = vmatpush1.bf16.msra.mxu0 %v5340
      %5479 = vmatprep.subr.bf16.mxu0 0
      %5480 = vmatpush1.bf16.msra.mxu0 %v5341
      %5481 = vmatprep.subr.bf16.mxu0 0
      %5482 = vmatpush1.bf16.msra.mxu0 %v5342
      %5483 = vmatprep.subr.bf16.mxu0 0
      %5484 = vmatpush1.bf16.msra.mxu0 %v5343
      %5485 = vmatprep.subr.bf16.mxu0 0
      %5486 = vmatpush1.bf16.msra.mxu0 %v5344
      %5487 = vmatprep.subr.bf16.mxu0 0
      %5488 = vmatpush1.bf16.msra.mxu0 %v5345
      %5489 = vmatprep.subr.bf16.mxu0 0
      %5490 = vmatpush1.bf16.msra.mxu0 %v5346
      %5491 = vmatprep.mubr.bf16.mxu0 %v4940
      %5492 = vmatmul.mubr.bf16.gmra.mrb[0].mxu0 %v4939
      %v5493 = vpop.f32.mrb[0].mxu0
      %v5494 = vadd.f32 0.0, %v5493
      %v5495 = vpop.f32.mrb[0].mxu0
      %v5496 = vpop.f32.mrb[0].mxu0
      %v5497 = vpop.f32.mrb[0].mxu0
      %5498 = vdwg.mxu0
      %5499 = vmatprep.subr.bf16.mxu0 0
      %5500 = vmatpush1.bf16.msra.mxu0 %v5347
      %5501 = vmatprep.subr.bf16.mxu0 0
      %5502 = vmatpush1.bf16.msra.mxu0 %v5348
      %5503 = vmatprep.subr.bf16.mxu0 0
      %5504 = vmatpush1.bf16.msra.mxu0 %v5349
      %5505 = vmatprep.subr.bf16.mxu0 0
      %5506 = vmatpush1.bf16.msra.mxu0 %v5350
      %5507 = vmatprep.subr.bf16.mxu0 0
      %5508 = vmatpush1.bf16.msra.mxu0 %v5351
      %5509 = vmatprep.subr.bf16.mxu0 0
      %5510 = vmatpush1.bf16.msra.mxu0 %v5352
      %5511 = vmatprep.subr.bf16.mxu0 0
      %5512 = vmatpush1.bf16.msra.mxu0 %v5353
      %5513 = vmatprep.subr.bf16.mxu0 0
      %5514 = vmatpush1.bf16.msra.mxu0 %v5354
      %5515 = vmatprep.subr.bf16.mxu0 0
      %5516 = vmatpush1.bf16.msra.mxu0 %v5355
      %5517 = vmatprep.subr.bf16.mxu0 0
      %5518 = vmatpush1.bf16.msra.mxu0 %v5356
      %5519 = vmatprep.subr.bf16.mxu0 0
      %5520 = vmatpush1.bf16.msra.mxu0 %v5357
      %5521 = vmatprep.subr.bf16.mxu0 0
      %5522 = vmatpush1.bf16.msra.mxu0 %v5358
      %5523 = vmatprep.subr.bf16.mxu0 0
      %5524 = vmatpush1.bf16.msra.mxu0 %v5359
      %5525 = vmatprep.subr.bf16.mxu0 0
      %5526 = vmatpush1.bf16.msra.mxu0 %v5360
      %5527 = vmatprep.subr.bf16.mxu0 0
      %5528 = vmatpush1.bf16.msra.mxu0 %v5361
      %5529 = vmatprep.subr.bf16.mxu0 0
      %5530 = vmatpush1.bf16.msra.mxu0 %v5362
      %5531 = vmatprep.mubr.bf16.mxu0 %v4942
      %5532 = vmatmul.mubr.bf16.gmra.mrb[0].mxu0 %v4941
      %v5533 = vpop.f32.mrb[0].mxu0
      %v5534 = vadd.f32 %v5494, %v5533
      %v5535 = vpop.f32.mrb[0].mxu0
      %v5536 = vpop.f32.mrb[0].mxu0
      %v5537 = vpop.f32.mrb[0].mxu0
      %5538 = vdwg.mxu0
      %5539 = vmatprep.subr.bf16.mxu0 0
      %5540 = vmatpush1.bf16.msra.mxu0 %v5363
      %5541 = vmatprep.subr.bf16.mxu0 0
      %5542 = vmatpush1.bf16.msra.mxu0 %v5364
      %5543 = vmatprep.subr.bf16.mxu0 0
      %5544 = vmatpush1.bf16.msra.mxu0 %v5365
      %5545 = vmatprep.subr.bf16.mxu0 0
      %5546 = vmatpush1.bf16.msra.mxu0 %v5366
      %5547 = vmatprep.subr.bf16.mxu0 0
      %5548 = vmatpush1.bf16.msra.mxu0 %v5367
      %5549 = vmatprep.subr.bf16.mxu0 0
      %5550 = vmatpush1.bf16.msra.mxu0 %v5368
      %5551 = vmatprep.subr.bf16.mxu0 0
      %5552 = vmatpush1.bf16.msra.mxu0 %v5369
      %5553 = vmatprep.subr.bf16.mxu0 0
      %5554 = vmatpush1.bf16.msra.mxu0 %v5370
      %5555 = vmatprep.subr.bf16.mxu0 0
      %5556 = vmatpush1.bf16.msra.mxu0 %v5371
      %5557 = vmatprep.subr.bf16.mxu0 0
      %5558 = vmatpush1.bf16.msra.mxu0 %v5372
      %5559 = vmatprep.subr.bf16.mxu0 0
      %5560 = vmatpush1.bf16.msra.mxu0 %v5373
      %5561 = vmatprep.subr.bf16.mxu0 0
      %5562 = vmatpush1.bf16.msra.mxu0 %v5374
      %5563 = vmatprep.subr.bf16.mxu0 0
      %5564 = vmatpush1.bf16.msra.mxu0 %v5375
      %5565 = vmatprep.subr.bf16.mxu0 0
      %5566 = vmatpush1.bf16.msra.mxu0 %v5376
      %5567 = vmatprep.subr.bf16.mxu0 0
      %5568 = vmatpush1.bf16.msra.mxu0 %v5377
      %5569 = vmatprep.subr.bf16.mxu0 0
      %5570 = vmatpush1.bf16.msra.mxu0 %v5378
      %5571 = vmatprep.mubr.bf16.mxu0 %v4944
      %5572 = vmatmul.mubr.bf16.gmra.mrb[0].mxu0 %v4943
      %v5573 = vpop.f32.mrb[0].mxu0
      %v5574 = vadd.f32 %v5534, %v5573
      %v5575 = vpop.f32.mrb[0].mxu0
      %v5576 = vpop.f32.mrb[0].mxu0
      %v5577 = vpop.f32.mrb[0].mxu0
      %5578 = vdwg.mxu0
      %5579 = vmatprep.subr.bf16.mxu0 0
      %5580 = vmatpush1.bf16.msra.mxu0 %v5379
      %5581 = vmatprep.subr.bf16.mxu0 0
      %5582 = vmatpush1.bf16.msra.mxu0 %v5380
      %5583 = vmatprep.subr.bf16.mxu0 0
      %5584 = vmatpush1.bf16.msra.mxu0 %v5381
      %5585 = vmatprep.subr.bf16.mxu0 0
      %5586 = vmatpush1.bf16.msra.mxu0 %v5382
      %5587 = vmatprep.subr.bf16.mxu0 0
      %5588 = vmatpush1.bf16.msra.mxu0 %v5383
      %5589 = vmatprep.subr.bf16.mxu0 0
      %5590 = vmatpush1.bf16.msra.mxu0 %v5384
      %5591 = vmatprep.subr.bf16.mxu0 0
      %5592 = vmatpush1.bf16.msra.mxu0 %v5385
      %5593 = vmatprep.subr.bf16.mxu0 0
      %5594 = vmatpush1.bf16.msra.mxu0 %v5386
      %5595 = vmatprep.subr.bf16.mxu0 0
      %5596 = vmatpush1.bf16.msra.mxu0 %v5387
      %5597 = vmatprep.subr.bf16.mxu0 0
      %5598 = vmatpush1.bf16.msra.mxu0 %v5388
      %5599 = vmatprep.subr.bf16.mxu0 0
      %5600 = vmatpush1.bf16.msra.mxu0 %v5389
      %5601 = vmatprep.subr.bf16.mxu0 0
      %5602 = vmatpush1.bf16.msra.mxu0 %v5390
      %5603 = vmatprep.subr.bf16.mxu0 0
      %5604 = vmatpush1.bf16.msra.mxu0 %v5391
      %5605 = vmatprep.subr.bf16.mxu0 0
      %5606 = vmatpush1.bf16.msra.mxu0 %v5392
      %5607 = vmatprep.subr.bf16.mxu0 0
      %5608 = vmatpush1.bf16.msra.mxu0 %v5393
      %5609 = vmatprep.subr.bf16.mxu0 0
      %5610 = vmatpush1.bf16.msra.mxu0 %v5394
      %5611 = vmatprep.mubr.bf16.mxu0 %v4946
      %5612 = vmatmul.mubr.bf16.gmra.mrb[0].mxu0 %v4945
      %v5613 = vpop.f32.mrb[0].mxu0
      %v5614 = vadd.f32 %v5574, %v5613
      %v5615 = vpop.f32.mrb[0].mxu0
      %v5616 = vpop.f32.mrb[0].mxu0
      %v5617 = vpop.f32.mrb[0].mxu0
      %5618 = vdwg.mxu0
      %v5619 = vld [vmem:[%s7] sm:$0xf]
      %v5620 = vld [vmem:[%s7 + $0x4] sm:$0xf]
      %v5621 = vld [vmem:[%s7 + $0x8] sm:$0xf]
      %v5622 = vld [vmem:[%s7 + $0xc] sm:$0xf]
      %v5623 = vld [vmem:[%s7 + $0x10] sm:$0xf]
      %v5624 = vld [vmem:[%s7 + $0x14] sm:$0xf]
      %v5625 = vld [vmem:[%s7 + $0x18] sm:$0xf]
      %v5626 = vld [vmem:[%s7 + $0x1c] sm:$0xf]
      %v5627 = vld [vmem:[%s7 + $0x20] sm:$0xf]
      %v5628 = vld [vmem:[%s7 + $0x24] sm:$0xf]
      %v5629 = vld [vmem:[%s7 + $0x28] sm:$0xf]
      %v5630 = vld [vmem:[%s7 + $0x2c] sm:$0xf]
      %v5631 = vld [vmem:[%s7 + $0x30] sm:$0xf]
      %v5632 = vld [vmem:[%s7 + $0x34] sm:$0xf]
      %v5633 = vld [vmem:[%s7 + $0x38] sm:$0xf]
      %v5634 = vld [vmem:[%s7 + $0x3c] sm:$0xf]
      %v5635 = vld [vmem:[%s7 + $0x40] sm:$0xf]
      %v5636 = vld [vmem:[%s7 + $0x44] sm:$0xf]
      %v5637 = vld [vmem:[%s7 + $0x48] sm:$0xf]
      %v5638 = vld [vmem:[%s7 + $0x4c] sm:$0xf]
      %v5639 = vld [vmem:[%s7 + $0x50] sm:$0xf]
      %v5640 = vld [vmem:[%s7 + $0x54] sm:$0xf]
      %v5641 = vld [vmem:[%s7 + $0x58] sm:$0xf]
      %v5642 = vld [vmem:[%s7 + $0x5c] sm:$0xf]
      %v5643 = vld [vmem:[%s7 + $0x60] sm:$0xf]
      %v5644 = vld [vmem:[%s7 + $0x64] sm:$0xf]
      %v5645 = vld [vmem:[%s7 + $0x68] sm:$0xf]
      %v5646 = vld [vmem:[%s7 + $0x6c] sm:$0xf]
      %v5647 = vld [vmem:[%s7 + $0x70] sm:$0xf]
      %v5648 = vld [vmem:[%s7 + $0x74] sm:$0xf]
      %v5649 = vld [vmem:[%s7 + $0x78] sm:$0xf]
      %v5650 = vld [vmem:[%s7 + $0x7c] sm:$0xf]
      %v5651 = vld [vmem:[%s7 + $0x80] sm:$0xf]
      %v5652 = vld [vmem:[%s7 + $0x84] sm:$0xf]
      %v5653 = vld [vmem:[%s7 + $0x88] sm:$0xf]
      %v5654 = vld [vmem:[%s7 + $0x8c] sm:$0xf]
      %v5655 = vld [vmem:[%s7 + $0x90] sm:$0xf]
      %v5656 = vld [vmem:[%s7 + $0x94] sm:$0xf]
      %v5657 = vld [vmem:[%s7 + $0x98] sm:$0xf]
      %v5658 = vld [vmem:[%s7 + $0x9c] sm:$0xf]
      %v5659 = vld [vmem:[%s7 + $0xa0] sm:$0xf]
      %v5660 = vld [vmem:[%s7 + $0xa4] sm:$0xf]
      %v5661 = vld [vmem:[%s7 + $0xa8] sm:$0xf]
      %v5662 = vld [vmem:[%s7 + $0xac] sm:$0xf]
      %v5663 = vld [vmem:[%s7 + $0xb0] sm:$0xf]
      %v5664 = vld [vmem:[%s7 + $0xb4] sm:$0xf]
      %v5665 = vld [vmem:[%s7 + $0xb8] sm:$0xf]
      %v5666 = vld [vmem:[%s7 + $0xbc] sm:$0xf]
      %v5667 = vld [vmem:[%s7 + $0xc0] sm:$0xf]
      %v5668 = vld [vmem:[%s7 + $0xc4] sm:$0xf]
      %v5669 = vld [vmem:[%s7 + $0xc8] sm:$0xf]
      %v5670 = vld [vmem:[%s7 + $0xcc] sm:$0xf]
      %v5671 = vld [vmem:[%s7 + $0xd0] sm:$0xf]
      %v5672 = vld [vmem:[%s7 + $0xd4] sm:$0xf]
      %v5673 = vld [vmem:[%s7 + $0xd8] sm:$0xf]
      %v5674 = vld [vmem:[%s7 + $0xdc] sm:$0xf]
      %v5675 = vld [vmem:[%s7 + $0xe0] sm:$0xf]
      %v5676 = vld [vmem:[%s7 + $0xe4] sm:$0xf]
      %v5677 = vld [vmem:[%s7 + $0xe8] sm:$0xf]
      %v5678 = vld [vmem:[%s7 + $0xec] sm:$0xf]
      %v5679 = vld [vmem:[%s7 + $0xf0] sm:$0xf]
      %v5680 = vld [vmem:[%s7 + $0xf4] sm:$0xf]
      %v5681 = vld [vmem:[%s7 + $0xf8] sm:$0xf]
      %v5682 = vld [vmem:[%s7 + $0xfc] sm:$0xf]
      %v5683 = vld [vmem:[%s7 + $0x100] sm:$0xf]
      %v5684 = vld [vmem:[%s7 + $0x104] sm:$0xf]
      %v5685 = vld [vmem:[%s7 + $0x108] sm:$0xf]
      %v5686 = vld [vmem:[%s7 + $0x10c] sm:$0xf]
      %v5687 = vld [vmem:[%s7 + $0x110] sm:$0xf]
      %v5688 = vld [vmem:[%s7 + $0x114] sm:$0xf]
      %v5689 = vld [vmem:[%s7 + $0x118] sm:$0xf]
      %v5690 = vld [vmem:[%s7 + $0x11c] sm:$0xf]
      %v5691 = vld [vmem:[%s7 + $0x120] sm:$0xf]
      %v5692 = vld [vmem:[%s7 + $0x124] sm:$0xf]
      %v5693 = vld [vmem:[%s7 + $0x128] sm:$0xf]
      %v5694 = vld [vmem:[%s7 + $0x12c] sm:$0xf]
      %v5695 = vld [vmem:[%s7 + $0x130] sm:$0xf]
      %v5696 = vld [vmem:[%s7 + $0x134] sm:$0xf]
      %v5697 = vld [vmem:[%s7 + $0x138] sm:$0xf]
      %v5698 = vld [vmem:[%s7 + $0x13c] sm:$0xf]
      %v5699 = vld [vmem:[%s7 + $0x140] sm:$0xf]
      %v5700 = vld [vmem:[%s7 + $0x144] sm:$0xf]
      %v5701 = vld [vmem:[%s7 + $0x148] sm:$0xf]
      %v5702 = vld [vmem:[%s7 + $0x14c] sm:$0xf]
      %v5703 = vld [vmem:[%s7 + $0x150] sm:$0xf]
      %v5704 = vld [vmem:[%s7 + $0x154] sm:$0xf]
      %v5705 = vld [vmem:[%s7 + $0x158] sm:$0xf]
      %v5706 = vld [vmem:[%s7 + $0x15c] sm:$0xf]
      %v5707 = vld [vmem:[%s7 + $0x160] sm:$0xf]
      %v5708 = vld [vmem:[%s7 + $0x164] sm:$0xf]
      %v5709 = vld [vmem:[%s7 + $0x168] sm:$0xf]
      %v5710 = vld [vmem:[%s7 + $0x16c] sm:$0xf]
      %v5711 = vld [vmem:[%s7 + $0x170] sm:$0xf]
      %v5712 = vld [vmem:[%s7 + $0x174] sm:$0xf]
      %v5713 = vld [vmem:[%s7 + $0x178] sm:$0xf]
      %v5714 = vld [vmem:[%s7 + $0x17c] sm:$0xf]
      %v5715 = vld [vmem:[%s7 + $0x180] sm:$0xf]
      %v5716 = vld [vmem:[%s7 + $0x184] sm:$0xf]
      %v5717 = vld [vmem:[%s7 + $0x188] sm:$0xf]
      %v5718 = vld [vmem:[%s7 + $0x18c] sm:$0xf]
      %v5719 = vld [vmem:[%s7 + $0x190] sm:$0xf]
      %v5720 = vld [vmem:[%s7 + $0x194] sm:$0xf]
      %v5721 = vld [vmem:[%s7 + $0x198] sm:$0xf]
      %v5722 = vld [vmem:[%s7 + $0x19c] sm:$0xf]
      %v5723 = vld [vmem:[%s7 + $0x1a0] sm:$0xf]
      %v5724 = vld [vmem:[%s7 + $0x1a4] sm:$0xf]
      %v5725 = vld [vmem:[%s7 + $0x1a8] sm:$0xf]
      %v5726 = vld [vmem:[%s7 + $0x1ac] sm:$0xf]
      %v5727 = vld [vmem:[%s7 + $0x1b0] sm:$0xf]
      %v5728 = vld [vmem:[%s7 + $0x1b4] sm:$0xf]
      %v5729 = vld [vmem:[%s7 + $0x1b8] sm:$0xf]
      %v5730 = vld [vmem:[%s7 + $0x1bc] sm:$0xf]
      %v5731 = vld [vmem:[%s7 + $0x1c0] sm:$0xf]
      %v5732 = vld [vmem:[%s7 + $0x1c4] sm:$0xf]
      %v5733 = vld [vmem:[%s7 + $0x1c8] sm:$0xf]
      %v5734 = vld [vmem:[%s7 + $0x1cc] sm:$0xf]
      %v5735 = vld [vmem:[%s7 + $0x1d0] sm:$0xf]
      %v5736 = vld [vmem:[%s7 + $0x1d4] sm:$0xf]
      %v5737 = vld [vmem:[%s7 + $0x1d8] sm:$0xf]
      %v5738 = vld [vmem:[%s7 + $0x1dc] sm:$0xf]
      %v5739 = vld [vmem:[%s7 + $0x1e0] sm:$0xf]
      %v5740 = vld [vmem:[%s7 + $0x1e4] sm:$0xf]
      %v5741 = vld [vmem:[%s7 + $0x1e8] sm:$0xf]
      %v5742 = vld [vmem:[%s7 + $0x1ec] sm:$0xf]
      %v5743 = vld [vmem:[%s7 + $0x1f0] sm:$0xf]
      %v5744 = vld [vmem:[%s7 + $0x1f4] sm:$0xf]
      %v5745 = vld [vmem:[%s7 + $0x1f8] sm:$0xf]
      %v5746 = vld [vmem:[%s7 + $0x1fc] sm:$0xf]
      %v5875 = vunpack.c.l.b16 %v5619
      %v5876 = vunpack.c.l.b16 %v5620
      %v5877 = vunpack.c.l.b16 %v5621
      %v5878 = vunpack.c.l.b16 %v5622
      %v5879 = vunpack.c.l.b16 %v5623
      %v5880 = vunpack.c.l.b16 %v5624
      %v5881 = vunpack.c.l.b16 %v5625
      %v5882 = vunpack.c.l.b16 %v5626
      %v5883 = vunpack.c.l.b16 %v5627
      %v5884 = vunpack.c.l.b16 %v5628
      %v5885 = vunpack.c.l.b16 %v5629
      %v5886 = vunpack.c.l.b16 %v5630
      %v5887 = vunpack.c.l.b16 %v5631
      %v5888 = vunpack.c.l.b16 %v5632
      %v5889 = vunpack.c.l.b16 %v5633
      %v5890 = vunpack.c.l.b16 %v5634
      %v5891 = vunpack.c.l.b16 %v5635
      %v5892 = vunpack.c.l.b16 %v5636
      %v5893 = vunpack.c.l.b16 %v5637
      %v5894 = vunpack.c.l.b16 %v5638
      %v5895 = vunpack.c.l.b16 %v5639
      %v5896 = vunpack.c.l.b16 %v5640
      %v5897 = vunpack.c.l.b16 %v5641
      %v5898 = vunpack.c.l.b16 %v5642
      %v5899 = vunpack.c.l.b16 %v5643
      %v5900 = vunpack.c.l.b16 %v5644
      %v5901 = vunpack.c.l.b16 %v5645
      %v5902 = vunpack.c.l.b16 %v5646
      %v5903 = vunpack.c.l.b16 %v5647
      %v5904 = vunpack.c.l.b16 %v5648
      %v5905 = vunpack.c.l.b16 %v5649
      %v5906 = vunpack.c.l.b16 %v5650
      %v5907 = vunpack.c.l.b16 %v5651
      %v5908 = vunpack.c.l.b16 %v5652
      %v5909 = vunpack.c.l.b16 %v5653
      %v5910 = vunpack.c.l.b16 %v5654
      %v5911 = vunpack.c.l.b16 %v5655
      %v5912 = vunpack.c.l.b16 %v5656
      %v5913 = vunpack.c.l.b16 %v5657
      %v5914 = vunpack.c.l.b16 %v5658
      %v5915 = vunpack.c.l.b16 %v5659
      %v5916 = vunpack.c.l.b16 %v5660
      %v5917 = vunpack.c.l.b16 %v5661
      %v5918 = vunpack.c.l.b16 %v5662
      %v5919 = vunpack.c.l.b16 %v5663
      %v5920 = vunpack.c.l.b16 %v5664
      %v5921 = vunpack.c.l.b16 %v5665
      %v5922 = vunpack.c.l.b16 %v5666
      %v5923 = vunpack.c.l.b16 %v5667
      %v5924 = vunpack.c.l.b16 %v5668
      %v5925 = vunpack.c.l.b16 %v5669
      %v5926 = vunpack.c.l.b16 %v5670
      %v5927 = vunpack.c.l.b16 %v5671
      %v5928 = vunpack.c.l.b16 %v5672
      %v5929 = vunpack.c.l.b16 %v5673
      %v5930 = vunpack.c.l.b16 %v5674
      %v5931 = vunpack.c.l.b16 %v5675
      %v5932 = vunpack.c.l.b16 %v5676
      %v5933 = vunpack.c.l.b16 %v5677
      %v5934 = vunpack.c.l.b16 %v5678
      %v5935 = vunpack.c.l.b16 %v5679
      %v5936 = vunpack.c.l.b16 %v5680
      %v5937 = vunpack.c.l.b16 %v5681
      %v5938 = vunpack.c.l.b16 %v5682
      %v5939 = vunpack.c.l.b16 %v5683
      %v5940 = vunpack.c.l.b16 %v5684
      %v5941 = vunpack.c.l.b16 %v5685
      %v5942 = vunpack.c.l.b16 %v5686
      %v5943 = vunpack.c.l.b16 %v5687
      %v5944 = vunpack.c.l.b16 %v5688
      %v5945 = vunpack.c.l.b16 %v5689
      %v5946 = vunpack.c.l.b16 %v5690
      %v5947 = vunpack.c.l.b16 %v5691
      %v5948 = vunpack.c.l.b16 %v5692
      %v5949 = vunpack.c.l.b16 %v5693
      %v5950 = vunpack.c.l.b16 %v5694
      %v5951 = vunpack.c.l.b16 %v5695
      %v5952 = vunpack.c.l.b16 %v5696
      %v5953 = vunpack.c.l.b16 %v5697
      %v5954 = vunpack.c.l.b16 %v5698
      %v5955 = vunpack.c.l.b16 %v5699
      %v5956 = vunpack.c.l.b16 %v5700
      %v5957 = vunpack.c.l.b16 %v5701
      %v5958 = vunpack.c.l.b16 %v5702
      %v5959 = vunpack.c.l.b16 %v5703
      %v5960 = vunpack.c.l.b16 %v5704
      %v5961 = vunpack.c.l.b16 %v5705
      %v5962 = vunpack.c.l.b16 %v5706
      %v5963 = vunpack.c.l.b16 %v5707
      %v5964 = vunpack.c.l.b16 %v5708
      %v5965 = vunpack.c.l.b16 %v5709
      %v5966 = vunpack.c.l.b16 %v5710
      %v5967 = vunpack.c.l.b16 %v5711
      %v5968 = vunpack.c.l.b16 %v5712
      %v5969 = vunpack.c.l.b16 %v5713
      %v5970 = vunpack.c.l.b16 %v5714
      %v5971 = vunpack.c.l.b16 %v5715
      %v5972 = vunpack.c.l.b16 %v5716
      %v5973 = vunpack.c.l.b16 %v5717
      %v5974 = vunpack.c.l.b16 %v5718
      %v5975 = vunpack.c.l.b16 %v5719
      %v5976 = vunpack.c.l.b16 %v5720
      %v5977 = vunpack.c.l.b16 %v5721
      %v5978 = vunpack.c.l.b16 %v5722
      %v5979 = vunpack.c.l.b16 %v5723
      %v5980 = vunpack.c.l.b16 %v5724
      %v5981 = vunpack.c.l.b16 %v5725
      %v5982 = vunpack.c.l.b16 %v5726
      %v5983 = vunpack.c.l.b16 %v5727
      %v5984 = vunpack.c.l.b16 %v5728
      %v5985 = vunpack.c.l.b16 %v5729
      %v5986 = vunpack.c.l.b16 %v5730
      %v5987 = vunpack.c.l.b16 %v5731
      %v5988 = vunpack.c.l.b16 %v5732
      %v5989 = vunpack.c.l.b16 %v5733
      %v5990 = vunpack.c.l.b16 %v5734
      %v5991 = vunpack.c.l.b16 %v5735
      %v5992 = vunpack.c.l.b16 %v5736
      %v5993 = vunpack.c.l.b16 %v5737
      %v5994 = vunpack.c.l.b16 %v5738
      %v5995 = vunpack.c.l.b16 %v5739
      %v5996 = vunpack.c.l.b16 %v5740
      %v5997 = vunpack.c.l.b16 %v5741
      %v5998 = vunpack.c.l.b16 %v5742
      %v5999 = vunpack.c.l.b16 %v5743
      %v6000 = vunpack.c.l.b16 %v5744
      %v6001 = vunpack.c.l.b16 %v5745
      %v6002 = vunpack.c.l.b16 %v5746
      %v6003 = vpack.c.b16 %v5876, %v5875
      %v6004 = vpack.c.b16 %v5878, %v5877
      %v6005 = vpack.c.b16 %v5880, %v5879
      %v6006 = vpack.c.b16 %v5882, %v5881
      %v6007 = vpack.c.b16 %v5884, %v5883
      %v6008 = vpack.c.b16 %v5886, %v5885
      %v6009 = vpack.c.b16 %v5888, %v5887
      %v6010 = vpack.c.b16 %v5890, %v5889
      %v6011 = vpack.c.b16 %v5892, %v5891
      %v6012 = vpack.c.b16 %v5894, %v5893
      %v6013 = vpack.c.b16 %v5896, %v5895
      %v6014 = vpack.c.b16 %v5898, %v5897
      %v6015 = vpack.c.b16 %v5900, %v5899
      %v6016 = vpack.c.b16 %v5902, %v5901
      %v6017 = vpack.c.b16 %v5904, %v5903
      %v6018 = vpack.c.b16 %v5906, %v5905
      %v6019 = vpack.c.b16 %v5908, %v5907
      %v6020 = vpack.c.b16 %v5910, %v5909
      %v6021 = vpack.c.b16 %v5912, %v5911
      %v6022 = vpack.c.b16 %v5914, %v5913
      %v6023 = vpack.c.b16 %v5916, %v5915
      %v6024 = vpack.c.b16 %v5918, %v5917
      %v6025 = vpack.c.b16 %v5920, %v5919
      %v6026 = vpack.c.b16 %v5922, %v5921
      %v6027 = vpack.c.b16 %v5924, %v5923
      %v6028 = vpack.c.b16 %v5926, %v5925
      %v6029 = vpack.c.b16 %v5928, %v5927
      %v6030 = vpack.c.b16 %v5930, %v5929
      %v6031 = vpack.c.b16 %v5932, %v5931
      %v6032 = vpack.c.b16 %v5934, %v5933
      %v6033 = vpack.c.b16 %v5936, %v5935
      %v6034 = vpack.c.b16 %v5938, %v5937
      %v6035 = vpack.c.b16 %v5940, %v5939
      %v6036 = vpack.c.b16 %v5942, %v5941
      %v6037 = vpack.c.b16 %v5944, %v5943
      %v6038 = vpack.c.b16 %v5946, %v5945
      %v6039 = vpack.c.b16 %v5948, %v5947
      %v6040 = vpack.c.b16 %v5950, %v5949
      %v6041 = vpack.c.b16 %v5952, %v5951
      %v6042 = vpack.c.b16 %v5954, %v5953
      %v6043 = vpack.c.b16 %v5956, %v5955
      %v6044 = vpack.c.b16 %v5958, %v5957
      %v6045 = vpack.c.b16 %v5960, %v5959
      %v6046 = vpack.c.b16 %v5962, %v5961
      %v6047 = vpack.c.b16 %v5964, %v5963
      %v6048 = vpack.c.b16 %v5966, %v5965
      %v6049 = vpack.c.b16 %v5968, %v5967
      %v6050 = vpack.c.b16 %v5970, %v5969
      %v6051 = vpack.c.b16 %v5972, %v5971
      %v6052 = vpack.c.b16 %v5974, %v5973
      %v6053 = vpack.c.b16 %v5976, %v5975
      %v6054 = vpack.c.b16 %v5978, %v5977
      %v6055 = vpack.c.b16 %v5980, %v5979
      %v6056 = vpack.c.b16 %v5982, %v5981
      %v6057 = vpack.c.b16 %v5984, %v5983
      %v6058 = vpack.c.b16 %v5986, %v5985
      %v6059 = vpack.c.b16 %v5988, %v5987
      %v6060 = vpack.c.b16 %v5990, %v5989
      %v6061 = vpack.c.b16 %v5992, %v5991
      %v6062 = vpack.c.b16 %v5994, %v5993
      %v6063 = vpack.c.b16 %v5996, %v5995
      %v6064 = vpack.c.b16 %v5998, %v5997
      %v6065 = vpack.c.b16 %v6000, %v5999
      %v6066 = vpack.c.b16 %v6002, %v6001
      %6131 = vmatprep.subr.bf16.mxu0 0
      %6132 = vmatpush1.bf16.msra.mxu0 %v6003
      %6133 = vmatprep.subr.bf16.mxu0 0
      %6134 = vmatpush1.bf16.msra.mxu0 %v6004
      %6135 = vmatprep.subr.bf16.mxu0 0
      %6136 = vmatpush1.bf16.msra.mxu0 %v6005
      %6137 = vmatprep.subr.bf16.mxu0 0
      %6138 = vmatpush1.bf16.msra.mxu0 %v6006
      %6139 = vmatprep.subr.bf16.mxu0 0
      %6140 = vmatpush1.bf16.msra.mxu0 %v6007
      %6141 = vmatprep.subr.bf16.mxu0 0
      %6142 = vmatpush1.bf16.msra.mxu0 %v6008
      %6143 = vmatprep.subr.bf16.mxu0 0
      %6144 = vmatpush1.bf16.msra.mxu0 %v6009
      %6145 = vmatprep.subr.bf16.mxu0 0
      %6146 = vmatpush1.bf16.msra.mxu0 %v6010
      %6147 = vmatprep.subr.bf16.mxu0 0
      %6148 = vmatpush1.bf16.msra.mxu0 %v6011
      %6149 = vmatprep.subr.bf16.mxu0 0
      %6150 = vmatpush1.bf16.msra.mxu0 %v6012
      %6151 = vmatprep.subr.bf16.mxu0 0
      %6152 = vmatpush1.bf16.msra.mxu0 %v6013
      %6153 = vmatprep.subr.bf16.mxu0 0
      %6154 = vmatpush1.bf16.msra.mxu0 %v6014
      %6155 = vmatprep.subr.bf16.mxu0 0
      %6156 = vmatpush1.bf16.msra.mxu0 %v6015
      %6157 = vmatprep.subr.bf16.mxu0 0
      %6158 = vmatpush1.bf16.msra.mxu0 %v6016
      %6159 = vmatprep.subr.bf16.mxu0 0
      %6160 = vmatpush1.bf16.msra.mxu0 %v6017
      %6161 = vmatprep.subr.bf16.mxu0 0
      %6162 = vmatpush1.bf16.msra.mxu0 %v6018
      %6163 = vmatprep.mubr.bf16.mxu0 %v4940
      %6164 = vmatmul.mubr.bf16.gmra.mrb[0].mxu0 %v4939
      %v6165 = vpop.f32.mrb[0].mxu0
      %v6166 = vadd.f32 0.0, %v6165
      %v6167 = vpop.f32.mrb[0].mxu0
      %v6168 = vpop.f32.mrb[0].mxu0
      %v6169 = vpop.f32.mrb[0].mxu0
      %6170 = vdwg.mxu0
      %6171 = vmatprep.subr.bf16.mxu0 0
      %6172 = vmatpush1.bf16.msra.mxu0 %v6019
      %6173 = vmatprep.subr.bf16.mxu0 0
      %6174 = vmatpush1.bf16.msra.mxu0 %v6020
      %6175 = vmatprep.subr.bf16.mxu0 0
      %6176 = vmatpush1.bf16.msra.mxu0 %v6021
      %6177 = vmatprep.subr.bf16.mxu0 0
      %6178 = vmatpush1.bf16.msra.mxu0 %v6022
      %6179 = vmatprep.subr.bf16.mxu0 0
      %6180 = vmatpush1.bf16.msra.mxu0 %v6023
      %6181 = vmatprep.subr.bf16.mxu0 0
      %6182 = vmatpush1.bf16.msra.mxu0 %v6024
      %6183 = vmatprep.subr.bf16.mxu0 0
      %6184 = vmatpush1.bf16.msra.mxu0 %v6025
      %6185 = vmatprep.subr.bf16.mxu0 0
      %6186 = vmatpush1.bf16.msra.mxu0 %v6026
      %6187 = vmatprep.subr.bf16.mxu0 0
      %6188 = vmatpush1.bf16.msra.mxu0 %v6027
      %6189 = vmatprep.subr.bf16.mxu0 0
      %6190 = vmatpush1.bf16.msra.mxu0 %v6028
      %6191 = vmatprep.subr.bf16.mxu0 0
      %6192 = vmatpush1.bf16.msra.mxu0 %v6029
      %6193 = vmatprep.subr.bf16.mxu0 0
      %6194 = vmatpush1.bf16.msra.mxu0 %v6030
      %6195 = vmatprep.subr.bf16.mxu0 0
      %6196 = vmatpush1.bf16.msra.mxu0 %v6031
      %6197 = vmatprep.subr.bf16.mxu0 0
      %6198 = vmatpush1.bf16.msra.mxu0 %v6032
      %6199 = vmatprep.subr.bf16.mxu0 0
      %6200 = vmatpush1.bf16.msra.mxu0 %v6033
      %6201 = vmatprep.subr.bf16.mxu0 0
      %6202 = vmatpush1.bf16.msra.mxu0 %v6034
      %6203 = vmatprep.mubr.bf16.mxu0 %v4942
      %6204 = vmatmul.mubr.bf16.gmra.mrb[0].mxu0 %v4941
      %v6205 = vpop.f32.mrb[0].mxu0
      %v6206 = vadd.f32 %v6166, %v6205
      %v6207 = vpop.f32.mrb[0].mxu0
      %v6208 = vpop.f32.mrb[0].mxu0
      %v6209 = vpop.f32.mrb[0].mxu0
      %6210 = vdwg.mxu0
      %6211 = vmatprep.subr.bf16.mxu0 0
      %6212 = vmatpush1.bf16.msra.mxu0 %v6035
      %6213 = vmatprep.subr.bf16.mxu0 0
      %6214 = vmatpush1.bf16.msra.mxu0 %v6036
      %6215 = vmatprep.subr.bf16.mxu0 0
      %6216 = vmatpush1.bf16.msra.mxu0 %v6037
      %6217 = vmatprep.subr.bf16.mxu0 0
      %6218 = vmatpush1.bf16.msra.mxu0 %v6038
      %6219 = vmatprep.subr.bf16.mxu0 0
      %6220 = vmatpush1.bf16.msra.mxu0 %v6039
      %6221 = vmatprep.subr.bf16.mxu0 0
      %6222 = vmatpush1.bf16.msra.mxu0 %v6040
      %6223 = vmatprep.subr.bf16.mxu0 0
      %6224 = vmatpush1.bf16.msra.mxu0 %v6041
      %6225 = vmatprep.subr.bf16.mxu0 0
      %6226 = vmatpush1.bf16.msra.mxu0 %v6042
      %6227 = vmatprep.subr.bf16.mxu0 0
      %6228 = vmatpush1.bf16.msra.mxu0 %v6043
      %6229 = vmatprep.subr.bf16.mxu0 0
      %6230 = vmatpush1.bf16.msra.mxu0 %v6044
      %6231 = vmatprep.subr.bf16.mxu0 0
      %6232 = vmatpush1.bf16.msra.mxu0 %v6045
      %6233 = vmatprep.subr.bf16.mxu0 0
      %6234 = vmatpush1.bf16.msra.mxu0 %v6046
      %6235 = vmatprep.subr.bf16.mxu0 0
      %6236 = vmatpush1.bf16.msra.mxu0 %v6047
      %6237 = vmatprep.subr.bf16.mxu0 0
      %6238 = vmatpush1.bf16.msra.mxu0 %v6048
      %6239 = vmatprep.subr.bf16.mxu0 0
      %6240 = vmatpush1.bf16.msra.mxu0 %v6049
      %6241 = vmatprep.subr.bf16.mxu0 0
      %6242 = vmatpush1.bf16.msra.mxu0 %v6050
      %6243 = vmatprep.mubr.bf16.mxu0 %v4944
      %6244 = vmatmul.mubr.bf16.gmra.mrb[0].mxu0 %v4943
      %v6245 = vpop.f32.mrb[0].mxu0
      %v6246 = vadd.f32 %v6206, %v6245
      %v6247 = vpop.f32.mrb[0].mxu0
      %v6248 = vpop.f32.mrb[0].mxu0
      %v6249 = vpop.f32.mrb[0].mxu0
      %6250 = vdwg.mxu0
      %6251 = vmatprep.subr.bf16.mxu0 0
      %6252 = vmatpush1.bf16.msra.mxu0 %v6051
      %6253 = vmatprep.subr.bf16.mxu0 0
      %6254 = vmatpush1.bf16.msra.mxu0 %v6052
      %6255 = vmatprep.subr.bf16.mxu0 0
      %6256 = vmatpush1.bf16.msra.mxu0 %v6053
      %6257 = vmatprep.subr.bf16.mxu0 0
      %6258 = vmatpush1.bf16.msra.mxu0 %v6054
      %6259 = vmatprep.subr.bf16.mxu0 0
      %6260 = vmatpush1.bf16.msra.mxu0 %v6055
      %6261 = vmatprep.subr.bf16.mxu0 0
      %6262 = vmatpush1.bf16.msra.mxu0 %v6056
      %6263 = vmatprep.subr.bf16.mxu0 0
      %6264 = vmatpush1.bf16.msra.mxu0 %v6057
      %6265 = vmatprep.subr.bf16.mxu0 0
      %6266 = vmatpush1.bf16.msra.mxu0 %v6058
      %6267 = vmatprep.subr.bf16.mxu0 0
      %6268 = vmatpush1.bf16.msra.mxu0 %v6059
      %6269 = vmatprep.subr.bf16.mxu0 0
      %6270 = vmatpush1.bf16.msra.mxu0 %v6060
      %6271 = vmatprep.subr.bf16.mxu0 0
      %6272 = vmatpush1.bf16.msra.mxu0 %v6061
      %6273 = vmatprep.subr.bf16.mxu0 0
      %6274 = vmatpush1.bf16.msra.mxu0 %v6062
      %6275 = vmatprep.subr.bf16.mxu0 0
      %6276 = vmatpush1.bf16.msra.mxu0 %v6063
      %6277 = vmatprep.subr.bf16.mxu0 0
      %6278 = vmatpush1.bf16.msra.mxu0 %v6064
      %6279 = vmatprep.subr.bf16.mxu0 0
      %6280 = vmatpush1.bf16.msra.mxu0 %v6065
      %6281 = vmatprep.subr.bf16.mxu0 0
      %6282 = vmatpush1.bf16.msra.mxu0 %v6066
      %6283 = vmatprep.mubr.bf16.mxu0 %v4946
      %6284 = vmatmul.mubr.bf16.gmra.mrb[0].mxu0 %v4945
      %v6285 = vpop.f32.mrb[0].mxu0
      %v6286 = vadd.f32 %v6246, %v6285
      %v6287 = vpop.f32.mrb[0].mxu0
      %v6288 = vpop.f32.mrb[0].mxu0
      %v6289 = vpop.f32.mrb[0].mxu0
      %6290 = vdwg.mxu0
      %v6291 = vld [vmem:[%s8] sm:$0xf]
      %v6292 = vld [vmem:[%s8 + $0x4] sm:$0xf]
      %v6293 = vld [vmem:[%s8 + $0x8] sm:$0xf]
      %v6294 = vld [vmem:[%s8 + $0xc] sm:$0xf]
      %v6295 = vld [vmem:[%s8 + $0x10] sm:$0xf]
      %v6296 = vld [vmem:[%s8 + $0x14] sm:$0xf]
      %v6297 = vld [vmem:[%s8 + $0x18] sm:$0xf]
      %v6298 = vld [vmem:[%s8 + $0x1c] sm:$0xf]
      %v6299 = vld [vmem:[%s8 + $0x20] sm:$0xf]
      %v6300 = vld [vmem:[%s8 + $0x24] sm:$0xf]
      %v6301 = vld [vmem:[%s8 + $0x28] sm:$0xf]
      %v6302 = vld [vmem:[%s8 + $0x2c] sm:$0xf]
      %v6303 = vld [vmem:[%s8 + $0x30] sm:$0xf]
      %v6304 = vld [vmem:[%s8 + $0x34] sm:$0xf]
      %v6305 = vld [vmem:[%s8 + $0x38] sm:$0xf]
      %v6306 = vld [vmem:[%s8 + $0x3c] sm:$0xf]
      %v6307 = vld [vmem:[%s8 + $0x40] sm:$0xf]
      %v6308 = vld [vmem:[%s8 + $0x44] sm:$0xf]
      %v6309 = vld [vmem:[%s8 + $0x48] sm:$0xf]
      %v6310 = vld [vmem:[%s8 + $0x4c] sm:$0xf]
      %v6311 = vld [vmem:[%s8 + $0x50] sm:$0xf]
      %v6312 = vld [vmem:[%s8 + $0x54] sm:$0xf]
      %v6313 = vld [vmem:[%s8 + $0x58] sm:$0xf]
      %v6314 = vld [vmem:[%s8 + $0x5c] sm:$0xf]
      %v6315 = vld [vmem:[%s8 + $0x60] sm:$0xf]
      %v6316 = vld [vmem:[%s8 + $0x64] sm:$0xf]
      %v6317 = vld [vmem:[%s8 + $0x68] sm:$0xf]
      %v6318 = vld [vmem:[%s8 + $0x6c] sm:$0xf]
      %v6319 = vld [vmem:[%s8 + $0x70] sm:$0xf]
      %v6320 = vld [vmem:[%s8 + $0x74] sm:$0xf]
      %v6321 = vld [vmem:[%s8 + $0x78] sm:$0xf]
      %v6322 = vld [vmem:[%s8 + $0x7c] sm:$0xf]
      %v6323 = vld [vmem:[%s8 + $0x80] sm:$0xf]
      %v6324 = vld [vmem:[%s8 + $0x84] sm:$0xf]
      %v6325 = vld [vmem:[%s8 + $0x88] sm:$0xf]
      %v6326 = vld [vmem:[%s8 + $0x8c] sm:$0xf]
      %v6327 = vld [vmem:[%s8 + $0x90] sm:$0xf]
      %v6328 = vld [vmem:[%s8 + $0x94] sm:$0xf]
      %v6329 = vld [vmem:[%s8 + $0x98] sm:$0xf]
      %v6330 = vld [vmem:[%s8 + $0x9c] sm:$0xf]
      %v6331 = vld [vmem:[%s8 + $0xa0] sm:$0xf]
      %v6332 = vld [vmem:[%s8 + $0xa4] sm:$0xf]
      %v6333 = vld [vmem:[%s8 + $0xa8] sm:$0xf]
      %v6334 = vld [vmem:[%s8 + $0xac] sm:$0xf]
      %v6335 = vld [vmem:[%s8 + $0xb0] sm:$0xf]
      %v6336 = vld [vmem:[%s8 + $0xb4] sm:$0xf]
      %v6337 = vld [vmem:[%s8 + $0xb8] sm:$0xf]
      %v6338 = vld [vmem:[%s8 + $0xbc] sm:$0xf]
      %v6339 = vld [vmem:[%s8 + $0xc0] sm:$0xf]
      %v6340 = vld [vmem:[%s8 + $0xc4] sm:$0xf]
      %v6341 = vld [vmem:[%s8 + $0xc8] sm:$0xf]
      %v6342 = vld [vmem:[%s8 + $0xcc] sm:$0xf]
      %v6343 = vld [vmem:[%s8 + $0xd0] sm:$0xf]
      %v6344 = vld [vmem:[%s8 + $0xd4] sm:$0xf]
      %v6345 = vld [vmem:[%s8 + $0xd8] sm:$0xf]
      %v6346 = vld [vmem:[%s8 + $0xdc] sm:$0xf]
      %v6347 = vld [vmem:[%s8 + $0xe0] sm:$0xf]
      %v6348 = vld [vmem:[%s8 + $0xe4] sm:$0xf]
      %v6349 = vld [vmem:[%s8 + $0xe8] sm:$0xf]
      %v6350 = vld [vmem:[%s8 + $0xec] sm:$0xf]
      %v6351 = vld [vmem:[%s8 + $0xf0] sm:$0xf]
      %v6352 = vld [vmem:[%s8 + $0xf4] sm:$0xf]
      %v6353 = vld [vmem:[%s8 + $0xf8] sm:$0xf]
      %v6354 = vld [vmem:[%s8 + $0xfc] sm:$0xf]
      %v6355 = vld [vmem:[%s8 + $0x100] sm:$0xf]
      %v6356 = vld [vmem:[%s8 + $0x104] sm:$0xf]
      %v6357 = vld [vmem:[%s8 + $0x108] sm:$0xf]
      %v6358 = vld [vmem:[%s8 + $0x10c] sm:$0xf]
      %v6359 = vld [vmem:[%s8 + $0x110] sm:$0xf]
      %v6360 = vld [vmem:[%s8 + $0x114] sm:$0xf]
      %v6361 = vld [vmem:[%s8 + $0x118] sm:$0xf]
      %v6362 = vld [vmem:[%s8 + $0x11c] sm:$0xf]
      %v6363 = vld [vmem:[%s8 + $0x120] sm:$0xf]
      %v6364 = vld [vmem:[%s8 + $0x124] sm:$0xf]
      %v6365 = vld [vmem:[%s8 + $0x128] sm:$0xf]
      %v6366 = vld [vmem:[%s8 + $0x12c] sm:$0xf]
      %v6367 = vld [vmem:[%s8 + $0x130] sm:$0xf]
      %v6368 = vld [vmem:[%s8 + $0x134] sm:$0xf]
      %v6369 = vld [vmem:[%s8 + $0x138] sm:$0xf]
      %v6370 = vld [vmem:[%s8 + $0x13c] sm:$0xf]
      %v6371 = vld [vmem:[%s8 + $0x140] sm:$0xf]
      %v6372 = vld [vmem:[%s8 + $0x144] sm:$0xf]
      %v6373 = vld [vmem:[%s8 + $0x148] sm:$0xf]
      %v6374 = vld [vmem:[%s8 + $0x14c] sm:$0xf]
      %v6375 = vld [vmem:[%s8 + $0x150] sm:$0xf]
      %v6376 = vld [vmem:[%s8 + $0x154] sm:$0xf]
      %v6377 = vld [vmem:[%s8 + $0x158] sm:$0xf]
      %v6378 = vld [vmem:[%s8 + $0x15c] sm:$0xf]
      %v6379 = vld [vmem:[%s8 + $0x160] sm:$0xf]
      %v6380 = vld [vmem:[%s8 + $0x164] sm:$0xf]
      %v6381 = vld [vmem:[%s8 + $0x168] sm:$0xf]
      %v6382 = vld [vmem:[%s8 + $0x16c] sm:$0xf]
      %v6383 = vld [vmem:[%s8 + $0x170] sm:$0xf]
      %v6384 = vld [vmem:[%s8 + $0x174] sm:$0xf]
      %v6385 = vld [vmem:[%s8 + $0x178] sm:$0xf]
      %v6386 = vld [vmem:[%s8 + $0x17c] sm:$0xf]
      %v6387 = vld [vmem:[%s8 + $0x180] sm:$0xf]
      %v6388 = vld [vmem:[%s8 + $0x184] sm:$0xf]
      %v6389 = vld [vmem:[%s8 + $0x188] sm:$0xf]
      %v6390 = vld [vmem:[%s8 + $0x18c] sm:$0xf]
      %v6391 = vld [vmem:[%s8 + $0x190] sm:$0xf]
      %v6392 = vld [vmem:[%s8 + $0x194] sm:$0xf]
      %v6393 = vld [vmem:[%s8 + $0x198] sm:$0xf]
      %v6394 = vld [vmem:[%s8 + $0x19c] sm:$0xf]
      %v6395 = vld [vmem:[%s8 + $0x1a0] sm:$0xf]
      %v6396 = vld [vmem:[%s8 + $0x1a4] sm:$0xf]
      %v6397 = vld [vmem:[%s8 + $0x1a8] sm:$0xf]
      %v6398 = vld [vmem:[%s8 + $0x1ac] sm:$0xf]
      %v6399 = vld [vmem:[%s8 + $0x1b0] sm:$0xf]
      %v6400 = vld [vmem:[%s8 + $0x1b4] sm:$0xf]
      %v6401 = vld [vmem:[%s8 + $0x1b8] sm:$0xf]
      %v6402 = vld [vmem:[%s8 + $0x1bc] sm:$0xf]
      %v6403 = vld [vmem:[%s8 + $0x1c0] sm:$0xf]
      %v6404 = vld [vmem:[%s8 + $0x1c4] sm:$0xf]
      %v6405 = vld [vmem:[%s8 + $0x1c8] sm:$0xf]
      %v6406 = vld [vmem:[%s8 + $0x1cc] sm:$0xf]
      %v6407 = vld [vmem:[%s8 + $0x1d0] sm:$0xf]
      %v6408 = vld [vmem:[%s8 + $0x1d4] sm:$0xf]
      %v6409 = vld [vmem:[%s8 + $0x1d8] sm:$0xf]
      %v6410 = vld [vmem:[%s8 + $0x1dc] sm:$0xf]
      %v6411 = vld [vmem:[%s8 + $0x1e0] sm:$0xf]
      %v6412 = vld [vmem:[%s8 + $0x1e4] sm:$0xf]
      %v6413 = vld [vmem:[%s8 + $0x1e8] sm:$0xf]
      %v6414 = vld [vmem:[%s8 + $0x1ec] sm:$0xf]
      %v6415 = vld [vmem:[%s8 + $0x1f0] sm:$0xf]
      %v6416 = vld [vmem:[%s8 + $0x1f4] sm:$0xf]
      %v6417 = vld [vmem:[%s8 + $0x1f8] sm:$0xf]
      %v6418 = vld [vmem:[%s8 + $0x1fc] sm:$0xf]
      %v6547 = vunpack.c.l.b16 %v6291
      %v6548 = vunpack.c.l.b16 %v6292
      %v6549 = vunpack.c.l.b16 %v6293
      %v6550 = vunpack.c.l.b16 %v6294
      %v6551 = vunpack.c.l.b16 %v6295
      %v6552 = vunpack.c.l.b16 %v6296
      %v6553 = vunpack.c.l.b16 %v6297
      %v6554 = vunpack.c.l.b16 %v6298
      %v6555 = vunpack.c.l.b16 %v6299
      %v6556 = vunpack.c.l.b16 %v6300
      %v6557 = vunpack.c.l.b16 %v6301
      %v6558 = vunpack.c.l.b16 %v6302
      %v6559 = vunpack.c.l.b16 %v6303
      %v6560 = vunpack.c.l.b16 %v6304
      %v6561 = vunpack.c.l.b16 %v6305
      %v6562 = vunpack.c.l.b16 %v6306
      %v6563 = vunpack.c.l.b16 %v6307
      %v6564 = vunpack.c.l.b16 %v6308
      %v6565 = vunpack.c.l.b16 %v6309
      %v6566 = vunpack.c.l.b16 %v6310
      %v6567 = vunpack.c.l.b16 %v6311
      %v6568 = vunpack.c.l.b16 %v6312
      %v6569 = vunpack.c.l.b16 %v6313
      %v6570 = vunpack.c.l.b16 %v6314
      %v6571 = vunpack.c.l.b16 %v6315
      %v6572 = vunpack.c.l.b16 %v6316
      %v6573 = vunpack.c.l.b16 %v6317
      %v6574 = vunpack.c.l.b16 %v6318
      %v6575 = vunpack.c.l.b16 %v6319
      %v6576 = vunpack.c.l.b16 %v6320
      %v6577 = vunpack.c.l.b16 %v6321
      %v6578 = vunpack.c.l.b16 %v6322
      %v6579 = vunpack.c.l.b16 %v6323
      %v6580 = vunpack.c.l.b16 %v6324
      %v6581 = vunpack.c.l.b16 %v6325
      %v6582 = vunpack.c.l.b16 %v6326
      %v6583 = vunpack.c.l.b16 %v6327
      %v6584 = vunpack.c.l.b16 %v6328
      %v6585 = vunpack.c.l.b16 %v6329
      %v6586 = vunpack.c.l.b16 %v6330
      %v6587 = vunpack.c.l.b16 %v6331
      %v6588 = vunpack.c.l.b16 %v6332
      %v6589 = vunpack.c.l.b16 %v6333
      %v6590 = vunpack.c.l.b16 %v6334
      %v6591 = vunpack.c.l.b16 %v6335
      %v6592 = vunpack.c.l.b16 %v6336
      %v6593 = vunpack.c.l.b16 %v6337
      %v6594 = vunpack.c.l.b16 %v6338
      %v6595 = vunpack.c.l.b16 %v6339
      %v6596 = vunpack.c.l.b16 %v6340
      %v6597 = vunpack.c.l.b16 %v6341
      %v6598 = vunpack.c.l.b16 %v6342
      %v6599 = vunpack.c.l.b16 %v6343
      %v6600 = vunpack.c.l.b16 %v6344
      %v6601 = vunpack.c.l.b16 %v6345
      %v6602 = vunpack.c.l.b16 %v6346
      %v6603 = vunpack.c.l.b16 %v6347
      %v6604 = vunpack.c.l.b16 %v6348
      %v6605 = vunpack.c.l.b16 %v6349
      %v6606 = vunpack.c.l.b16 %v6350
      %v6607 = vunpack.c.l.b16 %v6351
      %v6608 = vunpack.c.l.b16 %v6352
      %v6609 = vunpack.c.l.b16 %v6353
      %v6610 = vunpack.c.l.b16 %v6354
      %v6611 = vunpack.c.l.b16 %v6355
      %v6612 = vunpack.c.l.b16 %v6356
      %v6613 = vunpack.c.l.b16 %v6357
      %v6614 = vunpack.c.l.b16 %v6358
      %v6615 = vunpack.c.l.b16 %v6359
      %v6616 = vunpack.c.l.b16 %v6360
      %v6617 = vunpack.c.l.b16 %v6361
      %v6618 = vunpack.c.l.b16 %v6362
      %v6619 = vunpack.c.l.b16 %v6363
      %v6620 = vunpack.c.l.b16 %v6364
      %v6621 = vunpack.c.l.b16 %v6365
      %v6622 = vunpack.c.l.b16 %v6366
      %v6623 = vunpack.c.l.b16 %v6367
      %v6624 = vunpack.c.l.b16 %v6368
      %v6625 = vunpack.c.l.b16 %v6369
      %v6626 = vunpack.c.l.b16 %v6370
      %v6627 = vunpack.c.l.b16 %v6371
      %v6628 = vunpack.c.l.b16 %v6372
      %v6629 = vunpack.c.l.b16 %v6373
      %v6630 = vunpack.c.l.b16 %v6374
      %v6631 = vunpack.c.l.b16 %v6375
      %v6632 = vunpack.c.l.b16 %v6376
      %v6633 = vunpack.c.l.b16 %v6377
      %v6634 = vunpack.c.l.b16 %v6378
      %v6635 = vunpack.c.l.b16 %v6379
      %v6636 = vunpack.c.l.b16 %v6380
      %v6637 = vunpack.c.l.b16 %v6381
      %v6638 = vunpack.c.l.b16 %v6382
      %v6639 = vunpack.c.l.b16 %v6383
      %v6640 = vunpack.c.l.b16 %v6384
      %v6641 = vunpack.c.l.b16 %v6385
      %v6642 = vunpack.c.l.b16 %v6386
      %v6643 = vunpack.c.l.b16 %v6387
      %v6644 = vunpack.c.l.b16 %v6388
      %v6645 = vunpack.c.l.b16 %v6389
      %v6646 = vunpack.c.l.b16 %v6390
      %v6647 = vunpack.c.l.b16 %v6391
      %v6648 = vunpack.c.l.b16 %v6392
      %v6649 = vunpack.c.l.b16 %v6393
      %v6650 = vunpack.c.l.b16 %v6394
      %v6651 = vunpack.c.l.b16 %v6395
      %v6652 = vunpack.c.l.b16 %v6396
      %v6653 = vunpack.c.l.b16 %v6397
      %v6654 = vunpack.c.l.b16 %v6398
      %v6655 = vunpack.c.l.b16 %v6399
      %v6656 = vunpack.c.l.b16 %v6400
      %v6657 = vunpack.c.l.b16 %v6401
      %v6658 = vunpack.c.l.b16 %v6402
      %v6659 = vunpack.c.l.b16 %v6403
      %v6660 = vunpack.c.l.b16 %v6404
      %v6661 = vunpack.c.l.b16 %v6405
      %v6662 = vunpack.c.l.b16 %v6406
      %v6663 = vunpack.c.l.b16 %v6407
      %v6664 = vunpack.c.l.b16 %v6408
      %v6665 = vunpack.c.l.b16 %v6409
      %v6666 = vunpack.c.l.b16 %v6410
      %v6667 = vunpack.c.l.b16 %v6411
      %v6668 = vunpack.c.l.b16 %v6412
      %v6669 = vunpack.c.l.b16 %v6413
      %v6670 = vunpack.c.l.b16 %v6414
      %v6671 = vunpack.c.l.b16 %v6415
      %v6672 = vunpack.c.l.b16 %v6416
      %v6673 = vunpack.c.l.b16 %v6417
      %v6674 = vunpack.c.l.b16 %v6418
      %v6675 = vpack.c.b16 %v6548, %v6547
      %v6676 = vpack.c.b16 %v6550, %v6549
      %v6677 = vpack.c.b16 %v6552, %v6551
      %v6678 = vpack.c.b16 %v6554, %v6553
      %v6679 = vpack.c.b16 %v6556, %v6555
      %v6680 = vpack.c.b16 %v6558, %v6557
      %v6681 = vpack.c.b16 %v6560, %v6559
      %v6682 = vpack.c.b16 %v6562, %v6561
      %v6683 = vpack.c.b16 %v6564, %v6563
      %v6684 = vpack.c.b16 %v6566, %v6565
      %v6685 = vpack.c.b16 %v6568, %v6567
      %v6686 = vpack.c.b16 %v6570, %v6569
      %v6687 = vpack.c.b16 %v6572, %v6571
      %v6688 = vpack.c.b16 %v6574, %v6573
      %v6689 = vpack.c.b16 %v6576, %v6575
      %v6690 = vpack.c.b16 %v6578, %v6577
      %v6691 = vpack.c.b16 %v6580, %v6579
      %v6692 = vpack.c.b16 %v6582, %v6581
      %v6693 = vpack.c.b16 %v6584, %v6583
      %v6694 = vpack.c.b16 %v6586, %v6585
      %v6695 = vpack.c.b16 %v6588, %v6587
      %v6696 = vpack.c.b16 %v6590, %v6589
      %v6697 = vpack.c.b16 %v6592, %v6591
      %v6698 = vpack.c.b16 %v6594, %v6593
      %v6699 = vpack.c.b16 %v6596, %v6595
      %v6700 = vpack.c.b16 %v6598, %v6597
      %v6701 = vpack.c.b16 %v6600, %v6599
      %v6702 = vpack.c.b16 %v6602, %v6601
      %v6703 = vpack.c.b16 %v6604, %v6603
      %v6704 = vpack.c.b16 %v6606, %v6605
      %v6705 = vpack.c.b16 %v6608, %v6607
      %v6706 = vpack.c.b16 %v6610, %v6609
      %v6707 = vpack.c.b16 %v6612, %v6611
      %v6708 = vpack.c.b16 %v6614, %v6613
      %v6709 = vpack.c.b16 %v6616, %v6615
      %v6710 = vpack.c.b16 %v6618, %v6617
      %v6711 = vpack.c.b16 %v6620, %v6619
      %v6712 = vpack.c.b16 %v6622, %v6621
      %v6713 = vpack.c.b16 %v6624, %v6623
      %v6714 = vpack.c.b16 %v6626, %v6625
      %v6715 = vpack.c.b16 %v6628, %v6627
      %v6716 = vpack.c.b16 %v6630, %v6629
      %v6717 = vpack.c.b16 %v6632, %v6631
      %v6718 = vpack.c.b16 %v6634, %v6633
      %v6719 = vpack.c.b16 %v6636, %v6635
      %v6720 = vpack.c.b16 %v6638, %v6637
      %v6721 = vpack.c.b16 %v6640, %v6639
      %v6722 = vpack.c.b16 %v6642, %v6641
      %v6723 = vpack.c.b16 %v6644, %v6643
      %v6724 = vpack.c.b16 %v6646, %v6645
      %v6725 = vpack.c.b16 %v6648, %v6647
      %v6726 = vpack.c.b16 %v6650, %v6649
      %v6727 = vpack.c.b16 %v6652, %v6651
      %v6728 = vpack.c.b16 %v6654, %v6653
      %v6729 = vpack.c.b16 %v6656, %v6655
      %v6730 = vpack.c.b16 %v6658, %v6657
      %v6731 = vpack.c.b16 %v6660, %v6659
      %v6732 = vpack.c.b16 %v6662, %v6661
      %v6733 = vpack.c.b16 %v6664, %v6663
      %v6734 = vpack.c.b16 %v6666, %v6665
      %v6735 = vpack.c.b16 %v6668, %v6667
      %v6736 = vpack.c.b16 %v6670, %v6669
      %v6737 = vpack.c.b16 %v6672, %v6671
      %v6738 = vpack.c.b16 %v6674, %v6673
      %6803 = vmatprep.subr.bf16.mxu0 0
      %6804 = vmatpush1.bf16.msra.mxu0 %v6675
      %6805 = vmatprep.subr.bf16.mxu0 0
      %6806 = vmatpush1.bf16.msra.mxu0 %v6676
      %6807 = vmatprep.subr.bf16.mxu0 0
      %6808 = vmatpush1.bf16.msra.mxu0 %v6677
      %6809 = vmatprep.subr.bf16.mxu0 0
      %6810 = vmatpush1.bf16.msra.mxu0 %v6678
      %6811 = vmatprep.subr.bf16.mxu0 0
      %6812 = vmatpush1.bf16.msra.mxu0 %v6679
      %6813 = vmatprep.subr.bf16.mxu0 0
      %6814 = vmatpush1.bf16.msra.mxu0 %v6680
      %6815 = vmatprep.subr.bf16.mxu0 0
      %6816 = vmatpush1.bf16.msra.mxu0 %v6681
      %6817 = vmatprep.subr.bf16.mxu0 0
      %6818 = vmatpush1.bf16.msra.mxu0 %v6682
      %6819 = vmatprep.subr.bf16.mxu0 0
      %6820 = vmatpush1.bf16.msra.mxu0 %v6683
      %6821 = vmatprep.subr.bf16.mxu0 0
      %6822 = vmatpush1.bf16.msra.mxu0 %v6684
      %6823 = vmatprep.subr.bf16.mxu0 0
      %6824 = vmatpush1.bf16.msra.mxu0 %v6685
      %6825 = vmatprep.subr.bf16.mxu0 0
      %6826 = vmatpush1.bf16.msra.mxu0 %v6686
      %6827 = vmatprep.subr.bf16.mxu0 0
      %6828 = vmatpush1.bf16.msra.mxu0 %v6687
      %6829 = vmatprep.subr.bf16.mxu0 0
      %6830 = vmatpush1.bf16.msra.mxu0 %v6688
      %6831 = vmatprep.subr.bf16.mxu0 0
      %6832 = vmatpush1.bf16.msra.mxu0 %v6689
      %6833 = vmatprep.subr.bf16.mxu0 0
      %6834 = vmatpush1.bf16.msra.mxu0 %v6690
      %6835 = vmatprep.mubr.bf16.mxu0 %v4940
      %6836 = vmatmul.mubr.bf16.gmra.mrb[0].mxu0 %v4939
      %v6837 = vpop.f32.mrb[0].mxu0
      %v6838 = vadd.f32 0.0, %v6837
      %v6839 = vpop.f32.mrb[0].mxu0
      %v6840 = vpop.f32.mrb[0].mxu0
      %v6841 = vpop.f32.mrb[0].mxu0
      %6842 = vdwg.mxu0
      %6843 = vmatprep.subr.bf16.mxu0 0
      %6844 = vmatpush1.bf16.msra.mxu0 %v6691
      %6845 = vmatprep.subr.bf16.mxu0 0
      %6846 = vmatpush1.bf16.msra.mxu0 %v6692
      %6847 = vmatprep.subr.bf16.mxu0 0
      %6848 = vmatpush1.bf16.msra.mxu0 %v6693
      %6849 = vmatprep.subr.bf16.mxu0 0
      %6850 = vmatpush1.bf16.msra.mxu0 %v6694
      %6851 = vmatprep.subr.bf16.mxu0 0
      %6852 = vmatpush1.bf16.msra.mxu0 %v6695
      %6853 = vmatprep.subr.bf16.mxu0 0
      %6854 = vmatpush1.bf16.msra.mxu0 %v6696
      %6855 = vmatprep.subr.bf16.mxu0 0
      %6856 = vmatpush1.bf16.msra.mxu0 %v6697
      %6857 = vmatprep.subr.bf16.mxu0 0
      %6858 = vmatpush1.bf16.msra.mxu0 %v6698
      %6859 = vmatprep.subr.bf16.mxu0 0
      %6860 = vmatpush1.bf16.msra.mxu0 %v6699
      %6861 = vmatprep.subr.bf16.mxu0 0
      %6862 = vmatpush1.bf16.msra.mxu0 %v6700
      %6863 = vmatprep.subr.bf16.mxu0 0
      %6864 = vmatpush1.bf16.msra.mxu0 %v6701
      %6865 = vmatprep.subr.bf16.mxu0 0
      %6866 = vmatpush1.bf16.msra.mxu0 %v6702
      %6867 = vmatprep.subr.bf16.mxu0 0
      %6868 = vmatpush1.bf16.msra.mxu0 %v6703
      %6869 = vmatprep.subr.bf16.mxu0 0
      %6870 = vmatpush1.bf16.msra.mxu0 %v6704
      %6871 = vmatprep.subr.bf16.mxu0 0
      %6872 = vmatpush1.bf16.msra.mxu0 %v6705
      %6873 = vmatprep.subr.bf16.mxu0 0
      %6874 = vmatpush1.bf16.msra.mxu0 %v6706
      %6875 = vmatprep.mubr.bf16.mxu0 %v4942
      %6876 = vmatmul.mubr.bf16.gmra.mrb[0].mxu0 %v4941
      %v6877 = vpop.f32.mrb[0].mxu0
      %v6878 = vadd.f32 %v6838, %v6877
      %v6879 = vpop.f32.mrb[0].mxu0
      %v6880 = vpop.f32.mrb[0].mxu0
      %v6881 = vpop.f32.mrb[0].mxu0
      %6882 = vdwg.mxu0
      %6883 = vmatprep.subr.bf16.mxu0 0
      %6884 = vmatpush1.bf16.msra.mxu0 %v6707
      %6885 = vmatprep.subr.bf16.mxu0 0
      %6886 = vmatpush1.bf16.msra.mxu0 %v6708
      %6887 = vmatprep.subr.bf16.mxu0 0
      %6888 = vmatpush1.bf16.msra.mxu0 %v6709
      %6889 = vmatprep.subr.bf16.mxu0 0
      %6890 = vmatpush1.bf16.msra.mxu0 %v6710
      %6891 = vmatprep.subr.bf16.mxu0 0
      %6892 = vmatpush1.bf16.msra.mxu0 %v6711
      %6893 = vmatprep.subr.bf16.mxu0 0
      %6894 = vmatpush1.bf16.msra.mxu0 %v6712
      %6895 = vmatprep.subr.bf16.mxu0 0
      %6896 = vmatpush1.bf16.msra.mxu0 %v6713
      %6897 = vmatprep.subr.bf16.mxu0 0
      %6898 = vmatpush1.bf16.msra.mxu0 %v6714
      %6899 = vmatprep.subr.bf16.mxu0 0
      %6900 = vmatpush1.bf16.msra.mxu0 %v6715
      %6901 = vmatprep.subr.bf16.mxu0 0
      %6902 = vmatpush1.bf16.msra.mxu0 %v6716
      %6903 = vmatprep.subr.bf16.mxu0 0
      %6904 = vmatpush1.bf16.msra.mxu0 %v6717
      %6905 = vmatprep.subr.bf16.mxu0 0
      %6906 = vmatpush1.bf16.msra.mxu0 %v6718
      %6907 = vmatprep.subr.bf16.mxu0 0
      %6908 = vmatpush1.bf16.msra.mxu0 %v6719
      %6909 = vmatprep.subr.bf16.mxu0 0
      %6910 = vmatpush1.bf16.msra.mxu0 %v6720
      %6911 = vmatprep.subr.bf16.mxu0 0
      %6912 = vmatpush1.bf16.msra.mxu0 %v6721
      %6913 = vmatprep.subr.bf16.mxu0 0
      %6914 = vmatpush1.bf16.msra.mxu0 %v6722
      %6915 = vmatprep.mubr.bf16.mxu0 %v4944
      %6916 = vmatmul.mubr.bf16.gmra.mrb[0].mxu0 %v4943
      %v6917 = vpop.f32.mrb[0].mxu0
      %v6918 = vadd.f32 %v6878, %v6917
      %v6919 = vpop.f32.mrb[0].mxu0
      %v6920 = vpop.f32.mrb[0].mxu0
      %v6921 = vpop.f32.mrb[0].mxu0
      %6922 = vdwg.mxu0
      %6923 = vmatprep.subr.bf16.mxu0 0
      %6924 = vmatpush1.bf16.msra.mxu0 %v6723
      %6925 = vmatprep.subr.bf16.mxu0 0
      %6926 = vmatpush1.bf16.msra.mxu0 %v6724
      %6927 = vmatprep.subr.bf16.mxu0 0
      %6928 = vmatpush1.bf16.msra.mxu0 %v6725
      %6929 = vmatprep.subr.bf16.mxu0 0
      %6930 = vmatpush1.bf16.msra.mxu0 %v6726
      %6931 = vmatprep.subr.bf16.mxu0 0
      %6932 = vmatpush1.bf16.msra.mxu0 %v6727
      %6933 = vmatprep.subr.bf16.mxu0 0
      %6934 = vmatpush1.bf16.msra.mxu0 %v6728
      %6935 = vmatprep.subr.bf16.mxu0 0
      %6936 = vmatpush1.bf16.msra.mxu0 %v6729
      %6937 = vmatprep.subr.bf16.mxu0 0
      %6938 = vmatpush1.bf16.msra.mxu0 %v6730
      %6939 = vmatprep.subr.bf16.mxu0 0
      %6940 = vmatpush1.bf16.msra.mxu0 %v6731
      %6941 = vmatprep.subr.bf16.mxu0 0
      %6942 = vmatpush1.bf16.msra.mxu0 %v6732
      %6943 = vmatprep.subr.bf16.mxu0 0
      %6944 = vmatpush1.bf16.msra.mxu0 %v6733
      %6945 = vmatprep.subr.bf16.mxu0 0
      %6946 = vmatpush1.bf16.msra.mxu0 %v6734
      %6947 = vmatprep.subr.bf16.mxu0 0
      %6948 = vmatpush1.bf16.msra.mxu0 %v6735
      %6949 = vmatprep.subr.bf16.mxu0 0
      %6950 = vmatpush1.bf16.msra.mxu0 %v6736
      %6951 = vmatprep.subr.bf16.mxu0 0
      %6952 = vmatpush1.bf16.msra.mxu0 %v6737
      %6953 = vmatprep.subr.bf16.mxu0 0
      %6954 = vmatpush1.bf16.msra.mxu0 %v6738
      %6955 = vmatprep.mubr.bf16.mxu0 %v4946
      %6956 = vmatmul.mubr.bf16.gmra.mrb[0].mxu0 %v4945
      %v6957 = vpop.f32.mrb[0].mxu0
      %v6958 = vadd.f32 %v6918, %v6957
      %v6959 = vpop.f32.mrb[0].mxu0
      %v6960 = vpop.f32.mrb[0].mxu0
      %v6961 = vpop.f32.mrb[0].mxu0
      %6962 = vdwg.mxu0
      %v6963 = vpack.c.bf16 %v5614, %v5614
      %v6964 = vld [vmem:[%s9] sm:$0xff]
      %v6965 = vld [vmem:[%s9 + $0x8] sm:$0xff]
      %v6966 = vld [vmem:[%s9 + $0x10] sm:$0xff]
      %v6967 = vld [vmem:[%s9 + $0x18] sm:$0xff]
      %v6968 = vld [vmem:[%s9 + $0x20] sm:$0xff]
      %v6969 = vld [vmem:[%s9 + $0x28] sm:$0xff]
      %v6970 = vld [vmem:[%s9 + $0x30] sm:$0xff]
      %v6971 = vld [vmem:[%s9 + $0x38] sm:$0xff]
      %v6972 = vld [vmem:[%s9 + $0x40] sm:$0xff]
      %v6973 = vld [vmem:[%s9 + $0x48] sm:$0xff]
      %v6974 = vld [vmem:[%s9 + $0x50] sm:$0xff]
      %v6975 = vld [vmem:[%s9 + $0x58] sm:$0xff]
      %v6976 = vld [vmem:[%s9 + $0x60] sm:$0xff]
      %v6977 = vld [vmem:[%s9 + $0x68] sm:$0xff]
      %v6978 = vld [vmem:[%s9 + $0x70] sm:$0xff]
      %v6979 = vld [vmem:[%s9 + $0x78] sm:$0xff]
      %v6980 = vld [vmem:[%s10] sm:$0xff]
      %v6982 = vlaneseq
      %v6983 = vshrl.u32 %v6982, 7
      %v6984 = vsub.s32 0, %v6983
      %v6985 = vrot.slane %v6980, %v6984
      %v6986 = vlaneseq
      %v6987 = vshrl.u32 %v6986, 7
      %v6988 = vsub.s32 1, %v6987
      %v6989 = vrot.slane %v6980, %v6988
      %v6990 = vlaneseq
      %v6991 = vshrl.u32 %v6990, 7
      %v6992 = vsub.s32 2, %v6991
      %v6993 = vrot.slane %v6980, %v6992
      %v6994 = vlaneseq
      %v6995 = vshrl.u32 %v6994, 7
      %v6996 = vsub.s32 3, %v6995
      %v6997 = vrot.slane %v6980, %v6996
      %v6998 = vlaneseq
      %v6999 = vshrl.u32 %v6998, 7
      %v7000 = vsub.s32 4, %v6999
      %v7001 = vrot.slane %v6980, %v7000
      %v7002 = vlaneseq
      %v7003 = vshrl.u32 %v7002, 7
      %v7004 = vsub.s32 5, %v7003
      %v7005 = vrot.slane %v6980, %v7004
      %v7006 = vlaneseq
      %v7007 = vshrl.u32 %v7006, 7
      %v7008 = vsub.s32 6, %v7007
      %v7009 = vrot.slane %v6980, %v7008
      %v7010 = vlaneseq
      %v7011 = vshrl.u32 %v7010, 7
      %v7012 = vsub.s32 7, %v7011
      %v7013 = vrot.slane %v6980, %v7012
      %v7038 = vunpack.c.l.b16 %v6964
      %v7039 = vunpack.c.h.b16 %v6964
      %v7040 = vunpack.c.l.b16 %v6965
      %v7041 = vunpack.c.h.b16 %v6965
      %v7042 = vunpack.c.l.b16 %v6966
      %v7043 = vunpack.c.h.b16 %v6966
      %v7044 = vunpack.c.l.b16 %v6967
      %v7045 = vunpack.c.h.b16 %v6967
      %v7046 = vunpack.c.l.b16 %v6968
      %v7047 = vunpack.c.h.b16 %v6968
      %v7048 = vunpack.c.l.b16 %v6969
      %v7049 = vunpack.c.h.b16 %v6969
      %v7050 = vunpack.c.l.b16 %v6970
      %v7051 = vunpack.c.h.b16 %v6970
      %v7052 = vunpack.c.l.b16 %v6971
      %v7053 = vunpack.c.h.b16 %v6971
      %v7054 = vunpack.c.l.b16 %v6972
      %v7055 = vunpack.c.h.b16 %v6972
      %v7056 = vunpack.c.l.b16 %v6973
      %v7057 = vunpack.c.h.b16 %v6973
      %v7058 = vunpack.c.l.b16 %v6974
      %v7059 = vunpack.c.h.b16 %v6974
      %v7060 = vunpack.c.l.b16 %v6975
      %v7061 = vunpack.c.h.b16 %v6975
      %v7062 = vunpack.c.l.b16 %v6976
      %v7063 = vunpack.c.h.b16 %v6976
      %v7064 = vunpack.c.l.b16 %v6977
      %v7065 = vunpack.c.h.b16 %v6977
      %v7066 = vunpack.c.l.b16 %v6978
      %v7067 = vunpack.c.h.b16 %v6978
      %v7068 = vunpack.c.l.b16 %v6979
      %v7069 = vunpack.c.h.b16 %v6979
      %v7070 = vpack.c.b16 %v7046, %v7038
      %v7071 = vpack.c.b16 %v7047, %v7039
      %v7072 = vpack.c.b16 %v7048, %v7040
      %v7073 = vpack.c.b16 %v7049, %v7041
      %v7074 = vpack.c.b16 %v7050, %v7042
      %v7075 = vpack.c.b16 %v7051, %v7043
      %v7076 = vpack.c.b16 %v7052, %v7044
      %v7077 = vpack.c.b16 %v7053, %v7045
      %v7078 = vpack.c.b16 %v7062, %v7054
      %v7079 = vpack.c.b16 %v7063, %v7055
      %v7080 = vpack.c.b16 %v7064, %v7056
      %v7081 = vpack.c.b16 %v7065, %v7057
      %v7082 = vpack.c.b16 %v7066, %v7058
      %v7083 = vpack.c.b16 %v7067, %v7059
      %v7084 = vpack.c.b16 %v7068, %v7060
      %v7085 = vpack.c.b16 %v7069, %v7061
      %vm7102 = vcmask 261120
      %v7104 = vsel %vm7102, %v6963, 0
      %7106 = vmatprep.subr.bf16.mxu0 %v7071
      %7107 = vmatpush1.bf16.msra.mxu0 %v7070
      %7108 = vmatprep.subr.bf16.mxu0 %v7079
      %7109 = vmatpush1.bf16.msra.mxu0 %v7078
      %7110 = vmatprep.subr.bf16.mxu0 0
      %7111 = vmatpush1.bf16.msra.mxu0 0
      %7112 = vmatprep.subr.bf16.mxu0 0
      %7113 = vmatpush1.bf16.msra.mxu0 0
      %7114 = vmatprep.subr.bf16.mxu0 0
      %7115 = vmatpush1.bf16.msra.mxu0 0
      %7116 = vmatprep.subr.bf16.mxu0 0
      %7117 = vmatpush1.bf16.msra.mxu0 0
      %7118 = vmatprep.subr.bf16.mxu0 0
      %7119 = vmatpush1.bf16.msra.mxu0 0
      %7120 = vmatprep.subr.bf16.mxu0 0
      %7121 = vmatpush1.bf16.msra.mxu0 0
      %7122 = vmatprep.subr.bf16.mxu0 0
      %7123 = vmatpush1.bf16.msra.mxu0 0
      %7124 = vmatprep.subr.bf16.mxu0 0
      %7125 = vmatpush1.bf16.msra.mxu0 0
      %7126 = vmatprep.subr.bf16.mxu0 0
      %7127 = vmatpush1.bf16.msra.mxu0 0
      %7128 = vmatprep.subr.bf16.mxu0 0
      %7129 = vmatpush1.bf16.msra.mxu0 0
      %7130 = vmatprep.subr.bf16.mxu0 0
      %7131 = vmatpush1.bf16.msra.mxu0 0
      %7132 = vmatprep.subr.bf16.mxu0 0
      %7133 = vmatpush1.bf16.msra.mxu0 0
      %7134 = vmatprep.subr.bf16.mxu0 0
      %7135 = vmatpush1.bf16.msra.mxu0 0
      %7136 = vmatprep.subr.bf16.mxu0 0
      %7137 = vmatpush1.bf16.msra.mxu0 0
      %7138 = vmatprep.mubr.bf16.mxu0 0
      %7139 = vmatmul.mubr.bf16.gmra.mrb[0].mxu0 %v7104
      %v7140 = vpop.f32.mrb[0].mxu0
      %v7141 = vadd.f32 %v6985, %v7140
      %v7142 = vpop.f32.mrb[0].mxu0
      %v7143 = vadd.f32 %v6989, %v7142
      %v7144 = vpop.f32.mrb[0].mxu0
      %v7145 = vpop.f32.mrb[0].mxu0
      %7146 = vdwg.mxu0
      %7147 = vmatprep.subr.bf16.mxu0 %v7073
      %7148 = vmatpush1.bf16.msra.mxu0 %v7072
      %7149 = vmatprep.subr.bf16.mxu0 %v7081
      %7150 = vmatpush1.bf16.msra.mxu0 %v7080
      %7151 = vmatprep.subr.bf16.mxu0 0
      %7152 = vmatpush1.bf16.msra.mxu0 0
      %7153 = vmatprep.subr.bf16.mxu0 0
      %7154 = vmatpush1.bf16.msra.mxu0 0
      %7155 = vmatprep.subr.bf16.mxu0 0
      %7156 = vmatpush1.bf16.msra.mxu0 0
      %7157 = vmatprep.subr.bf16.mxu0 0
      %7158 = vmatpush1.bf16.msra.mxu0 0
      %7159 = vmatprep.subr.bf16.mxu0 0
      %7160 = vmatpush1.bf16.msra.mxu0 0
      %7161 = vmatprep.subr.bf16.mxu0 0
      %7162 = vmatpush1.bf16.msra.mxu0 0
      %7163 = vmatprep.subr.bf16.mxu0 0
      %7164 = vmatpush1.bf16.msra.mxu0 0
      %7165 = vmatprep.subr.bf16.mxu0 0
      %7166 = vmatpush1.bf16.msra.mxu0 0
      %7167 = vmatprep.subr.bf16.mxu0 0
      %7168 = vmatpush1.bf16.msra.mxu0 0
      %7169 = vmatprep.subr.bf16.mxu0 0
      %7170 = vmatpush1.bf16.msra.mxu0 0
      %7171 = vmatprep.subr.bf16.mxu0 0
      %7172 = vmatpush1.bf16.msra.mxu0 0
      %7173 = vmatprep.subr.bf16.mxu0 0
      %7174 = vmatpush1.bf16.msra.mxu0 0
      %7175 = vmatprep.subr.bf16.mxu0 0
      %7176 = vmatpush1.bf16.msra.mxu0 0
      %7177 = vmatprep.subr.bf16.mxu0 0
      %7178 = vmatpush1.bf16.msra.mxu0 0
      %7179 = vmatprep.mubr.bf16.mxu0 0
      %7180 = vmatmul.mubr.bf16.gmra.mrb[0].mxu0 %v7104
      %v7181 = vpop.f32.mrb[0].mxu0
      %v7182 = vadd.f32 %v6993, %v7181
      %v7183 = vpop.f32.mrb[0].mxu0
      %v7184 = vadd.f32 %v6997, %v7183
      %v7185 = vpop.f32.mrb[0].mxu0
      %v7186 = vpop.f32.mrb[0].mxu0
      %7187 = vdwg.mxu0
      %7188 = vmatprep.subr.bf16.mxu0 %v7075
      %7189 = vmatpush1.bf16.msra.mxu0 %v7074
      %7190 = vmatprep.subr.bf16.mxu0 %v7083
      %7191 = vmatpush1.bf16.msra.mxu0 %v7082
      %7192 = vmatprep.subr.bf16.mxu0 0
      %7193 = vmatpush1.bf16.msra.mxu0 0
      %7194 = vmatprep.subr.bf16.mxu0 0
      %7195 = vmatpush1.bf16.msra.mxu0 0
      %7196 = vmatprep.subr.bf16.mxu0 0
      %7197 = vmatpush1.bf16.msra.mxu0 0
      %7198 = vmatprep.subr.bf16.mxu0 0
      %7199 = vmatpush1.bf16.msra.mxu0 0
      %7200 = vmatprep.subr.bf16.mxu0 0
      %7201 = vmatpush1.bf16.msra.mxu0 0
      %7202 = vmatprep.subr.bf16.mxu0 0
      %7203 = vmatpush1.bf16.msra.mxu0 0
      %7204 = vmatprep.subr.bf16.mxu0 0
      %7205 = vmatpush1.bf16.msra.mxu0 0
      %7206 = vmatprep.subr.bf16.mxu0 0
      %7207 = vmatpush1.bf16.msra.mxu0 0
      %7208 = vmatprep.subr.bf16.mxu0 0
      %7209 = vmatpush1.bf16.msra.mxu0 0
      %7210 = vmatprep.subr.bf16.mxu0 0
      %7211 = vmatpush1.bf16.msra.mxu0 0
      %7212 = vmatprep.subr.bf16.mxu0 0
      %7213 = vmatpush1.bf16.msra.mxu0 0
      %7214 = vmatprep.subr.bf16.mxu0 0
      %7215 = vmatpush1.bf16.msra.mxu0 0
      %7216 = vmatprep.subr.bf16.mxu0 0
      %7217 = vmatpush1.bf16.msra.mxu0 0
      %7218 = vmatprep.subr.bf16.mxu0 0
      %7219 = vmatpush1.bf16.msra.mxu0 0
      %7220 = vmatprep.mubr.bf16.mxu0 0
      %7221 = vmatmul.mubr.bf16.gmra.mrb[0].mxu0 %v7104
      %v7222 = vpop.f32.mrb[0].mxu0
      %v7223 = vadd.f32 %v7001, %v7222
      %v7224 = vpop.f32.mrb[0].mxu0
      %v7225 = vadd.f32 %v7005, %v7224
      %v7226 = vpop.f32.mrb[0].mxu0
      %v7227 = vpop.f32.mrb[0].mxu0
      %7228 = vdwg.mxu0
      %7229 = vmatprep.subr.bf16.mxu0 %v7077
      %7230 = vmatpush1.bf16.msra.mxu0 %v7076
      %7231 = vmatprep.subr.bf16.mxu0 %v7085
      %7232 = vmatpush1.bf16.msra.mxu0 %v7084
      %7233 = vmatprep.subr.bf16.mxu0 0
      %7234 = vmatpush1.bf16.msra.mxu0 0
      %7235 = vmatprep.subr.bf16.mxu0 0
      %7236 = vmatpush1.bf16.msra.mxu0 0
      %7237 = vmatprep.subr.bf16.mxu0 0
      %7238 = vmatpush1.bf16.msra.mxu0 0
      %7239 = vmatprep.subr.bf16.mxu0 0
      %7240 = vmatpush1.bf16.msra.mxu0 0
      %7241 = vmatprep.subr.bf16.mxu0 0
      %7242 = vmatpush1.bf16.msra.mxu0 0
      %7243 = vmatprep.subr.bf16.mxu0 0
      %7244 = vmatpush1.bf16.msra.mxu0 0
      %7245 = vmatprep.subr.bf16.mxu0 0
      %7246 = vmatpush1.bf16.msra.mxu0 0
      %7247 = vmatprep.subr.bf16.mxu0 0
      %7248 = vmatpush1.bf16.msra.mxu0 0
      %7249 = vmatprep.subr.bf16.mxu0 0
      %7250 = vmatpush1.bf16.msra.mxu0 0
      %7251 = vmatprep.subr.bf16.mxu0 0
      %7252 = vmatpush1.bf16.msra.mxu0 0
      %7253 = vmatprep.subr.bf16.mxu0 0
      %7254 = vmatpush1.bf16.msra.mxu0 0
      %7255 = vmatprep.subr.bf16.mxu0 0
      %7256 = vmatpush1.bf16.msra.mxu0 0
      %7257 = vmatprep.subr.bf16.mxu0 0
      %7258 = vmatpush1.bf16.msra.mxu0 0
      %7259 = vmatprep.subr.bf16.mxu0 0
      %7260 = vmatpush1.bf16.msra.mxu0 0
      %7261 = vmatprep.mubr.bf16.mxu0 0
      %7262 = vmatmul.mubr.bf16.gmra.mrb[0].mxu0 %v7104
      %v7263 = vpop.f32.mrb[0].mxu0
      %v7264 = vadd.f32 %v7009, %v7263
      %v7265 = vpop.f32.mrb[0].mxu0
      %v7266 = vadd.f32 %v7013, %v7265
      %v7267 = vpop.f32.mrb[0].mxu0
      %v7268 = vpop.f32.mrb[0].mxu0
      %7269 = vdwg.mxu0
      %vm7270 = vcmp.gt.f32.partialorder %v7141, 20.0
      %vm7271 = vcmp.gt.f32.partialorder %v7143, 20.0
      %vm7272 = vcmp.gt.f32.partialorder %v7182, 20.0
      %vm7273 = vcmp.gt.f32.partialorder %v7184, 20.0
      %vm7274 = vcmp.gt.f32.partialorder %v7223, 20.0
      %vm7275 = vcmp.gt.f32.partialorder %v7225, 20.0
      %vm7276 = vcmp.gt.f32.partialorder %v7264, 20.0
      %vm7277 = vcmp.gt.f32.partialorder %v7266, 20.0
      %v7278 = vmin.f32 %v7141, 20.0
      %v7279 = vmin.f32 %v7143, 20.0
      %v7280 = vmin.f32 %v7182, 20.0
      %v7281 = vmin.f32 %v7184, 20.0
      %v7282 = vmin.f32 %v7223, 20.0
      %v7283 = vmin.f32 %v7225, 20.0
      %v7284 = vmin.f32 %v7264, 20.0
      %v7285 = vmin.f32 %v7266, 20.0
      %v7286 = vmul.f32 %v7278, 1.442695
      %v7287 = vpow.pop %v7286
      %v7288 = vmul.f32 %v7279, 1.442695
      %v7289 = vpow.pop %v7288
      %v7290 = vmul.f32 %v7280, 1.442695
      %v7291 = vpow.pop %v7290
      %v7292 = vmul.f32 %v7281, 1.442695
      %v7293 = vpow.pop %v7292
      %v7294 = vmul.f32 %v7282, 1.442695
      %v7295 = vpow.pop %v7294
      %v7296 = vmul.f32 %v7283, 1.442695
      %v7297 = vpow.pop %v7296
      %v7298 = vmul.f32 %v7284, 1.442695
      %v7299 = vpow.pop %v7298
      %v7300 = vmul.f32 %v7285, 1.442695
      %v7301 = vpow.pop %v7300
      %v7302 = vadd.f32 %v7287, 1.0
      %v7303 = vlog2.pop %v7302
      %v7304 = vmul.f32 %v7303, 0.6931472
      %v7305 = vmul.f32 -0.5, %v7287
      %v7306 = vadd.f32 %v7305, 1.0
      %v7307 = vmul.f32 %v7306, %v7287
      %v7308 = vand.u32 2147483647, %v7287
      %vm7309 = vcmp.lt.f32.partialorder %v7308, 0.0004427343
      %v7310 = vsel %vm7309, %v7307, %v7304
      %v7311 = vadd.f32 %v7289, 1.0
      %v7312 = vlog2.pop %v7311
      %v7313 = vmul.f32 %v7312, 0.6931472
      %v7314 = vmul.f32 -0.5, %v7289
      %v7315 = vadd.f32 %v7314, 1.0
      %v7316 = vmul.f32 %v7315, %v7289
      %v7317 = vand.u32 2147483647, %v7289
      %vm7318 = vcmp.lt.f32.partialorder %v7317, 0.0004427343
      %v7319 = vsel %vm7318, %v7316, %v7313
      %v7320 = vadd.f32 %v7291, 1.0
      %v7321 = vlog2.pop %v7320
      %v7322 = vmul.f32 %v7321, 0.6931472
      %v7323 = vmul.f32 -0.5, %v7291
      %v7324 = vadd.f32 %v7323, 1.0
      %v7325 = vmul.f32 %v7324, %v7291
      %v7326 = vand.u32 2147483647, %v7291
      %vm7327 = vcmp.lt.f32.partialorder %v7326, 0.0004427343
      %v7328 = vsel %vm7327, %v7325, %v7322
      %v7329 = vadd.f32 %v7293, 1.0
      %v7330 = vlog2.pop %v7329
      %v7331 = vmul.f32 %v7330, 0.6931472
      %v7332 = vmul.f32 -0.5, %v7293
      %v7333 = vadd.f32 %v7332, 1.0
      %v7334 = vmul.f32 %v7333, %v7293
      %v7335 = vand.u32 2147483647, %v7293
      %vm7336 = vcmp.lt.f32.partialorder %v7335, 0.0004427343
      %v7337 = vsel %vm7336, %v7334, %v7331
      %v7338 = vadd.f32 %v7295, 1.0
      %v7339 = vlog2.pop %v7338
      %v7340 = vmul.f32 %v7339, 0.6931472
      %v7341 = vmul.f32 -0.5, %v7295
      %v7342 = vadd.f32 %v7341, 1.0
      %v7343 = vmul.f32 %v7342, %v7295
      %v7344 = vand.u32 2147483647, %v7295
      %vm7345 = vcmp.lt.f32.partialorder %v7344, 0.0004427343
      %v7346 = vsel %vm7345, %v7343, %v7340
      %v7347 = vadd.f32 %v7297, 1.0
      %v7348 = vlog2.pop %v7347
      %v7349 = vmul.f32 %v7348, 0.6931472
      %v7350 = vmul.f32 -0.5, %v7297
      %v7351 = vadd.f32 %v7350, 1.0
      %v7352 = vmul.f32 %v7351, %v7297
      %v7353 = vand.u32 2147483647, %v7297
      %vm7354 = vcmp.lt.f32.partialorder %v7353, 0.0004427343
      %v7355 = vsel %vm7354, %v7352, %v7349
      %v7356 = vadd.f32 %v7299, 1.0
      %v7357 = vlog2.pop %v7356
      %v7358 = vmul.f32 %v7357, 0.6931472
      %v7359 = vmul.f32 -0.5, %v7299
      %v7360 = vadd.f32 %v7359, 1.0
      %v7361 = vmul.f32 %v7360, %v7299
      %v7362 = vand.u32 2147483647, %v7299
      %vm7363 = vcmp.lt.f32.partialorder %v7362, 0.0004427343
      %v7364 = vsel %vm7363, %v7361, %v7358
      %v7365 = vadd.f32 %v7301, 1.0
      %v7366 = vlog2.pop %v7365
      %v7367 = vmul.f32 %v7366, 0.6931472
      %v7368 = vmul.f32 -0.5, %v7301
      %v7369 = vadd.f32 %v7368, 1.0
      %v7370 = vmul.f32 %v7369, %v7301
      %v7371 = vand.u32 2147483647, %v7301
      %vm7372 = vcmp.lt.f32.partialorder %v7371, 0.0004427343
      %v7373 = vsel %vm7372, %v7370, %v7367
      %v7374 = vsel %vm7270, %v7141, %v7310
      %v7375 = vsel %vm7271, %v7143, %v7319
      %v7376 = vsel %vm7272, %v7182, %v7328
      %v7377 = vsel %vm7273, %v7184, %v7337
      %v7378 = vsel %vm7274, %v7223, %v7346
      %v7379 = vsel %vm7275, %v7225, %v7355
      %v7380 = vsel %vm7276, %v7264, %v7364
      %v7381 = vsel %vm7277, %v7266, %v7373
      %v7382 = vld [vmem:[%s11] sm:$0xff]
      %v7383 = vld [vmem:[%s11 + $0x8] sm:$0xff]
      %v7384 = vld [vmem:[%s11 + $0x10] sm:$0xff]
      %v7385 = vld [vmem:[%s11 + $0x18] sm:$0xff]
      %v7386 = vld [vmem:[%s11 + $0x20] sm:$0xff]
      %v7387 = vld [vmem:[%s11 + $0x28] sm:$0xff]
      %v7388 = vld [vmem:[%s11 + $0x30] sm:$0xff]
      %v7389 = vld [vmem:[%s11 + $0x38] sm:$0xff]
      %v7390 = vld [vmem:[%s11 + $0x40] sm:$0xff]
      %v7391 = vld [vmem:[%s11 + $0x48] sm:$0xff]
      %v7392 = vld [vmem:[%s11 + $0x50] sm:$0xff]
      %v7393 = vld [vmem:[%s11 + $0x58] sm:$0xff]
      %v7394 = vld [vmem:[%s11 + $0x60] sm:$0xff]
      %v7395 = vld [vmem:[%s11 + $0x68] sm:$0xff]
      %v7396 = vld [vmem:[%s11 + $0x70] sm:$0xff]
      %v7397 = vld [vmem:[%s11 + $0x78] sm:$0xff]
      %v7398 = vmul.f32 %v7382, 1.442695
      %v7399 = vpow.pop %v7398
      %v7400 = vmul.f32 %v7383, 1.442695
      %v7401 = vpow.pop %v7400
      %v7402 = vmul.f32 %v7384, 1.442695
      %v7403 = vpow.pop %v7402
      %v7404 = vmul.f32 %v7385, 1.442695
      %v7405 = vpow.pop %v7404
      %v7406 = vmul.f32 %v7386, 1.442695
      %v7407 = vpow.pop %v7406
      %v7408 = vmul.f32 %v7387, 1.442695
      %v7409 = vpow.pop %v7408
      %v7410 = vmul.f32 %v7388, 1.442695
      %v7411 = vpow.pop %v7410
      %v7412 = vmul.f32 %v7389, 1.442695
      %v7413 = vpow.pop %v7412
      %v7414 = vmul.f32 %v7390, 1.442695
      %v7415 = vpow.pop %v7414
      %v7416 = vmul.f32 %v7391, 1.442695
      %v7417 = vpow.pop %v7416
      %v7418 = vmul.f32 %v7392, 1.442695
      %v7419 = vpow.pop %v7418
      %v7420 = vmul.f32 %v7393, 1.442695
      %v7421 = vpow.pop %v7420
      %v7422 = vmul.f32 %v7394, 1.442695
      %v7423 = vpow.pop %v7422
      %v7424 = vmul.f32 %v7395, 1.442695
      %v7425 = vpow.pop %v7424
      %v7426 = vmul.f32 %v7396, 1.442695
      %v7427 = vpow.pop %v7426
      %v7428 = vmul.f32 %v7397, 1.442695
      %v7429 = vpow.pop %v7428
      %v7430 = vsub.f32 0.0, %v7399
      %v7431 = vsub.f32 0.0, %v7401
      %v7432 = vsub.f32 0.0, %v7403
      %v7433 = vsub.f32 0.0, %v7405
      %v7434 = vsub.f32 0.0, %v7407
      %v7435 = vsub.f32 0.0, %v7409
      %v7436 = vsub.f32 0.0, %v7411
      %v7437 = vsub.f32 0.0, %v7413
      %v7438 = vsub.f32 0.0, %v7415
      %v7439 = vsub.f32 0.0, %v7417
      %v7440 = vsub.f32 0.0, %v7419
      %v7441 = vsub.f32 0.0, %v7421
      %v7442 = vsub.f32 0.0, %v7423
      %v7443 = vsub.f32 0.0, %v7425
      %v7444 = vsub.f32 0.0, %v7427
      %v7445 = vsub.f32 0.0, %v7429
      %v7454 = vcombine.low %v7374, %v7375
      %v7455 = vcombine.high %v7374, %v7375
      %v7456 = vcombine.low %v7376, %v7377
      %v7457 = vcombine.high %v7376, %v7377
      %v7458 = vcombine.low %v7378, %v7379
      %v7459 = vcombine.high %v7378, %v7379
      %v7460 = vcombine.low %v7380, %v7381
      %v7461 = vcombine.high %v7380, %v7381
      %v7463 = vunpack.c.l.s4 1966171168
      %v7464 = vunpack.c.0.s8 %v7463
      %v7465 = vlaneseq
      %v7466 = vshrl.u32 %v7465, 7
      %v7467 = vsub.s32 %v7464, %v7466
      %v7468 = vrot.slane %v7454, %v7467
      %v7470 = vunpack.c.l.s4 1966171168
      %v7471 = vunpack.c.0.s8 %v7470
      %v7472 = vlaneseq
      %v7473 = vshrl.u32 %v7472, 7
      %v7474 = vsub.s32 %v7471, %v7473
      %v7475 = vrot.slane %v7455, %v7474
      %v7477 = vunpack.c.l.s4 1966171168
      %v7478 = vunpack.c.0.s8 %v7477
      %v7479 = vlaneseq
      %v7480 = vshrl.u32 %v7479, 7
      %v7481 = vsub.s32 %v7478, %v7480
      %v7482 = vrot.slane %v7456, %v7481
      %v7484 = vunpack.c.l.s4 1966171168
      %v7485 = vunpack.c.0.s8 %v7484
      %v7486 = vlaneseq
      %v7487 = vshrl.u32 %v7486, 7
      %v7488 = vsub.s32 %v7485, %v7487
      %v7489 = vrot.slane %v7457, %v7488
      %v7491 = vunpack.c.l.s4 1966171168
      %v7492 = vunpack.c.0.s8 %v7491
      %v7493 = vlaneseq
      %v7494 = vshrl.u32 %v7493, 7
      %v7495 = vsub.s32 %v7492, %v7494
      %v7496 = vrot.slane %v7458, %v7495
      %v7498 = vunpack.c.l.s4 1966171168
      %v7499 = vunpack.c.0.s8 %v7498
      %v7500 = vlaneseq
      %v7501 = vshrl.u32 %v7500, 7
      %v7502 = vsub.s32 %v7499, %v7501
      %v7503 = vrot.slane %v7459, %v7502
      %v7505 = vunpack.c.l.s4 1966171168
      %v7506 = vunpack.c.0.s8 %v7505
      %v7507 = vlaneseq
      %v7508 = vshrl.u32 %v7507, 7
      %v7509 = vsub.s32 %v7506, %v7508
      %v7510 = vrot.slane %v7460, %v7509
      %v7512 = vunpack.c.l.s4 1966171168
      %v7513 = vunpack.c.0.s8 %v7512
      %v7514 = vlaneseq
      %v7515 = vshrl.u32 %v7514, 7
      %v7516 = vsub.s32 %v7513, %v7515
      %v7517 = vrot.slane %v7461, %v7516
      %v7518 = vcombine.low %v7468, %v7482
      %v7519 = vcombine.high %v7468, %v7482
      %v7520 = vcombine.low %v7475, %v7489
      %v7521 = vcombine.high %v7475, %v7489
      %v7522 = vcombine.low %v7496, %v7510
      %v7523 = vcombine.high %v7496, %v7510
      %v7524 = vcombine.low %v7503, %v7517
      %v7525 = vcombine.high %v7503, %v7517
      %v7527 = vunpack.c.l.s4 1966171168
      %v7528 = vunpack.c.0.s8 %v7527
      %v7529 = vlaneseq
      %v7530 = vshrl.u32 %v7529, 7
      %v7531 = vsub.s32 %v7528, %v7530
      %v7532 = vrot.slane %v7518, %v7531
      %v7534 = vunpack.c.l.s4 1966171168
      %v7535 = vunpack.c.0.s8 %v7534
      %v7536 = vlaneseq
      %v7537 = vshrl.u32 %v7536, 7
      %v7538 = vsub.s32 %v7535, %v7537
      %v7539 = vrot.slane %v7520, %v7538
      %v7541 = vunpack.c.l.s4 1966171168
      %v7542 = vunpack.c.0.s8 %v7541
      %v7543 = vlaneseq
      %v7544 = vshrl.u32 %v7543, 7
      %v7545 = vsub.s32 %v7542, %v7544
      %v7546 = vrot.slane %v7519, %v7545
      %v7548 = vunpack.c.l.s4 1966171168
      %v7549 = vunpack.c.0.s8 %v7548
      %v7550 = vlaneseq
      %v7551 = vshrl.u32 %v7550, 7
      %v7552 = vsub.s32 %v7549, %v7551
      %v7553 = vrot.slane %v7521, %v7552
      %v7555 = vunpack.c.l.s4 1966171168
      %v7556 = vunpack.c.0.s8 %v7555
      %v7557 = vlaneseq
      %v7558 = vshrl.u32 %v7557, 7
      %v7559 = vsub.s32 %v7556, %v7558
      %v7560 = vrot.slane %v7522, %v7559
      %v7562 = vunpack.c.l.s4 1966171168
      %v7563 = vunpack.c.0.s8 %v7562
      %v7564 = vlaneseq
      %v7565 = vshrl.u32 %v7564, 7
      %v7566 = vsub.s32 %v7563, %v7565
      %v7567 = vrot.slane %v7524, %v7566
      %v7569 = vunpack.c.l.s4 1966171168
      %v7570 = vunpack.c.0.s8 %v7569
      %v7571 = vlaneseq
      %v7572 = vshrl.u32 %v7571, 7
      %v7573 = vsub.s32 %v7570, %v7572
      %v7574 = vrot.slane %v7523, %v7573
      %v7576 = vunpack.c.l.s4 1966171168
      %v7577 = vunpack.c.0.s8 %v7576
      %v7578 = vlaneseq
      %v7579 = vshrl.u32 %v7578, 7
      %v7580 = vsub.s32 %v7577, %v7579
      %v7581 = vrot.slane %v7525, %v7580
      %v7582 = vcombine.low %v7532, %v7560
      %v7583 = vcombine.high %v7532, %v7560
      %v7584 = vcombine.low %v7539, %v7567
      %v7585 = vcombine.high %v7539, %v7567
      %v7586 = vcombine.low %v7546, %v7574
      %v7587 = vcombine.high %v7546, %v7574
      %v7588 = vcombine.low %v7553, %v7581
      %v7589 = vcombine.high %v7553, %v7581
      %v7590 = vlaneseq
      %v7591 = vshrl.u32 %v7590, 7
      %v7592 = vsub.s32 0, %v7591
      %v7593 = vrot.slane %v7582, %v7592
      %v7594 = vlaneseq
      %v7595 = vshrl.u32 %v7594, 7
      %v7596 = vsub.s32 1, %v7595
      %v7597 = vrot.slane %v7582, %v7596
      %v7598 = vlaneseq
      %v7599 = vshrl.u32 %v7598, 7
      %v7600 = vsub.s32 2, %v7599
      %v7601 = vrot.slane %v7582, %v7600
      %v7602 = vlaneseq
      %v7603 = vshrl.u32 %v7602, 7
      %v7604 = vsub.s32 3, %v7603
      %v7605 = vrot.slane %v7582, %v7604
      %v7606 = vlaneseq
      %v7607 = vshrl.u32 %v7606, 7
      %v7608 = vsub.s32 4, %v7607
      %v7609 = vrot.slane %v7582, %v7608
      %v7610 = vlaneseq
      %v7611 = vshrl.u32 %v7610, 7
      %v7612 = vsub.s32 5, %v7611
      %v7613 = vrot.slane %v7582, %v7612
      %v7614 = vlaneseq
      %v7615 = vshrl.u32 %v7614, 7
      %v7616 = vsub.s32 6, %v7615
      %v7617 = vrot.slane %v7582, %v7616
      %v7618 = vlaneseq
      %v7619 = vshrl.u32 %v7618, 7
      %v7620 = vsub.s32 7, %v7619
      %v7621 = vrot.slane %v7582, %v7620
      %v7622 = vlaneseq
      %v7623 = vshrl.u32 %v7622, 7
      %v7624 = vsub.s32 0, %v7623
      %v7625 = vrot.slane %v7586, %v7624
      %v7626 = vlaneseq
      %v7627 = vshrl.u32 %v7626, 7
      %v7628 = vsub.s32 1, %v7627
      %v7629 = vrot.slane %v7586, %v7628
      %v7630 = vlaneseq
      %v7631 = vshrl.u32 %v7630, 7
      %v7632 = vsub.s32 2, %v7631
      %v7633 = vrot.slane %v7586, %v7632
      %v7634 = vlaneseq
      %v7635 = vshrl.u32 %v7634, 7
      %v7636 = vsub.s32 3, %v7635
      %v7637 = vrot.slane %v7586, %v7636
      %v7638 = vlaneseq
      %v7639 = vshrl.u32 %v7638, 7
      %v7640 = vsub.s32 4, %v7639
      %v7641 = vrot.slane %v7586, %v7640
      %v7642 = vlaneseq
      %v7643 = vshrl.u32 %v7642, 7
      %v7644 = vsub.s32 5, %v7643
      %v7645 = vrot.slane %v7586, %v7644
      %v7646 = vlaneseq
      %v7647 = vshrl.u32 %v7646, 7
      %v7648 = vsub.s32 6, %v7647
      %v7649 = vrot.slane %v7586, %v7648
      %v7650 = vlaneseq
      %v7651 = vshrl.u32 %v7650, 7
      %v7652 = vsub.s32 7, %v7651
      %v7653 = vrot.slane %v7586, %v7652
      %v7654 = vlaneseq
      %v7655 = vshrl.u32 %v7654, 7
      %v7656 = vsub.s32 0, %v7655
      %v7657 = vrot.slane %v7583, %v7656
      %v7658 = vlaneseq
      %v7659 = vshrl.u32 %v7658, 7
      %v7660 = vsub.s32 1, %v7659
      %v7661 = vrot.slane %v7583, %v7660
      %v7662 = vlaneseq
      %v7663 = vshrl.u32 %v7662, 7
      %v7664 = vsub.s32 2, %v7663
      %v7665 = vrot.slane %v7583, %v7664
      %v7666 = vlaneseq
      %v7667 = vshrl.u32 %v7666, 7
      %v7668 = vsub.s32 3, %v7667
      %v7669 = vrot.slane %v7583, %v7668
      %v7670 = vlaneseq
      %v7671 = vshrl.u32 %v7670, 7
      %v7672 = vsub.s32 4, %v7671
      %v7673 = vrot.slane %v7583, %v7672
      %v7674 = vlaneseq
      %v7675 = vshrl.u32 %v7674, 7
      %v7676 = vsub.s32 5, %v7675
      %v7677 = vrot.slane %v7583, %v7676
      %v7678 = vlaneseq
      %v7679 = vshrl.u32 %v7678, 7
      %v7680 = vsub.s32 6, %v7679
      %v7681 = vrot.slane %v7583, %v7680
      %v7682 = vlaneseq
      %v7683 = vshrl.u32 %v7682, 7
      %v7684 = vsub.s32 7, %v7683
      %v7685 = vrot.slane %v7583, %v7684
      %v7686 = vlaneseq
      %v7687 = vshrl.u32 %v7686, 7
      %v7688 = vsub.s32 0, %v7687
      %v7689 = vrot.slane %v7587, %v7688
      %v7690 = vlaneseq
      %v7691 = vshrl.u32 %v7690, 7
      %v7692 = vsub.s32 1, %v7691
      %v7693 = vrot.slane %v7587, %v7692
      %v7694 = vlaneseq
      %v7695 = vshrl.u32 %v7694, 7
      %v7696 = vsub.s32 2, %v7695
      %v7697 = vrot.slane %v7587, %v7696
      %v7698 = vlaneseq
      %v7699 = vshrl.u32 %v7698, 7
      %v7700 = vsub.s32 3, %v7699
      %v7701 = vrot.slane %v7587, %v7700
      %v7702 = vlaneseq
      %v7703 = vshrl.u32 %v7702, 7
      %v7704 = vsub.s32 4, %v7703
      %v7705 = vrot.slane %v7587, %v7704
      %v7706 = vlaneseq
      %v7707 = vshrl.u32 %v7706, 7
      %v7708 = vsub.s32 5, %v7707
      %v7709 = vrot.slane %v7587, %v7708
      %v7710 = vlaneseq
      %v7711 = vshrl.u32 %v7710, 7
      %v7712 = vsub.s32 6, %v7711
      %v7713 = vrot.slane %v7587, %v7712
      %v7714 = vlaneseq
      %v7715 = vshrl.u32 %v7714, 7
      %v7716 = vsub.s32 7, %v7715
      %v7717 = vrot.slane %v7587, %v7716
      %v7718 = vlaneseq
      %v7719 = vshrl.u32 %v7718, 7
      %v7720 = vsub.s32 0, %v7719
      %v7721 = vrot.slane %v7584, %v7720
      %v7722 = vlaneseq
      %v7723 = vshrl.u32 %v7722, 7
      %v7724 = vsub.s32 1, %v7723
      %v7725 = vrot.slane %v7584, %v7724
      %v7726 = vlaneseq
      %v7727 = vshrl.u32 %v7726, 7
      %v7728 = vsub.s32 2, %v7727
      %v7729 = vrot.slane %v7584, %v7728
      %v7730 = vlaneseq
      %v7731 = vshrl.u32 %v7730, 7
      %v7732 = vsub.s32 3, %v7731
      %v7733 = vrot.slane %v7584, %v7732
      %v7734 = vlaneseq
      %v7735 = vshrl.u32 %v7734, 7
      %v7736 = vsub.s32 4, %v7735
      %v7737 = vrot.slane %v7584, %v7736
      %v7738 = vlaneseq
      %v7739 = vshrl.u32 %v7738, 7
      %v7740 = vsub.s32 5, %v7739
      %v7741 = vrot.slane %v7584, %v7740
      %v7742 = vlaneseq
      %v7743 = vshrl.u32 %v7742, 7
      %v7744 = vsub.s32 6, %v7743
      %v7745 = vrot.slane %v7584, %v7744
      %v7746 = vlaneseq
      %v7747 = vshrl.u32 %v7746, 7
      %v7748 = vsub.s32 7, %v7747
      %v7749 = vrot.slane %v7584, %v7748
      %v7750 = vlaneseq
      %v7751 = vshrl.u32 %v7750, 7
      %v7752 = vsub.s32 0, %v7751
      %v7753 = vrot.slane %v7588, %v7752
      %v7754 = vlaneseq
      %v7755 = vshrl.u32 %v7754, 7
      %v7756 = vsub.s32 1, %v7755
      %v7757 = vrot.slane %v7588, %v7756
      %v7758 = vlaneseq
      %v7759 = vshrl.u32 %v7758, 7
      %v7760 = vsub.s32 2, %v7759
      %v7761 = vrot.slane %v7588, %v7760
      %v7762 = vlaneseq
      %v7763 = vshrl.u32 %v7762, 7
      %v7764 = vsub.s32 3, %v7763
      %v7765 = vrot.slane %v7588, %v7764
      %v7766 = vlaneseq
      %v7767 = vshrl.u32 %v7766, 7
      %v7768 = vsub.s32 4, %v7767
      %v7769 = vrot.slane %v7588, %v7768
      %v7770 = vlaneseq
      %v7771 = vshrl.u32 %v7770, 7
      %v7772 = vsub.s32 5, %v7771
      %v7773 = vrot.slane %v7588, %v7772
      %v7774 = vlaneseq
      %v7775 = vshrl.u32 %v7774, 7
      %v7776 = vsub.s32 6, %v7775
      %v7777 = vrot.slane %v7588, %v7776
      %v7778 = vlaneseq
      %v7779 = vshrl.u32 %v7778, 7
      %v7780 = vsub.s32 7, %v7779
      %v7781 = vrot.slane %v7588, %v7780
      %v7782 = vlaneseq
      %v7783 = vshrl.u32 %v7782, 7
      %v7784 = vsub.s32 0, %v7783
      %v7785 = vrot.slane %v7585, %v7784
      %v7786 = vlaneseq
      %v7787 = vshrl.u32 %v7786, 7
      %v7788 = vsub.s32 1, %v7787
      %v7789 = vrot.slane %v7585, %v7788
      %v7790 = vlaneseq
      %v7791 = vshrl.u32 %v7790, 7
      %v7792 = vsub.s32 2, %v7791
      %v7793 = vrot.slane %v7585, %v7792
      %v7794 = vlaneseq
      %v7795 = vshrl.u32 %v7794, 7
      %v7796 = vsub.s32 3, %v7795
      %v7797 = vrot.slane %v7585, %v7796
      %v7798 = vlaneseq
      %v7799 = vshrl.u32 %v7798, 7
      %v7800 = vsub.s32 4, %v7799
      %v7801 = vrot.slane %v7585, %v7800
      %v7802 = vlaneseq
      %v7803 = vshrl.u32 %v7802, 7
      %v7804 = vsub.s32 5, %v7803
      %v7805 = vrot.slane %v7585, %v7804
      %v7806 = vlaneseq
      %v7807 = vshrl.u32 %v7806, 7
      %v7808 = vsub.s32 6, %v7807
      %v7809 = vrot.slane %v7585, %v7808
      %v7810 = vlaneseq
      %v7811 = vshrl.u32 %v7810, 7
      %v7812 = vsub.s32 7, %v7811
      %v7813 = vrot.slane %v7585, %v7812
      %v7814 = vlaneseq
      %v7815 = vshrl.u32 %v7814, 7
      %v7816 = vsub.s32 0, %v7815
      %v7817 = vrot.slane %v7589, %v7816
      %v7818 = vlaneseq
      %v7819 = vshrl.u32 %v7818, 7
      %v7820 = vsub.s32 1, %v7819
      %v7821 = vrot.slane %v7589, %v7820
      %v7822 = vlaneseq
      %v7823 = vshrl.u32 %v7822, 7
      %v7824 = vsub.s32 2, %v7823
      %v7825 = vrot.slane %v7589, %v7824
      %v7826 = vlaneseq
      %v7827 = vshrl.u32 %v7826, 7
      %v7828 = vsub.s32 3, %v7827
      %v7829 = vrot.slane %v7589, %v7828
      %v7830 = vlaneseq
      %v7831 = vshrl.u32 %v7830, 7
      %v7832 = vsub.s32 4, %v7831
      %v7833 = vrot.slane %v7589, %v7832
      %v7834 = vlaneseq
      %v7835 = vshrl.u32 %v7834, 7
      %v7836 = vsub.s32 5, %v7835
      %v7837 = vrot.slane %v7589, %v7836
      %v7838 = vlaneseq
      %v7839 = vshrl.u32 %v7838, 7
      %v7840 = vsub.s32 6, %v7839
      %v7841 = vrot.slane %v7589, %v7840
      %v7842 = vlaneseq
      %v7843 = vshrl.u32 %v7842, 7
      %v7844 = vsub.s32 7, %v7843
      %v7845 = vrot.slane %v7589, %v7844
      %v7910 = vmul.f32 %v7593, %v7430
      %v7911 = vmul.f32 %v7597, %v7431
      %v7912 = vmul.f32 %v7601, %v7432
      %v7913 = vmul.f32 %v7605, %v7433
      %v7914 = vmul.f32 %v7609, %v7434
      %v7915 = vmul.f32 %v7613, %v7435
      %v7916 = vmul.f32 %v7617, %v7436
      %v7917 = vmul.f32 %v7621, %v7437
      %v7918 = vmul.f32 %v7593, %v7438
      %v7919 = vmul.f32 %v7597, %v7439
      %v7920 = vmul.f32 %v7601, %v7440
      %v7921 = vmul.f32 %v7605, %v7441
      %v7922 = vmul.f32 %v7609, %v7442
      %v7923 = vmul.f32 %v7613, %v7443
      %v7924 = vmul.f32 %v7617, %v7444
      %v7925 = vmul.f32 %v7621, %v7445
      %v7926 = vmul.f32 %v7625, %v7430
      %v7927 = vmul.f32 %v7629, %v7431
      %v7928 = vmul.f32 %v7633, %v7432
      %v7929 = vmul.f32 %v7637, %v7433
      %v7930 = vmul.f32 %v7641, %v7434
      %v7931 = vmul.f32 %v7645, %v7435
      %v7932 = vmul.f32 %v7649, %v7436
      %v7933 = vmul.f32 %v7653, %v7437
      %v7934 = vmul.f32 %v7625, %v7438
      %v7935 = vmul.f32 %v7629, %v7439
      %v7936 = vmul.f32 %v7633, %v7440
      %v7937 = vmul.f32 %v7637, %v7441
      %v7938 = vmul.f32 %v7641, %v7442
      %v7939 = vmul.f32 %v7645, %v7443
      %v7940 = vmul.f32 %v7649, %v7444
      %v7941 = vmul.f32 %v7653, %v7445
      %v7942 = vmul.f32 %v7657, %v7430
      %v7943 = vmul.f32 %v7661, %v7431
      %v7944 = vmul.f32 %v7665, %v7432
      %v7945 = vmul.f32 %v7669, %v7433
      %v7946 = vmul.f32 %v7673, %v7434
      %v7947 = vmul.f32 %v7677, %v7435
      %v7948 = vmul.f32 %v7681, %v7436
      %v7949 = vmul.f32 %v7685, %v7437
      %v7950 = vmul.f32 %v7657, %v7438
      %v7951 = vmul.f32 %v7661, %v7439
      %v7952 = vmul.f32 %v7665, %v7440
      %v7953 = vmul.f32 %v7669, %v7441
      %v7954 = vmul.f32 %v7673, %v7442
      %v7955 = vmul.f32 %v7677, %v7443
      %v7956 = vmul.f32 %v7681, %v7444
      %v7957 = vmul.f32 %v7685, %v7445
      %v7958 = vmul.f32 %v7689, %v7430
      %v7959 = vmul.f32 %v7693, %v7431
      %v7960 = vmul.f32 %v7697, %v7432
      %v7961 = vmul.f32 %v7701, %v7433
      %v7962 = vmul.f32 %v7705, %v7434
      %v7963 = vmul.f32 %v7709, %v7435
      %v7964 = vmul.f32 %v7713, %v7436
      %v7965 = vmul.f32 %v7717, %v7437
      %v7966 = vmul.f32 %v7689, %v7438
      %v7967 = vmul.f32 %v7693, %v7439
      %v7968 = vmul.f32 %v7697, %v7440
      %v7969 = vmul.f32 %v7701, %v7441
      %v7970 = vmul.f32 %v7705, %v7442
      %v7971 = vmul.f32 %v7709, %v7443
      %v7972 = vmul.f32 %v7713, %v7444
      %v7973 = vmul.f32 %v7717, %v7445
      %v7974 = vmul.f32 %v7721, %v7430
      %v7975 = vmul.f32 %v7725, %v7431
      %v7976 = vmul.f32 %v7729, %v7432
      %v7977 = vmul.f32 %v7733, %v7433
      %v7978 = vmul.f32 %v7737, %v7434
      %v7979 = vmul.f32 %v7741, %v7435
      %v7980 = vmul.f32 %v7745, %v7436
      %v7981 = vmul.f32 %v7749, %v7437
      %v7982 = vmul.f32 %v7721, %v7438
      %v7983 = vmul.f32 %v7725, %v7439
      %v7984 = vmul.f32 %v7729, %v7440
      %v7985 = vmul.f32 %v7733, %v7441
      %v7986 = vmul.f32 %v7737, %v7442
      %v7987 = vmul.f32 %v7741, %v7443
      %v7988 = vmul.f32 %v7745, %v7444
      %v7989 = vmul.f32 %v7749, %v7445
      %v7990 = vmul.f32 %v7753, %v7430
      %v7991 = vmul.f32 %v7757, %v7431
      %v7992 = vmul.f32 %v7761, %v7432
      %v7993 = vmul.f32 %v7765, %v7433
      %v7994 = vmul.f32 %v7769, %v7434
      %v7995 = vmul.f32 %v7773, %v7435
      %v7996 = vmul.f32 %v7777, %v7436
      %v7997 = vmul.f32 %v7781, %v7437
      %v7998 = vmul.f32 %v7753, %v7438
      %v7999 = vmul.f32 %v7757, %v7439
      %v8000 = vmul.f32 %v7761, %v7440
      %v8001 = vmul.f32 %v7765, %v7441
      %v8002 = vmul.f32 %v7769, %v7442
      %v8003 = vmul.f32 %v7773, %v7443
      %v8004 = vmul.f32 %v7777, %v7444
      %v8005 = vmul.f32 %v7781, %v7445
      %v8006 = vmul.f32 %v7785, %v7430
      %v8007 = vmul.f32 %v7789, %v7431
      %v8008 = vmul.f32 %v7793, %v7432
      %v8009 = vmul.f32 %v7797, %v7433
      %v8010 = vmul.f32 %v7801, %v7434
      %v8011 = vmul.f32 %v7805, %v7435
      %v8012 = vmul.f32 %v7809, %v7436
      %v8013 = vmul.f32 %v7813, %v7437
      %v8014 = vmul.f32 %v7785, %v7438
      %v8015 = vmul.f32 %v7789, %v7439
      %v8016 = vmul.f32 %v7793, %v7440
      %v8017 = vmul.f32 %v7797, %v7441
      %v8018 = vmul.f32 %v7801, %v7442
      %v8019 = vmul.f32 %v7805, %v7443
      %v8020 = vmul.f32 %v7809, %v7444
      %v8021 = vmul.f32 %v7813, %v7445
      %v8022 = vmul.f32 %v7817, %v7430
      %v8023 = vmul.f32 %v7821, %v7431
      %v8024 = vmul.f32 %v7825, %v7432
      %v8025 = vmul.f32 %v7829, %v7433
      %v8026 = vmul.f32 %v7833, %v7434
      %v8027 = vmul.f32 %v7837, %v7435
      %v8028 = vmul.f32 %v7841, %v7436
      %v8029 = vmul.f32 %v7845, %v7437
      %v8030 = vmul.f32 %v7817, %v7438
      %v8031 = vmul.f32 %v7821, %v7439
      %v8032 = vmul.f32 %v7825, %v7440
      %v8033 = vmul.f32 %v7829, %v7441
      %v8034 = vmul.f32 %v7833, %v7442
      %v8035 = vmul.f32 %v7837, %v7443
      %v8036 = vmul.f32 %v7841, %v7444
      %v8037 = vmul.f32 %v7845, %v7445
      %v8038 = vmul.f32 %v7910, 1.442695
      %v8039 = vpow.pop %v8038
      %v8040 = vmul.f32 %v7911, 1.442695
      %v8041 = vpow.pop %v8040
      %v8042 = vmul.f32 %v7912, 1.442695
      %v8043 = vpow.pop %v8042
      %v8044 = vmul.f32 %v7913, 1.442695
      %v8045 = vpow.pop %v8044
      %v8046 = vmul.f32 %v7914, 1.442695
      %v8047 = vpow.pop %v8046
      %v8048 = vmul.f32 %v7915, 1.442695
      %v8049 = vpow.pop %v8048
      %v8050 = vmul.f32 %v7916, 1.442695
      %v8051 = vpow.pop %v8050
      %v8052 = vmul.f32 %v7917, 1.442695
      %v8053 = vpow.pop %v8052
      %v8054 = vmul.f32 %v7918, 1.442695
      %v8055 = vpow.pop %v8054
      %v8056 = vmul.f32 %v7919, 1.442695
      %v8057 = vpow.pop %v8056
      %v8058 = vmul.f32 %v7920, 1.442695
      %v8059 = vpow.pop %v8058
      %v8060 = vmul.f32 %v7921, 1.442695
      %v8061 = vpow.pop %v8060
      %v8062 = vmul.f32 %v7922, 1.442695
      %v8063 = vpow.pop %v8062
      %v8064 = vmul.f32 %v7923, 1.442695
      %v8065 = vpow.pop %v8064
      %v8066 = vmul.f32 %v7924, 1.442695
      %v8067 = vpow.pop %v8066
      %v8068 = vmul.f32 %v7925, 1.442695
      %v8069 = vpow.pop %v8068
      %v8070 = vmul.f32 %v7926, 1.442695
      %v8071 = vpow.pop %v8070
      %v8072 = vmul.f32 %v7927, 1.442695
      %v8073 = vpow.pop %v8072
      %v8074 = vmul.f32 %v7928, 1.442695
      %v8075 = vpow.pop %v8074
      %v8076 = vmul.f32 %v7929, 1.442695
      %v8077 = vpow.pop %v8076
      %v8078 = vmul.f32 %v7930, 1.442695
      %v8079 = vpow.pop %v8078
      %v8080 = vmul.f32 %v7931, 1.442695
      %v8081 = vpow.pop %v8080
      %v8082 = vmul.f32 %v7932, 1.442695
      %v8083 = vpow.pop %v8082
      %v8084 = vmul.f32 %v7933, 1.442695
      %v8085 = vpow.pop %v8084
      %v8086 = vmul.f32 %v7934, 1.442695
      %v8087 = vpow.pop %v8086
      %v8088 = vmul.f32 %v7935, 1.442695
      %v8089 = vpow.pop %v8088
      %v8090 = vmul.f32 %v7936, 1.442695
      %v8091 = vpow.pop %v8090
      %v8092 = vmul.f32 %v7937, 1.442695
      %v8093 = vpow.pop %v8092
      %v8094 = vmul.f32 %v7938, 1.442695
      %v8095 = vpow.pop %v8094
      %v8096 = vmul.f32 %v7939, 1.442695
      %v8097 = vpow.pop %v8096
      %v8098 = vmul.f32 %v7940, 1.442695
      %v8099 = vpow.pop %v8098
      %v8100 = vmul.f32 %v7941, 1.442695
      %v8101 = vpow.pop %v8100
      %v8102 = vmul.f32 %v7942, 1.442695
      %v8103 = vpow.pop %v8102
      %v8104 = vmul.f32 %v7943, 1.442695
      %v8105 = vpow.pop %v8104
      %v8106 = vmul.f32 %v7944, 1.442695
      %v8107 = vpow.pop %v8106
      %v8108 = vmul.f32 %v7945, 1.442695
      %v8109 = vpow.pop %v8108
      %v8110 = vmul.f32 %v7946, 1.442695
      %v8111 = vpow.pop %v8110
      %v8112 = vmul.f32 %v7947, 1.442695
      %v8113 = vpow.pop %v8112
      %v8114 = vmul.f32 %v7948, 1.442695
      %v8115 = vpow.pop %v8114
      %v8116 = vmul.f32 %v7949, 1.442695
      %v8117 = vpow.pop %v8116
      %v8118 = vmul.f32 %v7950, 1.442695
      %v8119 = vpow.pop %v8118
      %v8120 = vmul.f32 %v7951, 1.442695
      %v8121 = vpow.pop %v8120
      %v8122 = vmul.f32 %v7952, 1.442695
      %v8123 = vpow.pop %v8122
      %v8124 = vmul.f32 %v7953, 1.442695
      %v8125 = vpow.pop %v8124
      %v8126 = vmul.f32 %v7954, 1.442695
      %v8127 = vpow.pop %v8126
      %v8128 = vmul.f32 %v7955, 1.442695
      %v8129 = vpow.pop %v8128
      %v8130 = vmul.f32 %v7956, 1.442695
      %v8131 = vpow.pop %v8130
      %v8132 = vmul.f32 %v7957, 1.442695
      %v8133 = vpow.pop %v8132
      %v8134 = vmul.f32 %v7958, 1.442695
      %v8135 = vpow.pop %v8134
      %v8136 = vmul.f32 %v7959, 1.442695
      %v8137 = vpow.pop %v8136
      %v8138 = vmul.f32 %v7960, 1.442695
      %v8139 = vpow.pop %v8138
      %v8140 = vmul.f32 %v7961, 1.442695
      %v8141 = vpow.pop %v8140
      %v8142 = vmul.f32 %v7962, 1.442695
      %v8143 = vpow.pop %v8142
      %v8144 = vmul.f32 %v7963, 1.442695
      %v8145 = vpow.pop %v8144
      %v8146 = vmul.f32 %v7964, 1.442695
      %v8147 = vpow.pop %v8146
      %v8148 = vmul.f32 %v7965, 1.442695
      %v8149 = vpow.pop %v8148
      %v8150 = vmul.f32 %v7966, 1.442695
      %v8151 = vpow.pop %v8150
      %v8152 = vmul.f32 %v7967, 1.442695
      %v8153 = vpow.pop %v8152
      %v8154 = vmul.f32 %v7968, 1.442695
      %v8155 = vpow.pop %v8154
      %v8156 = vmul.f32 %v7969, 1.442695
      %v8157 = vpow.pop %v8156
      %v8158 = vmul.f32 %v7970, 1.442695
      %v8159 = vpow.pop %v8158
      %v8160 = vmul.f32 %v7971, 1.442695
      %v8161 = vpow.pop %v8160
      %v8162 = vmul.f32 %v7972, 1.442695
      %v8163 = vpow.pop %v8162
      %v8164 = vmul.f32 %v7973, 1.442695
      %v8165 = vpow.pop %v8164
      %v8166 = vmul.f32 %v7974, 1.442695
      %v8167 = vpow.pop %v8166
      %v8168 = vmul.f32 %v7975, 1.442695
      %v8169 = vpow.pop %v8168
      %v8170 = vmul.f32 %v7976, 1.442695
      %v8171 = vpow.pop %v8170
      %v8172 = vmul.f32 %v7977, 1.442695
      %v8173 = vpow.pop %v8172
      %v8174 = vmul.f32 %v7978, 1.442695
      %v8175 = vpow.pop %v8174
      %v8176 = vmul.f32 %v7979, 1.442695
      %v8177 = vpow.pop %v8176
      %v8178 = vmul.f32 %v7980, 1.442695
      %v8179 = vpow.pop %v8178
      %v8180 = vmul.f32 %v7981, 1.442695
      %v8181 = vpow.pop %v8180
      %v8182 = vmul.f32 %v7982, 1.442695
      %v8183 = vpow.pop %v8182
      %v8184 = vmul.f32 %v7983, 1.442695
      %v8185 = vpow.pop %v8184
      %v8186 = vmul.f32 %v7984, 1.442695
      %v8187 = vpow.pop %v8186
      %v8188 = vmul.f32 %v7985, 1.442695
      %v8189 = vpow.pop %v8188
      %v8190 = vmul.f32 %v7986, 1.442695
      %v8191 = vpow.pop %v8190
      %v8192 = vmul.f32 %v7987, 1.442695
      %v8193 = vpow.pop %v8192
      %v8194 = vmul.f32 %v7988, 1.442695
      %v8195 = vpow.pop %v8194
      %v8196 = vmul.f32 %v7989, 1.442695
      %v8197 = vpow.pop %v8196
      %v8198 = vmul.f32 %v7990, 1.442695
      %v8199 = vpow.pop %v8198
      %v8200 = vmul.f32 %v7991, 1.442695
      %v8201 = vpow.pop %v8200
      %v8202 = vmul.f32 %v7992, 1.442695
      %v8203 = vpow.pop %v8202
      %v8204 = vmul.f32 %v7993, 1.442695
      %v8205 = vpow.pop %v8204
      %v8206 = vmul.f32 %v7994, 1.442695
      %v8207 = vpow.pop %v8206
      %v8208 = vmul.f32 %v7995, 1.442695
      %v8209 = vpow.pop %v8208
      %v8210 = vmul.f32 %v7996, 1.442695
      %v8211 = vpow.pop %v8210
      %v8212 = vmul.f32 %v7997, 1.442695
      %v8213 = vpow.pop %v8212
      %v8214 = vmul.f32 %v7998, 1.442695
      %v8215 = vpow.pop %v8214
      %v8216 = vmul.f32 %v7999, 1.442695
      %v8217 = vpow.pop %v8216
      %v8218 = vmul.f32 %v8000, 1.442695
      %v8219 = vpow.pop %v8218
      %v8220 = vmul.f32 %v8001, 1.442695
      %v8221 = vpow.pop %v8220
      %v8222 = vmul.f32 %v8002, 1.442695
      %v8223 = vpow.pop %v8222
      %v8224 = vmul.f32 %v8003, 1.442695
      %v8225 = vpow.pop %v8224
      %v8226 = vmul.f32 %v8004, 1.442695
      %v8227 = vpow.pop %v8226
      %v8228 = vmul.f32 %v8005, 1.442695
      %v8229 = vpow.pop %v8228
      %v8230 = vmul.f32 %v8006, 1.442695
      %v8231 = vpow.pop %v8230
      %v8232 = vmul.f32 %v8007, 1.442695
      %v8233 = vpow.pop %v8232
      %v8234 = vmul.f32 %v8008, 1.442695
      %v8235 = vpow.pop %v8234
      %v8236 = vmul.f32 %v8009, 1.442695
      %v8237 = vpow.pop %v8236
      %v8238 = vmul.f32 %v8010, 1.442695
      %v8239 = vpow.pop %v8238
      %v8240 = vmul.f32 %v8011, 1.442695
      %v8241 = vpow.pop %v8240
      %v8242 = vmul.f32 %v8012, 1.442695
      %v8243 = vpow.pop %v8242
      %v8244 = vmul.f32 %v8013, 1.442695
      %v8245 = vpow.pop %v8244
      %v8246 = vmul.f32 %v8014, 1.442695
      %v8247 = vpow.pop %v8246
      %v8248 = vmul.f32 %v8015, 1.442695
      %v8249 = vpow.pop %v8248
      %v8250 = vmul.f32 %v8016, 1.442695
      %v8251 = vpow.pop %v8250
      %v8252 = vmul.f32 %v8017, 1.442695
      %v8253 = vpow.pop %v8252
      %v8254 = vmul.f32 %v8018, 1.442695
      %v8255 = vpow.pop %v8254
      %v8256 = vmul.f32 %v8019, 1.442695
      %v8257 = vpow.pop %v8256
      %v8258 = vmul.f32 %v8020, 1.442695
      %v8259 = vpow.pop %v8258
      %v8260 = vmul.f32 %v8021, 1.442695
      %v8261 = vpow.pop %v8260
      %v8262 = vmul.f32 %v8022, 1.442695
      %v8263 = vpow.pop %v8262
      %v8264 = vmul.f32 %v8023, 1.442695
      %v8265 = vpow.pop %v8264
      %v8266 = vmul.f32 %v8024, 1.442695
      %v8267 = vpow.pop %v8266
      %v8268 = vmul.f32 %v8025, 1.442695
      %v8269 = vpow.pop %v8268
      %v8270 = vmul.f32 %v8026, 1.442695
      %v8271 = vpow.pop %v8270
      %v8272 = vmul.f32 %v8027, 1.442695
      %v8273 = vpow.pop %v8272
      %v8274 = vmul.f32 %v8028, 1.442695
      %v8275 = vpow.pop %v8274
      %v8276 = vmul.f32 %v8029, 1.442695
      %v8277 = vpow.pop %v8276
      %v8278 = vmul.f32 %v8030, 1.442695
      %v8279 = vpow.pop %v8278
      %v8280 = vmul.f32 %v8031, 1.442695
      %v8281 = vpow.pop %v8280
      %v8282 = vmul.f32 %v8032, 1.442695
      %v8283 = vpow.pop %v8282
      %v8284 = vmul.f32 %v8033, 1.442695
      %v8285 = vpow.pop %v8284
      %v8286 = vmul.f32 %v8034, 1.442695
      %v8287 = vpow.pop %v8286
      %v8288 = vmul.f32 %v8035, 1.442695
      %v8289 = vpow.pop %v8288
      %v8290 = vmul.f32 %v8036, 1.442695
      %v8291 = vpow.pop %v8290
      %v8292 = vmul.f32 %v8037, 1.442695
      %v8293 = vpow.pop %v8292
      %8294 = vst [vmem:[#allocation2] sm:$0xff] %v8039
      %8295 = vst [vmem:[#allocation2 + $0x8] sm:$0xff] %v8041
      %8296 = vst [vmem:[#allocation2 + $0x10] sm:$0xff] %v8043
      %8297 = vst [vmem:[#allocation2 + $0x18] sm:$0xff] %v8045
      %8298 = vst [vmem:[#allocation2 + $0x20] sm:$0xff] %v8047
      %8299 = vst [vmem:[#allocation2 + $0x28] sm:$0xff] %v8049
      %8300 = vst [vmem:[#allocation2 + $0x30] sm:$0xff] %v8051
      %8301 = vst [vmem:[#allocation2 + $0x38] sm:$0xff] %v8053
      %8302 = vst [vmem:[#allocation2 + $0x40] sm:$0xff] %v8055
      %8303 = vst [vmem:[#allocation2 + $0x48] sm:$0xff] %v8057
      %8304 = vst [vmem:[#allocation2 + $0x50] sm:$0xff] %v8059
      %8305 = vst [vmem:[#allocation2 + $0x58] sm:$0xff] %v8061
      %8306 = vst [vmem:[#allocation2 + $0x60] sm:$0xff] %v8063
      %8307 = vst [vmem:[#allocation2 + $0x68] sm:$0xff] %v8065
      %8308 = vst [vmem:[#allocation2 + $0x70] sm:$0xff] %v8067
      %8309 = vst [vmem:[#allocation2 + $0x78] sm:$0xff] %v8069
      %8310 = vst [vmem:[#allocation2 + $0x80] sm:$0xff] %v8071
      %8311 = vst [vmem:[#allocation2 + $0x88] sm:$0xff] %v8073
      %8312 = vst [vmem:[#allocation2 + $0x90] sm:$0xff] %v8075
      %8313 = vst [vmem:[#allocation2 + $0x98] sm:$0xff] %v8077
      %8314 = vst [vmem:[#allocation2 + $0xa0] sm:$0xff] %v8079
      %8315 = vst [vmem:[#allocation2 + $0xa8] sm:$0xff] %v8081
      %8316 = vst [vmem:[#allocation2 + $0xb0] sm:$0xff] %v8083
      %8317 = vst [vmem:[#allocation2 + $0xb8] sm:$0xff] %v8085
      %8318 = vst [vmem:[#allocation2 + $0xc0] sm:$0xff] %v8087
      %8319 = vst [vmem:[#allocation2 + $0xc8] sm:$0xff] %v8089
      %8320 = vst [vmem:[#allocation2 + $0xd0] sm:$0xff] %v8091
      %8321 = vst [vmem:[#allocation2 + $0xd8] sm:$0xff] %v8093
      %8322 = vst [vmem:[#allocation2 + $0xe0] sm:$0xff] %v8095
      %8323 = vst [vmem:[#allocation2 + $0xe8] sm:$0xff] %v8097
      %8324 = vst [vmem:[#allocation2 + $0xf0] sm:$0xff] %v8099
      %8325 = vst [vmem:[#allocation2 + $0xf8] sm:$0xff] %v8101
      %8326 = vst [vmem:[#allocation2 + $0x100] sm:$0xff] %v8103
      %8327 = vst [vmem:[#allocation2 + $0x108] sm:$0xff] %v8105
      %8328 = vst [vmem:[#allocation2 + $0x110] sm:$0xff] %v8107
      %8329 = vst [vmem:[#allocation2 + $0x118] sm:$0xff] %v8109
      %8330 = vst [vmem:[#allocation2 + $0x120] sm:$0xff] %v8111
      %8331 = vst [vmem:[#allocation2 + $0x128] sm:$0xff] %v8113
      %8332 = vst [vmem:[#allocation2 + $0x130] sm:$0xff] %v8115
      %8333 = vst [vmem:[#allocation2 + $0x138] sm:$0xff] %v8117
      %8334 = vst [vmem:[#allocation2 + $0x140] sm:$0xff] %v8119
      %8335 = vst [vmem:[#allocation2 + $0x148] sm:$0xff] %v8121
      %8336 = vst [vmem:[#allocation2 + $0x150] sm:$0xff] %v8123
      %8337 = vst [vmem:[#allocation2 + $0x158] sm:$0xff] %v8125
      %8338 = vst [vmem:[#allocation2 + $0x160] sm:$0xff] %v8127
      %8339 = vst [vmem:[#allocation2 + $0x168] sm:$0xff] %v8129
      %8340 = vst [vmem:[#allocation2 + $0x170] sm:$0xff] %v8131
      %8341 = vst [vmem:[#allocation2 + $0x178] sm:$0xff] %v8133
      %8342 = vst [vmem:[#allocation2 + $0x180] sm:$0xff] %v8135
      %8343 = vst [vmem:[#allocation2 + $0x188] sm:$0xff] %v8137
      %8344 = vst [vmem:[#allocation2 + $0x190] sm:$0xff] %v8139
      %8345 = vst [vmem:[#allocation2 + $0x198] sm:$0xff] %v8141
      %8346 = vst [vmem:[#allocation2 + $0x1a0] sm:$0xff] %v8143
      %8347 = vst [vmem:[#allocation2 + $0x1a8] sm:$0xff] %v8145
      %8348 = vst [vmem:[#allocation2 + $0x1b0] sm:$0xff] %v8147
      %8349 = vst [vmem:[#allocation2 + $0x1b8] sm:$0xff] %v8149
      %8350 = vst [vmem:[#allocation2 + $0x1c0] sm:$0xff] %v8151
      %8351 = vst [vmem:[#allocation2 + $0x1c8] sm:$0xff] %v8153
      %8352 = vst [vmem:[#allocation2 + $0x1d0] sm:$0xff] %v8155
      %8353 = vst [vmem:[#allocation2 + $0x1d8] sm:$0xff] %v8157
      %8354 = vst [vmem:[#allocation2 + $0x1e0] sm:$0xff] %v8159
      %8355 = vst [vmem:[#allocation2 + $0x1e8] sm:$0xff] %v8161
      %8356 = vst [vmem:[#allocation2 + $0x1f0] sm:$0xff] %v8163
      %8357 = vst [vmem:[#allocation2 + $0x1f8] sm:$0xff] %v8165
      %8358 = vst [vmem:[#allocation2 + $0x200] sm:$0xff] %v8167
      %8359 = vst [vmem:[#allocation2 + $0x208] sm:$0xff] %v8169
      %8360 = vst [vmem:[#allocation2 + $0x210] sm:$0xff] %v8171
      %8361 = vst [vmem:[#allocation2 + $0x218] sm:$0xff] %v8173
      %8362 = vst [vmem:[#allocation2 + $0x220] sm:$0xff] %v8175
      %8363 = vst [vmem:[#allocation2 + $0x228] sm:$0xff] %v8177
      %8364 = vst [vmem:[#allocation2 + $0x230] sm:$0xff] %v8179
      %8365 = vst [vmem:[#allocation2 + $0x238] sm:$0xff] %v8181
      %8366 = vst [vmem:[#allocation2 + $0x240] sm:$0xff] %v8183
      %8367 = vst [vmem:[#allocation2 + $0x248] sm:$0xff] %v8185
      %8368 = vst [vmem:[#allocation2 + $0x250] sm:$0xff] %v8187
      %8369 = vst [vmem:[#allocation2 + $0x258] sm:$0xff] %v8189
      %8370 = vst [vmem:[#allocation2 + $0x260] sm:$0xff] %v8191
      %8371 = vst [vmem:[#allocation2 + $0x268] sm:$0xff] %v8193
      %8372 = vst [vmem:[#allocation2 + $0x270] sm:$0xff] %v8195
      %8373 = vst [vmem:[#allocation2 + $0x278] sm:$0xff] %v8197
      %8374 = vst [vmem:[#allocation2 + $0x280] sm:$0xff] %v8199
      %8375 = vst [vmem:[#allocation2 + $0x288] sm:$0xff] %v8201
      %8376 = vst [vmem:[#allocation2 + $0x290] sm:$0xff] %v8203
      %8377 = vst [vmem:[#allocation2 + $0x298] sm:$0xff] %v8205
      %8378 = vst [vmem:[#allocation2 + $0x2a0] sm:$0xff] %v8207
      %8379 = vst [vmem:[#allocation2 + $0x2a8] sm:$0xff] %v8209
      %8380 = vst [vmem:[#allocation2 + $0x2b0] sm:$0xff] %v8211
      %8381 = vst [vmem:[#allocation2 + $0x2b8] sm:$0xff] %v8213
      %8382 = vst [vmem:[#allocation2 + $0x2c0] sm:$0xff] %v8215
      %8383 = vst [vmem:[#allocation2 + $0x2c8] sm:$0xff] %v8217
      %8384 = vst [vmem:[#allocation2 + $0x2d0] sm:$0xff] %v8219
      %8385 = vst [vmem:[#allocation2 + $0x2d8] sm:$0xff] %v8221
      %8386 = vst [vmem:[#allocation2 + $0x2e0] sm:$0xff] %v8223
      %8387 = vst [vmem:[#allocation2 + $0x2e8] sm:$0xff] %v8225
      %8388 = vst [vmem:[#allocation2 + $0x2f0] sm:$0xff] %v8227
      %8389 = vst [vmem:[#allocation2 + $0x2f8] sm:$0xff] %v8229
      %8390 = vst [vmem:[#allocation2 + $0x300] sm:$0xff] %v8231
      %8391 = vst [vmem:[#allocation2 + $0x308] sm:$0xff] %v8233
      %8392 = vst [vmem:[#allocation2 + $0x310] sm:$0xff] %v8235
      %8393 = vst [vmem:[#allocation2 + $0x318] sm:$0xff] %v8237
      %8394 = vst [vmem:[#allocation2 + $0x320] sm:$0xff] %v8239
      %8395 = vst [vmem:[#allocation2 + $0x328] sm:$0xff] %v8241
      %8396 = vst [vmem:[#allocation2 + $0x330] sm:$0xff] %v8243
      %8397 = vst [vmem:[#allocation2 + $0x338] sm:$0xff] %v8245
      %8398 = vst [vmem:[#allocation2 + $0x340] sm:$0xff] %v8247
      %8399 = vst [vmem:[#allocation2 + $0x348] sm:$0xff] %v8249
      %8400 = vst [vmem:[#allocation2 + $0x350] sm:$0xff] %v8251
      %8401 = vst [vmem:[#allocation2 + $0x358] sm:$0xff] %v8253
      %8402 = vst [vmem:[#allocation2 + $0x360] sm:$0xff] %v8255
      %8403 = vst [vmem:[#allocation2 + $0x368] sm:$0xff] %v8257
      %8404 = vst [vmem:[#allocation2 + $0x370] sm:$0xff] %v8259
      %8405 = vst [vmem:[#allocation2 + $0x378] sm:$0xff] %v8261
      %8406 = vst [vmem:[#allocation2 + $0x380] sm:$0xff] %v8263
      %8407 = vst [vmem:[#allocation2 + $0x388] sm:$0xff] %v8265
      %8408 = vst [vmem:[#allocation2 + $0x390] sm:$0xff] %v8267
      %8409 = vst [vmem:[#allocation2 + $0x398] sm:$0xff] %v8269
      %8410 = vst [vmem:[#allocation2 + $0x3a0] sm:$0xff] %v8271
      %8411 = vst [vmem:[#allocation2 + $0x3a8] sm:$0xff] %v8273
      %8412 = vst [vmem:[#allocation2 + $0x3b0] sm:$0xff] %v8275
      %8413 = vst [vmem:[#allocation2 + $0x3b8] sm:$0xff] %v8277
      %8414 = vst [vmem:[#allocation2 + $0x3c0] sm:$0xff] %v8279
      %8415 = vst [vmem:[#allocation2 + $0x3c8] sm:$0xff] %v8281
      %8416 = vst [vmem:[#allocation2 + $0x3d0] sm:$0xff] %v8283
      %8417 = vst [vmem:[#allocation2 + $0x3d8] sm:$0xff] %v8285
      %8418 = vst [vmem:[#allocation2 + $0x3e0] sm:$0xff] %v8287
      %8419 = vst [vmem:[#allocation2 + $0x3e8] sm:$0xff] %v8289
      %8420 = vst [vmem:[#allocation2 + $0x3f0] sm:$0xff] %v8291
      %8421 = vst [vmem:[#allocation2 + $0x3f8] sm:$0xff] %v8293
      %v8422 = vmul.f32 %v7374, %v4931
      %v8423 = vmul.f32 %v7375, %v4932
      %v8424 = vmul.f32 %v7376, %v4933
      %v8425 = vmul.f32 %v7377, %v4934
      %v8426 = vmul.f32 %v7378, %v4935
      %v8427 = vmul.f32 %v7379, %v4936
      %v8428 = vmul.f32 %v7380, %v4937
      %v8429 = vmul.f32 %v7381, %v4938
      %v8438 = vcombine.low %v8422, %v8423
      %v8439 = vcombine.high %v8422, %v8423
      %v8440 = vcombine.low %v8424, %v8425
      %v8441 = vcombine.high %v8424, %v8425
      %v8442 = vcombine.low %v8426, %v8427
      %v8443 = vcombine.high %v8426, %v8427
      %v8444 = vcombine.low %v8428, %v8429
      %v8445 = vcombine.high %v8428, %v8429
      %v8447 = vunpack.c.l.s4 1966171168
      %v8448 = vunpack.c.0.s8 %v8447
      %v8449 = vlaneseq
      %v8450 = vshrl.u32 %v8449, 7
      %v8451 = vsub.s32 %v8448, %v8450
      %v8452 = vrot.slane %v8438, %v8451
      %v8454 = vunpack.c.l.s4 1966171168
      %v8455 = vunpack.c.0.s8 %v8454
      %v8456 = vlaneseq
      %v8457 = vshrl.u32 %v8456, 7
      %v8458 = vsub.s32 %v8455, %v8457
      %v8459 = vrot.slane %v8439, %v8458
      %v8461 = vunpack.c.l.s4 1966171168
      %v8462 = vunpack.c.0.s8 %v8461
      %v8463 = vlaneseq
      %v8464 = vshrl.u32 %v8463, 7
      %v8465 = vsub.s32 %v8462, %v8464
      %v8466 = vrot.slane %v8440, %v8465
      %v8468 = vunpack.c.l.s4 1966171168
      %v8469 = vunpack.c.0.s8 %v8468
      %v8470 = vlaneseq
      %v8471 = vshrl.u32 %v8470, 7
      %v8472 = vsub.s32 %v8469, %v8471
      %v8473 = vrot.slane %v8441, %v8472
      %v8475 = vunpack.c.l.s4 1966171168
      %v8476 = vunpack.c.0.s8 %v8475
      %v8477 = vlaneseq
      %v8478 = vshrl.u32 %v8477, 7
      %v8479 = vsub.s32 %v8476, %v8478
      %v8480 = vrot.slane %v8442, %v8479
      %v8482 = vunpack.c.l.s4 1966171168
      %v8483 = vunpack.c.0.s8 %v8482
      %v8484 = vlaneseq
      %v8485 = vshrl.u32 %v8484, 7
      %v8486 = vsub.s32 %v8483, %v8485
      %v8487 = vrot.slane %v8443, %v8486
      %v8489 = vunpack.c.l.s4 1966171168
      %v8490 = vunpack.c.0.s8 %v8489
      %v8491 = vlaneseq
      %v8492 = vshrl.u32 %v8491, 7
      %v8493 = vsub.s32 %v8490, %v8492
      %v8494 = vrot.slane %v8444, %v8493
      %v8496 = vunpack.c.l.s4 1966171168
      %v8497 = vunpack.c.0.s8 %v8496
      %v8498 = vlaneseq
      %v8499 = vshrl.u32 %v8498, 7
      %v8500 = vsub.s32 %v8497, %v8499
      %v8501 = vrot.slane %v8445, %v8500
      %v8502 = vcombine.low %v8452, %v8466
      %v8503 = vcombine.high %v8452, %v8466
      %v8504 = vcombine.low %v8459, %v8473
      %v8505 = vcombine.high %v8459, %v8473
      %v8506 = vcombine.low %v8480, %v8494
      %v8507 = vcombine.high %v8480, %v8494
      %v8508 = vcombine.low %v8487, %v8501
      %v8509 = vcombine.high %v8487, %v8501
      %v8511 = vunpack.c.l.s4 1966171168
      %v8512 = vunpack.c.0.s8 %v8511
      %v8513 = vlaneseq
      %v8514 = vshrl.u32 %v8513, 7
      %v8515 = vsub.s32 %v8512, %v8514
      %v8516 = vrot.slane %v8502, %v8515
      %v8518 = vunpack.c.l.s4 1966171168
      %v8519 = vunpack.c.0.s8 %v8518
      %v8520 = vlaneseq
      %v8521 = vshrl.u32 %v8520, 7
      %v8522 = vsub.s32 %v8519, %v8521
      %v8523 = vrot.slane %v8504, %v8522
      %v8525 = vunpack.c.l.s4 1966171168
      %v8526 = vunpack.c.0.s8 %v8525
      %v8527 = vlaneseq
      %v8528 = vshrl.u32 %v8527, 7
      %v8529 = vsub.s32 %v8526, %v8528
      %v8530 = vrot.slane %v8503, %v8529
      %v8532 = vunpack.c.l.s4 1966171168
      %v8533 = vunpack.c.0.s8 %v8532
      %v8534 = vlaneseq
      %v8535 = vshrl.u32 %v8534, 7
      %v8536 = vsub.s32 %v8533, %v8535
      %v8537 = vrot.slane %v8505, %v8536
      %v8539 = vunpack.c.l.s4 1966171168
      %v8540 = vunpack.c.0.s8 %v8539
      %v8541 = vlaneseq
      %v8542 = vshrl.u32 %v8541, 7
      %v8543 = vsub.s32 %v8540, %v8542
      %v8544 = vrot.slane %v8506, %v8543
      %v8546 = vunpack.c.l.s4 1966171168
      %v8547 = vunpack.c.0.s8 %v8546
      %v8548 = vlaneseq
      %v8549 = vshrl.u32 %v8548, 7
      %v8550 = vsub.s32 %v8547, %v8549
      %v8551 = vrot.slane %v8508, %v8550
      %v8553 = vunpack.c.l.s4 1966171168
      %v8554 = vunpack.c.0.s8 %v8553
      %v8555 = vlaneseq
      %v8556 = vshrl.u32 %v8555, 7
      %v8557 = vsub.s32 %v8554, %v8556
      %v8558 = vrot.slane %v8507, %v8557
      %v8560 = vunpack.c.l.s4 1966171168
      %v8561 = vunpack.c.0.s8 %v8560
      %v8562 = vlaneseq
      %v8563 = vshrl.u32 %v8562, 7
      %v8564 = vsub.s32 %v8561, %v8563
      %v8565 = vrot.slane %v8509, %v8564
      %v8566 = vcombine.low %v8516, %v8544
      %v8567 = vcombine.high %v8516, %v8544
      %v8568 = vcombine.low %v8523, %v8551
      %v8569 = vcombine.high %v8523, %v8551
      %v8570 = vcombine.low %v8530, %v8558
      %v8571 = vcombine.high %v8530, %v8558
      %v8572 = vcombine.low %v8537, %v8565
      %v8573 = vcombine.high %v8537, %v8565
      %v8574 = vlaneseq
      %v8575 = vshrl.u32 %v8574, 7
      %v8576 = vsub.s32 0, %v8575
      %v8577 = vrot.slane %v6286, %v8576
      %8579 = vbcast.lane.b32.xlu0 %v8577, 256
      %v8580 = vpop.permute.xlu0 %8579
      %s8582 = sor.u32 256, 8
      %8583 = vbcast.lane.b32.xlu0 %v8577, %s8582
      %v8584 = vpop.permute.xlu0 %8583
      %v8585 = vlaneseq
      %v8586 = vshrl.u32 %v8585, 7
      %v8587 = vsub.s32 1, %v8586
      %v8588 = vrot.slane %v6286, %v8587
      %8590 = vbcast.lane.b32.xlu0 %v8588, 256
      %v8591 = vpop.permute.xlu0 %8590
      %s8593 = sor.u32 256, 8
      %8594 = vbcast.lane.b32.xlu0 %v8588, %s8593
      %v8595 = vpop.permute.xlu0 %8594
      %v8596 = vlaneseq
      %v8597 = vshrl.u32 %v8596, 7
      %v8598 = vsub.s32 2, %v8597
      %v8599 = vrot.slane %v6286, %v8598
      %8601 = vbcast.lane.b32.xlu0 %v8599, 256
      %v8602 = vpop.permute.xlu0 %8601
      %s8604 = sor.u32 256, 8
      %8605 = vbcast.lane.b32.xlu0 %v8599, %s8604
      %v8606 = vpop.permute.xlu0 %8605
      %v8607 = vlaneseq
      %v8608 = vshrl.u32 %v8607, 7
      %v8609 = vsub.s32 3, %v8608
      %v8610 = vrot.slane %v6286, %v8609
      %8612 = vbcast.lane.b32.xlu0 %v8610, 256
      %v8613 = vpop.permute.xlu0 %8612
      %s8615 = sor.u32 256, 8
      %8616 = vbcast.lane.b32.xlu0 %v8610, %s8615
      %v8617 = vpop.permute.xlu0 %8616
      %v8618 = vlaneseq
      %v8619 = vshrl.u32 %v8618, 7
      %v8620 = vsub.s32 4, %v8619
      %v8621 = vrot.slane %v6286, %v8620
      %8623 = vbcast.lane.b32.xlu0 %v8621, 256
      %v8624 = vpop.permute.xlu0 %8623
      %s8626 = sor.u32 256, 8
      %8627 = vbcast.lane.b32.xlu0 %v8621, %s8626
      %v8628 = vpop.permute.xlu0 %8627
      %v8629 = vlaneseq
      %v8630 = vshrl.u32 %v8629, 7
      %v8631 = vsub.s32 5, %v8630
      %v8632 = vrot.slane %v6286, %v8631
      %8634 = vbcast.lane.b32.xlu0 %v8632, 256
      %v8635 = vpop.permute.xlu0 %8634
      %s8637 = sor.u32 256, 8
      %8638 = vbcast.lane.b32.xlu0 %v8632, %s8637
      %v8639 = vpop.permute.xlu0 %8638
      %v8640 = vlaneseq
      %v8641 = vshrl.u32 %v8640, 7
      %v8642 = vsub.s32 6, %v8641
      %v8643 = vrot.slane %v6286, %v8642
      %8645 = vbcast.lane.b32.xlu0 %v8643, 256
      %v8646 = vpop.permute.xlu0 %8645
      %s8648 = sor.u32 256, 8
      %8649 = vbcast.lane.b32.xlu0 %v8643, %s8648
      %v8650 = vpop.permute.xlu0 %8649
      %v8651 = vlaneseq
      %v8652 = vshrl.u32 %v8651, 7
      %v8653 = vsub.s32 7, %v8652
      %v8654 = vrot.slane %v6286, %v8653
      %8656 = vbcast.lane.b32.xlu0 %v8654, 256
      %v8657 = vpop.permute.xlu0 %8656
      %s8659 = sor.u32 256, 8
      %8660 = vbcast.lane.b32.xlu0 %v8654, %s8659
      %v8661 = vpop.permute.xlu0 %8660
      %v8662 = vlaneseq
      %v8663 = vshrl.u32 %v8662, 7
      %v8664 = vsub.s32 0, %v8663
      %v8665 = vrot.slane %v8566, %v8664
      %v8666 = vlaneseq
      %v8667 = vshrl.u32 %v8666, 7
      %v8668 = vsub.s32 1, %v8667
      %v8669 = vrot.slane %v8566, %v8668
      %v8670 = vlaneseq
      %v8671 = vshrl.u32 %v8670, 7
      %v8672 = vsub.s32 2, %v8671
      %v8673 = vrot.slane %v8566, %v8672
      %v8674 = vlaneseq
      %v8675 = vshrl.u32 %v8674, 7
      %v8676 = vsub.s32 3, %v8675
      %v8677 = vrot.slane %v8566, %v8676
      %v8678 = vlaneseq
      %v8679 = vshrl.u32 %v8678, 7
      %v8680 = vsub.s32 4, %v8679
      %v8681 = vrot.slane %v8566, %v8680
      %v8682 = vlaneseq
      %v8683 = vshrl.u32 %v8682, 7
      %v8684 = vsub.s32 5, %v8683
      %v8685 = vrot.slane %v8566, %v8684
      %v8686 = vlaneseq
      %v8687 = vshrl.u32 %v8686, 7
      %v8688 = vsub.s32 6, %v8687
      %v8689 = vrot.slane %v8566, %v8688
      %v8690 = vlaneseq
      %v8691 = vshrl.u32 %v8690, 7
      %v8692 = vsub.s32 7, %v8691
      %v8693 = vrot.slane %v8566, %v8692
      %v8694 = vlaneseq
      %v8695 = vshrl.u32 %v8694, 7
      %v8696 = vsub.s32 0, %v8695
      %v8697 = vrot.slane %v8570, %v8696
      %v8698 = vlaneseq
      %v8699 = vshrl.u32 %v8698, 7
      %v8700 = vsub.s32 1, %v8699
      %v8701 = vrot.slane %v8570, %v8700
      %v8702 = vlaneseq
      %v8703 = vshrl.u32 %v8702, 7
      %v8704 = vsub.s32 2, %v8703
      %v8705 = vrot.slane %v8570, %v8704
      %v8706 = vlaneseq
      %v8707 = vshrl.u32 %v8706, 7
      %v8708 = vsub.s32 3, %v8707
      %v8709 = vrot.slane %v8570, %v8708
      %v8710 = vlaneseq
      %v8711 = vshrl.u32 %v8710, 7
      %v8712 = vsub.s32 4, %v8711
      %v8713 = vrot.slane %v8570, %v8712
      %v8714 = vlaneseq
      %v8715 = vshrl.u32 %v8714, 7
      %v8716 = vsub.s32 5, %v8715
      %v8717 = vrot.slane %v8570, %v8716
      %v8718 = vlaneseq
      %v8719 = vshrl.u32 %v8718, 7
      %v8720 = vsub.s32 6, %v8719
      %v8721 = vrot.slane %v8570, %v8720
      %v8722 = vlaneseq
      %v8723 = vshrl.u32 %v8722, 7
      %v8724 = vsub.s32 7, %v8723
      %v8725 = vrot.slane %v8570, %v8724
      %v8726 = vlaneseq
      %v8727 = vshrl.u32 %v8726, 7
      %v8728 = vsub.s32 0, %v8727
      %v8729 = vrot.slane %v8567, %v8728
      %v8730 = vlaneseq
      %v8731 = vshrl.u32 %v8730, 7
      %v8732 = vsub.s32 1, %v8731
      %v8733 = vrot.slane %v8567, %v8732
      %v8734 = vlaneseq
      %v8735 = vshrl.u32 %v8734, 7
      %v8736 = vsub.s32 2, %v8735
      %v8737 = vrot.slane %v8567, %v8736
      %v8738 = vlaneseq
      %v8739 = vshrl.u32 %v8738, 7
      %v8740 = vsub.s32 3, %v8739
      %v8741 = vrot.slane %v8567, %v8740
      %v8742 = vlaneseq
      %v8743 = vshrl.u32 %v8742, 7
      %v8744 = vsub.s32 4, %v8743
      %v8745 = vrot.slane %v8567, %v8744
      %v8746 = vlaneseq
      %v8747 = vshrl.u32 %v8746, 7
      %v8748 = vsub.s32 5, %v8747
      %v8749 = vrot.slane %v8567, %v8748
      %v8750 = vlaneseq
      %v8751 = vshrl.u32 %v8750, 7
      %v8752 = vsub.s32 6, %v8751
      %v8753 = vrot.slane %v8567, %v8752
      %v8754 = vlaneseq
      %v8755 = vshrl.u32 %v8754, 7
      %v8756 = vsub.s32 7, %v8755
      %v8757 = vrot.slane %v8567, %v8756
      %v8758 = vlaneseq
      %v8759 = vshrl.u32 %v8758, 7
      %v8760 = vsub.s32 0, %v8759
      %v8761 = vrot.slane %v8571, %v8760
      %v8762 = vlaneseq
      %v8763 = vshrl.u32 %v8762, 7
      %v8764 = vsub.s32 1, %v8763
      %v8765 = vrot.slane %v8571, %v8764
      %v8766 = vlaneseq
      %v8767 = vshrl.u32 %v8766, 7
      %v8768 = vsub.s32 2, %v8767
      %v8769 = vrot.slane %v8571, %v8768
      %v8770 = vlaneseq
      %v8771 = vshrl.u32 %v8770, 7
      %v8772 = vsub.s32 3, %v8771
      %v8773 = vrot.slane %v8571, %v8772
      %v8774 = vlaneseq
      %v8775 = vshrl.u32 %v8774, 7
      %v8776 = vsub.s32 4, %v8775
      %v8777 = vrot.slane %v8571, %v8776
      %v8778 = vlaneseq
      %v8779 = vshrl.u32 %v8778, 7
      %v8780 = vsub.s32 5, %v8779
      %v8781 = vrot.slane %v8571, %v8780
      %v8782 = vlaneseq
      %v8783 = vshrl.u32 %v8782, 7
      %v8784 = vsub.s32 6, %v8783
      %v8785 = vrot.slane %v8571, %v8784
      %v8786 = vlaneseq
      %v8787 = vshrl.u32 %v8786, 7
      %v8788 = vsub.s32 7, %v8787
      %v8789 = vrot.slane %v8571, %v8788
      %v8790 = vlaneseq
      %v8791 = vshrl.u32 %v8790, 7
      %v8792 = vsub.s32 0, %v8791
      %v8793 = vrot.slane %v8568, %v8792
      %v8794 = vlaneseq
      %v8795 = vshrl.u32 %v8794, 7
      %v8796 = vsub.s32 1, %v8795
      %v8797 = vrot.slane %v8568, %v8796
      %v8798 = vlaneseq
      %v8799 = vshrl.u32 %v8798, 7
      %v8800 = vsub.s32 2, %v8799
      %v8801 = vrot.slane %v8568, %v8800
      %v8802 = vlaneseq
      %v8803 = vshrl.u32 %v8802, 7
      %v8804 = vsub.s32 3, %v8803
      %v8805 = vrot.slane %v8568, %v8804
      %v8806 = vlaneseq
      %v8807 = vshrl.u32 %v8806, 7
      %v8808 = vsub.s32 4, %v8807
      %v8809 = vrot.slane %v8568, %v8808
      %v8810 = vlaneseq
      %v8811 = vshrl.u32 %v8810, 7
      %v8812 = vsub.s32 5, %v8811
      %v8813 = vrot.slane %v8568, %v8812
      %v8814 = vlaneseq
      %v8815 = vshrl.u32 %v8814, 7
      %v8816 = vsub.s32 6, %v8815
      %v8817 = vrot.slane %v8568, %v8816
      %v8818 = vlaneseq
      %v8819 = vshrl.u32 %v8818, 7
      %v8820 = vsub.s32 7, %v8819
      %v8821 = vrot.slane %v8568, %v8820
      %v8822 = vlaneseq
      %v8823 = vshrl.u32 %v8822, 7
      %v8824 = vsub.s32 0, %v8823
      %v8825 = vrot.slane %v8572, %v8824
      %v8826 = vlaneseq
      %v8827 = vshrl.u32 %v8826, 7
      %v8828 = vsub.s32 1, %v8827
      %v8829 = vrot.slane %v8572, %v8828
      %v8830 = vlaneseq
      %v8831 = vshrl.u32 %v8830, 7
      %v8832 = vsub.s32 2, %v8831
      %v8833 = vrot.slane %v8572, %v8832
      %v8834 = vlaneseq
      %v8835 = vshrl.u32 %v8834, 7
      %v8836 = vsub.s32 3, %v8835
      %v8837 = vrot.slane %v8572, %v8836
      %v8838 = vlaneseq
      %v8839 = vshrl.u32 %v8838, 7
      %v8840 = vsub.s32 4, %v8839
      %v8841 = vrot.slane %v8572, %v8840
      %v8842 = vlaneseq
      %v8843 = vshrl.u32 %v8842, 7
      %v8844 = vsub.s32 5, %v8843
      %v8845 = vrot.slane %v8572, %v8844
      %v8846 = vlaneseq
      %v8847 = vshrl.u32 %v8846, 7
      %v8848 = vsub.s32 6, %v8847
      %v8849 = vrot.slane %v8572, %v8848
      %v8850 = vlaneseq
      %v8851 = vshrl.u32 %v8850, 7
      %v8852 = vsub.s32 7, %v8851
      %v8853 = vrot.slane %v8572, %v8852
      %v8854 = vlaneseq
      %v8855 = vshrl.u32 %v8854, 7
      %v8856 = vsub.s32 0, %v8855
      %v8857 = vrot.slane %v8569, %v8856
      %v8858 = vlaneseq
      %v8859 = vshrl.u32 %v8858, 7
      %v8860 = vsub.s32 1, %v8859
      %v8861 = vrot.slane %v8569, %v8860
      %v8862 = vlaneseq
      %v8863 = vshrl.u32 %v8862, 7
      %v8864 = vsub.s32 2, %v8863
      %v8865 = vrot.slane %v8569, %v8864
      %v8866 = vlaneseq
      %v8867 = vshrl.u32 %v8866, 7
      %v8868 = vsub.s32 3, %v8867
      %v8869 = vrot.slane %v8569, %v8868
      %v8870 = vlaneseq
      %v8871 = vshrl.u32 %v8870, 7
      %v8872 = vsub.s32 4, %v8871
      %v8873 = vrot.slane %v8569, %v8872
      %v8874 = vlaneseq
      %v8875 = vshrl.u32 %v8874, 7
      %v8876 = vsub.s32 5, %v8875
      %v8877 = vrot.slane %v8569, %v8876
      %v8878 = vlaneseq
      %v8879 = vshrl.u32 %v8878, 7
      %v8880 = vsub.s32 6, %v8879
      %v8881 = vrot.slane %v8569, %v8880
      %v8882 = vlaneseq
      %v8883 = vshrl.u32 %v8882, 7
      %v8884 = vsub.s32 7, %v8883
      %v8885 = vrot.slane %v8569, %v8884
      %v8886 = vlaneseq
      %v8887 = vshrl.u32 %v8886, 7
      %v8888 = vsub.s32 0, %v8887
      %v8889 = vrot.slane %v8573, %v8888
      %v8890 = vlaneseq
      %v8891 = vshrl.u32 %v8890, 7
      %v8892 = vsub.s32 1, %v8891
      %v8893 = vrot.slane %v8573, %v8892
      %v8894 = vlaneseq
      %v8895 = vshrl.u32 %v8894, 7
      %v8896 = vsub.s32 2, %v8895
      %v8897 = vrot.slane %v8573, %v8896
      %v8898 = vlaneseq
      %v8899 = vshrl.u32 %v8898, 7
      %v8900 = vsub.s32 3, %v8899
      %v8901 = vrot.slane %v8573, %v8900
      %v8902 = vlaneseq
      %v8903 = vshrl.u32 %v8902, 7
      %v8904 = vsub.s32 4, %v8903
      %v8905 = vrot.slane %v8573, %v8904
      %v8906 = vlaneseq
      %v8907 = vshrl.u32 %v8906, 7
      %v8908 = vsub.s32 5, %v8907
      %v8909 = vrot.slane %v8573, %v8908
      %v8910 = vlaneseq
      %v8911 = vshrl.u32 %v8910, 7
      %v8912 = vsub.s32 6, %v8911
      %v8913 = vrot.slane %v8573, %v8912
      %v8914 = vlaneseq
      %v8915 = vshrl.u32 %v8914, 7
      %v8916 = vsub.s32 7, %v8915
      %v8917 = vrot.slane %v8573, %v8916
      %v8982 = vmul.f32 %v8665, %v8580
      %v8983 = vmul.f32 %v8669, %v8580
      %v8984 = vmul.f32 %v8673, %v8580
      %v8985 = vmul.f32 %v8677, %v8580
      %v8986 = vmul.f32 %v8681, %v8580
      %v8987 = vmul.f32 %v8685, %v8580
      %v8988 = vmul.f32 %v8689, %v8580
      %v8989 = vmul.f32 %v8693, %v8580
      %v8990 = vmul.f32 %v8665, %v8584
      %v8991 = vmul.f32 %v8669, %v8584
      %v8992 = vmul.f32 %v8673, %v8584
      %v8993 = vmul.f32 %v8677, %v8584
      %v8994 = vmul.f32 %v8681, %v8584
      %v8995 = vmul.f32 %v8685, %v8584
      %v8996 = vmul.f32 %v8689, %v8584
      %v8997 = vmul.f32 %v8693, %v8584
      %v8998 = vmul.f32 %v8697, %v8591
      %v8999 = vmul.f32 %v8701, %v8591
      %v9000 = vmul.f32 %v8705, %v8591
      %v9001 = vmul.f32 %v8709, %v8591
      %v9002 = vmul.f32 %v8713, %v8591
      %v9003 = vmul.f32 %v8717, %v8591
      %v9004 = vmul.f32 %v8721, %v8591
      %v9005 = vmul.f32 %v8725, %v8591
      %v9006 = vmul.f32 %v8697, %v8595
      %v9007 = vmul.f32 %v8701, %v8595
      %v9008 = vmul.f32 %v8705, %v8595
      %v9009 = vmul.f32 %v8709, %v8595
      %v9010 = vmul.f32 %v8713, %v8595
      %v9011 = vmul.f32 %v8717, %v8595
      %v9012 = vmul.f32 %v8721, %v8595
      %v9013 = vmul.f32 %v8725, %v8595
      %v9014 = vmul.f32 %v8729, %v8602
      %v9015 = vmul.f32 %v8733, %v8602
      %v9016 = vmul.f32 %v8737, %v8602
      %v9017 = vmul.f32 %v8741, %v8602
      %v9018 = vmul.f32 %v8745, %v8602
      %v9019 = vmul.f32 %v8749, %v8602
      %v9020 = vmul.f32 %v8753, %v8602
      %v9021 = vmul.f32 %v8757, %v8602
      %v9022 = vmul.f32 %v8729, %v8606
      %v9023 = vmul.f32 %v8733, %v8606
      %v9024 = vmul.f32 %v8737, %v8606
      %v9025 = vmul.f32 %v8741, %v8606
      %v9026 = vmul.f32 %v8745, %v8606
      %v9027 = vmul.f32 %v8749, %v8606
      %v9028 = vmul.f32 %v8753, %v8606
      %v9029 = vmul.f32 %v8757, %v8606
      %v9030 = vmul.f32 %v8761, %v8613
      %v9031 = vmul.f32 %v8765, %v8613
      %v9032 = vmul.f32 %v8769, %v8613
      %v9033 = vmul.f32 %v8773, %v8613
      %v9034 = vmul.f32 %v8777, %v8613
      %v9035 = vmul.f32 %v8781, %v8613
      %v9036 = vmul.f32 %v8785, %v8613
      %v9037 = vmul.f32 %v8789, %v8613
      %v9038 = vmul.f32 %v8761, %v8617
      %v9039 = vmul.f32 %v8765, %v8617
      %v9040 = vmul.f32 %v8769, %v8617
      %v9041 = vmul.f32 %v8773, %v8617
      %v9042 = vmul.f32 %v8777, %v8617
      %v9043 = vmul.f32 %v8781, %v8617
      %v9044 = vmul.f32 %v8785, %v8617
      %v9045 = vmul.f32 %v8789, %v8617
      %v9046 = vmul.f32 %v8793, %v8624
      %v9047 = vmul.f32 %v8797, %v8624
      %v9048 = vmul.f32 %v8801, %v8624
      %v9049 = vmul.f32 %v8805, %v8624
      %v9050 = vmul.f32 %v8809, %v8624
      %v9051 = vmul.f32 %v8813, %v8624
      %v9052 = vmul.f32 %v8817, %v8624
      %v9053 = vmul.f32 %v8821, %v8624
      %v9054 = vmul.f32 %v8793, %v8628
      %v9055 = vmul.f32 %v8797, %v8628
      %v9056 = vmul.f32 %v8801, %v8628
      %v9057 = vmul.f32 %v8805, %v8628
      %v9058 = vmul.f32 %v8809, %v8628
      %v9059 = vmul.f32 %v8813, %v8628
      %v9060 = vmul.f32 %v8817, %v8628
      %v9061 = vmul.f32 %v8821, %v8628
      %v9062 = vmul.f32 %v8825, %v8635
      %v9063 = vmul.f32 %v8829, %v8635
      %v9064 = vmul.f32 %v8833, %v8635
      %v9065 = vmul.f32 %v8837, %v8635
      %v9066 = vmul.f32 %v8841, %v8635
      %v9067 = vmul.f32 %v8845, %v8635
      %v9068 = vmul.f32 %v8849, %v8635
      %v9069 = vmul.f32 %v8853, %v8635
      %v9070 = vmul.f32 %v8825, %v8639
      %v9071 = vmul.f32 %v8829, %v8639
      %v9072 = vmul.f32 %v8833, %v8639
      %v9073 = vmul.f32 %v8837, %v8639
      %v9074 = vmul.f32 %v8841, %v8639
      %v9075 = vmul.f32 %v8845, %v8639
      %v9076 = vmul.f32 %v8849, %v8639
      %v9077 = vmul.f32 %v8853, %v8639
      %v9078 = vmul.f32 %v8857, %v8646
      %v9079 = vmul.f32 %v8861, %v8646
      %v9080 = vmul.f32 %v8865, %v8646
      %v9081 = vmul.f32 %v8869, %v8646
      %v9082 = vmul.f32 %v8873, %v8646
      %v9083 = vmul.f32 %v8877, %v8646
      %v9084 = vmul.f32 %v8881, %v8646
      %v9085 = vmul.f32 %v8885, %v8646
      %v9086 = vmul.f32 %v8857, %v8650
      %v9087 = vmul.f32 %v8861, %v8650
      %v9088 = vmul.f32 %v8865, %v8650
      %v9089 = vmul.f32 %v8869, %v8650
      %v9090 = vmul.f32 %v8873, %v8650
      %v9091 = vmul.f32 %v8877, %v8650
      %v9092 = vmul.f32 %v8881, %v8650
      %v9093 = vmul.f32 %v8885, %v8650
      %v9094 = vmul.f32 %v8889, %v8657
      %v9095 = vmul.f32 %v8893, %v8657
      %v9096 = vmul.f32 %v8897, %v8657
      %v9097 = vmul.f32 %v8901, %v8657
      %v9098 = vmul.f32 %v8905, %v8657
      %v9099 = vmul.f32 %v8909, %v8657
      %v9100 = vmul.f32 %v8913, %v8657
      %v9101 = vmul.f32 %v8917, %v8657
      %v9102 = vmul.f32 %v8889, %v8661
      %v9103 = vmul.f32 %v8893, %v8661
      %v9104 = vmul.f32 %v8897, %v8661
      %v9105 = vmul.f32 %v8901, %v8661
      %v9106 = vmul.f32 %v8905, %v8661
      %v9107 = vmul.f32 %v8909, %v8661
      %v9108 = vmul.f32 %v8913, %v8661
      %v9109 = vmul.f32 %v8917, %v8661
      %9110 = vst [vmem:[#allocation3] sm:$0xff] %v8982
      %9111 = vst [vmem:[#allocation3 + $0x8] sm:$0xff] %v8983
      %9112 = vst [vmem:[#allocation3 + $0x10] sm:$0xff] %v8984
      %9113 = vst [vmem:[#allocation3 + $0x18] sm:$0xff] %v8985
      %9114 = vst [vmem:[#allocation3 + $0x20] sm:$0xff] %v8986
      %9115 = vst [vmem:[#allocation3 + $0x28] sm:$0xff] %v8987
      %9116 = vst [vmem:[#allocation3 + $0x30] sm:$0xff] %v8988
      %9117 = vst [vmem:[#allocation3 + $0x38] sm:$0xff] %v8989
      %9118 = vst [vmem:[#allocation3 + $0x40] sm:$0xff] %v8990
      %9119 = vst [vmem:[#allocation3 + $0x48] sm:$0xff] %v8991
      %9120 = vst [vmem:[#allocation3 + $0x50] sm:$0xff] %v8992
      %9121 = vst [vmem:[#allocation3 + $0x58] sm:$0xff] %v8993
      %9122 = vst [vmem:[#allocation3 + $0x60] sm:$0xff] %v8994
      %9123 = vst [vmem:[#allocation3 + $0x68] sm:$0xff] %v8995
      %9124 = vst [vmem:[#allocation3 + $0x70] sm:$0xff] %v8996
      %9125 = vst [vmem:[#allocation3 + $0x78] sm:$0xff] %v8997
      %9126 = vst [vmem:[#allocation3 + $0x80] sm:$0xff] %v8998
      %9127 = vst [vmem:[#allocation3 + $0x88] sm:$0xff] %v8999
      %9128 = vst [vmem:[#allocation3 + $0x90] sm:$0xff] %v9000
      %9129 = vst [vmem:[#allocation3 + $0x98] sm:$0xff] %v9001
      %9130 = vst [vmem:[#allocation3 + $0xa0] sm:$0xff] %v9002
      %9131 = vst [vmem:[#allocation3 + $0xa8] sm:$0xff] %v9003
      %9132 = vst [vmem:[#allocation3 + $0xb0] sm:$0xff] %v9004
      %9133 = vst [vmem:[#allocation3 + $0xb8] sm:$0xff] %v9005
      %9134 = vst [vmem:[#allocation3 + $0xc0] sm:$0xff] %v9006
      %9135 = vst [vmem:[#allocation3 + $0xc8] sm:$0xff] %v9007
      %9136 = vst [vmem:[#allocation3 + $0xd0] sm:$0xff] %v9008
      %9137 = vst [vmem:[#allocation3 + $0xd8] sm:$0xff] %v9009
      %9138 = vst [vmem:[#allocation3 + $0xe0] sm:$0xff] %v9010
      %9139 = vst [vmem:[#allocation3 + $0xe8] sm:$0xff] %v9011
      %9140 = vst [vmem:[#allocation3 + $0xf0] sm:$0xff] %v9012
      %9141 = vst [vmem:[#allocation3 + $0xf8] sm:$0xff] %v9013
      %9142 = vst [vmem:[#allocation3 + $0x100] sm:$0xff] %v9014
      %9143 = vst [vmem:[#allocation3 + $0x108] sm:$0xff] %v9015
      %9144 = vst [vmem:[#allocation3 + $0x110] sm:$0xff] %v9016
      %9145 = vst [vmem:[#allocation3 + $0x118] sm:$0xff] %v9017
      %9146 = vst [vmem:[#allocation3 + $0x120] sm:$0xff] %v9018
      %9147 = vst [vmem:[#allocation3 + $0x128] sm:$0xff] %v9019
      %9148 = vst [vmem:[#allocation3 + $0x130] sm:$0xff] %v9020
      %9149 = vst [vmem:[#allocation3 + $0x138] sm:$0xff] %v9021
      %9150 = vst [vmem:[#allocation3 + $0x140] sm:$0xff] %v9022
      %9151 = vst [vmem:[#allocation3 + $0x148] sm:$0xff] %v9023
      %9152 = vst [vmem:[#allocation3 + $0x150] sm:$0xff] %v9024
      %9153 = vst [vmem:[#allocation3 + $0x158] sm:$0xff] %v9025
      %9154 = vst [vmem:[#allocation3 + $0x160] sm:$0xff] %v9026
      %9155 = vst [vmem:[#allocation3 + $0x168] sm:$0xff] %v9027
      %9156 = vst [vmem:[#allocation3 + $0x170] sm:$0xff] %v9028
      %9157 = vst [vmem:[#allocation3 + $0x178] sm:$0xff] %v9029
      %9158 = vst [vmem:[#allocation3 + $0x180] sm:$0xff] %v9030
      %9159 = vst [vmem:[#allocation3 + $0x188] sm:$0xff] %v9031
      %9160 = vst [vmem:[#allocation3 + $0x190] sm:$0xff] %v9032
      %9161 = vst [vmem:[#allocation3 + $0x198] sm:$0xff] %v9033
      %9162 = vst [vmem:[#allocation3 + $0x1a0] sm:$0xff] %v9034
      %9163 = vst [vmem:[#allocation3 + $0x1a8] sm:$0xff] %v9035
      %9164 = vst [vmem:[#allocation3 + $0x1b0] sm:$0xff] %v9036
      %9165 = vst [vmem:[#allocation3 + $0x1b8] sm:$0xff] %v9037
      %9166 = vst [vmem:[#allocation3 + $0x1c0] sm:$0xff] %v9038
      %9167 = vst [vmem:[#allocation3 + $0x1c8] sm:$0xff] %v9039
      %9168 = vst [vmem:[#allocation3 + $0x1d0] sm:$0xff] %v9040
      %9169 = vst [vmem:[#allocation3 + $0x1d8] sm:$0xff] %v9041
      %9170 = vst [vmem:[#allocation3 + $0x1e0] sm:$0xff] %v9042
      %9171 = vst [vmem:[#allocation3 + $0x1e8] sm:$0xff] %v9043
      %9172 = vst [vmem:[#allocation3 + $0x1f0] sm:$0xff] %v9044
      %9173 = vst [vmem:[#allocation3 + $0x1f8] sm:$0xff] %v9045
      %9174 = vst [vmem:[#allocation3 + $0x200] sm:$0xff] %v9046
      %9175 = vst [vmem:[#allocation3 + $0x208] sm:$0xff] %v9047
      %9176 = vst [vmem:[#allocation3 + $0x210] sm:$0xff] %v9048
      %9177 = vst [vmem:[#allocation3 + $0x218] sm:$0xff] %v9049
      %9178 = vst [vmem:[#allocation3 + $0x220] sm:$0xff] %v9050
      %9179 = vst [vmem:[#allocation3 + $0x228] sm:$0xff] %v9051
      %9180 = vst [vmem:[#allocation3 + $0x230] sm:$0xff] %v9052
      %9181 = vst [vmem:[#allocation3 + $0x238] sm:$0xff] %v9053
      %9182 = vst [vmem:[#allocation3 + $0x240] sm:$0xff] %v9054
      %9183 = vst [vmem:[#allocation3 + $0x248] sm:$0xff] %v9055
      %9184 = vst [vmem:[#allocation3 + $0x250] sm:$0xff] %v9056
      %9185 = vst [vmem:[#allocation3 + $0x258] sm:$0xff] %v9057
      %9186 = vst [vmem:[#allocation3 + $0x260] sm:$0xff] %v9058
      %9187 = vst [vmem:[#allocation3 + $0x268] sm:$0xff] %v9059
      %9188 = vst [vmem:[#allocation3 + $0x270] sm:$0xff] %v9060
      %9189 = vst [vmem:[#allocation3 + $0x278] sm:$0xff] %v9061
      %9190 = vst [vmem:[#allocation3 + $0x280] sm:$0xff] %v9062
      %9191 = vst [vmem:[#allocation3 + $0x288] sm:$0xff] %v9063
      %9192 = vst [vmem:[#allocation3 + $0x290] sm:$0xff] %v9064
      %9193 = vst [vmem:[#allocation3 + $0x298] sm:$0xff] %v9065
      %9194 = vst [vmem:[#allocation3 + $0x2a0] sm:$0xff] %v9066
      %9195 = vst [vmem:[#allocation3 + $0x2a8] sm:$0xff] %v9067
      %9196 = vst [vmem:[#allocation3 + $0x2b0] sm:$0xff] %v9068
      %9197 = vst [vmem:[#allocation3 + $0x2b8] sm:$0xff] %v9069
      %9198 = vst [vmem:[#allocation3 + $0x2c0] sm:$0xff] %v9070
      %9199 = vst [vmem:[#allocation3 + $0x2c8] sm:$0xff] %v9071
      %9200 = vst [vmem:[#allocation3 + $0x2d0] sm:$0xff] %v9072
      %9201 = vst [vmem:[#allocation3 + $0x2d8] sm:$0xff] %v9073
      %9202 = vst [vmem:[#allocation3 + $0x2e0] sm:$0xff] %v9074
      %9203 = vst [vmem:[#allocation3 + $0x2e8] sm:$0xff] %v9075
      %9204 = vst [vmem:[#allocation3 + $0x2f0] sm:$0xff] %v9076
      %9205 = vst [vmem:[#allocation3 + $0x2f8] sm:$0xff] %v9077
      %9206 = vst [vmem:[#allocation3 + $0x300] sm:$0xff] %v9078
      %9207 = vst [vmem:[#allocation3 + $0x308] sm:$0xff] %v9079
      %9208 = vst [vmem:[#allocation3 + $0x310] sm:$0xff] %v9080
      %9209 = vst [vmem:[#allocation3 + $0x318] sm:$0xff] %v9081
      %9210 = vst [vmem:[#allocation3 + $0x320] sm:$0xff] %v9082
      %9211 = vst [vmem:[#allocation3 + $0x328] sm:$0xff] %v9083
      %9212 = vst [vmem:[#allocation3 + $0x330] sm:$0xff] %v9084
      %9213 = vst [vmem:[#allocation3 + $0x338] sm:$0xff] %v9085
      %9214 = vst [vmem:[#allocation3 + $0x340] sm:$0xff] %v9086
      %9215 = vst [vmem:[#allocation3 + $0x348] sm:$0xff] %v9087
      %9216 = vst [vmem:[#allocation3 + $0x350] sm:$0xff] %v9088
      %9217 = vst [vmem:[#allocation3 + $0x358] sm:$0xff] %v9089
      %9218 = vst [vmem:[#allocation3 + $0x360] sm:$0xff] %v9090
      %9219 = vst [vmem:[#allocation3 + $0x368] sm:$0xff] %v9091
      %9220 = vst [vmem:[#allocation3 + $0x370] sm:$0xff] %v9092
      %9221 = vst [vmem:[#allocation3 + $0x378] sm:$0xff] %v9093
      %9222 = vst [vmem:[#allocation3 + $0x380] sm:$0xff] %v9094
      %9223 = vst [vmem:[#allocation3 + $0x388] sm:$0xff] %v9095
      %9224 = vst [vmem:[#allocation3 + $0x390] sm:$0xff] %v9096
      %9225 = vst [vmem:[#allocation3 + $0x398] sm:$0xff] %v9097
      %9226 = vst [vmem:[#allocation3 + $0x3a0] sm:$0xff] %v9098
      %9227 = vst [vmem:[#allocation3 + $0x3a8] sm:$0xff] %v9099
      %9228 = vst [vmem:[#allocation3 + $0x3b0] sm:$0xff] %v9100
      %9229 = vst [vmem:[#allocation3 + $0x3b8] sm:$0xff] %v9101
      %9230 = vst [vmem:[#allocation3 + $0x3c0] sm:$0xff] %v9102
      %9231 = vst [vmem:[#allocation3 + $0x3c8] sm:$0xff] %v9103
      %9232 = vst [vmem:[#allocation3 + $0x3d0] sm:$0xff] %v9104
      %9233 = vst [vmem:[#allocation3 + $0x3d8] sm:$0xff] %v9105
      %9234 = vst [vmem:[#allocation3 + $0x3e0] sm:$0xff] %v9106
      %9235 = vst [vmem:[#allocation3 + $0x3e8] sm:$0xff] %v9107
      %9236 = vst [vmem:[#allocation3 + $0x3f0] sm:$0xff] %v9108
      %9237 = vst [vmem:[#allocation3 + $0x3f8] sm:$0xff] %v9109
      loop: start=0, step=1, limit=8
      $region85: #{mu_model.2} parent=83 // loop_pre_header
        _
      $region86: #{mu_model.2} parent=83 // loop_header
        %s9239 = sphi 0, %s9243
        %p9240 = scmp.ge.s32.totalorder %s9239, 8
        %v9244 = vphi 0.0, %v9313
        %v9245 = vphi 0.0, %v9314
        %v9246 = vphi 0.0, %v9315
        %v9247 = vphi 0.0, %v9316
        %v9248 = vphi 0.0, %v9317
        %v9249 = vphi 0.0, %v9318
        %v9250 = vphi 0.0, %v9319
        %v9251 = vphi 0.0, %v9320
        %v9252 = vphi 0.0, %v9321
        %v9253 = vphi 0.0, %v9322
        %v9254 = vphi 0.0, %v9323
        %v9255 = vphi 0.0, %v9324
        %v9256 = vphi 0.0, %v9325
        %v9257 = vphi 0.0, %v9326
        %v9258 = vphi 0.0, %v9327
        %v9259 = vphi 0.0, %v9328
      $region87: #{mu_model.2} parent=83 // loop_header_branch
        %9242 = sbr.rel (%p9240) target = $region91
      $region88: #{mu_model.2} parent=83 // loop_body
        %s9260 = smul.u32 %s9239, 16
        %s9261 = smul.addr %s9260, 8
        %s9262 = scalar_lea.vmem [#allocation2], %s9261
        %v9263 = vld [vmem:[%s9262] sm:$0xff]
        %v9264 = vld [vmem:[%s9262 + $0x8] sm:$0xff]
        %v9265 = vld [vmem:[%s9262 + $0x10] sm:$0xff]
        %v9266 = vld [vmem:[%s9262 + $0x18] sm:$0xff]
        %v9267 = vld [vmem:[%s9262 + $0x20] sm:$0xff]
        %v9268 = vld [vmem:[%s9262 + $0x28] sm:$0xff]
        %v9269 = vld [vmem:[%s9262 + $0x30] sm:$0xff]
        %v9270 = vld [vmem:[%s9262 + $0x38] sm:$0xff]
        %v9271 = vld [vmem:[%s9262 + $0x40] sm:$0xff]
        %v9272 = vld [vmem:[%s9262 + $0x48] sm:$0xff]
        %v9273 = vld [vmem:[%s9262 + $0x50] sm:$0xff]
        %v9274 = vld [vmem:[%s9262 + $0x58] sm:$0xff]
        %v9275 = vld [vmem:[%s9262 + $0x60] sm:$0xff]
        %v9276 = vld [vmem:[%s9262 + $0x68] sm:$0xff]
        %v9277 = vld [vmem:[%s9262 + $0x70] sm:$0xff]
        %v9278 = vld [vmem:[%s9262 + $0x78] sm:$0xff]
        %v9279 = vmul.f32 %v9263, %v9244
        %v9280 = vmul.f32 %v9264, %v9245
        %v9281 = vmul.f32 %v9265, %v9246
        %v9282 = vmul.f32 %v9266, %v9247
        %v9283 = vmul.f32 %v9267, %v9248
        %v9284 = vmul.f32 %v9268, %v9249
        %v9285 = vmul.f32 %v9269, %v9250
        %v9286 = vmul.f32 %v9270, %v9251
        %v9287 = vmul.f32 %v9271, %v9252
        %v9288 = vmul.f32 %v9272, %v9253
        %v9289 = vmul.f32 %v9273, %v9254
        %v9290 = vmul.f32 %v9274, %v9255
        %v9291 = vmul.f32 %v9275, %v9256
        %v9292 = vmul.f32 %v9276, %v9257
        %v9293 = vmul.f32 %v9277, %v9258
        %v9294 = vmul.f32 %v9278, %v9259
        %s9295 = smul.addr %s9260, 8
        %s9296 = scalar_lea.vmem [#allocation3], %s9295
        %v9297 = vld [vmem:[%s9296] sm:$0xff]
        %v9298 = vld [vmem:[%s9296 + $0x8] sm:$0xff]
        %v9299 = vld [vmem:[%s9296 + $0x10] sm:$0xff]
        %v9300 = vld [vmem:[%s9296 + $0x18] sm:$0xff]
        %v9301 = vld [vmem:[%s9296 + $0x20] sm:$0xff]
        %v9302 = vld [vmem:[%s9296 + $0x28] sm:$0xff]
        %v9303 = vld [vmem:[%s9296 + $0x30] sm:$0xff]
        %v9304 = vld [vmem:[%s9296 + $0x38] sm:$0xff]
        %v9305 = vld [vmem:[%s9296 + $0x40] sm:$0xff]
        %v9306 = vld [vmem:[%s9296 + $0x48] sm:$0xff]
        %v9307 = vld [vmem:[%s9296 + $0x50] sm:$0xff]
        %v9308 = vld [vmem:[%s9296 + $0x58] sm:$0xff]
        %v9309 = vld [vmem:[%s9296 + $0x60] sm:$0xff]
        %v9310 = vld [vmem:[%s9296 + $0x68] sm:$0xff]
        %v9311 = vld [vmem:[%s9296 + $0x70] sm:$0xff]
        %v9312 = vld [vmem:[%s9296 + $0x78] sm:$0xff]
        %v9313 = vadd.f32 %v9279, %v9297
        %v9314 = vadd.f32 %v9280, %v9298
        %v9315 = vadd.f32 %v9281, %v9299
        %v9316 = vadd.f32 %v9282, %v9300
        %v9317 = vadd.f32 %v9283, %v9301
        %v9318 = vadd.f32 %v9284, %v9302
        %v9319 = vadd.f32 %v9285, %v9303
        %v9320 = vadd.f32 %v9286, %v9304
        %v9321 = vadd.f32 %v9287, %v9305
        %v9322 = vadd.f32 %v9288, %v9306
        %v9323 = vadd.f32 %v9289, %v9307
        %v9324 = vadd.f32 %v9290, %v9308
        %v9325 = vadd.f32 %v9291, %v9309
        %v9326 = vadd.f32 %v9292, %v9310
        %v9327 = vadd.f32 %v9293, %v9311
        %v9328 = vadd.f32 %v9294, %v9312
        %s9329 = smul.addr %s9260, 8
        %s9330 = scalar_lea.vmem [#allocation4], %s9329
        %9331 = vst [vmem:[%s9330] sm:$0xff] %v9313
        %9332 = vst [vmem:[%s9330 + $0x8] sm:$0xff] %v9314
        %9333 = vst [vmem:[%s9330 + $0x10] sm:$0xff] %v9315
        %9334 = vst [vmem:[%s9330 + $0x18] sm:$0xff] %v9316
        %9335 = vst [vmem:[%s9330 + $0x20] sm:$0xff] %v9317
        %9336 = vst [vmem:[%s9330 + $0x28] sm:$0xff] %v9318
        %9337 = vst [vmem:[%s9330 + $0x30] sm:$0xff] %v9319
        %9338 = vst [vmem:[%s9330 + $0x38] sm:$0xff] %v9320
        %9339 = vst [vmem:[%s9330 + $0x40] sm:$0xff] %v9321
        %9340 = vst [vmem:[%s9330 + $0x48] sm:$0xff] %v9322
        %9341 = vst [vmem:[%s9330 + $0x50] sm:$0xff] %v9323
        %9342 = vst [vmem:[%s9330 + $0x58] sm:$0xff] %v9324
        %9343 = vst [vmem:[%s9330 + $0x60] sm:$0xff] %v9325
        %9344 = vst [vmem:[%s9330 + $0x68] sm:$0xff] %v9326
        %9345 = vst [vmem:[%s9330 + $0x70] sm:$0xff] %v9327
        %9346 = vst [vmem:[%s9330 + $0x78] sm:$0xff] %v9328
      $region89: #{mu_model.2} parent=83 // loop_footer
        %s9243 = sadd.s32 1, %s9239
      $region90: #{mu_model.2} parent=83 // loop_footer_branch
        %9238 = sbr.rel target = $region86
      $region91: #{mu_model.2} parent=83 // loop_exit
        _
      %v9347 = vld [vmem:[#allocation4] sm:$0xff]
      %v9348 = vld [vmem:[#allocation4 + $0x8] sm:$0xff]
      %v9349 = vld [vmem:[#allocation4 + $0x10] sm:$0xff]
      %v9350 = vld [vmem:[#allocation4 + $0x18] sm:$0xff]
      %v9351 = vld [vmem:[#allocation4 + $0x20] sm:$0xff]
      %v9352 = vld [vmem:[#allocation4 + $0x28] sm:$0xff]
      %v9353 = vld [vmem:[#allocation4 + $0x30] sm:$0xff]
      %v9354 = vld [vmem:[#allocation4 + $0x38] sm:$0xff]
      %v9355 = vld [vmem:[#allocation4 + $0x40] sm:$0xff]
      %v9356 = vld [vmem:[#allocation4 + $0x48] sm:$0xff]
      %v9357 = vld [vmem:[#allocation4 + $0x50] sm:$0xff]
      %v9358 = vld [vmem:[#allocation4 + $0x58] sm:$0xff]
      %v9359 = vld [vmem:[#allocation4 + $0x60] sm:$0xff]
      %v9360 = vld [vmem:[#allocation4 + $0x68] sm:$0xff]
      %v9361 = vld [vmem:[#allocation4 + $0x70] sm:$0xff]
      %v9362 = vld [vmem:[#allocation4 + $0x78] sm:$0xff]
      %v9363 = vld [vmem:[#allocation4 + $0x80] sm:$0xff]
      %v9364 = vld [vmem:[#allocation4 + $0x88] sm:$0xff]
      %v9365 = vld [vmem:[#allocation4 + $0x90] sm:$0xff]
      %v9366 = vld [vmem:[#allocation4 + $0x98] sm:$0xff]
      %v9367 = vld [vmem:[#allocation4 + $0xa0] sm:$0xff]
      %v9368 = vld [vmem:[#allocation4 + $0xa8] sm:$0xff]
      %v9369 = vld [vmem:[#allocation4 + $0xb0] sm:$0xff]
      %v9370 = vld [vmem:[#allocation4 + $0xb8] sm:$0xff]
      %v9371 = vld [vmem:[#allocation4 + $0xc0] sm:$0xff]
      %v9372 = vld [vmem:[#allocation4 + $0xc8] sm:$0xff]
      %v9373 = vld [vmem:[#allocation4 + $0xd0] sm:$0xff]
      %v9374 = vld [vmem:[#allocation4 + $0xd8] sm:$0xff]
      %v9375 = vld [vmem:[#allocation4 + $0xe0] sm:$0xff]
      %v9376 = vld [vmem:[#allocation4 + $0xe8] sm:$0xff]
      %v9377 = vld [vmem:[#allocation4 + $0xf0] sm:$0xff]
      %v9378 = vld [vmem:[#allocation4 + $0xf8] sm:$0xff]
      %v9379 = vld [vmem:[#allocation4 + $0x100] sm:$0xff]
      %v9380 = vld [vmem:[#allocation4 + $0x108] sm:$0xff]
      %v9381 = vld [vmem:[#allocation4 + $0x110] sm:$0xff]
      %v9382 = vld [vmem:[#allocation4 + $0x118] sm:$0xff]
      %v9383 = vld [vmem:[#allocation4 + $0x120] sm:$0xff]
      %v9384 = vld [vmem:[#allocation4 + $0x128] sm:$0xff]
      %v9385 = vld [vmem:[#allocation4 + $0x130] sm:$0xff]
      %v9386 = vld [vmem:[#allocation4 + $0x138] sm:$0xff]
      %v9387 = vld [vmem:[#allocation4 + $0x140] sm:$0xff]
      %v9388 = vld [vmem:[#allocation4 + $0x148] sm:$0xff]
      %v9389 = vld [vmem:[#allocation4 + $0x150] sm:$0xff]
      %v9390 = vld [vmem:[#allocation4 + $0x158] sm:$0xff]
      %v9391 = vld [vmem:[#allocation4 + $0x160] sm:$0xff]
      %v9392 = vld [vmem:[#allocation4 + $0x168] sm:$0xff]
      %v9393 = vld [vmem:[#allocation4 + $0x170] sm:$0xff]
      %v9394 = vld [vmem:[#allocation4 + $0x178] sm:$0xff]
      %v9395 = vld [vmem:[#allocation4 + $0x180] sm:$0xff]
      %v9396 = vld [vmem:[#allocation4 + $0x188] sm:$0xff]
      %v9397 = vld [vmem:[#allocation4 + $0x190] sm:$0xff]
      %v9398 = vld [vmem:[#allocation4 + $0x198] sm:$0xff]
      %v9399 = vld [vmem:[#allocation4 + $0x1a0] sm:$0xff]
      %v9400 = vld [vmem:[#allocation4 + $0x1a8] sm:$0xff]
      %v9401 = vld [vmem:[#allocation4 + $0x1b0] sm:$0xff]
      %v9402 = vld [vmem:[#allocation4 + $0x1b8] sm:$0xff]
      %v9403 = vld [vmem:[#allocation4 + $0x1c0] sm:$0xff]
      %v9404 = vld [vmem:[#allocation4 + $0x1c8] sm:$0xff]
      %v9405 = vld [vmem:[#allocation4 + $0x1d0] sm:$0xff]
      %v9406 = vld [vmem:[#allocation4 + $0x1d8] sm:$0xff]
      %v9407 = vld [vmem:[#allocation4 + $0x1e0] sm:$0xff]
      %v9408 = vld [vmem:[#allocation4 + $0x1e8] sm:$0xff]
      %v9409 = vld [vmem:[#allocation4 + $0x1f0] sm:$0xff]
      %v9410 = vld [vmem:[#allocation4 + $0x1f8] sm:$0xff]
      %v9411 = vld [vmem:[#allocation4 + $0x200] sm:$0xff]
      %v9412 = vld [vmem:[#allocation4 + $0x208] sm:$0xff]
      %v9413 = vld [vmem:[#allocation4 + $0x210] sm:$0xff]
      %v9414 = vld [vmem:[#allocation4 + $0x218] sm:$0xff]
      %v9415 = vld [vmem:[#allocation4 + $0x220] sm:$0xff]
      %v9416 = vld [vmem:[#allocation4 + $0x228] sm:$0xff]
      %v9417 = vld [vmem:[#allocation4 + $0x230] sm:$0xff]
      %v9418 = vld [vmem:[#allocation4 + $0x238] sm:$0xff]
      %v9419 = vld [vmem:[#allocation4 + $0x240] sm:$0xff]
      %v9420 = vld [vmem:[#allocation4 + $0x248] sm:$0xff]
      %v9421 = vld [vmem:[#allocation4 + $0x250] sm:$0xff]
      %v9422 = vld [vmem:[#allocation4 + $0x258] sm:$0xff]
      %v9423 = vld [vmem:[#allocation4 + $0x260] sm:$0xff]
      %v9424 = vld [vmem:[#allocation4 + $0x268] sm:$0xff]
      %v9425 = vld [vmem:[#allocation4 + $0x270] sm:$0xff]
      %v9426 = vld [vmem:[#allocation4 + $0x278] sm:$0xff]
      %v9427 = vld [vmem:[#allocation4 + $0x280] sm:$0xff]
      %v9428 = vld [vmem:[#allocation4 + $0x288] sm:$0xff]
      %v9429 = vld [vmem:[#allocation4 + $0x290] sm:$0xff]
      %v9430 = vld [vmem:[#allocation4 + $0x298] sm:$0xff]
      %v9431 = vld [vmem:[#allocation4 + $0x2a0] sm:$0xff]
      %v9432 = vld [vmem:[#allocation4 + $0x2a8] sm:$0xff]
      %v9433 = vld [vmem:[#allocation4 + $0x2b0] sm:$0xff]
      %v9434 = vld [vmem:[#allocation4 + $0x2b8] sm:$0xff]
      %v9435 = vld [vmem:[#allocation4 + $0x2c0] sm:$0xff]
      %v9436 = vld [vmem:[#allocation4 + $0x2c8] sm:$0xff]
      %v9437 = vld [vmem:[#allocation4 + $0x2d0] sm:$0xff]
      %v9438 = vld [vmem:[#allocation4 + $0x2d8] sm:$0xff]
      %v9439 = vld [vmem:[#allocation4 + $0x2e0] sm:$0xff]
      %v9440 = vld [vmem:[#allocation4 + $0x2e8] sm:$0xff]
      %v9441 = vld [vmem:[#allocation4 + $0x2f0] sm:$0xff]
      %v9442 = vld [vmem:[#allocation4 + $0x2f8] sm:$0xff]
      %v9443 = vld [vmem:[#allocation4 + $0x300] sm:$0xff]
      %v9444 = vld [vmem:[#allocation4 + $0x308] sm:$0xff]
      %v9445 = vld [vmem:[#allocation4 + $0x310] sm:$0xff]
      %v9446 = vld [vmem:[#allocation4 + $0x318] sm:$0xff]
      %v9447 = vld [vmem:[#allocation4 + $0x320] sm:$0xff]
      %v9448 = vld [vmem:[#allocation4 + $0x328] sm:$0xff]
      %v9449 = vld [vmem:[#allocation4 + $0x330] sm:$0xff]
      %v9450 = vld [vmem:[#allocation4 + $0x338] sm:$0xff]
      %v9451 = vld [vmem:[#allocation4 + $0x340] sm:$0xff]
      %v9452 = vld [vmem:[#allocation4 + $0x348] sm:$0xff]
      %v9453 = vld [vmem:[#allocation4 + $0x350] sm:$0xff]
      %v9454 = vld [vmem:[#allocation4 + $0x358] sm:$0xff]
      %v9455 = vld [vmem:[#allocation4 + $0x360] sm:$0xff]
      %v9456 = vld [vmem:[#allocation4 + $0x368] sm:$0xff]
      %v9457 = vld [vmem:[#allocation4 + $0x370] sm:$0xff]
      %v9458 = vld [vmem:[#allocation4 + $0x378] sm:$0xff]
      %v9459 = vld [vmem:[#allocation4 + $0x380] sm:$0xff]
      %v9460 = vld [vmem:[#allocation4 + $0x388] sm:$0xff]
      %v9461 = vld [vmem:[#allocation4 + $0x390] sm:$0xff]
      %v9462 = vld [vmem:[#allocation4 + $0x398] sm:$0xff]
      %v9463 = vld [vmem:[#allocation4 + $0x3a0] sm:$0xff]
      %v9464 = vld [vmem:[#allocation4 + $0x3a8] sm:$0xff]
      %v9465 = vld [vmem:[#allocation4 + $0x3b0] sm:$0xff]
      %v9466 = vld [vmem:[#allocation4 + $0x3b8] sm:$0xff]
      %v9467 = vld [vmem:[#allocation4 + $0x3c0] sm:$0xff]
      %v9468 = vld [vmem:[#allocation4 + $0x3c8] sm:$0xff]
      %v9469 = vld [vmem:[#allocation4 + $0x3d0] sm:$0xff]
      %v9470 = vld [vmem:[#allocation4 + $0x3d8] sm:$0xff]
      %v9471 = vld [vmem:[#allocation4 + $0x3e0] sm:$0xff]
      %v9472 = vld [vmem:[#allocation4 + $0x3e8] sm:$0xff]
      %v9473 = vld [vmem:[#allocation4 + $0x3f0] sm:$0xff]
      %v9474 = vld [vmem:[#allocation4 + $0x3f8] sm:$0xff]
      %v9475 = vlaneseq
      %v9476 = vshrl.u32 %v9475, 7
      %v9477 = vsub.s32 0, %v9476
      %v9478 = vrot.slane %v6958, %v9477
      %9480 = vbcast.lane.b32.xlu0 %v9478, 256
      %v9481 = vpop.permute.xlu0 %9480
      %s9483 = sor.u32 256, 8
      %9484 = vbcast.lane.b32.xlu0 %v9478, %s9483
      %v9485 = vpop.permute.xlu0 %9484
      %v9486 = vlaneseq
      %v9487 = vshrl.u32 %v9486, 7
      %v9488 = vsub.s32 1, %v9487
      %v9489 = vrot.slane %v6958, %v9488
      %9491 = vbcast.lane.b32.xlu0 %v9489, 256
      %v9492 = vpop.permute.xlu0 %9491
      %s9494 = sor.u32 256, 8
      %9495 = vbcast.lane.b32.xlu0 %v9489, %s9494
      %v9496 = vpop.permute.xlu0 %9495
      %v9497 = vlaneseq
      %v9498 = vshrl.u32 %v9497, 7
      %v9499 = vsub.s32 2, %v9498
      %v9500 = vrot.slane %v6958, %v9499
      %9502 = vbcast.lane.b32.xlu0 %v9500, 256
      %v9503 = vpop.permute.xlu0 %9502
      %s9505 = sor.u32 256, 8
      %9506 = vbcast.lane.b32.xlu0 %v9500, %s9505
      %v9507 = vpop.permute.xlu0 %9506
      %v9508 = vlaneseq
      %v9509 = vshrl.u32 %v9508, 7
      %v9510 = vsub.s32 3, %v9509
      %v9511 = vrot.slane %v6958, %v9510
      %9513 = vbcast.lane.b32.xlu0 %v9511, 256
      %v9514 = vpop.permute.xlu0 %9513
      %s9516 = sor.u32 256, 8
      %9517 = vbcast.lane.b32.xlu0 %v9511, %s9516
      %v9518 = vpop.permute.xlu0 %9517
      %v9519 = vlaneseq
      %v9520 = vshrl.u32 %v9519, 7
      %v9521 = vsub.s32 4, %v9520
      %v9522 = vrot.slane %v6958, %v9521
      %9524 = vbcast.lane.b32.xlu0 %v9522, 256
      %v9525 = vpop.permute.xlu0 %9524
      %s9527 = sor.u32 256, 8
      %9528 = vbcast.lane.b32.xlu0 %v9522, %s9527
      %v9529 = vpop.permute.xlu0 %9528
      %v9530 = vlaneseq
      %v9531 = vshrl.u32 %v9530, 7
      %v9532 = vsub.s32 5, %v9531
      %v9533 = vrot.slane %v6958, %v9532
      %9535 = vbcast.lane.b32.xlu0 %v9533, 256
      %v9536 = vpop.permute.xlu0 %9535
      %s9538 = sor.u32 256, 8
      %9539 = vbcast.lane.b32.xlu0 %v9533, %s9538
      %v9540 = vpop.permute.xlu0 %9539
      %v9541 = vlaneseq
      %v9542 = vshrl.u32 %v9541, 7
      %v9543 = vsub.s32 6, %v9542
      %v9544 = vrot.slane %v6958, %v9543
      %9546 = vbcast.lane.b32.xlu0 %v9544, 256
      %v9547 = vpop.permute.xlu0 %9546
      %s9549 = sor.u32 256, 8
      %9550 = vbcast.lane.b32.xlu0 %v9544, %s9549
      %v9551 = vpop.permute.xlu0 %9550
      %v9552 = vlaneseq
      %v9553 = vshrl.u32 %v9552, 7
      %v9554 = vsub.s32 7, %v9553
      %v9555 = vrot.slane %v6958, %v9554
      %9557 = vbcast.lane.b32.xlu0 %v9555, 256
      %v9558 = vpop.permute.xlu0 %9557
      %s9560 = sor.u32 256, 8
      %9561 = vbcast.lane.b32.xlu0 %v9555, %s9560
      %v9562 = vpop.permute.xlu0 %9561
      %v9563 = vmul.f32 %v9347, %v9481
      %v9564 = vmul.f32 %v9348, %v9481
      %v9565 = vmul.f32 %v9349, %v9481
      %v9566 = vmul.f32 %v9350, %v9481
      %v9567 = vmul.f32 %v9351, %v9481
      %v9568 = vmul.f32 %v9352, %v9481
      %v9569 = vmul.f32 %v9353, %v9481
      %v9570 = vmul.f32 %v9354, %v9481
      %v9571 = vmul.f32 %v9355, %v9485
      %v9572 = vmul.f32 %v9356, %v9485
      %v9573 = vmul.f32 %v9357, %v9485
      %v9574 = vmul.f32 %v9358, %v9485
      %v9575 = vmul.f32 %v9359, %v9485
      %v9576 = vmul.f32 %v9360, %v9485
      %v9577 = vmul.f32 %v9361, %v9485
      %v9578 = vmul.f32 %v9362, %v9485
      %v9579 = vmul.f32 %v9363, %v9492
      %v9580 = vmul.f32 %v9364, %v9492
      %v9581 = vmul.f32 %v9365, %v9492
      %v9582 = vmul.f32 %v9366, %v9492
      %v9583 = vmul.f32 %v9367, %v9492
      %v9584 = vmul.f32 %v9368, %v9492
      %v9585 = vmul.f32 %v9369, %v9492
      %v9586 = vmul.f32 %v9370, %v9492
      %v9587 = vmul.f32 %v9371, %v9496
      %v9588 = vmul.f32 %v9372, %v9496
      %v9589 = vmul.f32 %v9373, %v9496
      %v9590 = vmul.f32 %v9374, %v9496
      %v9591 = vmul.f32 %v9375, %v9496
      %v9592 = vmul.f32 %v9376, %v9496
      %v9593 = vmul.f32 %v9377, %v9496
      %v9594 = vmul.f32 %v9378, %v9496
      %v9595 = vmul.f32 %v9379, %v9503
      %v9596 = vmul.f32 %v9380, %v9503
      %v9597 = vmul.f32 %v9381, %v9503
      %v9598 = vmul.f32 %v9382, %v9503
      %v9599 = vmul.f32 %v9383, %v9503
      %v9600 = vmul.f32 %v9384, %v9503
      %v9601 = vmul.f32 %v9385, %v9503
      %v9602 = vmul.f32 %v9386, %v9503
      %v9603 = vmul.f32 %v9387, %v9507
      %v9604 = vmul.f32 %v9388, %v9507
      %v9605 = vmul.f32 %v9389, %v9507
      %v9606 = vmul.f32 %v9390, %v9507
      %v9607 = vmul.f32 %v9391, %v9507
      %v9608 = vmul.f32 %v9392, %v9507
      %v9609 = vmul.f32 %v9393, %v9507
      %v9610 = vmul.f32 %v9394, %v9507
      %v9611 = vmul.f32 %v9395, %v9514
      %v9612 = vmul.f32 %v9396, %v9514
      %v9613 = vmul.f32 %v9397, %v9514
      %v9614 = vmul.f32 %v9398, %v9514
      %v9615 = vmul.f32 %v9399, %v9514
      %v9616 = vmul.f32 %v9400, %v9514
      %v9617 = vmul.f32 %v9401, %v9514
      %v9618 = vmul.f32 %v9402, %v9514
      %v9619 = vmul.f32 %v9403, %v9518
      %v9620 = vmul.f32 %v9404, %v9518
      %v9621 = vmul.f32 %v9405, %v9518
      %v9622 = vmul.f32 %v9406, %v9518
      %v9623 = vmul.f32 %v9407, %v9518
      %v9624 = vmul.f32 %v9408, %v9518
      %v9625 = vmul.f32 %v9409, %v9518
      %v9626 = vmul.f32 %v9410, %v9518
      %v9627 = vmul.f32 %v9411, %v9525
      %v9628 = vmul.f32 %v9412, %v9525
      %v9629 = vmul.f32 %v9413, %v9525
      %v9630 = vmul.f32 %v9414, %v9525
      %v9631 = vmul.f32 %v9415, %v9525
      %v9632 = vmul.f32 %v9416, %v9525
      %v9633 = vmul.f32 %v9417, %v9525
      %v9634 = vmul.f32 %v9418, %v9525
      %v9635 = vmul.f32 %v9419, %v9529
      %v9636 = vmul.f32 %v9420, %v9529
      %v9637 = vmul.f32 %v9421, %v9529
      %v9638 = vmul.f32 %v9422, %v9529
      %v9639 = vmul.f32 %v9423, %v9529
      %v9640 = vmul.f32 %v9424, %v9529
      %v9641 = vmul.f32 %v9425, %v9529
      %v9642 = vmul.f32 %v9426, %v9529
      %v9643 = vmul.f32 %v9427, %v9536
      %v9644 = vmul.f32 %v9428, %v9536
      %v9645 = vmul.f32 %v9429, %v9536
      %v9646 = vmul.f32 %v9430, %v9536
      %v9647 = vmul.f32 %v9431, %v9536
      %v9648 = vmul.f32 %v9432, %v9536
      %v9649 = vmul.f32 %v9433, %v9536
      %v9650 = vmul.f32 %v9434, %v9536
      %v9651 = vmul.f32 %v9435, %v9540
      %v9652 = vmul.f32 %v9436, %v9540
      %v9653 = vmul.f32 %v9437, %v9540
      %v9654 = vmul.f32 %v9438, %v9540
      %v9655 = vmul.f32 %v9439, %v9540
      %v9656 = vmul.f32 %v9440, %v9540
      %v9657 = vmul.f32 %v9441, %v9540
      %v9658 = vmul.f32 %v9442, %v9540
      %v9659 = vmul.f32 %v9443, %v9547
      %v9660 = vmul.f32 %v9444, %v9547
      %v9661 = vmul.f32 %v9445, %v9547
      %v9662 = vmul.f32 %v9446, %v9547
      %v9663 = vmul.f32 %v9447, %v9547
      %v9664 = vmul.f32 %v9448, %v9547
      %v9665 = vmul.f32 %v9449, %v9547
      %v9666 = vmul.f32 %v9450, %v9547
      %v9667 = vmul.f32 %v9451, %v9551
      %v9668 = vmul.f32 %v9452, %v9551
      %v9669 = vmul.f32 %v9453, %v9551
      %v9670 = vmul.f32 %v9454, %v9551
      %v9671 = vmul.f32 %v9455, %v9551
      %v9672 = vmul.f32 %v9456, %v9551
      %v9673 = vmul.f32 %v9457, %v9551
      %v9674 = vmul.f32 %v9458, %v9551
      %v9675 = vmul.f32 %v9459, %v9558
      %v9676 = vmul.f32 %v9460, %v9558
      %v9677 = vmul.f32 %v9461, %v9558
      %v9678 = vmul.f32 %v9462, %v9558
      %v9679 = vmul.f32 %v9463, %v9558
      %v9680 = vmul.f32 %v9464, %v9558
      %v9681 = vmul.f32 %v9465, %v9558
      %v9682 = vmul.f32 %v9466, %v9558
      %v9683 = vmul.f32 %v9467, %v9562
      %v9684 = vmul.f32 %v9468, %v9562
      %v9685 = vmul.f32 %v9469, %v9562
      %v9686 = vmul.f32 %v9470, %v9562
      %v9687 = vmul.f32 %v9471, %v9562
      %v9688 = vmul.f32 %v9472, %v9562
      %v9689 = vmul.f32 %v9473, %v9562
      %v9690 = vmul.f32 %v9474, %v9562
      %v9691 = vadd.f32 %v9563, %v9571
      %v9692 = vrot.slane %v9691, 4
      %v9693 = vadd.f32 %v9691, %v9692
      %v9694 = vrot.slane %v9693, 2
      %v9695 = vadd.f32 %v9693, %v9694
      %v9696 = vrot.slane %v9695, 1
      %v9697 = vadd.f32 %v9695, %v9696
      %v9698 = vadd.f32 %v9564, %v9572
      %v9699 = vrot.slane %v9698, 4
      %v9700 = vadd.f32 %v9698, %v9699
      %v9701 = vrot.slane %v9700, 2
      %v9702 = vadd.f32 %v9700, %v9701
      %v9703 = vrot.slane %v9702, 1
      %v9704 = vadd.f32 %v9702, %v9703
      %v9705 = vadd.f32 %v9565, %v9573
      %v9706 = vrot.slane %v9705, 4
      %v9707 = vadd.f32 %v9705, %v9706
      %v9708 = vrot.slane %v9707, 2
      %v9709 = vadd.f32 %v9707, %v9708
      %v9710 = vrot.slane %v9709, 1
      %v9711 = vadd.f32 %v9709, %v9710
      %v9712 = vadd.f32 %v9566, %v9574
      %v9713 = vrot.slane %v9712, 4
      %v9714 = vadd.f32 %v9712, %v9713
      %v9715 = vrot.slane %v9714, 2
      %v9716 = vadd.f32 %v9714, %v9715
      %v9717 = vrot.slane %v9716, 1
      %v9718 = vadd.f32 %v9716, %v9717
      %v9719 = vadd.f32 %v9567, %v9575
      %v9720 = vrot.slane %v9719, 4
      %v9721 = vadd.f32 %v9719, %v9720
      %v9722 = vrot.slane %v9721, 2
      %v9723 = vadd.f32 %v9721, %v9722
      %v9724 = vrot.slane %v9723, 1
      %v9725 = vadd.f32 %v9723, %v9724
      %v9726 = vadd.f32 %v9568, %v9576
      %v9727 = vrot.slane %v9726, 4
      %v9728 = vadd.f32 %v9726, %v9727
      %v9729 = vrot.slane %v9728, 2
      %v9730 = vadd.f32 %v9728, %v9729
      %v9731 = vrot.slane %v9730, 1
      %v9732 = vadd.f32 %v9730, %v9731
      %v9733 = vadd.f32 %v9569, %v9577
      %v9734 = vrot.slane %v9733, 4
      %v9735 = vadd.f32 %v9733, %v9734
      %v9736 = vrot.slane %v9735, 2
      %v9737 = vadd.f32 %v9735, %v9736
      %v9738 = vrot.slane %v9737, 1
      %v9739 = vadd.f32 %v9737, %v9738
      %v9740 = vadd.f32 %v9570, %v9578
      %v9741 = vrot.slane %v9740, 4
      %v9742 = vadd.f32 %v9740, %v9741
      %v9743 = vrot.slane %v9742, 2
      %v9744 = vadd.f32 %v9742, %v9743
      %v9745 = vrot.slane %v9744, 1
      %v9746 = vadd.f32 %v9744, %v9745
      %v9747 = vadd.f32 %v9579, %v9587
      %v9748 = vrot.slane %v9747, 4
      %v9749 = vadd.f32 %v9747, %v9748
      %v9750 = vrot.slane %v9749, 2
      %v9751 = vadd.f32 %v9749, %v9750
      %v9752 = vrot.slane %v9751, 1
      %v9753 = vadd.f32 %v9751, %v9752
      %v9754 = vadd.f32 %v9580, %v9588
      %v9755 = vrot.slane %v9754, 4
      %v9756 = vadd.f32 %v9754, %v9755
      %v9757 = vrot.slane %v9756, 2
      %v9758 = vadd.f32 %v9756, %v9757
      %v9759 = vrot.slane %v9758, 1
      %v9760 = vadd.f32 %v9758, %v9759
      %v9761 = vadd.f32 %v9581, %v9589
      %v9762 = vrot.slane %v9761, 4
      %v9763 = vadd.f32 %v9761, %v9762
      %v9764 = vrot.slane %v9763, 2
      %v9765 = vadd.f32 %v9763, %v9764
      %v9766 = vrot.slane %v9765, 1
      %v9767 = vadd.f32 %v9765, %v9766
      %v9768 = vadd.f32 %v9582, %v9590
      %v9769 = vrot.slane %v9768, 4
      %v9770 = vadd.f32 %v9768, %v9769
      %v9771 = vrot.slane %v9770, 2
      %v9772 = vadd.f32 %v9770, %v9771
      %v9773 = vrot.slane %v9772, 1
      %v9774 = vadd.f32 %v9772, %v9773
      %v9775 = vadd.f32 %v9583, %v9591
      %v9776 = vrot.slane %v9775, 4
      %v9777 = vadd.f32 %v9775, %v9776
      %v9778 = vrot.slane %v9777, 2
      %v9779 = vadd.f32 %v9777, %v9778
      %v9780 = vrot.slane %v9779, 1
      %v9781 = vadd.f32 %v9779, %v9780
      %v9782 = vadd.f32 %v9584, %v9592
      %v9783 = vrot.slane %v9782, 4
      %v9784 = vadd.f32 %v9782, %v9783
      %v9785 = vrot.slane %v9784, 2
      %v9786 = vadd.f32 %v9784, %v9785
      %v9787 = vrot.slane %v9786, 1
      %v9788 = vadd.f32 %v9786, %v9787
      %v9789 = vadd.f32 %v9585, %v9593
      %v9790 = vrot.slane %v9789, 4
      %v9791 = vadd.f32 %v9789, %v9790
      %v9792 = vrot.slane %v9791, 2
      %v9793 = vadd.f32 %v9791, %v9792
      %v9794 = vrot.slane %v9793, 1
      %v9795 = vadd.f32 %v9793, %v9794
      %v9796 = vadd.f32 %v9586, %v9594
      %v9797 = vrot.slane %v9796, 4
      %v9798 = vadd.f32 %v9796, %v9797
      %v9799 = vrot.slane %v9798, 2
      %v9800 = vadd.f32 %v9798, %v9799
      %v9801 = vrot.slane %v9800, 1
      %v9802 = vadd.f32 %v9800, %v9801
      %v9803 = vadd.f32 %v9595, %v9603
      %v9804 = vrot.slane %v9803, 4
      %v9805 = vadd.f32 %v9803, %v9804
      %v9806 = vrot.slane %v9805, 2
      %v9807 = vadd.f32 %v9805, %v9806
      %v9808 = vrot.slane %v9807, 1
      %v9809 = vadd.f32 %v9807, %v9808
      %v9810 = vadd.f32 %v9596, %v9604
      %v9811 = vrot.slane %v9810, 4
      %v9812 = vadd.f32 %v9810, %v9811
      %v9813 = vrot.slane %v9812, 2
      %v9814 = vadd.f32 %v9812, %v9813
      %v9815 = vrot.slane %v9814, 1
      %v9816 = vadd.f32 %v9814, %v9815
      %v9817 = vadd.f32 %v9597, %v9605
      %v9818 = vrot.slane %v9817, 4
      %v9819 = vadd.f32 %v9817, %v9818
      %v9820 = vrot.slane %v9819, 2
      %v9821 = vadd.f32 %v9819, %v9820
      %v9822 = vrot.slane %v9821, 1
      %v9823 = vadd.f32 %v9821, %v9822
      %v9824 = vadd.f32 %v9598, %v9606
      %v9825 = vrot.slane %v9824, 4
      %v9826 = vadd.f32 %v9824, %v9825
      %v9827 = vrot.slane %v9826, 2
      %v9828 = vadd.f32 %v9826, %v9827
      %v9829 = vrot.slane %v9828, 1
      %v9830 = vadd.f32 %v9828, %v9829
      %v9831 = vadd.f32 %v9599, %v9607
      %v9832 = vrot.slane %v9831, 4
      %v9833 = vadd.f32 %v9831, %v9832
      %v9834 = vrot.slane %v9833, 2
      %v9835 = vadd.f32 %v9833, %v9834
      %v9836 = vrot.slane %v9835, 1
      %v9837 = vadd.f32 %v9835, %v9836
      %v9838 = vadd.f32 %v9600, %v9608
      %v9839 = vrot.slane %v9838, 4
      %v9840 = vadd.f32 %v9838, %v9839
      %v9841 = vrot.slane %v9840, 2
      %v9842 = vadd.f32 %v9840, %v9841
      %v9843 = vrot.slane %v9842, 1
      %v9844 = vadd.f32 %v9842, %v9843
      %v9845 = vadd.f32 %v9601, %v9609
      %v9846 = vrot.slane %v9845, 4
      %v9847 = vadd.f32 %v9845, %v9846
      %v9848 = vrot.slane %v9847, 2
      %v9849 = vadd.f32 %v9847, %v9848
      %v9850 = vrot.slane %v9849, 1
      %v9851 = vadd.f32 %v9849, %v9850
      %v9852 = vadd.f32 %v9602, %v9610
      %v9853 = vrot.slane %v9852, 4
      %v9854 = vadd.f32 %v9852, %v9853
      %v9855 = vrot.slane %v9854, 2
      %v9856 = vadd.f32 %v9854, %v9855
      %v9857 = vrot.slane %v9856, 1
      %v9858 = vadd.f32 %v9856, %v9857
      %v9859 = vadd.f32 %v9611, %v9619
      %v9860 = vrot.slane %v9859, 4
      %v9861 = vadd.f32 %v9859, %v9860
      %v9862 = vrot.slane %v9861, 2
      %v9863 = vadd.f32 %v9861, %v9862
      %v9864 = vrot.slane %v9863, 1
      %v9865 = vadd.f32 %v9863, %v9864
      %v9866 = vadd.f32 %v9612, %v9620
      %v9867 = vrot.slane %v9866, 4
      %v9868 = vadd.f32 %v9866, %v9867
      %v9869 = vrot.slane %v9868, 2
      %v9870 = vadd.f32 %v9868, %v9869
      %v9871 = vrot.slane %v9870, 1
      %v9872 = vadd.f32 %v9870, %v9871
      %v9873 = vadd.f32 %v9613, %v9621
      %v9874 = vrot.slane %v9873, 4
      %v9875 = vadd.f32 %v9873, %v9874
      %v9876 = vrot.slane %v9875, 2
      %v9877 = vadd.f32 %v9875, %v9876
      %v9878 = vrot.slane %v9877, 1
      %v9879 = vadd.f32 %v9877, %v9878
      %v9880 = vadd.f32 %v9614, %v9622
      %v9881 = vrot.slane %v9880, 4
      %v9882 = vadd.f32 %v9880, %v9881
      %v9883 = vrot.slane %v9882, 2
      %v9884 = vadd.f32 %v9882, %v9883
      %v9885 = vrot.slane %v9884, 1
      %v9886 = vadd.f32 %v9884, %v9885
      %v9887 = vadd.f32 %v9615, %v9623
      %v9888 = vrot.slane %v9887, 4
      %v9889 = vadd.f32 %v9887, %v9888
      %v9890 = vrot.slane %v9889, 2
      %v9891 = vadd.f32 %v9889, %v9890
      %v9892 = vrot.slane %v9891, 1
      %v9893 = vadd.f32 %v9891, %v9892
      %v9894 = vadd.f32 %v9616, %v9624
      %v9895 = vrot.slane %v9894, 4
      %v9896 = vadd.f32 %v9894, %v9895
      %v9897 = vrot.slane %v9896, 2
      %v9898 = vadd.f32 %v9896, %v9897
      %v9899 = vrot.slane %v9898, 1
      %v9900 = vadd.f32 %v9898, %v9899
      %v9901 = vadd.f32 %v9617, %v9625
      %v9902 = vrot.slane %v9901, 4
      %v9903 = vadd.f32 %v9901, %v9902
      %v9904 = vrot.slane %v9903, 2
      %v9905 = vadd.f32 %v9903, %v9904
      %v9906 = vrot.slane %v9905, 1
      %v9907 = vadd.f32 %v9905, %v9906
      %v9908 = vadd.f32 %v9618, %v9626
      %v9909 = vrot.slane %v9908, 4
      %v9910 = vadd.f32 %v9908, %v9909
      %v9911 = vrot.slane %v9910, 2
      %v9912 = vadd.f32 %v9910, %v9911
      %v9913 = vrot.slane %v9912, 1
      %v9914 = vadd.f32 %v9912, %v9913
      %v9915 = vadd.f32 %v9627, %v9635
      %v9916 = vrot.slane %v9915, 4
      %v9917 = vadd.f32 %v9915, %v9916
      %v9918 = vrot.slane %v9917, 2
      %v9919 = vadd.f32 %v9917, %v9918
      %v9920 = vrot.slane %v9919, 1
      %v9921 = vadd.f32 %v9919, %v9920
      %v9922 = vadd.f32 %v9628, %v9636
      %v9923 = vrot.slane %v9922, 4
      %v9924 = vadd.f32 %v9922, %v9923
      %v9925 = vrot.slane %v9924, 2
      %v9926 = vadd.f32 %v9924, %v9925
      %v9927 = vrot.slane %v9926, 1
      %v9928 = vadd.f32 %v9926, %v9927
      %v9929 = vadd.f32 %v9629, %v9637
      %v9930 = vrot.slane %v9929, 4
      %v9931 = vadd.f32 %v9929, %v9930
      %v9932 = vrot.slane %v9931, 2
      %v9933 = vadd.f32 %v9931, %v9932
      %v9934 = vrot.slane %v9933, 1
      %v9935 = vadd.f32 %v9933, %v9934
      %v9936 = vadd.f32 %v9630, %v9638
      %v9937 = vrot.slane %v9936, 4
      %v9938 = vadd.f32 %v9936, %v9937
      %v9939 = vrot.slane %v9938, 2
      %v9940 = vadd.f32 %v9938, %v9939
      %v9941 = vrot.slane %v9940, 1
      %v9942 = vadd.f32 %v9940, %v9941
      %v9943 = vadd.f32 %v9631, %v9639
      %v9944 = vrot.slane %v9943, 4
      %v9945 = vadd.f32 %v9943, %v9944
      %v9946 = vrot.slane %v9945, 2
      %v9947 = vadd.f32 %v9945, %v9946
      %v9948 = vrot.slane %v9947, 1
      %v9949 = vadd.f32 %v9947, %v9948
      %v9950 = vadd.f32 %v9632, %v9640
      %v9951 = vrot.slane %v9950, 4
      %v9952 = vadd.f32 %v9950, %v9951
      %v9953 = vrot.slane %v9952, 2
      %v9954 = vadd.f32 %v9952, %v9953
      %v9955 = vrot.slane %v9954, 1
      %v9956 = vadd.f32 %v9954, %v9955
      %v9957 = vadd.f32 %v9633, %v9641
      %v9958 = vrot.slane %v9957, 4
      %v9959 = vadd.f32 %v9957, %v9958
      %v9960 = vrot.slane %v9959, 2
      %v9961 = vadd.f32 %v9959, %v9960
      %v9962 = vrot.slane %v9961, 1
      %v9963 = vadd.f32 %v9961, %v9962
      %v9964 = vadd.f32 %v9634, %v9642
      %v9965 = vrot.slane %v9964, 4
      %v9966 = vadd.f32 %v9964, %v9965
      %v9967 = vrot.slane %v9966, 2
      %v9968 = vadd.f32 %v9966, %v9967
      %v9969 = vrot.slane %v9968, 1
      %v9970 = vadd.f32 %v9968, %v9969
      %v9971 = vadd.f32 %v9643, %v9651
      %v9972 = vrot.slane %v9971, 4
      %v9973 = vadd.f32 %v9971, %v9972
      %v9974 = vrot.slane %v9973, 2
      %v9975 = vadd.f32 %v9973, %v9974
      %v9976 = vrot.slane %v9975, 1
      %v9977 = vadd.f32 %v9975, %v9976
      %v9978 = vadd.f32 %v9644, %v9652
      %v9979 = vrot.slane %v9978, 4
      %v9980 = vadd.f32 %v9978, %v9979
      %v9981 = vrot.slane %v9980, 2
      %v9982 = vadd.f32 %v9980, %v9981
      %v9983 = vrot.slane %v9982, 1
      %v9984 = vadd.f32 %v9982, %v9983
      %v9985 = vadd.f32 %v9645, %v9653
      %v9986 = vrot.slane %v9985, 4
      %v9987 = vadd.f32 %v9985, %v9986
      %v9988 = vrot.slane %v9987, 2
      %v9989 = vadd.f32 %v9987, %v9988
      %v9990 = vrot.slane %v9989, 1
      %v9991 = vadd.f32 %v9989, %v9990
      %v9992 = vadd.f32 %v9646, %v9654
      %v9993 = vrot.slane %v9992, 4
      %v9994 = vadd.f32 %v9992, %v9993
      %v9995 = vrot.slane %v9994, 2
      %v9996 = vadd.f32 %v9994, %v9995
      %v9997 = vrot.slane %v9996, 1
      %v9998 = vadd.f32 %v9996, %v9997
      %v9999 = vadd.f32 %v9647, %v9655
      %v10000 = vrot.slane %v9999, 4
      %v10001 = vadd.f32 %v9999, %v10000
      %v10002 = vrot.slane %v10001, 2
      %v10003 = vadd.f32 %v10001, %v10002
      %v10004 = vrot.slane %v10003, 1
      %v10005 = vadd.f32 %v10003, %v10004
      %v10006 = vadd.f32 %v9648, %v9656
      %v10007 = vrot.slane %v10006, 4
      %v10008 = vadd.f32 %v10006, %v10007
      %v10009 = vrot.slane %v10008, 2
      %v10010 = vadd.f32 %v10008, %v10009
      %v10011 = vrot.slane %v10010, 1
      %v10012 = vadd.f32 %v10010, %v10011
      %v10013 = vadd.f32 %v9649, %v9657
      %v10014 = vrot.slane %v10013, 4
      %v10015 = vadd.f32 %v10013, %v10014
      %v10016 = vrot.slane %v10015, 2
      %v10017 = vadd.f32 %v10015, %v10016
      %v10018 = vrot.slane %v10017, 1
      %v10019 = vadd.f32 %v10017, %v10018
      %v10020 = vadd.f32 %v9650, %v9658
      %v10021 = vrot.slane %v10020, 4
      %v10022 = vadd.f32 %v10020, %v10021
      %v10023 = vrot.slane %v10022, 2
      %v10024 = vadd.f32 %v10022, %v10023
      %v10025 = vrot.slane %v10024, 1
      %v10026 = vadd.f32 %v10024, %v10025
      %v10027 = vadd.f32 %v9659, %v9667
      %v10028 = vrot.slane %v10027, 4
      %v10029 = vadd.f32 %v10027, %v10028
      %v10030 = vrot.slane %v10029, 2
      %v10031 = vadd.f32 %v10029, %v10030
      %v10032 = vrot.slane %v10031, 1
      %v10033 = vadd.f32 %v10031, %v10032
      %v10034 = vadd.f32 %v9660, %v9668
      %v10035 = vrot.slane %v10034, 4
      %v10036 = vadd.f32 %v10034, %v10035
      %v10037 = vrot.slane %v10036, 2
      %v10038 = vadd.f32 %v10036, %v10037
      %v10039 = vrot.slane %v10038, 1
      %v10040 = vadd.f32 %v10038, %v10039
      %v10041 = vadd.f32 %v9661, %v9669
      %v10042 = vrot.slane %v10041, 4
      %v10043 = vadd.f32 %v10041, %v10042
      %v10044 = vrot.slane %v10043, 2
      %v10045 = vadd.f32 %v10043, %v10044
      %v10046 = vrot.slane %v10045, 1
      %v10047 = vadd.f32 %v10045, %v10046
      %v10048 = vadd.f32 %v9662, %v9670
      %v10049 = vrot.slane %v10048, 4
      %v10050 = vadd.f32 %v10048, %v10049
      %v10051 = vrot.slane %v10050, 2
      %v10052 = vadd.f32 %v10050, %v10051
      %v10053 = vrot.slane %v10052, 1
      %v10054 = vadd.f32 %v10052, %v10053
      %v10055 = vadd.f32 %v9663, %v9671
      %v10056 = vrot.slane %v10055, 4
      %v10057 = vadd.f32 %v10055, %v10056
      %v10058 = vrot.slane %v10057, 2
      %v10059 = vadd.f32 %v10057, %v10058
      %v10060 = vrot.slane %v10059, 1
      %v10061 = vadd.f32 %v10059, %v10060
      %v10062 = vadd.f32 %v9664, %v9672
      %v10063 = vrot.slane %v10062, 4
      %v10064 = vadd.f32 %v10062, %v10063
      %v10065 = vrot.slane %v10064, 2
      %v10066 = vadd.f32 %v10064, %v10065
      %v10067 = vrot.slane %v10066, 1
      %v10068 = vadd.f32 %v10066, %v10067
      %v10069 = vadd.f32 %v9665, %v9673
      %v10070 = vrot.slane %v10069, 4
      %v10071 = vadd.f32 %v10069, %v10070
      %v10072 = vrot.slane %v10071, 2
      %v10073 = vadd.f32 %v10071, %v10072
      %v10074 = vrot.slane %v10073, 1
      %v10075 = vadd.f32 %v10073, %v10074
      %v10076 = vadd.f32 %v9666, %v9674
      %v10077 = vrot.slane %v10076, 4
      %v10078 = vadd.f32 %v10076, %v10077
      %v10079 = vrot.slane %v10078, 2
      %v10080 = vadd.f32 %v10078, %v10079
      %v10081 = vrot.slane %v10080, 1
      %v10082 = vadd.f32 %v10080, %v10081
      %v10083 = vadd.f32 %v9675, %v9683
      %v10084 = vrot.slane %v10083, 4
      %v10085 = vadd.f32 %v10083, %v10084
      %v10086 = vrot.slane %v10085, 2
      %v10087 = vadd.f32 %v10085, %v10086
      %v10088 = vrot.slane %v10087, 1
      %v10089 = vadd.f32 %v10087, %v10088
      %v10090 = vadd.f32 %v9676, %v9684
      %v10091 = vrot.slane %v10090, 4
      %v10092 = vadd.f32 %v10090, %v10091
      %v10093 = vrot.slane %v10092, 2
      %v10094 = vadd.f32 %v10092, %v10093
      %v10095 = vrot.slane %v10094, 1
      %v10096 = vadd.f32 %v10094, %v10095
      %v10097 = vadd.f32 %v9677, %v9685
      %v10098 = vrot.slane %v10097, 4
      %v10099 = vadd.f32 %v10097, %v10098
      %v10100 = vrot.slane %v10099, 2
      %v10101 = vadd.f32 %v10099, %v10100
      %v10102 = vrot.slane %v10101, 1
      %v10103 = vadd.f32 %v10101, %v10102
      %v10104 = vadd.f32 %v9678, %v9686
      %v10105 = vrot.slane %v10104, 4
      %v10106 = vadd.f32 %v10104, %v10105
      %v10107 = vrot.slane %v10106, 2
      %v10108 = vadd.f32 %v10106, %v10107
      %v10109 = vrot.slane %v10108, 1
      %v10110 = vadd.f32 %v10108, %v10109
      %v10111 = vadd.f32 %v9679, %v9687
      %v10112 = vrot.slane %v10111, 4
      %v10113 = vadd.f32 %v10111, %v10112
      %v10114 = vrot.slane %v10113, 2
      %v10115 = vadd.f32 %v10113, %v10114
      %v10116 = vrot.slane %v10115, 1
      %v10117 = vadd.f32 %v10115, %v10116
      %v10118 = vadd.f32 %v9680, %v9688
      %v10119 = vrot.slane %v10118, 4
      %v10120 = vadd.f32 %v10118, %v10119
      %v10121 = vrot.slane %v10120, 2
      %v10122 = vadd.f32 %v10120, %v10121
      %v10123 = vrot.slane %v10122, 1
      %v10124 = vadd.f32 %v10122, %v10123
      %v10125 = vadd.f32 %v9681, %v9689
      %v10126 = vrot.slane %v10125, 4
      %v10127 = vadd.f32 %v10125, %v10126
      %v10128 = vrot.slane %v10127, 2
      %v10129 = vadd.f32 %v10127, %v10128
      %v10130 = vrot.slane %v10129, 1
      %v10131 = vadd.f32 %v10129, %v10130
      %v10132 = vadd.f32 %v9682, %v9690
      %v10133 = vrot.slane %v10132, 4
      %v10134 = vadd.f32 %v10132, %v10133
      %v10135 = vrot.slane %v10134, 2
      %v10136 = vadd.f32 %v10134, %v10135
      %v10137 = vrot.slane %v10136, 1
      %v10138 = vadd.f32 %v10136, %v10137
      %v10139 = vld [vmem:[%s12] sm:$0xff]
      %v10141 = vlaneseq
      %v10142 = vshrl.u32 %v10141, 7
      %v10143 = vsub.s32 0, %v10142
      %v10144 = vrot.slane %v10139, %v10143
      %v10145 = vlaneseq
      %v10146 = vshrl.u32 %v10145, 7
      %v10147 = vsub.s32 1, %v10146
      %v10148 = vrot.slane %v10139, %v10147
      %v10149 = vlaneseq
      %v10150 = vshrl.u32 %v10149, 7
      %v10151 = vsub.s32 2, %v10150
      %v10152 = vrot.slane %v10139, %v10151
      %v10153 = vlaneseq
      %v10154 = vshrl.u32 %v10153, 7
      %v10155 = vsub.s32 3, %v10154
      %v10156 = vrot.slane %v10139, %v10155
      %v10157 = vlaneseq
      %v10158 = vshrl.u32 %v10157, 7
      %v10159 = vsub.s32 4, %v10158
      %v10160 = vrot.slane %v10139, %v10159
      %v10161 = vlaneseq
      %v10162 = vshrl.u32 %v10161, 7
      %v10163 = vsub.s32 5, %v10162
      %v10164 = vrot.slane %v10139, %v10163
      %v10165 = vlaneseq
      %v10166 = vshrl.u32 %v10165, 7
      %v10167 = vsub.s32 6, %v10166
      %v10168 = vrot.slane %v10139, %v10167
      %v10169 = vlaneseq
      %v10170 = vshrl.u32 %v10169, 7
      %v10171 = vsub.s32 7, %v10170
      %v10172 = vrot.slane %v10139, %v10171
      %v10181 = vmul.f32 %v10144, %v4931
      %v10182 = vmul.f32 %v10148, %v4932
      %v10183 = vmul.f32 %v10152, %v4933
      %v10184 = vmul.f32 %v10156, %v4934
      %v10185 = vmul.f32 %v10160, %v4935
      %v10186 = vmul.f32 %v10164, %v4936
      %v10187 = vmul.f32 %v10168, %v4937
      %v10188 = vmul.f32 %v10172, %v4938
      %v10197 = vrot.slane %v10181, 1
      %v10198 = vrot.slane %v10182, 1
      %v10199 = vrot.slane %v10183, 1
      %v10200 = vrot.slane %v10184, 1
      %v10201 = vrot.slane %v10185, 1
      %v10202 = vrot.slane %v10186, 1
      %v10203 = vrot.slane %v10187, 1
      %v10204 = vrot.slane %v10188, 1
      %v10205 = vrot.slane %v10181, 2
      %v10206 = vrot.slane %v10182, 2
      %v10207 = vrot.slane %v10183, 2
      %v10208 = vrot.slane %v10184, 2
      %v10209 = vrot.slane %v10185, 2
      %v10210 = vrot.slane %v10186, 2
      %v10211 = vrot.slane %v10187, 2
      %v10212 = vrot.slane %v10188, 2
      %v10213 = vrot.slane %v10181, 3
      %v10214 = vrot.slane %v10182, 3
      %v10215 = vrot.slane %v10183, 3
      %v10216 = vrot.slane %v10184, 3
      %v10217 = vrot.slane %v10185, 3
      %v10218 = vrot.slane %v10186, 3
      %v10219 = vrot.slane %v10187, 3
      %v10220 = vrot.slane %v10188, 3
      %v10221 = vrot.slane %v10181, 4
      %v10222 = vrot.slane %v10182, 4
      %v10223 = vrot.slane %v10183, 4
      %v10224 = vrot.slane %v10184, 4
      %v10225 = vrot.slane %v10185, 4
      %v10226 = vrot.slane %v10186, 4
      %v10227 = vrot.slane %v10187, 4
      %v10228 = vrot.slane %v10188, 4
      %v10229 = vrot.slane %v10181, 5
      %v10230 = vrot.slane %v10182, 5
      %v10231 = vrot.slane %v10183, 5
      %v10232 = vrot.slane %v10184, 5
      %v10233 = vrot.slane %v10185, 5
      %v10234 = vrot.slane %v10186, 5
      %v10235 = vrot.slane %v10187, 5
      %v10236 = vrot.slane %v10188, 5
      %v10237 = vrot.slane %v10181, 6
      %v10238 = vrot.slane %v10182, 6
      %v10239 = vrot.slane %v10183, 6
      %v10240 = vrot.slane %v10184, 6
      %v10241 = vrot.slane %v10185, 6
      %v10242 = vrot.slane %v10186, 6
      %v10243 = vrot.slane %v10187, 6
      %v10244 = vrot.slane %v10188, 6
      %v10245 = vrot.slane %v10181, 7
      %v10246 = vrot.slane %v10182, 7
      %v10247 = vrot.slane %v10183, 7
      %v10248 = vrot.slane %v10184, 7
      %v10249 = vrot.slane %v10185, 7
      %v10250 = vrot.slane %v10186, 7
      %v10251 = vrot.slane %v10187, 7
      %v10252 = vrot.slane %v10188, 7
      %v10317 = vadd.f32 %v9697, %v10181
      %v10318 = vadd.f32 %v9704, %v10182
      %v10319 = vadd.f32 %v9711, %v10183
      %v10320 = vadd.f32 %v9718, %v10184
      %v10321 = vadd.f32 %v9725, %v10185
      %v10322 = vadd.f32 %v9732, %v10186
      %v10323 = vadd.f32 %v9739, %v10187
      %v10324 = vadd.f32 %v9746, %v10188
      %v10325 = vadd.f32 %v9753, %v10197
      %v10326 = vadd.f32 %v9760, %v10198
      %v10327 = vadd.f32 %v9767, %v10199
      %v10328 = vadd.f32 %v9774, %v10200
      %v10329 = vadd.f32 %v9781, %v10201
      %v10330 = vadd.f32 %v9788, %v10202
      %v10331 = vadd.f32 %v9795, %v10203
      %v10332 = vadd.f32 %v9802, %v10204
      %v10333 = vadd.f32 %v9809, %v10205
      %v10334 = vadd.f32 %v9816, %v10206
      %v10335 = vadd.f32 %v9823, %v10207
      %v10336 = vadd.f32 %v9830, %v10208
      %v10337 = vadd.f32 %v9837, %v10209
      %v10338 = vadd.f32 %v9844, %v10210
      %v10339 = vadd.f32 %v9851, %v10211
      %v10340 = vadd.f32 %v9858, %v10212
      %v10341 = vadd.f32 %v9865, %v10213
      %v10342 = vadd.f32 %v9872, %v10214
      %v10343 = vadd.f32 %v9879, %v10215
      %v10344 = vadd.f32 %v9886, %v10216
      %v10345 = vadd.f32 %v9893, %v10217
      %v10346 = vadd.f32 %v9900, %v10218
      %v10347 = vadd.f32 %v9907, %v10219
      %v10348 = vadd.f32 %v9914, %v10220
      %v10349 = vadd.f32 %v9921, %v10221
      %v10350 = vadd.f32 %v9928, %v10222
      %v10351 = vadd.f32 %v9935, %v10223
      %v10352 = vadd.f32 %v9942, %v10224
      %v10353 = vadd.f32 %v9949, %v10225
      %v10354 = vadd.f32 %v9956, %v10226
      %v10355 = vadd.f32 %v9963, %v10227
      %v10356 = vadd.f32 %v9970, %v10228
      %v10357 = vadd.f32 %v9977, %v10229
      %v10358 = vadd.f32 %v9984, %v10230
      %v10359 = vadd.f32 %v9991, %v10231
      %v10360 = vadd.f32 %v9998, %v10232
      %v10361 = vadd.f32 %v10005, %v10233
      %v10362 = vadd.f32 %v10012, %v10234
      %v10363 = vadd.f32 %v10019, %v10235
      %v10364 = vadd.f32 %v10026, %v10236
      %v10365 = vadd.f32 %v10033, %v10237
      %v10366 = vadd.f32 %v10040, %v10238
      %v10367 = vadd.f32 %v10047, %v10239
      %v10368 = vadd.f32 %v10054, %v10240
      %v10369 = vadd.f32 %v10061, %v10241
      %v10370 = vadd.f32 %v10068, %v10242
      %v10371 = vadd.f32 %v10075, %v10243
      %v10372 = vadd.f32 %v10082, %v10244
      %v10373 = vadd.f32 %v10089, %v10245
      %v10374 = vadd.f32 %v10096, %v10246
      %v10375 = vadd.f32 %v10103, %v10247
      %v10376 = vadd.f32 %v10110, %v10248
      %v10377 = vadd.f32 %v10117, %v10249
      %v10378 = vadd.f32 %v10124, %v10250
      %v10379 = vadd.f32 %v10131, %v10251
      %v10380 = vadd.f32 %v10138, %v10252
      %v10381 = vsub.f32 0.0, %v4176
      %v10382 = vsub.f32 0.0, %v4178
      %v10383 = vsub.f32 0.0, %v4258
      %v10384 = vsub.f32 0.0, %v4260
      %v10385 = vsub.f32 0.0, %v4340
      %v10386 = vsub.f32 0.0, %v4342
      %v10387 = vsub.f32 0.0, %v4422
      %v10388 = vsub.f32 0.0, %v4424
      %v10389 = vmul.f32 %v10381, 1.442695
      %v10390 = vpow.pop %v10389
      %v10391 = vmul.f32 %v10382, 1.442695
      %v10392 = vpow.pop %v10391
      %v10393 = vmul.f32 %v10383, 1.442695
      %v10394 = vpow.pop %v10393
      %v10395 = vmul.f32 %v10384, 1.442695
      %v10396 = vpow.pop %v10395
      %v10397 = vmul.f32 %v10385, 1.442695
      %v10398 = vpow.pop %v10397
      %v10399 = vmul.f32 %v10386, 1.442695
      %v10400 = vpow.pop %v10399
      %v10401 = vmul.f32 %v10387, 1.442695
      %v10402 = vpow.pop %v10401
      %v10403 = vmul.f32 %v10388, 1.442695
      %v10404 = vpow.pop %v10403
      %v10405 = vadd.f32 %v10390, 1.0
      %v10406 = vadd.f32 %v10392, 1.0
      %v10407 = vadd.f32 %v10394, 1.0
      %v10408 = vadd.f32 %v10396, 1.0
      %v10409 = vadd.f32 %v10398, 1.0
      %v10410 = vadd.f32 %v10400, 1.0
      %v10411 = vadd.f32 %v10402, 1.0
      %v10412 = vadd.f32 %v10404, 1.0
      %v10413 = vrcp.pop %v10405
      %v10414 = vmul.f32 1.0, %v10413
      %v10415 = vrcp.pop %v10406
      %v10416 = vmul.f32 1.0, %v10415
      %v10417 = vrcp.pop %v10407
      %v10418 = vmul.f32 1.0, %v10417
      %v10419 = vrcp.pop %v10408
      %v10420 = vmul.f32 1.0, %v10419
      %v10421 = vrcp.pop %v10409
      %v10422 = vmul.f32 1.0, %v10421
      %v10423 = vrcp.pop %v10410
      %v10424 = vmul.f32 1.0, %v10423
      %v10425 = vrcp.pop %v10411
      %v10426 = vmul.f32 1.0, %v10425
      %v10427 = vrcp.pop %v10412
      %v10428 = vmul.f32 1.0, %v10427
      %v10429 = vmul.f32 %v4176, %v10414
      %v10430 = vmul.f32 %v4178, %v10416
      %v10431 = vmul.f32 %v4258, %v10418
      %v10432 = vmul.f32 %v4260, %v10420
      %v10433 = vmul.f32 %v4340, %v10422
      %v10434 = vmul.f32 %v4342, %v10424
      %v10435 = vmul.f32 %v4422, %v10426
      %v10436 = vmul.f32 %v4424, %v10428
      %v10445 = vrot.slane %v10429, 1
      %v10446 = vrot.slane %v10430, 1
      %v10447 = vrot.slane %v10431, 1
      %v10448 = vrot.slane %v10432, 1
      %v10449 = vrot.slane %v10433, 1
      %v10450 = vrot.slane %v10434, 1
      %v10451 = vrot.slane %v10435, 1
      %v10452 = vrot.slane %v10436, 1
      %v10453 = vrot.slane %v10429, 2
      %v10454 = vrot.slane %v10430, 2
      %v10455 = vrot.slane %v10431, 2
      %v10456 = vrot.slane %v10432, 2
      %v10457 = vrot.slane %v10433, 2
      %v10458 = vrot.slane %v10434, 2
      %v10459 = vrot.slane %v10435, 2
      %v10460 = vrot.slane %v10436, 2
      %v10461 = vrot.slane %v10429, 3
      %v10462 = vrot.slane %v10430, 3
      %v10463 = vrot.slane %v10431, 3
      %v10464 = vrot.slane %v10432, 3
      %v10465 = vrot.slane %v10433, 3
      %v10466 = vrot.slane %v10434, 3
      %v10467 = vrot.slane %v10435, 3
      %v10468 = vrot.slane %v10436, 3
      %v10469 = vrot.slane %v10429, 4
      %v10470 = vrot.slane %v10430, 4
      %v10471 = vrot.slane %v10431, 4
      %v10472 = vrot.slane %v10432, 4
      %v10473 = vrot.slane %v10433, 4
      %v10474 = vrot.slane %v10434, 4
      %v10475 = vrot.slane %v10435, 4
      %v10476 = vrot.slane %v10436, 4
      %v10477 = vrot.slane %v10429, 5
      %v10478 = vrot.slane %v10430, 5
      %v10479 = vrot.slane %v10431, 5
      %v10480 = vrot.slane %v10432, 5
      %v10481 = vrot.slane %v10433, 5
      %v10482 = vrot.slane %v10434, 5
      %v10483 = vrot.slane %v10435, 5
      %v10484 = vrot.slane %v10436, 5
      %v10485 = vrot.slane %v10429, 6
      %v10486 = vrot.slane %v10430, 6
      %v10487 = vrot.slane %v10431, 6
      %v10488 = vrot.slane %v10432, 6
      %v10489 = vrot.slane %v10433, 6
      %v10490 = vrot.slane %v10434, 6
      %v10491 = vrot.slane %v10435, 6
      %v10492 = vrot.slane %v10436, 6
      %v10493 = vrot.slane %v10429, 7
      %v10494 = vrot.slane %v10430, 7
      %v10495 = vrot.slane %v10431, 7
      %v10496 = vrot.slane %v10432, 7
      %v10497 = vrot.slane %v10433, 7
      %v10498 = vrot.slane %v10434, 7
      %v10499 = vrot.slane %v10435, 7
      %v10500 = vrot.slane %v10436, 7
      %v10565 = vmul.f32 %v10317, %v10429
      %v10566 = vmul.f32 %v10318, %v10430
      %v10567 = vmul.f32 %v10319, %v10431
      %v10568 = vmul.f32 %v10320, %v10432
      %v10569 = vmul.f32 %v10321, %v10433
      %v10570 = vmul.f32 %v10322, %v10434
      %v10571 = vmul.f32 %v10323, %v10435
      %v10572 = vmul.f32 %v10324, %v10436
      %v10573 = vmul.f32 %v10325, %v10445
      %v10574 = vmul.f32 %v10326, %v10446
      %v10575 = vmul.f32 %v10327, %v10447
      %v10576 = vmul.f32 %v10328, %v10448
      %v10577 = vmul.f32 %v10329, %v10449
      %v10578 = vmul.f32 %v10330, %v10450
      %v10579 = vmul.f32 %v10331, %v10451
      %v10580 = vmul.f32 %v10332, %v10452
      %v10581 = vmul.f32 %v10333, %v10453
      %v10582 = vmul.f32 %v10334, %v10454
      %v10583 = vmul.f32 %v10335, %v10455
      %v10584 = vmul.f32 %v10336, %v10456
      %v10585 = vmul.f32 %v10337, %v10457
      %v10586 = vmul.f32 %v10338, %v10458
      %v10587 = vmul.f32 %v10339, %v10459
      %v10588 = vmul.f32 %v10340, %v10460
      %v10589 = vmul.f32 %v10341, %v10461
      %v10590 = vmul.f32 %v10342, %v10462
      %v10591 = vmul.f32 %v10343, %v10463
      %v10592 = vmul.f32 %v10344, %v10464
      %v10593 = vmul.f32 %v10345, %v10465
      %v10594 = vmul.f32 %v10346, %v10466
      %v10595 = vmul.f32 %v10347, %v10467
      %v10596 = vmul.f32 %v10348, %v10468
      %v10597 = vmul.f32 %v10349, %v10469
      %v10598 = vmul.f32 %v10350, %v10470
      %v10599 = vmul.f32 %v10351, %v10471
      %v10600 = vmul.f32 %v10352, %v10472
      %v10601 = vmul.f32 %v10353, %v10473
      %v10602 = vmul.f32 %v10354, %v10474
      %v10603 = vmul.f32 %v10355, %v10475
      %v10604 = vmul.f32 %v10356, %v10476
      %v10605 = vmul.f32 %v10357, %v10477
      %v10606 = vmul.f32 %v10358, %v10478
      %v10607 = vmul.f32 %v10359, %v10479
      %v10608 = vmul.f32 %v10360, %v10480
      %v10609 = vmul.f32 %v10361, %v10481
      %v10610 = vmul.f32 %v10362, %v10482
      %v10611 = vmul.f32 %v10363, %v10483
      %v10612 = vmul.f32 %v10364, %v10484
      %v10613 = vmul.f32 %v10365, %v10485
      %v10614 = vmul.f32 %v10366, %v10486
      %v10615 = vmul.f32 %v10367, %v10487
      %v10616 = vmul.f32 %v10368, %v10488
      %v10617 = vmul.f32 %v10369, %v10489
      %v10618 = vmul.f32 %v10370, %v10490
      %v10619 = vmul.f32 %v10371, %v10491
      %v10620 = vmul.f32 %v10372, %v10492
      %v10621 = vmul.f32 %v10373, %v10493
      %v10622 = vmul.f32 %v10374, %v10494
      %v10623 = vmul.f32 %v10375, %v10495
      %v10624 = vmul.f32 %v10376, %v10496
      %v10625 = vmul.f32 %v10377, %v10497
      %v10626 = vmul.f32 %v10378, %v10498
      %v10627 = vmul.f32 %v10379, %v10499
      %v10628 = vmul.f32 %v10380, %v10500
      %v10629 = vpack.c.bf16 %v10565, %v10565
      %v10630 = vpack.c.bf16 %v10566, %v10566
      %v10631 = vpack.c.bf16 %v10567, %v10567
      %v10632 = vpack.c.bf16 %v10568, %v10568
      %v10633 = vpack.c.bf16 %v10569, %v10569
      %v10634 = vpack.c.bf16 %v10570, %v10570
      %v10635 = vpack.c.bf16 %v10571, %v10571
      %v10636 = vpack.c.bf16 %v10572, %v10572
      %v10637 = vpack.c.bf16 %v10573, %v10573
      %v10638 = vpack.c.bf16 %v10574, %v10574
      %v10639 = vpack.c.bf16 %v10575, %v10575
      %v10640 = vpack.c.bf16 %v10576, %v10576
      %v10641 = vpack.c.bf16 %v10577, %v10577
      %v10642 = vpack.c.bf16 %v10578, %v10578
      %v10643 = vpack.c.bf16 %v10579, %v10579
      %v10644 = vpack.c.bf16 %v10580, %v10580
      %v10645 = vpack.c.bf16 %v10581, %v10581
      %v10646 = vpack.c.bf16 %v10582, %v10582
      %v10647 = vpack.c.bf16 %v10583, %v10583
      %v10648 = vpack.c.bf16 %v10584, %v10584
      %v10649 = vpack.c.bf16 %v10585, %v10585
      %v10650 = vpack.c.bf16 %v10586, %v10586
      %v10651 = vpack.c.bf16 %v10587, %v10587
      %v10652 = vpack.c.bf16 %v10588, %v10588
      %v10653 = vpack.c.bf16 %v10589, %v10589
      %v10654 = vpack.c.bf16 %v10590, %v10590
      %v10655 = vpack.c.bf16 %v10591, %v10591
      %v10656 = vpack.c.bf16 %v10592, %v10592
      %v10657 = vpack.c.bf16 %v10593, %v10593
      %v10658 = vpack.c.bf16 %v10594, %v10594
      %v10659 = vpack.c.bf16 %v10595, %v10595
      %v10660 = vpack.c.bf16 %v10596, %v10596
      %v10661 = vpack.c.bf16 %v10597, %v10597
      %v10662 = vpack.c.bf16 %v10598, %v10598
      %v10663 = vpack.c.bf16 %v10599, %v10599
      %v10664 = vpack.c.bf16 %v10600, %v10600
      %v10665 = vpack.c.bf16 %v10601, %v10601
      %v10666 = vpack.c.bf16 %v10602, %v10602
      %v10667 = vpack.c.bf16 %v10603, %v10603
      %v10668 = vpack.c.bf16 %v10604, %v10604
      %v10669 = vpack.c.bf16 %v10605, %v10605
      %v10670 = vpack.c.bf16 %v10606, %v10606
      %v10671 = vpack.c.bf16 %v10607, %v10607
      %v10672 = vpack.c.bf16 %v10608, %v10608
      %v10673 = vpack.c.bf16 %v10609, %v10609
      %v10674 = vpack.c.bf16 %v10610, %v10610
      %v10675 = vpack.c.bf16 %v10611, %v10611
      %v10676 = vpack.c.bf16 %v10612, %v10612
      %v10677 = vpack.c.bf16 %v10613, %v10613
      %v10678 = vpack.c.bf16 %v10614, %v10614
      %v10679 = vpack.c.bf16 %v10615, %v10615
      %v10680 = vpack.c.bf16 %v10616, %v10616
      %v10681 = vpack.c.bf16 %v10617, %v10617
      %v10682 = vpack.c.bf16 %v10618, %v10618
      %v10683 = vpack.c.bf16 %v10619, %v10619
      %v10684 = vpack.c.bf16 %v10620, %v10620
      %v10685 = vpack.c.bf16 %v10621, %v10621
      %v10686 = vpack.c.bf16 %v10622, %v10622
      %v10687 = vpack.c.bf16 %v10623, %v10623
      %v10688 = vpack.c.bf16 %v10624, %v10624
      %v10689 = vpack.c.bf16 %v10625, %v10625
      %v10690 = vpack.c.bf16 %v10626, %v10626
      %v10691 = vpack.c.bf16 %v10627, %v10627
      %v10692 = vpack.c.bf16 %v10628, %v10628
      %v10693 = vld [vmem:[%s13] sm:$0xff]
      %v10694 = vld [vmem:[%s13 + $0x8] sm:$0xff]
      %v10695 = vld [vmem:[%s13 + $0x10] sm:$0xff]
      %v10696 = vld [vmem:[%s13 + $0x18] sm:$0xff]
      %v10697 = vld [vmem:[%s13 + $0x20] sm:$0xff]
      %v10698 = vld [vmem:[%s13 + $0x28] sm:$0xff]
      %v10699 = vld [vmem:[%s13 + $0x30] sm:$0xff]
      %v10700 = vld [vmem:[%s13 + $0x38] sm:$0xff]
      %v10701 = vld [vmem:[%s13 + $0x40] sm:$0xff]
      %v10702 = vld [vmem:[%s13 + $0x48] sm:$0xff]
      %v10703 = vld [vmem:[%s13 + $0x50] sm:$0xff]
      %v10704 = vld [vmem:[%s13 + $0x58] sm:$0xff]
      %v10705 = vld [vmem:[%s13 + $0x60] sm:$0xff]
      %v10706 = vld [vmem:[%s13 + $0x68] sm:$0xff]
      %v10707 = vld [vmem:[%s13 + $0x70] sm:$0xff]
      %v10708 = vld [vmem:[%s13 + $0x78] sm:$0xff]
      %v10709 = vld [vmem:[%s13 + $0x80] sm:$0xff]
      %v10710 = vld [vmem:[%s13 + $0x88] sm:$0xff]
      %v10711 = vld [vmem:[%s13 + $0x90] sm:$0xff]
      %v10712 = vld [vmem:[%s13 + $0x98] sm:$0xff]
      %v10713 = vld [vmem:[%s13 + $0xa0] sm:$0xff]
      %v10714 = vld [vmem:[%s13 + $0xa8] sm:$0xff]
      %v10715 = vld [vmem:[%s13 + $0xb0] sm:$0xff]
      %v10716 = vld [vmem:[%s13 + $0xb8] sm:$0xff]
      %v10717 = vld [vmem:[%s13 + $0xc0] sm:$0xff]
      %v10718 = vld [vmem:[%s13 + $0xc8] sm:$0xff]
      %v10719 = vld [vmem:[%s13 + $0xd0] sm:$0xff]
      %v10720 = vld [vmem:[%s13 + $0xd8] sm:$0xff]
      %v10721 = vld [vmem:[%s13 + $0xe0] sm:$0xff]
      %v10722 = vld [vmem:[%s13 + $0xe8] sm:$0xff]
      %v10723 = vld [vmem:[%s13 + $0xf0] sm:$0xff]
      %v10724 = vld [vmem:[%s13 + $0xf8] sm:$0xff]
      %v10725 = vld [vmem:[%s13 + $0x100] sm:$0xff]
      %v10726 = vld [vmem:[%s13 + $0x108] sm:$0xff]
      %v10727 = vld [vmem:[%s13 + $0x110] sm:$0xff]
      %v10728 = vld [vmem:[%s13 + $0x118] sm:$0xff]
      %v10729 = vld [vmem:[%s13 + $0x120] sm:$0xff]
      %v10730 = vld [vmem:[%s13 + $0x128] sm:$0xff]
      %v10731 = vld [vmem:[%s13 + $0x130] sm:$0xff]
      %v10732 = vld [vmem:[%s13 + $0x138] sm:$0xff]
      %v10733 = vld [vmem:[%s13 + $0x140] sm:$0xff]
      %v10734 = vld [vmem:[%s13 + $0x148] sm:$0xff]
      %v10735 = vld [vmem:[%s13 + $0x150] sm:$0xff]
      %v10736 = vld [vmem:[%s13 + $0x158] sm:$0xff]
      %v10737 = vld [vmem:[%s13 + $0x160] sm:$0xff]
      %v10738 = vld [vmem:[%s13 + $0x168] sm:$0xff]
      %v10739 = vld [vmem:[%s13 + $0x170] sm:$0xff]
      %v10740 = vld [vmem:[%s13 + $0x178] sm:$0xff]
      %v10741 = vld [vmem:[%s13 + $0x180] sm:$0xff]
      %v10742 = vld [vmem:[%s13 + $0x188] sm:$0xff]
      %v10743 = vld [vmem:[%s13 + $0x190] sm:$0xff]
      %v10744 = vld [vmem:[%s13 + $0x198] sm:$0xff]
      %v10745 = vld [vmem:[%s13 + $0x1a0] sm:$0xff]
      %v10746 = vld [vmem:[%s13 + $0x1a8] sm:$0xff]
      %v10747 = vld [vmem:[%s13 + $0x1b0] sm:$0xff]
      %v10748 = vld [vmem:[%s13 + $0x1b8] sm:$0xff]
      %v10749 = vld [vmem:[%s13 + $0x1c0] sm:$0xff]
      %v10750 = vld [vmem:[%s13 + $0x1c8] sm:$0xff]
      %v10751 = vld [vmem:[%s13 + $0x1d0] sm:$0xff]
      %v10752 = vld [vmem:[%s13 + $0x1d8] sm:$0xff]
      %v10753 = vld [vmem:[%s13 + $0x1e0] sm:$0xff]
      %v10754 = vld [vmem:[%s13 + $0x1e8] sm:$0xff]
      %v10755 = vld [vmem:[%s13 + $0x1f0] sm:$0xff]
      %v10756 = vld [vmem:[%s13 + $0x1f8] sm:$0xff]
      %v10757 = vld [vmem:[%s13 + $0x200] sm:$0xff]
      %v10758 = vld [vmem:[%s13 + $0x208] sm:$0xff]
      %v10759 = vld [vmem:[%s13 + $0x210] sm:$0xff]
      %v10760 = vld [vmem:[%s13 + $0x218] sm:$0xff]
      %v10761 = vld [vmem:[%s13 + $0x220] sm:$0xff]
      %v10762 = vld [vmem:[%s13 + $0x228] sm:$0xff]
      %v10763 = vld [vmem:[%s13 + $0x230] sm:$0xff]
      %v10764 = vld [vmem:[%s13 + $0x238] sm:$0xff]
      %v10765 = vld [vmem:[%s13 + $0x240] sm:$0xff]
      %v10766 = vld [vmem:[%s13 + $0x248] sm:$0xff]
      %v10767 = vld [vmem:[%s13 + $0x250] sm:$0xff]
      %v10768 = vld [vmem:[%s13 + $0x258] sm:$0xff]
      %v10769 = vld [vmem:[%s13 + $0x260] sm:$0xff]
      %v10770 = vld [vmem:[%s13 + $0x268] sm:$0xff]
      %v10771 = vld [vmem:[%s13 + $0x270] sm:$0xff]
      %v10772 = vld [vmem:[%s13 + $0x278] sm:$0xff]
      %v10773 = vld [vmem:[%s13 + $0x280] sm:$0xff]
      %v10774 = vld [vmem:[%s13 + $0x288] sm:$0xff]
      %v10775 = vld [vmem:[%s13 + $0x290] sm:$0xff]
      %v10776 = vld [vmem:[%s13 + $0x298] sm:$0xff]
      %v10777 = vld [vmem:[%s13 + $0x2a0] sm:$0xff]
      %v10778 = vld [vmem:[%s13 + $0x2a8] sm:$0xff]
      %v10779 = vld [vmem:[%s13 + $0x2b0] sm:$0xff]
      %v10780 = vld [vmem:[%s13 + $0x2b8] sm:$0xff]
      %v10781 = vld [vmem:[%s13 + $0x2c0] sm:$0xff]
      %v10782 = vld [vmem:[%s13 + $0x2c8] sm:$0xff]
      %v10783 = vld [vmem:[%s13 + $0x2d0] sm:$0xff]
      %v10784 = vld [vmem:[%s13 + $0x2d8] sm:$0xff]
      %v10785 = vld [vmem:[%s13 + $0x2e0] sm:$0xff]
      %v10786 = vld [vmem:[%s13 + $0x2e8] sm:$0xff]
      %v10787 = vld [vmem:[%s13 + $0x2f0] sm:$0xff]
      %v10788 = vld [vmem:[%s13 + $0x2f8] sm:$0xff]
      %v10789 = vld [vmem:[%s13 + $0x300] sm:$0xff]
      %v10790 = vld [vmem:[%s13 + $0x308] sm:$0xff]
      %v10791 = vld [vmem:[%s13 + $0x310] sm:$0xff]
      %v10792 = vld [vmem:[%s13 + $0x318] sm:$0xff]
      %v10793 = vld [vmem:[%s13 + $0x320] sm:$0xff]
      %v10794 = vld [vmem:[%s13 + $0x328] sm:$0xff]
      %v10795 = vld [vmem:[%s13 + $0x330] sm:$0xff]
      %v10796 = vld [vmem:[%s13 + $0x338] sm:$0xff]
      %v10797 = vld [vmem:[%s13 + $0x340] sm:$0xff]
      %v10798 = vld [vmem:[%s13 + $0x348] sm:$0xff]
      %v10799 = vld [vmem:[%s13 + $0x350] sm:$0xff]
      %v10800 = vld [vmem:[%s13 + $0x358] sm:$0xff]
      %v10801 = vld [vmem:[%s13 + $0x360] sm:$0xff]
      %v10802 = vld [vmem:[%s13 + $0x368] sm:$0xff]
      %v10803 = vld [vmem:[%s13 + $0x370] sm:$0xff]
      %v10804 = vld [vmem:[%s13 + $0x378] sm:$0xff]
      %v10805 = vld [vmem:[%s13 + $0x380] sm:$0xff]
      %v10806 = vld [vmem:[%s13 + $0x388] sm:$0xff]
      %v10807 = vld [vmem:[%s13 + $0x390] sm:$0xff]
      %v10808 = vld [vmem:[%s13 + $0x398] sm:$0xff]
      %v10809 = vld [vmem:[%s13 + $0x3a0] sm:$0xff]
      %v10810 = vld [vmem:[%s13 + $0x3a8] sm:$0xff]
      %v10811 = vld [vmem:[%s13 + $0x3b0] sm:$0xff]
      %v10812 = vld [vmem:[%s13 + $0x3b8] sm:$0xff]
      %v10813 = vld [vmem:[%s13 + $0x3c0] sm:$0xff]
      %v10814 = vld [vmem:[%s13 + $0x3c8] sm:$0xff]
      %v10815 = vld [vmem:[%s13 + $0x3d0] sm:$0xff]
      %v10816 = vld [vmem:[%s13 + $0x3d8] sm:$0xff]
      %v10817 = vld [vmem:[%s13 + $0x3e0] sm:$0xff]
      %v10818 = vld [vmem:[%s13 + $0x3e8] sm:$0xff]
      %v10819 = vld [vmem:[%s13 + $0x3f0] sm:$0xff]
      %v10820 = vld [vmem:[%s13 + $0x3f8] sm:$0xff]
      %v10821 = vld [vmem:[%s13 + $0x400] sm:$0xff]
      %v10822 = vld [vmem:[%s13 + $0x408] sm:$0xff]
      %v10823 = vld [vmem:[%s13 + $0x410] sm:$0xff]
      %v10824 = vld [vmem:[%s13 + $0x418] sm:$0xff]
      %v10825 = vld [vmem:[%s13 + $0x420] sm:$0xff]
      %v10826 = vld [vmem:[%s13 + $0x428] sm:$0xff]
      %v10827 = vld [vmem:[%s13 + $0x430] sm:$0xff]
      %v10828 = vld [vmem:[%s13 + $0x438] sm:$0xff]
      %v10829 = vld [vmem:[%s13 + $0x440] sm:$0xff]
      %v10830 = vld [vmem:[%s13 + $0x448] sm:$0xff]
      %v10831 = vld [vmem:[%s13 + $0x450] sm:$0xff]
      %v10832 = vld [vmem:[%s13 + $0x458] sm:$0xff]
      %v10833 = vld [vmem:[%s13 + $0x460] sm:$0xff]
      %v10834 = vld [vmem:[%s13 + $0x468] sm:$0xff]
      %v10835 = vld [vmem:[%s13 + $0x470] sm:$0xff]
      %v10836 = vld [vmem:[%s13 + $0x478] sm:$0xff]
      %v10837 = vld [vmem:[%s13 + $0x480] sm:$0xff]
      %v10838 = vld [vmem:[%s13 + $0x488] sm:$0xff]
      %v10839 = vld [vmem:[%s13 + $0x490] sm:$0xff]
      %v10840 = vld [vmem:[%s13 + $0x498] sm:$0xff]
      %v10841 = vld [vmem:[%s13 + $0x4a0] sm:$0xff]
      %v10842 = vld [vmem:[%s13 + $0x4a8] sm:$0xff]
      %v10843 = vld [vmem:[%s13 + $0x4b0] sm:$0xff]
      %v10844 = vld [vmem:[%s13 + $0x4b8] sm:$0xff]
      %v10845 = vld [vmem:[%s13 + $0x4c0] sm:$0xff]
      %v10846 = vld [vmem:[%s13 + $0x4c8] sm:$0xff]
      %v10847 = vld [vmem:[%s13 + $0x4d0] sm:$0xff]
      %v10848 = vld [vmem:[%s13 + $0x4d8] sm:$0xff]
      %v10849 = vld [vmem:[%s13 + $0x4e0] sm:$0xff]
      %v10850 = vld [vmem:[%s13 + $0x4e8] sm:$0xff]
      %v10851 = vld [vmem:[%s13 + $0x4f0] sm:$0xff]
      %v10852 = vld [vmem:[%s13 + $0x4f8] sm:$0xff]
      %v10853 = vld [vmem:[%s13 + $0x500] sm:$0xff]
      %v10854 = vld [vmem:[%s13 + $0x508] sm:$0xff]
      %v10855 = vld [vmem:[%s13 + $0x510] sm:$0xff]
      %v10856 = vld [vmem:[%s13 + $0x518] sm:$0xff]
      %v10857 = vld [vmem:[%s13 + $0x520] sm:$0xff]
      %v10858 = vld [vmem:[%s13 + $0x528] sm:$0xff]
      %v10859 = vld [vmem:[%s13 + $0x530] sm:$0xff]
      %v10860 = vld [vmem:[%s13 + $0x538] sm:$0xff]
      %v10861 = vld [vmem:[%s13 + $0x540] sm:$0xff]
      %v10862 = vld [vmem:[%s13 + $0x548] sm:$0xff]
      %v10863 = vld [vmem:[%s13 + $0x550] sm:$0xff]
      %v10864 = vld [vmem:[%s13 + $0x558] sm:$0xff]
      %v10865 = vld [vmem:[%s13 + $0x560] sm:$0xff]
      %v10866 = vld [vmem:[%s13 + $0x568] sm:$0xff]
      %v10867 = vld [vmem:[%s13 + $0x570] sm:$0xff]
      %v10868 = vld [vmem:[%s13 + $0x578] sm:$0xff]
      %v10869 = vld [vmem:[%s13 + $0x580] sm:$0xff]
      %v10870 = vld [vmem:[%s13 + $0x588] sm:$0xff]
      %v10871 = vld [vmem:[%s13 + $0x590] sm:$0xff]
      %v10872 = vld [vmem:[%s13 + $0x598] sm:$0xff]
      %v10873 = vld [vmem:[%s13 + $0x5a0] sm:$0xff]
      %v10874 = vld [vmem:[%s13 + $0x5a8] sm:$0xff]
      %v10875 = vld [vmem:[%s13 + $0x5b0] sm:$0xff]
      %v10876 = vld [vmem:[%s13 + $0x5b8] sm:$0xff]
      %v10877 = vld [vmem:[%s13 + $0x5c0] sm:$0xff]
      %v10878 = vld [vmem:[%s13 + $0x5c8] sm:$0xff]
      %v10879 = vld [vmem:[%s13 + $0x5d0] sm:$0xff]
      %v10880 = vld [vmem:[%s13 + $0x5d8] sm:$0xff]
      %v10881 = vld [vmem:[%s13 + $0x5e0] sm:$0xff]
      %v10882 = vld [vmem:[%s13 + $0x5e8] sm:$0xff]
      %v10883 = vld [vmem:[%s13 + $0x5f0] sm:$0xff]
      %v10884 = vld [vmem:[%s13 + $0x5f8] sm:$0xff]
      %v10885 = vld [vmem:[%s13 + $0x600] sm:$0xff]
      %v10886 = vld [vmem:[%s13 + $0x608] sm:$0xff]
      %v10887 = vld [vmem:[%s13 + $0x610] sm:$0xff]
      %v10888 = vld [vmem:[%s13 + $0x618] sm:$0xff]
      %v10889 = vld [vmem:[%s13 + $0x620] sm:$0xff]
      %v10890 = vld [vmem:[%s13 + $0x628] sm:$0xff]
      %v10891 = vld [vmem:[%s13 + $0x630] sm:$0xff]
      %v10892 = vld [vmem:[%s13 + $0x638] sm:$0xff]
      %v10893 = vld [vmem:[%s13 + $0x640] sm:$0xff]
      %v10894 = vld [vmem:[%s13 + $0x648] sm:$0xff]
      %v10895 = vld [vmem:[%s13 + $0x650] sm:$0xff]
      %v10896 = vld [vmem:[%s13 + $0x658] sm:$0xff]
      %v10897 = vld [vmem:[%s13 + $0x660] sm:$0xff]
      %v10898 = vld [vmem:[%s13 + $0x668] sm:$0xff]
      %v10899 = vld [vmem:[%s13 + $0x670] sm:$0xff]
      %v10900 = vld [vmem:[%s13 + $0x678] sm:$0xff]
      %v10901 = vld [vmem:[%s13 + $0x680] sm:$0xff]
      %v10902 = vld [vmem:[%s13 + $0x688] sm:$0xff]
      %v10903 = vld [vmem:[%s13 + $0x690] sm:$0xff]
      %v10904 = vld [vmem:[%s13 + $0x698] sm:$0xff]
      %v10905 = vld [vmem:[%s13 + $0x6a0] sm:$0xff]
      %v10906 = vld [vmem:[%s13 + $0x6a8] sm:$0xff]
      %v10907 = vld [vmem:[%s13 + $0x6b0] sm:$0xff]
      %v10908 = vld [vmem:[%s13 + $0x6b8] sm:$0xff]
      %v10909 = vld [vmem:[%s13 + $0x6c0] sm:$0xff]
      %v10910 = vld [vmem:[%s13 + $0x6c8] sm:$0xff]
      %v10911 = vld [vmem:[%s13 + $0x6d0] sm:$0xff]
      %v10912 = vld [vmem:[%s13 + $0x6d8] sm:$0xff]
      %v10913 = vld [vmem:[%s13 + $0x6e0] sm:$0xff]
      %v10914 = vld [vmem:[%s13 + $0x6e8] sm:$0xff]
      %v10915 = vld [vmem:[%s13 + $0x6f0] sm:$0xff]
      %v10916 = vld [vmem:[%s13 + $0x6f8] sm:$0xff]
      %v10917 = vld [vmem:[%s13 + $0x700] sm:$0xff]
      %v10918 = vld [vmem:[%s13 + $0x708] sm:$0xff]
      %v10919 = vld [vmem:[%s13 + $0x710] sm:$0xff]
      %v10920 = vld [vmem:[%s13 + $0x718] sm:$0xff]
      %v10921 = vld [vmem:[%s13 + $0x720] sm:$0xff]
      %v10922 = vld [vmem:[%s13 + $0x728] sm:$0xff]
      %v10923 = vld [vmem:[%s13 + $0x730] sm:$0xff]
      %v10924 = vld [vmem:[%s13 + $0x738] sm:$0xff]
      %v10925 = vld [vmem:[%s13 + $0x740] sm:$0xff]
      %v10926 = vld [vmem:[%s13 + $0x748] sm:$0xff]
      %v10927 = vld [vmem:[%s13 + $0x750] sm:$0xff]
      %v10928 = vld [vmem:[%s13 + $0x758] sm:$0xff]
      %v10929 = vld [vmem:[%s13 + $0x760] sm:$0xff]
      %v10930 = vld [vmem:[%s13 + $0x768] sm:$0xff]
      %v10931 = vld [vmem:[%s13 + $0x770] sm:$0xff]
      %v10932 = vld [vmem:[%s13 + $0x778] sm:$0xff]
      %v10933 = vld [vmem:[%s13 + $0x780] sm:$0xff]
      %v10934 = vld [vmem:[%s13 + $0x788] sm:$0xff]
      %v10935 = vld [vmem:[%s13 + $0x790] sm:$0xff]
      %v10936 = vld [vmem:[%s13 + $0x798] sm:$0xff]
      %v10937 = vld [vmem:[%s13 + $0x7a0] sm:$0xff]
      %v10938 = vld [vmem:[%s13 + $0x7a8] sm:$0xff]
      %v10939 = vld [vmem:[%s13 + $0x7b0] sm:$0xff]
      %v10940 = vld [vmem:[%s13 + $0x7b8] sm:$0xff]
      %v10941 = vld [vmem:[%s13 + $0x7c0] sm:$0xff]
      %v10942 = vld [vmem:[%s13 + $0x7c8] sm:$0xff]
      %v10943 = vld [vmem:[%s13 + $0x7d0] sm:$0xff]
      %v10944 = vld [vmem:[%s13 + $0x7d8] sm:$0xff]
      %v10945 = vld [vmem:[%s13 + $0x7e0] sm:$0xff]
      %v10946 = vld [vmem:[%s13 + $0x7e8] sm:$0xff]
      %v10947 = vld [vmem:[%s13 + $0x7f0] sm:$0xff]
      %v10948 = vld [vmem:[%s13 + $0x7f8] sm:$0xff]
      %v11013 = vunpack.c.l.b16 %v10629
      %v11014 = vunpack.c.l.b16 %v10630
      %v11015 = vunpack.c.l.b16 %v10631
      %v11016 = vunpack.c.l.b16 %v10632
      %v11017 = vunpack.c.l.b16 %v10633
      %v11018 = vunpack.c.l.b16 %v10634
      %v11019 = vunpack.c.l.b16 %v10635
      %v11020 = vunpack.c.l.b16 %v10636
      %v11021 = vunpack.c.l.b16 %v10637
      %v11022 = vunpack.c.l.b16 %v10638
      %v11023 = vunpack.c.l.b16 %v10639
      %v11024 = vunpack.c.l.b16 %v10640
      %v11025 = vunpack.c.l.b16 %v10641
      %v11026 = vunpack.c.l.b16 %v10642
      %v11027 = vunpack.c.l.b16 %v10643
      %v11028 = vunpack.c.l.b16 %v10644
      %v11029 = vunpack.c.l.b16 %v10645
      %v11030 = vunpack.c.l.b16 %v10646
      %v11031 = vunpack.c.l.b16 %v10647
      %v11032 = vunpack.c.l.b16 %v10648
      %v11033 = vunpack.c.l.b16 %v10649
      %v11034 = vunpack.c.l.b16 %v10650
      %v11035 = vunpack.c.l.b16 %v10651
      %v11036 = vunpack.c.l.b16 %v10652
      %v11037 = vunpack.c.l.b16 %v10653
      %v11038 = vunpack.c.l.b16 %v10654
      %v11039 = vunpack.c.l.b16 %v10655
      %v11040 = vunpack.c.l.b16 %v10656
      %v11041 = vunpack.c.l.b16 %v10657
      %v11042 = vunpack.c.l.b16 %v10658
      %v11043 = vunpack.c.l.b16 %v10659
      %v11044 = vunpack.c.l.b16 %v10660
      %v11045 = vunpack.c.l.b16 %v10661
      %v11046 = vunpack.c.l.b16 %v10662
      %v11047 = vunpack.c.l.b16 %v10663
      %v11048 = vunpack.c.l.b16 %v10664
      %v11049 = vunpack.c.l.b16 %v10665
      %v11050 = vunpack.c.l.b16 %v10666
      %v11051 = vunpack.c.l.b16 %v10667
      %v11052 = vunpack.c.l.b16 %v10668
      %v11053 = vunpack.c.l.b16 %v10669
      %v11054 = vunpack.c.l.b16 %v10670
      %v11055 = vunpack.c.l.b16 %v10671
      %v11056 = vunpack.c.l.b16 %v10672
      %v11057 = vunpack.c.l.b16 %v10673
      %v11058 = vunpack.c.l.b16 %v10674
      %v11059 = vunpack.c.l.b16 %v10675
      %v11060 = vunpack.c.l.b16 %v10676
      %v11061 = vunpack.c.l.b16 %v10677
      %v11062 = vunpack.c.l.b16 %v10678
      %v11063 = vunpack.c.l.b16 %v10679
      %v11064 = vunpack.c.l.b16 %v10680
      %v11065 = vunpack.c.l.b16 %v10681
      %v11066 = vunpack.c.l.b16 %v10682
      %v11067 = vunpack.c.l.b16 %v10683
      %v11068 = vunpack.c.l.b16 %v10684
      %v11069 = vunpack.c.l.b16 %v10685
      %v11070 = vunpack.c.l.b16 %v10686
      %v11071 = vunpack.c.l.b16 %v10687
      %v11072 = vunpack.c.l.b16 %v10688
      %v11073 = vunpack.c.l.b16 %v10689
      %v11074 = vunpack.c.l.b16 %v10690
      %v11075 = vunpack.c.l.b16 %v10691
      %v11076 = vunpack.c.l.b16 %v10692
      %v11077 = vrot.slane %v11021, 7
      %vm11078 = vcmask 1041409
      %v11079 = vsel %vm11078, %v11077, %v11013
      %v11080 = vrot.slane %v11029, 6
      %vm11081 = vcmask 1042434
      %v11082 = vsel %vm11081, %v11080, %v11079
      %v11083 = vrot.slane %v11037, 5
      %vm11084 = vcmask 1043459
      %v11085 = vsel %vm11084, %v11083, %v11082
      %v11086 = vrot.slane %v11045, 4
      %vm11087 = vcmask 1044484
      %v11088 = vsel %vm11087, %v11086, %v11085
      %v11089 = vrot.slane %v11053, 3
      %vm11090 = vcmask 1045509
      %v11091 = vsel %vm11090, %v11089, %v11088
      %v11092 = vrot.slane %v11061, 2
      %vm11093 = vcmask 1046534
      %v11094 = vsel %vm11093, %v11092, %v11091
      %v11095 = vrot.slane %v11069, 1
      %vm11096 = vcmask 1047559
      %v11097 = vsel %vm11096, %v11095, %v11094
      %v11098 = vrot.slane %v11022, 7
      %v11099 = vsel %vm11078, %v11098, %v11014
      %v11100 = vrot.slane %v11030, 6
      %v11101 = vsel %vm11081, %v11100, %v11099
      %v11102 = vrot.slane %v11038, 5
      %v11103 = vsel %vm11084, %v11102, %v11101
      %v11104 = vrot.slane %v11046, 4
      %v11105 = vsel %vm11087, %v11104, %v11103
      %v11106 = vrot.slane %v11054, 3
      %v11107 = vsel %vm11090, %v11106, %v11105
      %v11108 = vrot.slane %v11062, 2
      %v11109 = vsel %vm11093, %v11108, %v11107
      %v11110 = vrot.slane %v11070, 1
      %v11111 = vsel %vm11096, %v11110, %v11109
      %v11112 = vrot.slane %v11023, 7
      %v11113 = vsel %vm11078, %v11112, %v11015
      %v11114 = vrot.slane %v11031, 6
      %v11115 = vsel %vm11081, %v11114, %v11113
      %v11116 = vrot.slane %v11039, 5
      %v11117 = vsel %vm11084, %v11116, %v11115
      %v11118 = vrot.slane %v11047, 4
      %v11119 = vsel %vm11087, %v11118, %v11117
      %v11120 = vrot.slane %v11055, 3
      %v11121 = vsel %vm11090, %v11120, %v11119
      %v11122 = vrot.slane %v11063, 2
      %v11123 = vsel %vm11093, %v11122, %v11121
      %v11124 = vrot.slane %v11071, 1
      %v11125 = vsel %vm11096, %v11124, %v11123
      %v11126 = vrot.slane %v11024, 7
      %v11127 = vsel %vm11078, %v11126, %v11016
      %v11128 = vrot.slane %v11032, 6
      %v11129 = vsel %vm11081, %v11128, %v11127
      %v11130 = vrot.slane %v11040, 5
      %v11131 = vsel %vm11084, %v11130, %v11129
      %v11132 = vrot.slane %v11048, 4
      %v11133 = vsel %vm11087, %v11132, %v11131
      %v11134 = vrot.slane %v11056, 3
      %v11135 = vsel %vm11090, %v11134, %v11133
      %v11136 = vrot.slane %v11064, 2
      %v11137 = vsel %vm11093, %v11136, %v11135
      %v11138 = vrot.slane %v11072, 1
      %v11139 = vsel %vm11096, %v11138, %v11137
      %v11140 = vrot.slane %v11025, 7
      %v11141 = vsel %vm11078, %v11140, %v11017
      %v11142 = vrot.slane %v11033, 6
      %v11143 = vsel %vm11081, %v11142, %v11141
      %v11144 = vrot.slane %v11041, 5
      %v11145 = vsel %vm11084, %v11144, %v11143
      %v11146 = vrot.slane %v11049, 4
      %v11147 = vsel %vm11087, %v11146, %v11145
      %v11148 = vrot.slane %v11057, 3
      %v11149 = vsel %vm11090, %v11148, %v11147
      %v11150 = vrot.slane %v11065, 2
      %v11151 = vsel %vm11093, %v11150, %v11149
      %v11152 = vrot.slane %v11073, 1
      %v11153 = vsel %vm11096, %v11152, %v11151
      %v11154 = vrot.slane %v11026, 7
      %v11155 = vsel %vm11078, %v11154, %v11018
      %v11156 = vrot.slane %v11034, 6
      %v11157 = vsel %vm11081, %v11156, %v11155
      %v11158 = vrot.slane %v11042, 5
      %v11159 = vsel %vm11084, %v11158, %v11157
      %v11160 = vrot.slane %v11050, 4
      %v11161 = vsel %vm11087, %v11160, %v11159
      %v11162 = vrot.slane %v11058, 3
      %v11163 = vsel %vm11090, %v11162, %v11161
      %v11164 = vrot.slane %v11066, 2
      %v11165 = vsel %vm11093, %v11164, %v11163
      %v11166 = vrot.slane %v11074, 1
      %v11167 = vsel %vm11096, %v11166, %v11165
      %v11168 = vrot.slane %v11027, 7
      %v11169 = vsel %vm11078, %v11168, %v11019
      %v11170 = vrot.slane %v11035, 6
      %v11171 = vsel %vm11081, %v11170, %v11169
      %v11172 = vrot.slane %v11043, 5
      %v11173 = vsel %vm11084, %v11172, %v11171
      %v11174 = vrot.slane %v11051, 4
      %v11175 = vsel %vm11087, %v11174, %v11173
      %v11176 = vrot.slane %v11059, 3
      %v11177 = vsel %vm11090, %v11176, %v11175
      %v11178 = vrot.slane %v11067, 2
      %v11179 = vsel %vm11093, %v11178, %v11177
      %v11180 = vrot.slane %v11075, 1
      %v11181 = vsel %vm11096, %v11180, %v11179
      %v11182 = vrot.slane %v11028, 7
      %v11183 = vsel %vm11078, %v11182, %v11020
      %v11184 = vrot.slane %v11036, 6
      %v11185 = vsel %vm11081, %v11184, %v11183
      %v11186 = vrot.slane %v11044, 5
      %v11187 = vsel %vm11084, %v11186, %v11185
      %v11188 = vrot.slane %v11052, 4
      %v11189 = vsel %vm11087, %v11188, %v11187
      %v11190 = vrot.slane %v11060, 3
      %v11191 = vsel %vm11090, %v11190, %v11189
      %v11192 = vrot.slane %v11068, 2
      %v11193 = vsel %vm11093, %v11192, %v11191
      %v11194 = vrot.slane %v11076, 1
      %v11195 = vsel %vm11096, %v11194, %v11193
      %v11196 = vpack.c.b16 %v11097, %v11097
      %v11197 = vpack.c.b16 %v11111, %v11111
      %v11198 = vpack.c.b16 %v11125, %v11125
      %v11199 = vpack.c.b16 %v11139, %v11139
      %v11200 = vpack.c.b16 %v11153, %v11153
      %v11201 = vpack.c.b16 %v11167, %v11167
      %v11202 = vpack.c.b16 %v11181, %v11181
      %v11203 = vpack.c.b16 %v11195, %v11195
      %v11468 = vunpack.c.l.b16 %v10693
      %v11469 = vunpack.c.h.b16 %v10693
      %v11470 = vunpack.c.l.b16 %v10694
      %v11471 = vunpack.c.h.b16 %v10694
      %v11472 = vunpack.c.l.b16 %v10695
      %v11473 = vunpack.c.h.b16 %v10695
      %v11474 = vunpack.c.l.b16 %v10696
      %v11475 = vunpack.c.h.b16 %v10696
      %v11476 = vunpack.c.l.b16 %v10697
      %v11477 = vunpack.c.h.b16 %v10697
      %v11478 = vunpack.c.l.b16 %v10698
      %v11479 = vunpack.c.h.b16 %v10698
      %v11480 = vunpack.c.l.b16 %v10699
      %v11481 = vunpack.c.h.b16 %v10699
      %v11482 = vunpack.c.l.b16 %v10700
      %v11483 = vunpack.c.h.b16 %v10700
      %v11484 = vunpack.c.l.b16 %v10701
      %v11485 = vunpack.c.h.b16 %v10701
      %v11486 = vunpack.c.l.b16 %v10702
      %v11487 = vunpack.c.h.b16 %v10702
      %v11488 = vunpack.c.l.b16 %v10703
      %v11489 = vunpack.c.h.b16 %v10703
      %v11490 = vunpack.c.l.b16 %v10704
      %v11491 = vunpack.c.h.b16 %v10704
      %v11492 = vunpack.c.l.b16 %v10705
      %v11493 = vunpack.c.h.b16 %v10705
      %v11494 = vunpack.c.l.b16 %v10706
      %v11495 = vunpack.c.h.b16 %v10706
      %v11496 = vunpack.c.l.b16 %v10707
      %v11497 = vunpack.c.h.b16 %v10707
      %v11498 = vunpack.c.l.b16 %v10708
      %v11499 = vunpack.c.h.b16 %v10708
      %v11500 = vunpack.c.l.b16 %v10709
      %v11501 = vunpack.c.h.b16 %v10709
      %v11502 = vunpack.c.l.b16 %v10710
      %v11503 = vunpack.c.h.b16 %v10710
      %v11504 = vunpack.c.l.b16 %v10711
      %v11505 = vunpack.c.h.b16 %v10711
      %v11506 = vunpack.c.l.b16 %v10712
      %v11507 = vunpack.c.h.b16 %v10712
      %v11508 = vunpack.c.l.b16 %v10713
      %v11509 = vunpack.c.h.b16 %v10713
      %v11510 = vunpack.c.l.b16 %v10714
      %v11511 = vunpack.c.h.b16 %v10714
      %v11512 = vunpack.c.l.b16 %v10715
      %v11513 = vunpack.c.h.b16 %v10715
      %v11514 = vunpack.c.l.b16 %v10716
      %v11515 = vunpack.c.h.b16 %v10716
      %v11516 = vunpack.c.l.b16 %v10717
      %v11517 = vunpack.c.h.b16 %v10717
      %v11518 = vunpack.c.l.b16 %v10718
      %v11519 = vunpack.c.h.b16 %v10718
      %v11520 = vunpack.c.l.b16 %v10719
      %v11521 = vunpack.c.h.b16 %v10719
      %v11522 = vunpack.c.l.b16 %v10720
      %v11523 = vunpack.c.h.b16 %v10720
      %v11524 = vunpack.c.l.b16 %v10721
      %v11525 = vunpack.c.h.b16 %v10721
      %v11526 = vunpack.c.l.b16 %v10722
      %v11527 = vunpack.c.h.b16 %v10722
      %v11528 = vunpack.c.l.b16 %v10723
      %v11529 = vunpack.c.h.b16 %v10723
      %v11530 = vunpack.c.l.b16 %v10724
      %v11531 = vunpack.c.h.b16 %v10724
      %v11532 = vunpack.c.l.b16 %v10725
      %v11533 = vunpack.c.h.b16 %v10725
      %v11534 = vunpack.c.l.b16 %v10726
      %v11535 = vunpack.c.h.b16 %v10726
      %v11536 = vunpack.c.l.b16 %v10727
      %v11537 = vunpack.c.h.b16 %v10727
      %v11538 = vunpack.c.l.b16 %v10728
      %v11539 = vunpack.c.h.b16 %v10728
      %v11540 = vunpack.c.l.b16 %v10729
      %v11541 = vunpack.c.h.b16 %v10729
      %v11542 = vunpack.c.l.b16 %v10730
      %v11543 = vunpack.c.h.b16 %v10730
      %v11544 = vunpack.c.l.b16 %v10731
      %v11545 = vunpack.c.h.b16 %v10731
      %v11546 = vunpack.c.l.b16 %v10732
      %v11547 = vunpack.c.h.b16 %v10732
      %v11548 = vunpack.c.l.b16 %v10733
      %v11549 = vunpack.c.h.b16 %v10733
      %v11550 = vunpack.c.l.b16 %v10734
      %v11551 = vunpack.c.h.b16 %v10734
      %v11552 = vunpack.c.l.b16 %v10735
      %v11553 = vunpack.c.h.b16 %v10735
      %v11554 = vunpack.c.l.b16 %v10736
      %v11555 = vunpack.c.h.b16 %v10736
      %v11556 = vunpack.c.l.b16 %v10737
      %v11557 = vunpack.c.h.b16 %v10737
      %v11558 = vunpack.c.l.b16 %v10738
      %v11559 = vunpack.c.h.b16 %v10738
      %v11560 = vunpack.c.l.b16 %v10739
      %v11561 = vunpack.c.h.b16 %v10739
      %v11562 = vunpack.c.l.b16 %v10740
      %v11563 = vunpack.c.h.b16 %v10740
      %v11564 = vunpack.c.l.b16 %v10741
      %v11565 = vunpack.c.h.b16 %v10741
      %v11566 = vunpack.c.l.b16 %v10742
      %v11567 = vunpack.c.h.b16 %v10742
      %v11568 = vunpack.c.l.b16 %v10743
      %v11569 = vunpack.c.h.b16 %v10743
      %v11570 = vunpack.c.l.b16 %v10744
      %v11571 = vunpack.c.h.b16 %v10744
      %v11572 = vunpack.c.l.b16 %v10745
      %v11573 = vunpack.c.h.b16 %v10745
      %v11574 = vunpack.c.l.b16 %v10746
      %v11575 = vunpack.c.h.b16 %v10746
      %v11576 = vunpack.c.l.b16 %v10747
      %v11577 = vunpack.c.h.b16 %v10747
      %v11578 = vunpack.c.l.b16 %v10748
      %v11579 = vunpack.c.h.b16 %v10748
      %v11580 = vunpack.c.l.b16 %v10749
      %v11581 = vunpack.c.h.b16 %v10749
      %v11582 = vunpack.c.l.b16 %v10750
      %v11583 = vunpack.c.h.b16 %v10750
      %v11584 = vunpack.c.l.b16 %v10751
      %v11585 = vunpack.c.h.b16 %v10751
      %v11586 = vunpack.c.l.b16 %v10752
      %v11587 = vunpack.c.h.b16 %v10752
      %v11588 = vunpack.c.l.b16 %v10753
      %v11589 = vunpack.c.h.b16 %v10753
      %v11590 = vunpack.c.l.b16 %v10754
      %v11591 = vunpack.c.h.b16 %v10754
      %v11592 = vunpack.c.l.b16 %v10755
      %v11593 = vunpack.c.h.b16 %v10755
      %v11594 = vunpack.c.l.b16 %v10756
      %v11595 = vunpack.c.h.b16 %v10756
      %v11596 = vunpack.c.l.b16 %v10757
      %v11597 = vunpack.c.h.b16 %v10757
      %v11598 = vunpack.c.l.b16 %v10758
      %v11599 = vunpack.c.h.b16 %v10758
      %v11600 = vunpack.c.l.b16 %v10759
      %v11601 = vunpack.c.h.b16 %v10759
      %v11602 = vunpack.c.l.b16 %v10760
      %v11603 = vunpack.c.h.b16 %v10760
      %v11604 = vunpack.c.l.b16 %v10761
      %v11605 = vunpack.c.h.b16 %v10761
      %v11606 = vunpack.c.l.b16 %v10762
      %v11607 = vunpack.c.h.b16 %v10762
      %v11608 = vunpack.c.l.b16 %v10763
      %v11609 = vunpack.c.h.b16 %v10763
      %v11610 = vunpack.c.l.b16 %v10764
      %v11611 = vunpack.c.h.b16 %v10764
      %v11612 = vunpack.c.l.b16 %v10765
      %v11613 = vunpack.c.h.b16 %v10765
      %v11614 = vunpack.c.l.b16 %v10766
      %v11615 = vunpack.c.h.b16 %v10766
      %v11616 = vunpack.c.l.b16 %v10767
      %v11617 = vunpack.c.h.b16 %v10767
      %v11618 = vunpack.c.l.b16 %v10768
      %v11619 = vunpack.c.h.b16 %v10768
      %v11620 = vunpack.c.l.b16 %v10769
      %v11621 = vunpack.c.h.b16 %v10769
      %v11622 = vunpack.c.l.b16 %v10770
      %v11623 = vunpack.c.h.b16 %v10770
      %v11624 = vunpack.c.l.b16 %v10771
      %v11625 = vunpack.c.h.b16 %v10771
      %v11626 = vunpack.c.l.b16 %v10772
      %v11627 = vunpack.c.h.b16 %v10772
      %v11628 = vunpack.c.l.b16 %v10773
      %v11629 = vunpack.c.h.b16 %v10773
      %v11630 = vunpack.c.l.b16 %v10774
      %v11631 = vunpack.c.h.b16 %v10774
      %v11632 = vunpack.c.l.b16 %v10775
      %v11633 = vunpack.c.h.b16 %v10775
      %v11634 = vunpack.c.l.b16 %v10776
      %v11635 = vunpack.c.h.b16 %v10776
      %v11636 = vunpack.c.l.b16 %v10777
      %v11637 = vunpack.c.h.b16 %v10777
      %v11638 = vunpack.c.l.b16 %v10778
      %v11639 = vunpack.c.h.b16 %v10778
      %v11640 = vunpack.c.l.b16 %v10779
      %v11641 = vunpack.c.h.b16 %v10779
      %v11642 = vunpack.c.l.b16 %v10780
      %v11643 = vunpack.c.h.b16 %v10780
      %v11644 = vunpack.c.l.b16 %v10781
      %v11645 = vunpack.c.h.b16 %v10781
      %v11646 = vunpack.c.l.b16 %v10782
      %v11647 = vunpack.c.h.b16 %v10782
      %v11648 = vunpack.c.l.b16 %v10783
      %v11649 = vunpack.c.h.b16 %v10783
      %v11650 = vunpack.c.l.b16 %v10784
      %v11651 = vunpack.c.h.b16 %v10784
      %v11652 = vunpack.c.l.b16 %v10785
      %v11653 = vunpack.c.h.b16 %v10785
      %v11654 = vunpack.c.l.b16 %v10786
      %v11655 = vunpack.c.h.b16 %v10786
      %v11656 = vunpack.c.l.b16 %v10787
      %v11657 = vunpack.c.h.b16 %v10787
      %v11658 = vunpack.c.l.b16 %v10788
      %v11659 = vunpack.c.h.b16 %v10788
      %v11660 = vunpack.c.l.b16 %v10789
      %v11661 = vunpack.c.h.b16 %v10789
      %v11662 = vunpack.c.l.b16 %v10790
      %v11663 = vunpack.c.h.b16 %v10790
      %v11664 = vunpack.c.l.b16 %v10791
      %v11665 = vunpack.c.h.b16 %v10791
      %v11666 = vunpack.c.l.b16 %v10792
      %v11667 = vunpack.c.h.b16 %v10792
      %v11668 = vunpack.c.l.b16 %v10793
      %v11669 = vunpack.c.h.b16 %v10793
      %v11670 = vunpack.c.l.b16 %v10794
      %v11671 = vunpack.c.h.b16 %v10794
      %v11672 = vunpack.c.l.b16 %v10795
      %v11673 = vunpack.c.h.b16 %v10795
      %v11674 = vunpack.c.l.b16 %v10796
      %v11675 = vunpack.c.h.b16 %v10796
      %v11676 = vunpack.c.l.b16 %v10797
      %v11677 = vunpack.c.h.b16 %v10797
      %v11678 = vunpack.c.l.b16 %v10798
      %v11679 = vunpack.c.h.b16 %v10798
      %v11680 = vunpack.c.l.b16 %v10799
      %v11681 = vunpack.c.h.b16 %v10799
      %v11682 = vunpack.c.l.b16 %v10800
      %v11683 = vunpack.c.h.b16 %v10800
      %v11684 = vunpack.c.l.b16 %v10801
      %v11685 = vunpack.c.h.b16 %v10801
      %v11686 = vunpack.c.l.b16 %v10802
      %v11687 = vunpack.c.h.b16 %v10802
      %v11688 = vunpack.c.l.b16 %v10803
      %v11689 = vunpack.c.h.b16 %v10803
      %v11690 = vunpack.c.l.b16 %v10804
      %v11691 = vunpack.c.h.b16 %v10804
      %v11692 = vunpack.c.l.b16 %v10805
      %v11693 = vunpack.c.h.b16 %v10805
      %v11694 = vunpack.c.l.b16 %v10806
      %v11695 = vunpack.c.h.b16 %v10806
      %v11696 = vunpack.c.l.b16 %v10807
      %v11697 = vunpack.c.h.b16 %v10807
      %v11698 = vunpack.c.l.b16 %v10808
      %v11699 = vunpack.c.h.b16 %v10808
      %v11700 = vunpack.c.l.b16 %v10809
      %v11701 = vunpack.c.h.b16 %v10809
      %v11702 = vunpack.c.l.b16 %v10810
      %v11703 = vunpack.c.h.b16 %v10810
      %v11704 = vunpack.c.l.b16 %v10811
      %v11705 = vunpack.c.h.b16 %v10811
      %v11706 = vunpack.c.l.b16 %v10812
      %v11707 = vunpack.c.h.b16 %v10812
      %v11708 = vunpack.c.l.b16 %v10813
      %v11709 = vunpack.c.h.b16 %v10813
      %v11710 = vunpack.c.l.b16 %v10814
      %v11711 = vunpack.c.h.b16 %v10814
      %v11712 = vunpack.c.l.b16 %v10815
      %v11713 = vunpack.c.h.b16 %v10815
      %v11714 = vunpack.c.l.b16 %v10816
      %v11715 = vunpack.c.h.b16 %v10816
      %v11716 = vunpack.c.l.b16 %v10817
      %v11717 = vunpack.c.h.b16 %v10817
      %v11718 = vunpack.c.l.b16 %v10818
      %v11719 = vunpack.c.h.b16 %v10818
      %v11720 = vunpack.c.l.b16 %v10819
      %v11721 = vunpack.c.h.b16 %v10819
      %v11722 = vunpack.c.l.b16 %v10820
      %v11723 = vunpack.c.h.b16 %v10820
      %v11724 = vunpack.c.l.b16 %v10821
      %v11725 = vunpack.c.h.b16 %v10821
      %v11726 = vunpack.c.l.b16 %v10822
      %v11727 = vunpack.c.h.b16 %v10822
      %v11728 = vunpack.c.l.b16 %v10823
      %v11729 = vunpack.c.h.b16 %v10823
      %v11730 = vunpack.c.l.b16 %v10824
      %v11731 = vunpack.c.h.b16 %v10824
      %v11732 = vunpack.c.l.b16 %v10825
      %v11733 = vunpack.c.h.b16 %v10825
      %v11734 = vunpack.c.l.b16 %v10826
      %v11735 = vunpack.c.h.b16 %v10826
      %v11736 = vunpack.c.l.b16 %v10827
      %v11737 = vunpack.c.h.b16 %v10827
      %v11738 = vunpack.c.l.b16 %v10828
      %v11739 = vunpack.c.h.b16 %v10828
      %v11740 = vunpack.c.l.b16 %v10829
      %v11741 = vunpack.c.h.b16 %v10829
      %v11742 = vunpack.c.l.b16 %v10830
      %v11743 = vunpack.c.h.b16 %v10830
      %v11744 = vunpack.c.l.b16 %v10831
      %v11745 = vunpack.c.h.b16 %v10831
      %v11746 = vunpack.c.l.b16 %v10832
      %v11747 = vunpack.c.h.b16 %v10832
      %v11748 = vunpack.c.l.b16 %v10833
      %v11749 = vunpack.c.h.b16 %v10833
      %v11750 = vunpack.c.l.b16 %v10834
      %v11751 = vunpack.c.h.b16 %v10834
      %v11752 = vunpack.c.l.b16 %v10835
      %v11753 = vunpack.c.h.b16 %v10835
      %v11754 = vunpack.c.l.b16 %v10836
      %v11755 = vunpack.c.h.b16 %v10836
      %v11756 = vunpack.c.l.b16 %v10837
      %v11757 = vunpack.c.h.b16 %v10837
      %v11758 = vunpack.c.l.b16 %v10838
      %v11759 = vunpack.c.h.b16 %v10838
      %v11760 = vunpack.c.l.b16 %v10839
      %v11761 = vunpack.c.h.b16 %v10839
      %v11762 = vunpack.c.l.b16 %v10840
      %v11763 = vunpack.c.h.b16 %v10840
      %v11764 = vunpack.c.l.b16 %v10841
      %v11765 = vunpack.c.h.b16 %v10841
      %v11766 = vunpack.c.l.b16 %v10842
      %v11767 = vunpack.c.h.b16 %v10842
      %v11768 = vunpack.c.l.b16 %v10843
      %v11769 = vunpack.c.h.b16 %v10843
      %v11770 = vunpack.c.l.b16 %v10844
      %v11771 = vunpack.c.h.b16 %v10844
      %v11772 = vunpack.c.l.b16 %v10845
      %v11773 = vunpack.c.h.b16 %v10845
      %v11774 = vunpack.c.l.b16 %v10846
      %v11775 = vunpack.c.h.b16 %v10846
      %v11776 = vunpack.c.l.b16 %v10847
      %v11777 = vunpack.c.h.b16 %v10847
      %v11778 = vunpack.c.l.b16 %v10848
      %v11779 = vunpack.c.h.b16 %v10848
      %v11780 = vunpack.c.l.b16 %v10849
      %v11781 = vunpack.c.h.b16 %v10849
      %v11782 = vunpack.c.l.b16 %v10850
      %v11783 = vunpack.c.h.b16 %v10850
      %v11784 = vunpack.c.l.b16 %v10851
      %v11785 = vunpack.c.h.b16 %v10851
      %v11786 = vunpack.c.l.b16 %v10852
      %v11787 = vunpack.c.h.b16 %v10852
      %v11788 = vunpack.c.l.b16 %v10853
      %v11789 = vunpack.c.h.b16 %v10853
      %v11790 = vunpack.c.l.b16 %v10854
      %v11791 = vunpack.c.h.b16 %v10854
      %v11792 = vunpack.c.l.b16 %v10855
      %v11793 = vunpack.c.h.b16 %v10855
      %v11794 = vunpack.c.l.b16 %v10856
      %v11795 = vunpack.c.h.b16 %v10856
      %v11796 = vunpack.c.l.b16 %v10857
      %v11797 = vunpack.c.h.b16 %v10857
      %v11798 = vunpack.c.l.b16 %v10858
      %v11799 = vunpack.c.h.b16 %v10858
      %v11800 = vunpack.c.l.b16 %v10859
      %v11801 = vunpack.c.h.b16 %v10859
      %v11802 = vunpack.c.l.b16 %v10860
      %v11803 = vunpack.c.h.b16 %v10860
      %v11804 = vunpack.c.l.b16 %v10861
      %v11805 = vunpack.c.h.b16 %v10861
      %v11806 = vunpack.c.l.b16 %v10862
      %v11807 = vunpack.c.h.b16 %v10862
      %v11808 = vunpack.c.l.b16 %v10863
      %v11809 = vunpack.c.h.b16 %v10863
      %v11810 = vunpack.c.l.b16 %v10864
      %v11811 = vunpack.c.h.b16 %v10864
      %v11812 = vunpack.c.l.b16 %v10865
      %v11813 = vunpack.c.h.b16 %v10865
      %v11814 = vunpack.c.l.b16 %v10866
      %v11815 = vunpack.c.h.b16 %v10866
      %v11816 = vunpack.c.l.b16 %v10867
      %v11817 = vunpack.c.h.b16 %v10867
      %v11818 = vunpack.c.l.b16 %v10868
      %v11819 = vunpack.c.h.b16 %v10868
      %v11820 = vunpack.c.l.b16 %v10869
      %v11821 = vunpack.c.h.b16 %v10869
      %v11822 = vunpack.c.l.b16 %v10870
      %v11823 = vunpack.c.h.b16 %v10870
      %v11824 = vunpack.c.l.b16 %v10871
      %v11825 = vunpack.c.h.b16 %v10871
      %v11826 = vunpack.c.l.b16 %v10872
      %v11827 = vunpack.c.h.b16 %v10872
      %v11828 = vunpack.c.l.b16 %v10873
      %v11829 = vunpack.c.h.b16 %v10873
      %v11830 = vunpack.c.l.b16 %v10874
      %v11831 = vunpack.c.h.b16 %v10874
      %v11832 = vunpack.c.l.b16 %v10875
      %v11833 = vunpack.c.h.b16 %v10875
      %v11834 = vunpack.c.l.b16 %v10876
      %v11835 = vunpack.c.h.b16 %v10876
      %v11836 = vunpack.c.l.b16 %v10877
      %v11837 = vunpack.c.h.b16 %v10877
      %v11838 = vunpack.c.l.b16 %v10878
      %v11839 = vunpack.c.h.b16 %v10878
      %v11840 = vunpack.c.l.b16 %v10879
      %v11841 = vunpack.c.h.b16 %v10879
      %v11842 = vunpack.c.l.b16 %v10880
      %v11843 = vunpack.c.h.b16 %v10880
      %v11844 = vunpack.c.l.b16 %v10881
      %v11845 = vunpack.c.h.b16 %v10881
      %v11846 = vunpack.c.l.b16 %v10882
      %v11847 = vunpack.c.h.b16 %v10882
      %v11848 = vunpack.c.l.b16 %v10883
      %v11849 = vunpack.c.h.b16 %v10883
      %v11850 = vunpack.c.l.b16 %v10884
      %v11851 = vunpack.c.h.b16 %v10884
      %v11852 = vunpack.c.l.b16 %v10885
      %v11853 = vunpack.c.h.b16 %v10885
      %v11854 = vunpack.c.l.b16 %v10886
      %v11855 = vunpack.c.h.b16 %v10886
      %v11856 = vunpack.c.l.b16 %v10887
      %v11857 = vunpack.c.h.b16 %v10887
      %v11858 = vunpack.c.l.b16 %v10888
      %v11859 = vunpack.c.h.b16 %v10888
      %v11860 = vunpack.c.l.b16 %v10889
      %v11861 = vunpack.c.h.b16 %v10889
      %v11862 = vunpack.c.l.b16 %v10890
      %v11863 = vunpack.c.h.b16 %v10890
      %v11864 = vunpack.c.l.b16 %v10891
      %v11865 = vunpack.c.h.b16 %v10891
      %v11866 = vunpack.c.l.b16 %v10892
      %v11867 = vunpack.c.h.b16 %v10892
      %v11868 = vunpack.c.l.b16 %v10893
      %v11869 = vunpack.c.h.b16 %v10893
      %v11870 = vunpack.c.l.b16 %v10894
      %v11871 = vunpack.c.h.b16 %v10894
      %v11872 = vunpack.c.l.b16 %v10895
      %v11873 = vunpack.c.h.b16 %v10895
      %v11874 = vunpack.c.l.b16 %v10896
      %v11875 = vunpack.c.h.b16 %v10896
      %v11876 = vunpack.c.l.b16 %v10897
      %v11877 = vunpack.c.h.b16 %v10897
      %v11878 = vunpack.c.l.b16 %v10898
      %v11879 = vunpack.c.h.b16 %v10898
      %v11880 = vunpack.c.l.b16 %v10899
      %v11881 = vunpack.c.h.b16 %v10899
      %v11882 = vunpack.c.l.b16 %v10900
      %v11883 = vunpack.c.h.b16 %v10900
      %v11884 = vunpack.c.l.b16 %v10901
      %v11885 = vunpack.c.h.b16 %v10901
      %v11886 = vunpack.c.l.b16 %v10902
      %v11887 = vunpack.c.h.b16 %v10902
      %v11888 = vunpack.c.l.b16 %v10903
      %v11889 = vunpack.c.h.b16 %v10903
      %v11890 = vunpack.c.l.b16 %v10904
      %v11891 = vunpack.c.h.b16 %v10904
      %v11892 = vunpack.c.l.b16 %v10905
      %v11893 = vunpack.c.h.b16 %v10905
      %v11894 = vunpack.c.l.b16 %v10906
      %v11895 = vunpack.c.h.b16 %v10906
      %v11896 = vunpack.c.l.b16 %v10907
      %v11897 = vunpack.c.h.b16 %v10907
      %v11898 = vunpack.c.l.b16 %v10908
      %v11899 = vunpack.c.h.b16 %v10908
      %v11900 = vunpack.c.l.b16 %v10909
      %v11901 = vunpack.c.h.b16 %v10909
      %v11902 = vunpack.c.l.b16 %v10910
      %v11903 = vunpack.c.h.b16 %v10910
      %v11904 = vunpack.c.l.b16 %v10911
      %v11905 = vunpack.c.h.b16 %v10911
      %v11906 = vunpack.c.l.b16 %v10912
      %v11907 = vunpack.c.h.b16 %v10912
      %v11908 = vunpack.c.l.b16 %v10913
      %v11909 = vunpack.c.h.b16 %v10913
      %v11910 = vunpack.c.l.b16 %v10914
      %v11911 = vunpack.c.h.b16 %v10914
      %v11912 = vunpack.c.l.b16 %v10915
      %v11913 = vunpack.c.h.b16 %v10915
      %v11914 = vunpack.c.l.b16 %v10916
      %v11915 = vunpack.c.h.b16 %v10916
      %v11916 = vunpack.c.l.b16 %v10917
      %v11917 = vunpack.c.h.b16 %v10917
      %v11918 = vunpack.c.l.b16 %v10918
      %v11919 = vunpack.c.h.b16 %v10918
      %v11920 = vunpack.c.l.b16 %v10919
      %v11921 = vunpack.c.h.b16 %v10919
      %v11922 = vunpack.c.l.b16 %v10920
      %v11923 = vunpack.c.h.b16 %v10920
      %v11924 = vunpack.c.l.b16 %v10921
      %v11925 = vunpack.c.h.b16 %v10921
      %v11926 = vunpack.c.l.b16 %v10922
      %v11927 = vunpack.c.h.b16 %v10922
      %v11928 = vunpack.c.l.b16 %v10923
      %v11929 = vunpack.c.h.b16 %v10923
      %v11930 = vunpack.c.l.b16 %v10924
      %v11931 = vunpack.c.h.b16 %v10924
      %v11932 = vunpack.c.l.b16 %v10925
      %v11933 = vunpack.c.h.b16 %v10925
      %v11934 = vunpack.c.l.b16 %v10926
      %v11935 = vunpack.c.h.b16 %v10926
      %v11936 = vunpack.c.l.b16 %v10927
      %v11937 = vunpack.c.h.b16 %v10927
      %v11938 = vunpack.c.l.b16 %v10928
      %v11939 = vunpack.c.h.b16 %v10928
      %v11940 = vunpack.c.l.b16 %v10929
      %v11941 = vunpack.c.h.b16 %v10929
      %v11942 = vunpack.c.l.b16 %v10930
      %v11943 = vunpack.c.h.b16 %v10930
      %v11944 = vunpack.c.l.b16 %v10931
      %v11945 = vunpack.c.h.b16 %v10931
      %v11946 = vunpack.c.l.b16 %v10932
      %v11947 = vunpack.c.h.b16 %v10932
      %v11948 = vunpack.c.l.b16 %v10933
      %v11949 = vunpack.c.h.b16 %v10933
      %v11950 = vunpack.c.l.b16 %v10934
      %v11951 = vunpack.c.h.b16 %v10934
      %v11952 = vunpack.c.l.b16 %v10935
      %v11953 = vunpack.c.h.b16 %v10935
      %v11954 = vunpack.c.l.b16 %v10936
      %v11955 = vunpack.c.h.b16 %v10936
      %v11956 = vunpack.c.l.b16 %v10937
      %v11957 = vunpack.c.h.b16 %v10937
      %v11958 = vunpack.c.l.b16 %v10938
      %v11959 = vunpack.c.h.b16 %v10938
      %v11960 = vunpack.c.l.b16 %v10939
      %v11961 = vunpack.c.h.b16 %v10939
      %v11962 = vunpack.c.l.b16 %v10940
      %v11963 = vunpack.c.h.b16 %v10940
      %v11964 = vunpack.c.l.b16 %v10941
      %v11965 = vunpack.c.h.b16 %v10941
      %v11966 = vunpack.c.l.b16 %v10942
      %v11967 = vunpack.c.h.b16 %v10942
      %v11968 = vunpack.c.l.b16 %v10943
      %v11969 = vunpack.c.h.b16 %v10943
      %v11970 = vunpack.c.l.b16 %v10944
      %v11971 = vunpack.c.h.b16 %v10944
      %v11972 = vunpack.c.l.b16 %v10945
      %v11973 = vunpack.c.h.b16 %v10945
      %v11974 = vunpack.c.l.b16 %v10946
      %v11975 = vunpack.c.h.b16 %v10946
      %v11976 = vunpack.c.l.b16 %v10947
      %v11977 = vunpack.c.h.b16 %v10947
      %v11978 = vunpack.c.l.b16 %v10948
      %v11979 = vunpack.c.h.b16 %v10948
      %v11980 = vpack.c.b16 %v11472, %v11468
      %v11981 = vpack.c.b16 %v11473, %v11469
      %v11982 = vpack.c.b16 %v11474, %v11470
      %v11983 = vpack.c.b16 %v11475, %v11471
      %v11984 = vpack.c.b16 %v11480, %v11476
      %v11985 = vpack.c.b16 %v11481, %v11477
      %v11986 = vpack.c.b16 %v11482, %v11478
      %v11987 = vpack.c.b16 %v11483, %v11479
      %v11988 = vpack.c.b16 %v11488, %v11484
      %v11989 = vpack.c.b16 %v11489, %v11485
      %v11990 = vpack.c.b16 %v11490, %v11486
      %v11991 = vpack.c.b16 %v11491, %v11487
      %v11992 = vpack.c.b16 %v11496, %v11492
      %v11993 = vpack.c.b16 %v11497, %v11493
      %v11994 = vpack.c.b16 %v11498, %v11494
      %v11995 = vpack.c.b16 %v11499, %v11495
      %v11996 = vpack.c.b16 %v11504, %v11500
      %v11997 = vpack.c.b16 %v11505, %v11501
      %v11998 = vpack.c.b16 %v11506, %v11502
      %v11999 = vpack.c.b16 %v11507, %v11503
      %v12000 = vpack.c.b16 %v11512, %v11508
      %v12001 = vpack.c.b16 %v11513, %v11509
      %v12002 = vpack.c.b16 %v11514, %v11510
      %v12003 = vpack.c.b16 %v11515, %v11511
      %v12004 = vpack.c.b16 %v11520, %v11516
      %v12005 = vpack.c.b16 %v11521, %v11517
      %v12006 = vpack.c.b16 %v11522, %v11518
      %v12007 = vpack.c.b16 %v11523, %v11519
      %v12008 = vpack.c.b16 %v11528, %v11524
      %v12009 = vpack.c.b16 %v11529, %v11525
      %v12010 = vpack.c.b16 %v11530, %v11526
      %v12011 = vpack.c.b16 %v11531, %v11527
      %v12012 = vpack.c.b16 %v11536, %v11532
      %v12013 = vpack.c.b16 %v11537, %v11533
      %v12014 = vpack.c.b16 %v11538, %v11534
      %v12015 = vpack.c.b16 %v11539, %v11535
      %v12016 = vpack.c.b16 %v11544, %v11540
      %v12017 = vpack.c.b16 %v11545, %v11541
      %v12018 = vpack.c.b16 %v11546, %v11542
      %v12019 = vpack.c.b16 %v11547, %v11543
      %v12020 = vpack.c.b16 %v11552, %v11548
      %v12021 = vpack.c.b16 %v11553, %v11549
      %v12022 = vpack.c.b16 %v11554, %v11550
      %v12023 = vpack.c.b16 %v11555, %v11551
      %v12024 = vpack.c.b16 %v11560, %v11556
      %v12025 = vpack.c.b16 %v11561, %v11557
      %v12026 = vpack.c.b16 %v11562, %v11558
      %v12027 = vpack.c.b16 %v11563, %v11559
      %v12028 = vpack.c.b16 %v11568, %v11564
      %v12029 = vpack.c.b16 %v11569, %v11565
      %v12030 = vpack.c.b16 %v11570, %v11566
      %v12031 = vpack.c.b16 %v11571, %v11567
      %v12032 = vpack.c.b16 %v11576, %v11572
      %v12033 = vpack.c.b16 %v11577, %v11573
      %v12034 = vpack.c.b16 %v11578, %v11574
      %v12035 = vpack.c.b16 %v11579, %v11575
      %v12036 = vpack.c.b16 %v11584, %v11580
      %v12037 = vpack.c.b16 %v11585, %v11581
      %v12038 = vpack.c.b16 %v11586, %v11582
      %v12039 = vpack.c.b16 %v11587, %v11583
      %v12040 = vpack.c.b16 %v11592, %v11588
      %v12041 = vpack.c.b16 %v11593, %v11589
      %v12042 = vpack.c.b16 %v11594, %v11590
      %v12043 = vpack.c.b16 %v11595, %v11591
      %v12044 = vpack.c.b16 %v11600, %v11596
      %v12045 = vpack.c.b16 %v11601, %v11597
      %v12046 = vpack.c.b16 %v11602, %v11598
      %v12047 = vpack.c.b16 %v11603, %v11599
      %v12048 = vpack.c.b16 %v11608, %v11604
      %v12049 = vpack.c.b16 %v11609, %v11605
      %v12050 = vpack.c.b16 %v11610, %v11606
      %v12051 = vpack.c.b16 %v11611, %v11607
      %v12052 = vpack.c.b16 %v11616, %v11612
      %v12053 = vpack.c.b16 %v11617, %v11613
      %v12054 = vpack.c.b16 %v11618, %v11614
      %v12055 = vpack.c.b16 %v11619, %v11615
      %v12056 = vpack.c.b16 %v11624, %v11620
      %v12057 = vpack.c.b16 %v11625, %v11621
      %v12058 = vpack.c.b16 %v11626, %v11622
      %v12059 = vpack.c.b16 %v11627, %v11623
      %v12060 = vpack.c.b16 %v11632, %v11628
      %v12061 = vpack.c.b16 %v11633, %v11629
      %v12062 = vpack.c.b16 %v11634, %v11630
      %v12063 = vpack.c.b16 %v11635, %v11631
      %v12064 = vpack.c.b16 %v11640, %v11636
      %v12065 = vpack.c.b16 %v11641, %v11637
      %v12066 = vpack.c.b16 %v11642, %v11638
      %v12067 = vpack.c.b16 %v11643, %v11639
      %v12068 = vpack.c.b16 %v11648, %v11644
      %v12069 = vpack.c.b16 %v11649, %v11645
      %v12070 = vpack.c.b16 %v11650, %v11646
      %v12071 = vpack.c.b16 %v11651, %v11647
      %v12072 = vpack.c.b16 %v11656, %v11652
      %v12073 = vpack.c.b16 %v11657, %v11653
      %v12074 = vpack.c.b16 %v11658, %v11654
      %v12075 = vpack.c.b16 %v11659, %v11655
      %v12076 = vpack.c.b16 %v11664, %v11660
      %v12077 = vpack.c.b16 %v11665, %v11661
      %v12078 = vpack.c.b16 %v11666, %v11662
      %v12079 = vpack.c.b16 %v11667, %v11663
      %v12080 = vpack.c.b16 %v11672, %v11668
      %v12081 = vpack.c.b16 %v11673, %v11669
      %v12082 = vpack.c.b16 %v11674, %v11670
      %v12083 = vpack.c.b16 %v11675, %v11671
      %v12084 = vpack.c.b16 %v11680, %v11676
      %v12085 = vpack.c.b16 %v11681, %v11677
      %v12086 = vpack.c.b16 %v11682, %v11678
      %v12087 = vpack.c.b16 %v11683, %v11679
      %v12088 = vpack.c.b16 %v11688, %v11684
      %v12089 = vpack.c.b16 %v11689, %v11685
      %v12090 = vpack.c.b16 %v11690, %v11686
      %v12091 = vpack.c.b16 %v11691, %v11687
      %v12092 = vpack.c.b16 %v11696, %v11692
      %v12093 = vpack.c.b16 %v11697, %v11693
      %v12094 = vpack.c.b16 %v11698, %v11694
      %v12095 = vpack.c.b16 %v11699, %v11695
      %v12096 = vpack.c.b16 %v11704, %v11700
      %v12097 = vpack.c.b16 %v11705, %v11701
      %v12098 = vpack.c.b16 %v11706, %v11702
      %v12099 = vpack.c.b16 %v11707, %v11703
      %v12100 = vpack.c.b16 %v11712, %v11708
      %v12101 = vpack.c.b16 %v11713, %v11709
      %v12102 = vpack.c.b16 %v11714, %v11710
      %v12103 = vpack.c.b16 %v11715, %v11711
      %v12104 = vpack.c.b16 %v11720, %v11716
      %v12105 = vpack.c.b16 %v11721, %v11717
      %v12106 = vpack.c.b16 %v11722, %v11718
      %v12107 = vpack.c.b16 %v11723, %v11719
      %v12108 = vpack.c.b16 %v11728, %v11724
      %v12109 = vpack.c.b16 %v11729, %v11725
      %v12110 = vpack.c.b16 %v11730, %v11726
      %v12111 = vpack.c.b16 %v11731, %v11727
      %v12112 = vpack.c.b16 %v11736, %v11732
      %v12113 = vpack.c.b16 %v11737, %v11733
      %v12114 = vpack.c.b16 %v11738, %v11734
      %v12115 = vpack.c.b16 %v11739, %v11735
      %v12116 = vpack.c.b16 %v11744, %v11740
      %v12117 = vpack.c.b16 %v11745, %v11741
      %v12118 = vpack.c.b16 %v11746, %v11742
      %v12119 = vpack.c.b16 %v11747, %v11743
      %v12120 = vpack.c.b16 %v11752, %v11748
      %v12121 = vpack.c.b16 %v11753, %v11749
      %v12122 = vpack.c.b16 %v11754, %v11750
      %v12123 = vpack.c.b16 %v11755, %v11751
      %v12124 = vpack.c.b16 %v11760, %v11756
      %v12125 = vpack.c.b16 %v11761, %v11757
      %v12126 = vpack.c.b16 %v11762, %v11758
      %v12127 = vpack.c.b16 %v11763, %v11759
      %v12128 = vpack.c.b16 %v11768, %v11764
      %v12129 = vpack.c.b16 %v11769, %v11765
      %v12130 = vpack.c.b16 %v11770, %v11766
      %v12131 = vpack.c.b16 %v11771, %v11767
      %v12132 = vpack.c.b16 %v11776, %v11772
      %v12133 = vpack.c.b16 %v11777, %v11773
      %v12134 = vpack.c.b16 %v11778, %v11774
      %v12135 = vpack.c.b16 %v11779, %v11775
      %v12136 = vpack.c.b16 %v11784, %v11780
      %v12137 = vpack.c.b16 %v11785, %v11781
      %v12138 = vpack.c.b16 %v11786, %v11782
      %v12139 = vpack.c.b16 %v11787, %v11783
      %v12140 = vpack.c.b16 %v11792, %v11788
      %v12141 = vpack.c.b16 %v11793, %v11789
      %v12142 = vpack.c.b16 %v11794, %v11790
      %v12143 = vpack.c.b16 %v11795, %v11791
      %v12144 = vpack.c.b16 %v11800, %v11796
      %v12145 = vpack.c.b16 %v11801, %v11797
      %v12146 = vpack.c.b16 %v11802, %v11798
      %v12147 = vpack.c.b16 %v11803, %v11799
      %v12148 = vpack.c.b16 %v11808, %v11804
      %v12149 = vpack.c.b16 %v11809, %v11805
      %v12150 = vpack.c.b16 %v11810, %v11806
      %v12151 = vpack.c.b16 %v11811, %v11807
      %v12152 = vpack.c.b16 %v11816, %v11812
      %v12153 = vpack.c.b16 %v11817, %v11813
      %v12154 = vpack.c.b16 %v11818, %v11814
      %v12155 = vpack.c.b16 %v11819, %v11815
      %v12156 = vpack.c.b16 %v11824, %v11820
      %v12157 = vpack.c.b16 %v11825, %v11821
      %v12158 = vpack.c.b16 %v11826, %v11822
      %v12159 = vpack.c.b16 %v11827, %v11823
      %v12160 = vpack.c.b16 %v11832, %v11828
      %v12161 = vpack.c.b16 %v11833, %v11829
      %v12162 = vpack.c.b16 %v11834, %v11830
      %v12163 = vpack.c.b16 %v11835, %v11831
      %v12164 = vpack.c.b16 %v11840, %v11836
      %v12165 = vpack.c.b16 %v11841, %v11837
      %v12166 = vpack.c.b16 %v11842, %v11838
      %v12167 = vpack.c.b16 %v11843, %v11839
      %v12168 = vpack.c.b16 %v11848, %v11844
      %v12169 = vpack.c.b16 %v11849, %v11845
      %v12170 = vpack.c.b16 %v11850, %v11846
      %v12171 = vpack.c.b16 %v11851, %v11847
      %v12172 = vpack.c.b16 %v11856, %v11852
      %v12173 = vpack.c.b16 %v11857, %v11853
      %v12174 = vpack.c.b16 %v11858, %v11854
      %v12175 = vpack.c.b16 %v11859, %v11855
      %v12176 = vpack.c.b16 %v11864, %v11860
      %v12177 = vpack.c.b16 %v11865, %v11861
      %v12178 = vpack.c.b16 %v11866, %v11862
      %v12179 = vpack.c.b16 %v11867, %v11863
      %v12180 = vpack.c.b16 %v11872, %v11868
      %v12181 = vpack.c.b16 %v11873, %v11869
      %v12182 = vpack.c.b16 %v11874, %v11870
      %v12183 = vpack.c.b16 %v11875, %v11871
      %v12184 = vpack.c.b16 %v11880, %v11876
      %v12185 = vpack.c.b16 %v11881, %v11877
      %v12186 = vpack.c.b16 %v11882, %v11878
      %v12187 = vpack.c.b16 %v11883, %v11879
      %v12188 = vpack.c.b16 %v11888, %v11884
      %v12189 = vpack.c.b16 %v11889, %v11885
      %v12190 = vpack.c.b16 %v11890, %v11886
      %v12191 = vpack.c.b16 %v11891, %v11887
      %v12192 = vpack.c.b16 %v11896, %v11892
      %v12193 = vpack.c.b16 %v11897, %v11893
      %v12194 = vpack.c.b16 %v11898, %v11894
      %v12195 = vpack.c.b16 %v11899, %v11895
      %v12196 = vpack.c.b16 %v11904, %v11900
      %v12197 = vpack.c.b16 %v11905, %v11901
      %v12198 = vpack.c.b16 %v11906, %v11902
      %v12199 = vpack.c.b16 %v11907, %v11903
      %v12200 = vpack.c.b16 %v11912, %v11908
      %v12201 = vpack.c.b16 %v11913, %v11909
      %v12202 = vpack.c.b16 %v11914, %v11910
      %v12203 = vpack.c.b16 %v11915, %v11911
      %v12204 = vpack.c.b16 %v11920, %v11916
      %v12205 = vpack.c.b16 %v11921, %v11917
      %v12206 = vpack.c.b16 %v11922, %v11918
      %v12207 = vpack.c.b16 %v11923, %v11919
      %v12208 = vpack.c.b16 %v11928, %v11924
      %v12209 = vpack.c.b16 %v11929, %v11925
      %v12210 = vpack.c.b16 %v11930, %v11926
      %v12211 = vpack.c.b16 %v11931, %v11927
      %v12212 = vpack.c.b16 %v11936, %v11932
      %v12213 = vpack.c.b16 %v11937, %v11933
      %v12214 = vpack.c.b16 %v11938, %v11934
      %v12215 = vpack.c.b16 %v11939, %v11935
      %v12216 = vpack.c.b16 %v11944, %v11940
      %v12217 = vpack.c.b16 %v11945, %v11941
      %v12218 = vpack.c.b16 %v11946, %v11942
      %v12219 = vpack.c.b16 %v11947, %v11943
      %v12220 = vpack.c.b16 %v11952, %v11948
      %v12221 = vpack.c.b16 %v11953, %v11949
      %v12222 = vpack.c.b16 %v11954, %v11950
      %v12223 = vpack.c.b16 %v11955, %v11951
      %v12224 = vpack.c.b16 %v11960, %v11956
      %v12225 = vpack.c.b16 %v11961, %v11957
      %v12226 = vpack.c.b16 %v11962, %v11958
      %v12227 = vpack.c.b16 %v11963, %v11959
      %v12228 = vpack.c.b16 %v11968, %v11964
      %v12229 = vpack.c.b16 %v11969, %v11965
      %v12230 = vpack.c.b16 %v11970, %v11966
      %v12231 = vpack.c.b16 %v11971, %v11967
      %v12232 = vpack.c.b16 %v11976, %v11972
      %v12233 = vpack.c.b16 %v11977, %v11973
      %v12234 = vpack.c.b16 %v11978, %v11974
      %v12235 = vpack.c.b16 %v11979, %v11975
      %12492 = vmatprep.subr.bf16.mxu0 %v11981
      %12493 = vmatpush1.bf16.msra.mxu0 %v11980
      %12494 = vmatprep.subr.bf16.mxu0 %v11985
      %12495 = vmatpush1.bf16.msra.mxu0 %v11984
      %12496 = vmatprep.subr.bf16.mxu0 %v11989
      %12497 = vmatpush1.bf16.msra.mxu0 %v11988
      %12498 = vmatprep.subr.bf16.mxu0 %v11993
      %12499 = vmatpush1.bf16.msra.mxu0 %v11992
      %12500 = vmatprep.subr.bf16.mxu0 %v11997
      %12501 = vmatpush1.bf16.msra.mxu0 %v11996
      %12502 = vmatprep.subr.bf16.mxu0 %v12001
      %12503 = vmatpush1.bf16.msra.mxu0 %v12000
      %12504 = vmatprep.subr.bf16.mxu0 %v12005
      %12505 = vmatpush1.bf16.msra.mxu0 %v12004
      %12506 = vmatprep.subr.bf16.mxu0 %v12009
      %12507 = vmatpush1.bf16.msra.mxu0 %v12008
      %12508 = vmatprep.subr.bf16.mxu0 %v12013
      %12509 = vmatpush1.bf16.msra.mxu0 %v12012
      %12510 = vmatprep.subr.bf16.mxu0 %v12017
      %12511 = vmatpush1.bf16.msra.mxu0 %v12016
      %12512 = vmatprep.subr.bf16.mxu0 %v12021
      %12513 = vmatpush1.bf16.msra.mxu0 %v12020
      %12514 = vmatprep.subr.bf16.mxu0 %v12025
      %12515 = vmatpush1.bf16.msra.mxu0 %v12024
      %12516 = vmatprep.subr.bf16.mxu0 %v12029
      %12517 = vmatpush1.bf16.msra.mxu0 %v12028
      %12518 = vmatprep.subr.bf16.mxu0 %v12033
      %12519 = vmatpush1.bf16.msra.mxu0 %v12032
      %12520 = vmatprep.subr.bf16.mxu0 %v12037
      %12521 = vmatpush1.bf16.msra.mxu0 %v12036
      %12522 = vmatprep.subr.bf16.mxu0 %v12041
      %12523 = vmatpush1.bf16.msra.mxu0 %v12040
      %12524 = vmatprep.mubr.bf16.mxu0 %v11197
      %12525 = vmatmul.mubr.bf16.gmra.mrb[0].mxu0 %v11196
      %v12526 = vpop.f32.mrb[0].mxu0
      %v12527 = vadd.f32 0.0, %v12526
      %v12528 = vpop.f32.mrb[0].mxu0
      %v12529 = vadd.f32 0.0, %v12528
      %v12530 = vpop.f32.mrb[0].mxu0
      %v12531 = vpop.f32.mrb[0].mxu0
      %12532 = vdwg.mxu0
      %12533 = vmatprep.subr.bf16.mxu0 %v12045
      %12534 = vmatpush1.bf16.msra.mxu0 %v12044
      %12535 = vmatprep.subr.bf16.mxu0 %v12049
      %12536 = vmatpush1.bf16.msra.mxu0 %v12048
      %12537 = vmatprep.subr.bf16.mxu0 %v12053
      %12538 = vmatpush1.bf16.msra.mxu0 %v12052
      %12539 = vmatprep.subr.bf16.mxu0 %v12057
      %12540 = vmatpush1.bf16.msra.mxu0 %v12056
      %12541 = vmatprep.subr.bf16.mxu0 %v12061
      %12542 = vmatpush1.bf16.msra.mxu0 %v12060
      %12543 = vmatprep.subr.bf16.mxu0 %v12065
      %12544 = vmatpush1.bf16.msra.mxu0 %v12064
      %12545 = vmatprep.subr.bf16.mxu0 %v12069
      %12546 = vmatpush1.bf16.msra.mxu0 %v12068
      %12547 = vmatprep.subr.bf16.mxu0 %v12073
      %12548 = vmatpush1.bf16.msra.mxu0 %v12072
      %12549 = vmatprep.subr.bf16.mxu0 %v12077
      %12550 = vmatpush1.bf16.msra.mxu0 %v12076
      %12551 = vmatprep.subr.bf16.mxu0 %v12081
      %12552 = vmatpush1.bf16.msra.mxu0 %v12080
      %12553 = vmatprep.subr.bf16.mxu0 %v12085
      %12554 = vmatpush1.bf16.msra.mxu0 %v12084
      %12555 = vmatprep.subr.bf16.mxu0 %v12089
      %12556 = vmatpush1.bf16.msra.mxu0 %v12088
      %12557 = vmatprep.subr.bf16.mxu0 %v12093
      %12558 = vmatpush1.bf16.msra.mxu0 %v12092
      %12559 = vmatprep.subr.bf16.mxu0 %v12097
      %12560 = vmatpush1.bf16.msra.mxu0 %v12096
      %12561 = vmatprep.subr.bf16.mxu0 %v12101
      %12562 = vmatpush1.bf16.msra.mxu0 %v12100
      %12563 = vmatprep.subr.bf16.mxu0 %v12105
      %12564 = vmatpush1.bf16.msra.mxu0 %v12104
      %12565 = vmatprep.mubr.bf16.mxu0 %v11199
      %12566 = vmatmul.mubr.bf16.gmra.mrb[0].mxu0 %v11198
      %v12567 = vpop.f32.mrb[0].mxu0
      %v12568 = vadd.f32 %v12527, %v12567
      %v12569 = vpop.f32.mrb[0].mxu0
      %v12570 = vadd.f32 %v12529, %v12569
      %v12571 = vpop.f32.mrb[0].mxu0
      %v12572 = vpop.f32.mrb[0].mxu0
      %12573 = vdwg.mxu0
      %12574 = vmatprep.subr.bf16.mxu0 %v12109
      %12575 = vmatpush1.bf16.msra.mxu0 %v12108
      %12576 = vmatprep.subr.bf16.mxu0 %v12113
      %12577 = vmatpush1.bf16.msra.mxu0 %v12112
      %12578 = vmatprep.subr.bf16.mxu0 %v12117
      %12579 = vmatpush1.bf16.msra.mxu0 %v12116
      %12580 = vmatprep.subr.bf16.mxu0 %v12121
      %12581 = vmatpush1.bf16.msra.mxu0 %v12120
      %12582 = vmatprep.subr.bf16.mxu0 %v12125
      %12583 = vmatpush1.bf16.msra.mxu0 %v12124
      %12584 = vmatprep.subr.bf16.mxu0 %v12129
      %12585 = vmatpush1.bf16.msra.mxu0 %v12128
      %12586 = vmatprep.subr.bf16.mxu0 %v12133
      %12587 = vmatpush1.bf16.msra.mxu0 %v12132
      %12588 = vmatprep.subr.bf16.mxu0 %v12137
      %12589 = vmatpush1.bf16.msra.mxu0 %v12136
      %12590 = vmatprep.subr.bf16.mxu0 %v12141
      %12591 = vmatpush1.bf16.msra.mxu0 %v12140
      %12592 = vmatprep.subr.bf16.mxu0 %v12145
      %12593 = vmatpush1.bf16.msra.mxu0 %v12144
      %12594 = vmatprep.subr.bf16.mxu0 %v12149
      %12595 = vmatpush1.bf16.msra.mxu0 %v12148
      %12596 = vmatprep.subr.bf16.mxu0 %v12153
      %12597 = vmatpush1.bf16.msra.mxu0 %v12152
      %12598 = vmatprep.subr.bf16.mxu0 %v12157
      %12599 = vmatpush1.bf16.msra.mxu0 %v12156
      %12600 = vmatprep.subr.bf16.mxu0 %v12161
      %12601 = vmatpush1.bf16.msra.mxu0 %v12160
      %12602 = vmatprep.subr.bf16.mxu0 %v12165
      %12603 = vmatpush1.bf16.msra.mxu0 %v12164
      %12604 = vmatprep.subr.bf16.mxu0 %v12169
      %12605 = vmatpush1.bf16.msra.mxu0 %v12168
      %12606 = vmatprep.mubr.bf16.mxu0 %v11201
      %12607 = vmatmul.mubr.bf16.gmra.mrb[0].mxu0 %v11200
      %v12608 = vpop.f32.mrb[0].mxu0
      %v12609 = vadd.f32 %v12568, %v12608
      %v12610 = vpop.f32.mrb[0].mxu0
      %v12611 = vadd.f32 %v12570, %v12610
      %v12612 = vpop.f32.mrb[0].mxu0
      %v12613 = vpop.f32.mrb[0].mxu0
      %12614 = vdwg.mxu0
      %12615 = vmatprep.subr.bf16.mxu0 %v12173
      %12616 = vmatpush1.bf16.msra.mxu0 %v12172
      %12617 = vmatprep.subr.bf16.mxu0 %v12177
      %12618 = vmatpush1.bf16.msra.mxu0 %v12176
      %12619 = vmatprep.subr.bf16.mxu0 %v12181
      %12620 = vmatpush1.bf16.msra.mxu0 %v12180
      %12621 = vmatprep.subr.bf16.mxu0 %v12185
      %12622 = vmatpush1.bf16.msra.mxu0 %v12184
      %12623 = vmatprep.subr.bf16.mxu0 %v12189
      %12624 = vmatpush1.bf16.msra.mxu0 %v12188
      %12625 = vmatprep.subr.bf16.mxu0 %v12193
      %12626 = vmatpush1.bf16.msra.mxu0 %v12192
      %12627 = vmatprep.subr.bf16.mxu0 %v12197
      %12628 = vmatpush1.bf16.msra.mxu0 %v12196
      %12629 = vmatprep.subr.bf16.mxu0 %v12201
      %12630 = vmatpush1.bf16.msra.mxu0 %v12200
      %12631 = vmatprep.subr.bf16.mxu0 %v12205
      %12632 = vmatpush1.bf16.msra.mxu0 %v12204
      %12633 = vmatprep.subr.bf16.mxu0 %v12209
      %12634 = vmatpush1.bf16.msra.mxu0 %v12208
      %12635 = vmatprep.subr.bf16.mxu0 %v12213
      %12636 = vmatpush1.bf16.msra.mxu0 %v12212
      %12637 = vmatprep.subr.bf16.mxu0 %v12217
      %12638 = vmatpush1.bf16.msra.mxu0 %v12216
      %12639 = vmatprep.subr.bf16.mxu0 %v12221
      %12640 = vmatpush1.bf16.msra.mxu0 %v12220
      %12641 = vmatprep.subr.bf16.mxu0 %v12225
      %12642 = vmatpush1.bf16.msra.mxu0 %v12224
      %12643 = vmatprep.subr.bf16.mxu0 %v12229
      %12644 = vmatpush1.bf16.msra.mxu0 %v12228
      %12645 = vmatprep.subr.bf16.mxu0 %v12233
      %12646 = vmatpush1.bf16.msra.mxu0 %v12232
      %12647 = vmatprep.mubr.bf16.mxu0 %v11203
      %12648 = vmatmul.mubr.bf16.gmra.mrb[0].mxu0 %v11202
      %v12649 = vpop.f32.mrb[0].mxu0
      %v12650 = vadd.f32 %v12609, %v12649
      %v12651 = vpop.f32.mrb[0].mxu0
      %v12652 = vadd.f32 %v12611, %v12651
      %v12653 = vpop.f32.mrb[0].mxu0
      %v12654 = vpop.f32.mrb[0].mxu0
      %12655 = vdwg.mxu0
      %12656 = vmatprep.subr.bf16.mxu0 %v11983
      %12657 = vmatpush1.bf16.msra.mxu0 %v11982
      %12658 = vmatprep.subr.bf16.mxu0 %v11987
      %12659 = vmatpush1.bf16.msra.mxu0 %v11986
      %12660 = vmatprep.subr.bf16.mxu0 %v11991
      %12661 = vmatpush1.bf16.msra.mxu0 %v11990
      %12662 = vmatprep.subr.bf16.mxu0 %v11995
      %12663 = vmatpush1.bf16.msra.mxu0 %v11994
      %12664 = vmatprep.subr.bf16.mxu0 %v11999
      %12665 = vmatpush1.bf16.msra.mxu0 %v11998
      %12666 = vmatprep.subr.bf16.mxu0 %v12003
      %12667 = vmatpush1.bf16.msra.mxu0 %v12002
      %12668 = vmatprep.subr.bf16.mxu0 %v12007
      %12669 = vmatpush1.bf16.msra.mxu0 %v12006
      %12670 = vmatprep.subr.bf16.mxu0 %v12011
      %12671 = vmatpush1.bf16.msra.mxu0 %v12010
      %12672 = vmatprep.subr.bf16.mxu0 %v12015
      %12673 = vmatpush1.bf16.msra.mxu0 %v12014
      %12674 = vmatprep.subr.bf16.mxu0 %v12019
      %12675 = vmatpush1.bf16.msra.mxu0 %v12018
      %12676 = vmatprep.subr.bf16.mxu0 %v12023
      %12677 = vmatpush1.bf16.msra.mxu0 %v12022
      %12678 = vmatprep.subr.bf16.mxu0 %v12027
      %12679 = vmatpush1.bf16.msra.mxu0 %v12026
      %12680 = vmatprep.subr.bf16.mxu0 %v12031
      %12681 = vmatpush1.bf16.msra.mxu0 %v12030
      %12682 = vmatprep.subr.bf16.mxu0 %v12035
      %12683 = vmatpush1.bf16.msra.mxu0 %v12034
      %12684 = vmatprep.subr.bf16.mxu0 %v12039
      %12685 = vmatpush1.bf16.msra.mxu0 %v12038
      %12686 = vmatprep.subr.bf16.mxu0 %v12043
      %12687 = vmatpush1.bf16.msra.mxu0 %v12042
      %12688 = vmatprep.mubr.bf16.mxu0 %v11197
      %12689 = vmatmul.mubr.bf16.gmra.mrb[0].mxu0 %v11196
      %v12690 = vpop.f32.mrb[0].mxu0
      %v12691 = vadd.f32 0.0, %v12690
      %v12692 = vpop.f32.mrb[0].mxu0
      %v12693 = vadd.f32 0.0, %v12692
      %v12694 = vpop.f32.mrb[0].mxu0
      %v12695 = vpop.f32.mrb[0].mxu0
      %12696 = vdwg.mxu0
      %12697 = vmatprep.subr.bf16.mxu0 %v12047
      %12698 = vmatpush1.bf16.msra.mxu0 %v12046
      %12699 = vmatprep.subr.bf16.mxu0 %v12051
      %12700 = vmatpush1.bf16.msra.mxu0 %v12050
      %12701 = vmatprep.subr.bf16.mxu0 %v12055
      %12702 = vmatpush1.bf16.msra.mxu0 %v12054
      %12703 = vmatprep.subr.bf16.mxu0 %v12059
      %12704 = vmatpush1.bf16.msra.mxu0 %v12058
      %12705 = vmatprep.subr.bf16.mxu0 %v12063
      %12706 = vmatpush1.bf16.msra.mxu0 %v12062
      %12707 = vmatprep.subr.bf16.mxu0 %v12067
      %12708 = vmatpush1.bf16.msra.mxu0 %v12066
      %12709 = vmatprep.subr.bf16.mxu0 %v12071
      %12710 = vmatpush1.bf16.msra.mxu0 %v12070
      %12711 = vmatprep.subr.bf16.mxu0 %v12075
      %12712 = vmatpush1.bf16.msra.mxu0 %v12074
      %12713 = vmatprep.subr.bf16.mxu0 %v12079
      %12714 = vmatpush1.bf16.msra.mxu0 %v12078
      %12715 = vmatprep.subr.bf16.mxu0 %v12083
      %12716 = vmatpush1.bf16.msra.mxu0 %v12082
      %12717 = vmatprep.subr.bf16.mxu0 %v12087
      %12718 = vmatpush1.bf16.msra.mxu0 %v12086
      %12719 = vmatprep.subr.bf16.mxu0 %v12091
      %12720 = vmatpush1.bf16.msra.mxu0 %v12090
      %12721 = vmatprep.subr.bf16.mxu0 %v12095
      %12722 = vmatpush1.bf16.msra.mxu0 %v12094
      %12723 = vmatprep.subr.bf16.mxu0 %v12099
      %12724 = vmatpush1.bf16.msra.mxu0 %v12098
      %12725 = vmatprep.subr.bf16.mxu0 %v12103
      %12726 = vmatpush1.bf16.msra.mxu0 %v12102
      %12727 = vmatprep.subr.bf16.mxu0 %v12107
      %12728 = vmatpush1.bf16.msra.mxu0 %v12106
      %12729 = vmatprep.mubr.bf16.mxu0 %v11199
      %12730 = vmatmul.mubr.bf16.gmra.mrb[0].mxu0 %v11198
      %v12731 = vpop.f32.mrb[0].mxu0
      %v12732 = vadd.f32 %v12691, %v12731
      %v12733 = vpop.f32.mrb[0].mxu0
      %v12734 = vadd.f32 %v12693, %v12733
      %v12735 = vpop.f32.mrb[0].mxu0
      %v12736 = vpop.f32.mrb[0].mxu0
      %12737 = vdwg.mxu0
      %12738 = vmatprep.subr.bf16.mxu0 %v12111
      %12739 = vmatpush1.bf16.msra.mxu0 %v12110
      %12740 = vmatprep.subr.bf16.mxu0 %v12115
      %12741 = vmatpush1.bf16.msra.mxu0 %v12114
      %12742 = vmatprep.subr.bf16.mxu0 %v12119
      %12743 = vmatpush1.bf16.msra.mxu0 %v12118
      %12744 = vmatprep.subr.bf16.mxu0 %v12123
      %12745 = vmatpush1.bf16.msra.mxu0 %v12122
      %12746 = vmatprep.subr.bf16.mxu0 %v12127
      %12747 = vmatpush1.bf16.msra.mxu0 %v12126
      %12748 = vmatprep.subr.bf16.mxu0 %v12131
      %12749 = vmatpush1.bf16.msra.mxu0 %v12130
      %12750 = vmatprep.subr.bf16.mxu0 %v12135
      %12751 = vmatpush1.bf16.msra.mxu0 %v12134
      %12752 = vmatprep.subr.bf16.mxu0 %v12139
      %12753 = vmatpush1.bf16.msra.mxu0 %v12138
      %12754 = vmatprep.subr.bf16.mxu0 %v12143
      %12755 = vmatpush1.bf16.msra.mxu0 %v12142
      %12756 = vmatprep.subr.bf16.mxu0 %v12147
      %12757 = vmatpush1.bf16.msra.mxu0 %v12146
      %12758 = vmatprep.subr.bf16.mxu0 %v12151
      %12759 = vmatpush1.bf16.msra.mxu0 %v12150
      %12760 = vmatprep.subr.bf16.mxu0 %v12155
      %12761 = vmatpush1.bf16.msra.mxu0 %v12154
      %12762 = vmatprep.subr.bf16.mxu0 %v12159
      %12763 = vmatpush1.bf16.msra.mxu0 %v12158
      %12764 = vmatprep.subr.bf16.mxu0 %v12163
      %12765 = vmatpush1.bf16.msra.mxu0 %v12162
      %12766 = vmatprep.subr.bf16.mxu0 %v12167
      %12767 = vmatpush1.bf16.msra.mxu0 %v12166
      %12768 = vmatprep.subr.bf16.mxu0 %v12171
      %12769 = vmatpush1.bf16.msra.mxu0 %v12170
      %12770 = vmatprep.mubr.bf16.mxu0 %v11201
      %12771 = vmatmul.mubr.bf16.gmra.mrb[0].mxu0 %v11200
      %v12772 = vpop.f32.mrb[0].mxu0
      %v12773 = vadd.f32 %v12732, %v12772
      %v12774 = vpop.f32.mrb[0].mxu0
      %v12775 = vadd.f32 %v12734, %v12774
      %v12776 = vpop.f32.mrb[0].mxu0
      %v12777 = vpop.f32.mrb[0].mxu0
      %12778 = vdwg.mxu0
      %12779 = vmatprep.subr.bf16.mxu0 %v12175
      %12780 = vmatpush1.bf16.msra.mxu0 %v12174
      %12781 = vmatprep.subr.bf16.mxu0 %v12179
      %12782 = vmatpush1.bf16.msra.mxu0 %v12178
      %12783 = vmatprep.subr.bf16.mxu0 %v12183
      %12784 = vmatpush1.bf16.msra.mxu0 %v12182
      %12785 = vmatprep.subr.bf16.mxu0 %v12187
      %12786 = vmatpush1.bf16.msra.mxu0 %v12186
      %12787 = vmatprep.subr.bf16.mxu0 %v12191
      %12788 = vmatpush1.bf16.msra.mxu0 %v12190
      %12789 = vmatprep.subr.bf16.mxu0 %v12195
      %12790 = vmatpush1.bf16.msra.mxu0 %v12194
      %12791 = vmatprep.subr.bf16.mxu0 %v12199
      %12792 = vmatpush1.bf16.msra.mxu0 %v12198
      %12793 = vmatprep.subr.bf16.mxu0 %v12203
      %12794 = vmatpush1.bf16.msra.mxu0 %v12202
      %12795 = vmatprep.subr.bf16.mxu0 %v12207
      %12796 = vmatpush1.bf16.msra.mxu0 %v12206
      %12797 = vmatprep.subr.bf16.mxu0 %v12211
      %12798 = vmatpush1.bf16.msra.mxu0 %v12210
      %12799 = vmatprep.subr.bf16.mxu0 %v12215
      %12800 = vmatpush1.bf16.msra.mxu0 %v12214
      %12801 = vmatprep.subr.bf16.mxu0 %v12219
      %12802 = vmatpush1.bf16.msra.mxu0 %v12218
      %12803 = vmatprep.subr.bf16.mxu0 %v12223
      %12804 = vmatpush1.bf16.msra.mxu0 %v12222
      %12805 = vmatprep.subr.bf16.mxu0 %v12227
      %12806 = vmatpush1.bf16.msra.mxu0 %v12226
      %12807 = vmatprep.subr.bf16.mxu0 %v12231
      %12808 = vmatpush1.bf16.msra.mxu0 %v12230
      %12809 = vmatprep.subr.bf16.mxu0 %v12235
      %12810 = vmatpush1.bf16.msra.mxu0 %v12234
      %12811 = vmatprep.mubr.bf16.mxu0 %v11203
      %12812 = vmatmul.mubr.bf16.gmra.mrb[0].mxu0 %v11202
      %v12813 = vpop.f32.mrb[0].mxu0
      %v12814 = vadd.f32 %v12773, %v12813
      %v12815 = vpop.f32.mrb[0].mxu0
      %v12816 = vadd.f32 %v12775, %v12815
      %v12817 = vpop.f32.mrb[0].mxu0
      %v12818 = vpop.f32.mrb[0].mxu0
      %12819 = vdwg.mxu0
      %v12820 = vpack.c.bf16 %v12650, %v12650
      %v12821 = vpack.c.bf16 %v12652, %v12652
      %v12822 = vpack.c.bf16 %v12814, %v12814
      %v12823 = vpack.c.bf16 %v12816, %v12816
      %v12824 = vld [vmem:[%s14] sm:$0xff]
      %v12825 = vld [vmem:[%s14 + $0x8] sm:$0xff]
      %v12826 = vld [vmem:[%s14 + $0x10] sm:$0xff]
      %v12827 = vld [vmem:[%s14 + $0x18] sm:$0xff]
      %v12828 = vld [vmem:[%s14 + $0x20] sm:$0xff]
      %v12829 = vld [vmem:[%s14 + $0x28] sm:$0xff]
      %v12830 = vld [vmem:[%s14 + $0x30] sm:$0xff]
      %v12831 = vld [vmem:[%s14 + $0x38] sm:$0xff]
      %v12832 = vld [vmem:[%s14 + $0x40] sm:$0xff]
      %v12833 = vld [vmem:[%s14 + $0x48] sm:$0xff]
      %v12834 = vld [vmem:[%s14 + $0x50] sm:$0xff]
      %v12835 = vld [vmem:[%s14 + $0x58] sm:$0xff]
      %v12836 = vld [vmem:[%s14 + $0x60] sm:$0xff]
      %v12837 = vld [vmem:[%s14 + $0x68] sm:$0xff]
      %v12838 = vld [vmem:[%s14 + $0x70] sm:$0xff]
      %v12839 = vld [vmem:[%s14 + $0x78] sm:$0xff]
      %v12840 = vld [vmem:[%s14 + $0x80] sm:$0xff]
      %v12841 = vld [vmem:[%s14 + $0x88] sm:$0xff]
      %v12842 = vld [vmem:[%s14 + $0x90] sm:$0xff]
      %v12843 = vld [vmem:[%s14 + $0x98] sm:$0xff]
      %v12844 = vld [vmem:[%s14 + $0xa0] sm:$0xff]
      %v12845 = vld [vmem:[%s14 + $0xa8] sm:$0xff]
      %v12846 = vld [vmem:[%s14 + $0xb0] sm:$0xff]
      %v12847 = vld [vmem:[%s14 + $0xb8] sm:$0xff]
      %v12848 = vld [vmem:[%s14 + $0xc0] sm:$0xff]
      %v12849 = vld [vmem:[%s14 + $0xc8] sm:$0xff]
      %v12850 = vld [vmem:[%s14 + $0xd0] sm:$0xff]
      %v12851 = vld [vmem:[%s14 + $0xd8] sm:$0xff]
      %v12852 = vld [vmem:[%s14 + $0xe0] sm:$0xff]
      %v12853 = vld [vmem:[%s14 + $0xe8] sm:$0xff]
      %v12854 = vld [vmem:[%s14 + $0xf0] sm:$0xff]
      %v12855 = vld [vmem:[%s14 + $0xf8] sm:$0xff]
      %v12856 = vld [vmem:[%s14 + $0x100] sm:$0xff]
      %v12857 = vld [vmem:[%s14 + $0x108] sm:$0xff]
      %v12858 = vld [vmem:[%s14 + $0x110] sm:$0xff]
      %v12859 = vld [vmem:[%s14 + $0x118] sm:$0xff]
      %v12860 = vld [vmem:[%s14 + $0x120] sm:$0xff]
      %v12861 = vld [vmem:[%s14 + $0x128] sm:$0xff]
      %v12862 = vld [vmem:[%s14 + $0x130] sm:$0xff]
      %v12863 = vld [vmem:[%s14 + $0x138] sm:$0xff]
      %v12864 = vld [vmem:[%s14 + $0x140] sm:$0xff]
      %v12865 = vld [vmem:[%s14 + $0x148] sm:$0xff]
      %v12866 = vld [vmem:[%s14 + $0x150] sm:$0xff]
      %v12867 = vld [vmem:[%s14 + $0x158] sm:$0xff]
      %v12868 = vld [vmem:[%s14 + $0x160] sm:$0xff]
      %v12869 = vld [vmem:[%s14 + $0x168] sm:$0xff]
      %v12870 = vld [vmem:[%s14 + $0x170] sm:$0xff]
      %v12871 = vld [vmem:[%s14 + $0x178] sm:$0xff]
      %v12872 = vld [vmem:[%s14 + $0x180] sm:$0xff]
      %v12873 = vld [vmem:[%s14 + $0x188] sm:$0xff]
      %v12874 = vld [vmem:[%s14 + $0x190] sm:$0xff]
      %v12875 = vld [vmem:[%s14 + $0x198] sm:$0xff]
      %v12876 = vld [vmem:[%s14 + $0x1a0] sm:$0xff]
      %v12877 = vld [vmem:[%s14 + $0x1a8] sm:$0xff]
      %v12878 = vld [vmem:[%s14 + $0x1b0] sm:$0xff]
      %v12879 = vld [vmem:[%s14 + $0x1b8] sm:$0xff]
      %v12880 = vld [vmem:[%s14 + $0x1c0] sm:$0xff]
      %v12881 = vld [vmem:[%s14 + $0x1c8] sm:$0xff]
      %v12882 = vld [vmem:[%s14 + $0x1d0] sm:$0xff]
      %v12883 = vld [vmem:[%s14 + $0x1d8] sm:$0xff]
      %v12884 = vld [vmem:[%s14 + $0x1e0] sm:$0xff]
      %v12885 = vld [vmem:[%s14 + $0x1e8] sm:$0xff]
      %v12886 = vld [vmem:[%s14 + $0x1f0] sm:$0xff]
      %v12887 = vld [vmem:[%s14 + $0x1f8] sm:$0xff]
      %v12888 = vld [vmem:[%s15] sm:$0x3]
      %v12890 = vlaneseq
      %v12891 = vshrl.u32 %v12890, 7
      %v12892 = vsub.s32 0, %v12891
      %v12893 = vrot.slane %v12888, %v12892
      %v12894 = vlaneseq
      %v12895 = vshrl.u32 %v12894, 7
      %v12896 = vsub.s32 1, %v12895
      %v12897 = vrot.slane %v12888, %v12896
      %v12964 = vunpack.c.l.b16 %v12824
      %v12965 = vunpack.c.h.b16 %v12824
      %v12966 = vunpack.c.l.b16 %v12825
      %v12967 = vunpack.c.h.b16 %v12825
      %v12968 = vunpack.c.l.b16 %v12826
      %v12969 = vunpack.c.h.b16 %v12826
      %v12970 = vunpack.c.l.b16 %v12827
      %v12971 = vunpack.c.h.b16 %v12827
      %v12972 = vunpack.c.l.b16 %v12828
      %v12973 = vunpack.c.h.b16 %v12828
      %v12974 = vunpack.c.l.b16 %v12829
      %v12975 = vunpack.c.h.b16 %v12829
      %v12976 = vunpack.c.l.b16 %v12830
      %v12977 = vunpack.c.h.b16 %v12830
      %v12978 = vunpack.c.l.b16 %v12831
      %v12979 = vunpack.c.h.b16 %v12831
      %v12980 = vunpack.c.l.b16 %v12832
      %v12981 = vunpack.c.h.b16 %v12832
      %v12982 = vunpack.c.l.b16 %v12833
      %v12983 = vunpack.c.h.b16 %v12833
      %v12984 = vunpack.c.l.b16 %v12834
      %v12985 = vunpack.c.h.b16 %v12834
      %v12986 = vunpack.c.l.b16 %v12835
      %v12987 = vunpack.c.h.b16 %v12835
      %v12988 = vunpack.c.l.b16 %v12836
      %v12989 = vunpack.c.h.b16 %v12836
      %v12990 = vunpack.c.l.b16 %v12837
      %v12991 = vunpack.c.h.b16 %v12837
      %v12992 = vunpack.c.l.b16 %v12838
      %v12993 = vunpack.c.h.b16 %v12838
      %v12994 = vunpack.c.l.b16 %v12839
      %v12995 = vunpack.c.h.b16 %v12839
      %v12996 = vunpack.c.l.b16 %v12840
      %v12997 = vunpack.c.h.b16 %v12840
      %v12998 = vunpack.c.l.b16 %v12841
      %v12999 = vunpack.c.h.b16 %v12841
      %v13000 = vunpack.c.l.b16 %v12842
      %v13001 = vunpack.c.h.b16 %v12842
      %v13002 = vunpack.c.l.b16 %v12843
      %v13003 = vunpack.c.h.b16 %v12843
      %v13004 = vunpack.c.l.b16 %v12844
      %v13005 = vunpack.c.h.b16 %v12844
      %v13006 = vunpack.c.l.b16 %v12845
      %v13007 = vunpack.c.h.b16 %v12845
      %v13008 = vunpack.c.l.b16 %v12846
      %v13009 = vunpack.c.h.b16 %v12846
      %v13010 = vunpack.c.l.b16 %v12847
      %v13011 = vunpack.c.h.b16 %v12847
      %v13012 = vunpack.c.l.b16 %v12848
      %v13013 = vunpack.c.h.b16 %v12848
      %v13014 = vunpack.c.l.b16 %v12849
      %v13015 = vunpack.c.h.b16 %v12849
      %v13016 = vunpack.c.l.b16 %v12850
      %v13017 = vunpack.c.h.b16 %v12850
      %v13018 = vunpack.c.l.b16 %v12851
      %v13019 = vunpack.c.h.b16 %v12851
      %v13020 = vunpack.c.l.b16 %v12852
      %v13021 = vunpack.c.h.b16 %v12852
      %v13022 = vunpack.c.l.b16 %v12853
      %v13023 = vunpack.c.h.b16 %v12853
      %v13024 = vunpack.c.l.b16 %v12854
      %v13025 = vunpack.c.h.b16 %v12854
      %v13026 = vunpack.c.l.b16 %v12855
      %v13027 = vunpack.c.h.b16 %v12855
      %v13028 = vunpack.c.l.b16 %v12856
      %v13029 = vunpack.c.h.b16 %v12856
      %v13030 = vunpack.c.l.b16 %v12857
      %v13031 = vunpack.c.h.b16 %v12857
      %v13032 = vunpack.c.l.b16 %v12858
      %v13033 = vunpack.c.h.b16 %v12858
      %v13034 = vunpack.c.l.b16 %v12859
      %v13035 = vunpack.c.h.b16 %v12859
      %v13036 = vunpack.c.l.b16 %v12860
      %v13037 = vunpack.c.h.b16 %v12860
      %v13038 = vunpack.c.l.b16 %v12861
      %v13039 = vunpack.c.h.b16 %v12861
      %v13040 = vunpack.c.l.b16 %v12862
      %v13041 = vunpack.c.h.b16 %v12862
      %v13042 = vunpack.c.l.b16 %v12863
      %v13043 = vunpack.c.h.b16 %v12863
      %v13044 = vunpack.c.l.b16 %v12864
      %v13045 = vunpack.c.h.b16 %v12864
      %v13046 = vunpack.c.l.b16 %v12865
      %v13047 = vunpack.c.h.b16 %v12865
      %v13048 = vunpack.c.l.b16 %v12866
      %v13049 = vunpack.c.h.b16 %v12866
      %v13050 = vunpack.c.l.b16 %v12867
      %v13051 = vunpack.c.h.b16 %v12867
      %v13052 = vunpack.c.l.b16 %v12868
      %v13053 = vunpack.c.h.b16 %v12868
      %v13054 = vunpack.c.l.b16 %v12869
      %v13055 = vunpack.c.h.b16 %v12869
      %v13056 = vunpack.c.l.b16 %v12870
      %v13057 = vunpack.c.h.b16 %v12870
      %v13058 = vunpack.c.l.b16 %v12871
      %v13059 = vunpack.c.h.b16 %v12871
      %v13060 = vunpack.c.l.b16 %v12872
      %v13061 = vunpack.c.h.b16 %v12872
      %v13062 = vunpack.c.l.b16 %v12873
      %v13063 = vunpack.c.h.b16 %v12873
      %v13064 = vunpack.c.l.b16 %v12874
      %v13065 = vunpack.c.h.b16 %v12874
      %v13066 = vunpack.c.l.b16 %v12875
      %v13067 = vunpack.c.h.b16 %v12875
      %v13068 = vunpack.c.l.b16 %v12876
      %v13069 = vunpack.c.h.b16 %v12876
      %v13070 = vunpack.c.l.b16 %v12877
      %v13071 = vunpack.c.h.b16 %v12877
      %v13072 = vunpack.c.l.b16 %v12878
      %v13073 = vunpack.c.h.b16 %v12878
      %v13074 = vunpack.c.l.b16 %v12879
      %v13075 = vunpack.c.h.b16 %v12879
      %v13076 = vunpack.c.l.b16 %v12880
      %v13077 = vunpack.c.h.b16 %v12880
      %v13078 = vunpack.c.l.b16 %v12881
      %v13079 = vunpack.c.h.b16 %v12881
      %v13080 = vunpack.c.l.b16 %v12882
      %v13081 = vunpack.c.h.b16 %v12882
      %v13082 = vunpack.c.l.b16 %v12883
      %v13083 = vunpack.c.h.b16 %v12883
      %v13084 = vunpack.c.l.b16 %v12884
      %v13085 = vunpack.c.h.b16 %v12884
      %v13086 = vunpack.c.l.b16 %v12885
      %v13087 = vunpack.c.h.b16 %v12885
      %v13088 = vunpack.c.l.b16 %v12886
      %v13089 = vunpack.c.h.b16 %v12886
      %v13090 = vunpack.c.l.b16 %v12887
      %v13091 = vunpack.c.h.b16 %v12887
      %v13092 = vpack.c.b16 %v12966, %v12964
      %v13093 = vpack.c.b16 %v12967, %v12965
      %v13094 = vpack.c.b16 %v12970, %v12968
      %v13095 = vpack.c.b16 %v12971, %v12969
      %v13096 = vpack.c.b16 %v12974, %v12972
      %v13097 = vpack.c.b16 %v12975, %v12973
      %v13098 = vpack.c.b16 %v12978, %v12976
      %v13099 = vpack.c.b16 %v12979, %v12977
      %v13100 = vpack.c.b16 %v12982, %v12980
      %v13101 = vpack.c.b16 %v12983, %v12981
      %v13102 = vpack.c.b16 %v12986, %v12984
      %v13103 = vpack.c.b16 %v12987, %v12985
      %v13104 = vpack.c.b16 %v12990, %v12988
      %v13105 = vpack.c.b16 %v12991, %v12989
      %v13106 = vpack.c.b16 %v12994, %v12992
      %v13107 = vpack.c.b16 %v12995, %v12993
      %v13108 = vpack.c.b16 %v12998, %v12996
      %v13109 = vpack.c.b16 %v12999, %v12997
      %v13110 = vpack.c.b16 %v13002, %v13000
      %v13111 = vpack.c.b16 %v13003, %v13001
      %v13112 = vpack.c.b16 %v13006, %v13004
      %v13113 = vpack.c.b16 %v13007, %v13005
      %v13114 = vpack.c.b16 %v13010, %v13008
      %v13115 = vpack.c.b16 %v13011, %v13009
      %v13116 = vpack.c.b16 %v13014, %v13012
      %v13117 = vpack.c.b16 %v13015, %v13013
      %v13118 = vpack.c.b16 %v13018, %v13016
      %v13119 = vpack.c.b16 %v13019, %v13017
      %v13120 = vpack.c.b16 %v13022, %v13020
      %v13121 = vpack.c.b16 %v13023, %v13021
      %v13122 = vpack.c.b16 %v13026, %v13024
      %v13123 = vpack.c.b16 %v13027, %v13025
      %v13124 = vpack.c.b16 %v13030, %v13028
      %v13125 = vpack.c.b16 %v13031, %v13029
      %v13126 = vpack.c.b16 %v13034, %v13032
      %v13127 = vpack.c.b16 %v13035, %v13033
      %v13128 = vpack.c.b16 %v13038, %v13036
      %v13129 = vpack.c.b16 %v13039, %v13037
      %v13130 = vpack.c.b16 %v13042, %v13040
      %v13131 = vpack.c.b16 %v13043, %v13041
      %v13132 = vpack.c.b16 %v13046, %v13044
      %v13133 = vpack.c.b16 %v13047, %v13045
      %v13134 = vpack.c.b16 %v13050, %v13048
      %v13135 = vpack.c.b16 %v13051, %v13049
      %v13136 = vpack.c.b16 %v13054, %v13052
      %v13137 = vpack.c.b16 %v13055, %v13053
      %v13138 = vpack.c.b16 %v13058, %v13056
      %v13139 = vpack.c.b16 %v13059, %v13057
      %v13140 = vpack.c.b16 %v13062, %v13060
      %v13141 = vpack.c.b16 %v13063, %v13061
      %v13142 = vpack.c.b16 %v13066, %v13064
      %v13143 = vpack.c.b16 %v13067, %v13065
      %v13144 = vpack.c.b16 %v13070, %v13068
      %v13145 = vpack.c.b16 %v13071, %v13069
      %v13146 = vpack.c.b16 %v13074, %v13072
      %v13147 = vpack.c.b16 %v13075, %v13073
      %v13148 = vpack.c.b16 %v13078, %v13076
      %v13149 = vpack.c.b16 %v13079, %v13077
      %v13150 = vpack.c.b16 %v13082, %v13080
      %v13151 = vpack.c.b16 %v13083, %v13081
      %v13152 = vpack.c.b16 %v13086, %v13084
      %v13153 = vpack.c.b16 %v13087, %v13085
      %v13154 = vpack.c.b16 %v13090, %v13088
      %v13155 = vpack.c.b16 %v13091, %v13089
      %13220 = vmatprep.subr.bf16.mxu0 %v13093
      %13221 = vmatpush1.bf16.msra.mxu0 %v13092
      %13222 = vmatprep.subr.bf16.mxu0 %v13095
      %13223 = vmatpush1.bf16.msra.mxu0 %v13094
      %13224 = vmatprep.subr.bf16.mxu0 %v13097
      %13225 = vmatpush1.bf16.msra.mxu0 %v13096
      %13226 = vmatprep.subr.bf16.mxu0 %v13099
      %13227 = vmatpush1.bf16.msra.mxu0 %v13098
      %13228 = vmatprep.subr.bf16.mxu0 %v13101
      %13229 = vmatpush1.bf16.msra.mxu0 %v13100
      %13230 = vmatprep.subr.bf16.mxu0 %v13103
      %13231 = vmatpush1.bf16.msra.mxu0 %v13102
      %13232 = vmatprep.subr.bf16.mxu0 %v13105
      %13233 = vmatpush1.bf16.msra.mxu0 %v13104
      %13234 = vmatprep.subr.bf16.mxu0 %v13107
      %13235 = vmatpush1.bf16.msra.mxu0 %v13106
      %13236 = vmatprep.subr.bf16.mxu0 %v13109
      %13237 = vmatpush1.bf16.msra.mxu0 %v13108
      %13238 = vmatprep.subr.bf16.mxu0 %v13111
      %13239 = vmatpush1.bf16.msra.mxu0 %v13110
      %13240 = vmatprep.subr.bf16.mxu0 %v13113
      %13241 = vmatpush1.bf16.msra.mxu0 %v13112
      %13242 = vmatprep.subr.bf16.mxu0 %v13115
      %13243 = vmatpush1.bf16.msra.mxu0 %v13114
      %13244 = vmatprep.subr.bf16.mxu0 %v13117
      %13245 = vmatpush1.bf16.msra.mxu0 %v13116
      %13246 = vmatprep.subr.bf16.mxu0 %v13119
      %13247 = vmatpush1.bf16.msra.mxu0 %v13118
      %13248 = vmatprep.subr.bf16.mxu0 %v13121
      %13249 = vmatpush1.bf16.msra.mxu0 %v13120
      %13250 = vmatprep.subr.bf16.mxu0 %v13123
      %13251 = vmatpush1.bf16.msra.mxu0 %v13122
      %13252 = vmatprep.mubr.bf16.mxu0 %v12821
      %13253 = vmatmul.mubr.bf16.gmra.mrb[0].mxu0 %v12820
      %v13254 = vpop.f32.mrb[0].mxu0
      %v13255 = vadd.f32 %v12893, %v13254
      %v13256 = vpop.f32.mrb[0].mxu0
      %v13257 = vadd.f32 %v12897, %v13256
      %v13258 = vpop.f32.mrb[0].mxu0
      %v13259 = vpop.f32.mrb[0].mxu0
      %13260 = vdwg.mxu0
      %13261 = vmatprep.subr.bf16.mxu0 %v13125
      %13262 = vmatpush1.bf16.msra.mxu0 %v13124
      %13263 = vmatprep.subr.bf16.mxu0 %v13127
      %13264 = vmatpush1.bf16.msra.mxu0 %v13126
      %13265 = vmatprep.subr.bf16.mxu0 %v13129
      %13266 = vmatpush1.bf16.msra.mxu0 %v13128
      %13267 = vmatprep.subr.bf16.mxu0 %v13131
      %13268 = vmatpush1.bf16.msra.mxu0 %v13130
      %13269 = vmatprep.subr.bf16.mxu0 %v13133
      %13270 = vmatpush1.bf16.msra.mxu0 %v13132
      %13271 = vmatprep.subr.bf16.mxu0 %v13135
      %13272 = vmatpush1.bf16.msra.mxu0 %v13134
      %13273 = vmatprep.subr.bf16.mxu0 %v13137
      %13274 = vmatpush1.bf16.msra.mxu0 %v13136
      %13275 = vmatprep.subr.bf16.mxu0 %v13139
      %13276 = vmatpush1.bf16.msra.mxu0 %v13138
      %13277 = vmatprep.subr.bf16.mxu0 %v13141
      %13278 = vmatpush1.bf16.msra.mxu0 %v13140
      %13279 = vmatprep.subr.bf16.mxu0 %v13143
      %13280 = vmatpush1.bf16.msra.mxu0 %v13142
      %13281 = vmatprep.subr.bf16.mxu0 %v13145
      %13282 = vmatpush1.bf16.msra.mxu0 %v13144
      %13283 = vmatprep.subr.bf16.mxu0 %v13147
      %13284 = vmatpush1.bf16.msra.mxu0 %v13146
      %13285 = vmatprep.subr.bf16.mxu0 %v13149
      %13286 = vmatpush1.bf16.msra.mxu0 %v13148
      %13287 = vmatprep.subr.bf16.mxu0 %v13151
      %13288 = vmatpush1.bf16.msra.mxu0 %v13150
      %13289 = vmatprep.subr.bf16.mxu0 %v13153
      %13290 = vmatpush1.bf16.msra.mxu0 %v13152
      %13291 = vmatprep.subr.bf16.mxu0 %v13155
      %13292 = vmatpush1.bf16.msra.mxu0 %v13154
      %13293 = vmatprep.mubr.bf16.mxu0 %v12823
      %13294 = vmatmul.mubr.bf16.gmra.mrb[0].mxu0 %v12822
      %v13295 = vpop.f32.mrb[0].mxu0
      %v13296 = vadd.f32 %v13255, %v13295
      %v13297 = vpop.f32.mrb[0].mxu0
      %v13298 = vadd.f32 %v13257, %v13297
      %v13299 = vpop.f32.mrb[0].mxu0
      %v13300 = vpop.f32.mrb[0].mxu0
      %13301 = vdwg.mxu0
      %13302 = vst [vmem:[%s518] sm:$0xff] %v13296
      %13303 = vst [vmem:[%s518 + $0x8] sm:$0xff] %v13298
      %p13304 = scmp.lt.s32.totalorder %s27, 1
      %s13305 = scalar_select %p13304, %s27, 1
      %s13306 = smul.addr %s13305, 2
      %s13307 = smul.addr %s13306, 8
      %s13308 = scalar_lea.vmem %s16, %s13307
      // Predicated region
      $region92: #{mu_model.2} parent=83 // pred_check
        %p13309 = pneg %p386
      $region93: #{mu_model.2} parent=83 // pred_check_branch
        %13311 = sbr.rel (%p13309) target = $region95
      $region94: #{mu_model.2} parent=83 // pred_region
        _
      $region95: #{mu_model.2} parent=83 // pred_fallthru
        _
    $region84: #{mu_model.2} parent=5 // pred_fallthru
      _
    %p13312 = scmp.le.s32.totalorder 2, %s22
    // Predicated region
    $region96: #{mu_model.2} parent=5 // pred_check
      %p13313 = pneg %p13312
    $region97: #{mu_model.2} parent=5 // pred_check_branch
      %13315 = sbr.rel (%p13313) target = $region99
    $region98: #{mu_model.2} parent=5 // pred_region
      %s13316 = ssub.s32 %s22, 2
      // Predicated region
      $region100: #{mu_model.2} parent=98 // pred_check
        %p13317 = pneg %p392
      $region101: #{mu_model.2} parent=98 // pred_check_branch
        %13319 = sbr.rel (%p13317) target = $region103
      $region102: #{mu_model.2} parent=98 // pred_region
        %p13320 = scmp.lt.s32.totalorder %s28, 1
        %s13321 = scalar_select %p13320, %s28, 1
        %s13322 = smul.addr %s13321, 2
        %s13323 = smul.addr %s13322, 8
        %s13324 = scalar_lea.vmem %s16, %s13323
      $region103: #{mu_model.2} parent=98 // pred_fallthru
        _
    $region99: #{mu_model.2} parent=5 // pred_fallthru
      _
  $region6: #{mu_model.2} parent=0 // loop_footer
    %s26 = sadd.s32 1, %s22
  $region7: #{mu_model.2} parent=0 // loop_footer_branch
    %21 = sbr.rel target = $region3
  $region8: #{mu_model.2} parent=0 // loop_exit
    _

</llo_original>
